<compile_context>
chip_gen: v7x
topology: tpu7x:2x2x1
jax: 0.10.0
libtpu: 0.0.40
codegen_flags: <defaults>
</compile_context>

<pallas_src>
import functools

import jax
import jax.numpy as jnp
from jax.experimental import pallas as pl
from jax.experimental.pallas import tpu as pltpu


# ----------------------------------------------------------------------------
# small in-kernel helpers
# ----------------------------------------------------------------------------
def _layer_norm(x, g, b, eps=1e-5):
    m = jnp.mean(x, axis=-1, keepdims=True)
    v = jnp.mean((x - m) ** 2, axis=-1, keepdims=True)
    return (x - m) * jax.lax.rsqrt(v + eps) * g + b


def _elu(x):
    # clamp the exp argument so the unselected branch never produces inf
    return jnp.where(x > 0, x, jnp.exp(jnp.minimum(x, 0.0)) - 1.0)


# ----------------------------------------------------------------------------
# Fused kernel: temporal transformer + GAT x2 + decoder (one batch element / step)
# ----------------------------------------------------------------------------
def _temporal_gat_kernel(
        x_ref, adj_ref, pe_ref, hmask_ref,
        w_emb_ref, b_emb_ref, w_qkv_ref, b_qkv_ref, w_o_ref, b_o_ref,
        ln1_g_ref, ln1_b_ref, w_ff1_ref, b_ff1_ref, w_ff2_ref, b_ff2_ref,
        ln2_g_ref, ln2_b_ref,
        gat1_w_ref, asrc1_ref, adst1_ref, gat1_b_ref,
        gat2_w_ref, asrc2_ref, adst2_ref, gat2_b_ref,
        w_dec_ref, b_dec_ref,
        o_ref, *, n_heads):
    N, W, F = x_ref.shape
    H = w_emb_ref.shape[1]
    scale = 1.0 / ((H // n_heads) ** 0.5)
    neg = -1e30
    f32 = jnp.float32
    hmask = hmask_ref[...]                                      # (nh, H) 0/1 head-channel mask

    # ---- temporal transformer: embedding + positional encoding --------------
    x2 = x_ref[...].reshape(N * W, F)
    h = jnp.dot(x2, w_emb_ref[...], preferred_element_type=f32) + b_emb_ref[...]
    h3 = h.reshape(N, W, H) + pe_ref[...][None, :, :]
    h2 = h3.reshape(N * W, H)
    h_last = h3[:, W - 1, :]                                    # (N, H) last time step

    # ---- MHA: 1-layer post-norm + last-step pooling => only the last query is needed.
    k3 = (jnp.dot(h2, w_qkv_ref[1], preferred_element_type=f32) + b_qkv_ref[1]).reshape(N, W, H)
    v3 = (jnp.dot(h2, w_qkv_ref[2], preferred_element_type=f32) + b_qkv_ref[2]).reshape(N, W, H)
    q_last = (jnp.dot(h_last, w_qkv_ref[0], preferred_element_type=f32) + b_qkv_ref[0]) * scale

    # batched over all heads at once; head channels picked by the 0/1 mask so the
    # contraction stays over the full lane-dense H.
    q_h = q_last[:, None, :] * hmask[None, :, :]                # (N, nh, H)
    s = jnp.einsum("nhc,njc->nhj", q_h, k3, preferred_element_type=f32)   # (N, nh, W)
    s = s - jnp.max(s, axis=-1, keepdims=True)
    p = jnp.exp(s)
    p = p * pl.reciprocal(jnp.sum(p, axis=-1, keepdims=True), approx=True)
    o_att = jnp.einsum("nhj,njc->nhc", p, v3, preferred_element_type=f32)  # (N, nh, H)
    attn = jnp.sum(o_att * hmask[None, :, :], axis=1)           # (N, H) concat heads

    # out projection + residual, then LN1 / FFN / LN2 on the pooled rows only
    y = h_last + jnp.dot(attn, w_o_ref[...], preferred_element_type=f32) + b_o_ref[...]
    y = _layer_norm(y, ln1_g_ref[...], ln1_b_ref[...])
    ff = jnp.maximum(jnp.dot(y, w_ff1_ref[...], preferred_element_type=f32) + b_ff1_ref[...], 0.0)
    ff = jnp.dot(ff, w_ff2_ref[...], preferred_element_type=f32) + b_ff2_ref[...]
    hb = _layer_norm(y + ff, ln2_g_ref[...], ln2_b_ref[...])    # (N, H)

    # ---- GAT layer 1: n_heads heads, per-head dim H/heads, concat -> H ------
    # Self-loops in adj guarantee >= 1 unmasked entry per softmax row.
    adj_mask = adj_ref[...] > 0.0                               # adj[i, j] => edge j -> i
    hp1 = jnp.dot(hb, gat1_w_ref[...], preferred_element_type=f32)                    # (N, H)
    a_src = jnp.einsum("hc,nc->hn", asrc1_ref[...], hp1, preferred_element_type=f32)  # (nh, N)
    a_dst = jnp.einsum("hc,nc->hn", adst1_ref[...], hp1, preferred_element_type=f32)  # (nh, N)
    e = a_dst[:, :, None] + a_src[:, None, :]                   # (nh, N_dst, N_src)
    e = jnp.where(e > 0, e, 0.2 * e)                            # LeakyReLU(0.2)
    e = jnp.where(adj_mask[None, :, :], e, neg)
    e = e - jnp.max(e, axis=-1, keepdims=True)
    pg = jnp.exp(e)
    pg = pg * pl.reciprocal(jnp.sum(pg, axis=-1, keepdims=True), approx=True)
    # single flattened matmul for all heads, then masked head-reduce (concat)
    agg = jnp.dot(pg.reshape(n_heads * N, N), hp1, preferred_element_type=f32)        # (nh*N, H)
    g1 = jnp.sum(agg.reshape(n_heads, N, H) * hmask[:, None, :], axis=0)              # (N, H)
    g1 = _elu(g1 + gat1_b_ref[...])

    # ---- GAT layer 2: single head, no concat --------------------------------
    hp2 = jnp.dot(g1, gat2_w_ref[...], preferred_element_type=f32)                    # (N, H)
    a_src2 = jnp.einsum("hc,nc->hn", asrc2_ref[...], hp2, preferred_element_type=f32) # (1, N)
    a_dst2 = jnp.einsum("hc,nc->hn", adst2_ref[...], hp2, preferred_element_type=f32) # (1, N)
    e2 = a_dst2[:, :, None] + a_src2[:, None, :]                # (1, N, N)
    e2 = jnp.where(e2 > 0, e2, 0.2 * e2)
    e2 = jnp.where(adj_mask[None, :, :], e2, neg)
    e2 = e2 - jnp.max(e2, axis=-1, keepdims=True)
    pg2 = jnp.exp(e2)
    pg2 = pg2 * pl.reciprocal(jnp.sum(pg2, axis=-1, keepdims=True), approx=True)
    g2 = jnp.dot(pg2[0], hp2, preferred_element_type=f32) + gat2_b_ref[...]           # (N, H)

    # ---- decoder: one lane-dense (N, horizon*F) matmul ----------------------
    o_ref[...] = (jnp.dot(g2, w_dec_ref[...], preferred_element_type=f32)
                  + b_dec_ref[...]).astype(o_ref.dtype)


# ----------------------------------------------------------------------------
# Parameters (deterministic synthetic init) and adjacency
# ----------------------------------------------------------------------------
def make_params(key, input_size, window, horizon, hidden, n_heads):
    keys = jax.random.split(key, 32)
    ki = iter(range(32))

    def w(shape):
        fan_in = shape[0]
        return jax.random.normal(keys[next(ki)], shape, jnp.float32) / jnp.sqrt(float(fan_in))

    def b(n):
        return jnp.zeros((n,), jnp.float32)

    ff = 4 * hidden
    c1 = hidden // n_heads

    # sinusoidal positional encoding (window, hidden)
    pos = jnp.arange(window, dtype=jnp.float32)[:, None]
    div = jnp.exp(jnp.arange(0, hidden, 2, dtype=jnp.float32) * (-jnp.log(10000.0) / hidden))
    pe = jnp.zeros((window, hidden), jnp.float32)
    pe = pe.at[:, 0::2].set(jnp.sin(pos * div)).at[:, 1::2].set(jnp.cos(pos * div))

    return {
        "hidden": hidden, "n_heads": n_heads, "horizon": horizon, "input_size": input_size,
        # temporal transformer
        "w_emb": w((input_size, hidden)), "b_emb": b(hidden), "pos_enc": pe,
        "w_q": w((hidden, hidden)), "b_q": b(hidden),
        "w_k": w((hidden, hidden)), "b_k": b(hidden),
        "w_v": w((hidden, hidden)), "b_v": b(hidden),
        "w_o": w((hidden, hidden)), "b_o": b(hidden),
        "ln1_g": jnp.ones((hidden,), jnp.float32), "ln1_b": b(hidden),
        "w_ff1": w((hidden, ff)), "b_ff1": b(ff),
        "w_ff2": w((ff, hidden)), "b_ff2": b(hidden),
        "ln2_g": jnp.ones((hidden,), jnp.float32), "ln2_b": b(hidden),
        # GAT layer 1 (heads=n_heads, concat)
        "gat1_w": w((hidden, n_heads * c1)),
        "gat1_asrc": 0.1 * jax.random.normal(keys[next(ki)], (n_heads, c1), jnp.float32),
        "gat1_adst": 0.1 * jax.random.normal(keys[next(ki)], (n_heads, c1), jnp.float32),
        "gat1_b": b(n_heads * c1),
        # GAT layer 2 (heads=1, concat=False)
        "gat2_w": w((hidden, hidden)),
        "gat2_asrc": 0.1 * jax.random.normal(keys[next(ki)], (1, hidden), jnp.float32),
        "gat2_adst": 0.1 * jax.random.normal(keys[next(ki)], (1, hidden), jnp.float32),
        "gat2_b": b(hidden),
        # decoder
        "w_dec": w((hidden, input_size * horizon)), "b_dec": b(input_size * horizon),
    }


def build_adj(edge_index, num_nodes):
    """Dense adjacency mask: adj[i, j] = 1 iff edge j -> i; self loops added.

    Self loops guarantee every softmax row in the GAT kernel has at least one
    unmasked entry, so the -1e30 masking never yields an all-masked row.
    """
    src, dst = edge_index[0], edge_index[1]
    adj = jnp.zeros((num_nodes, num_nodes), jnp.float32)
    adj = adj.at[dst, src].set(1.0)
    adj = jnp.minimum(adj + jnp.eye(num_nodes, dtype=jnp.float32), 1.0)
    return adj


# ----------------------------------------------------------------------------
# Forward pass
# ----------------------------------------------------------------------------
def temporal_gat_forward(params, x, edge_index, edge_weight):
    # layout: x (B, W, N, F)
    del edge_weight  # TODO(synk): edge_dim=0 -> zero-dim edge features; weights unused.
    B, W, N, F = x.shape
    H = params["hidden"]
    nh = params["n_heads"]
    T = params["horizon"]
    c1 = H // nh
    FF = params["w_ff1"].shape[1]

    adj = build_adj(edge_index, N)

    # -------- host-side constant packing (traced once under jit) --------
    r2 = lambda a: a.reshape(1, -1)
    # 0/1 head-channel mask, shared by MHA head split and GAT head concat
    head_mask = jnp.repeat(jnp.eye(nh, dtype=jnp.float32), c1, axis=1)                # (nh, H)
    # stacked QKV weights/biases (single operand, leading-dim indexed in-kernel)
    w_qkv = jnp.stack([params["w_q"], params["w_k"], params["w_v"]], axis=0)          # (3, H, H)
    b_qkv = jnp.stack([params["b_q"], params["b_k"], params["b_v"]], axis=0).reshape(3, 1, H)
    # GAT-1 attention vectors scattered to full hidden width (head-block layout)
    eye_h = jnp.eye(nh, dtype=jnp.float32)
    asrc1 = (params["gat1_asrc"][:, None, :] * eye_h[:, :, None]).reshape(nh, H)
    adst1 = (params["gat1_adst"][:, None, :] * eye_h[:, :, None]).reshape(nh, H)

    # per-node time series layout for the transformer stage
    x_series = jnp.transpose(x, (0, 2, 1, 3))                                         # (B, N, W, F)

    const2 = lambda b: (0, 0)
    const3 = lambda b: (0, 0, 0)

    # advisory cost hint (the kernel is far cheaper than its operand byte count suggests)
    per_b_flops = (2 * N * W * F * H + 4 * N * W * H * H + 2 * N * H * H
                   + 4 * N * nh * W * H + 2 * N * H * H + 4 * N * H * FF
                   + 2 * N * H * H + 4 * nh * N * H + 2 * nh * N * N * H
                   + 2 * N * H * H + 4 * N * H + 2 * N * N * H
                   + 2 * N * H * T * F)
    per_b_trans = N * nh * W + nh * N * N + N * N + N * H
    weight_bytes = 4 * (F * H + H + 3 * H * H + 3 * H + H * H + 5 * H + 2 * H * FF + FF
                        + 2 * H * H + 2 * nh * H + 4 * H + H * T * F + T * F
                        + N * N + W * H + nh * H)
    cost = pl.CostEstimate(flops=int(B * per_b_flops),
                           transcendentals=int(B * per_b_trans),
                           bytes_accessed=int(4 * x.size + 4 * B * N * T * F + weight_bytes))

    out_flat = pl.pallas_call(
        functools.partial(_temporal_gat_kernel, n_heads=nh),
        grid=(B,),
        in_specs=[
            pl.BlockSpec((pl.Squeezed(), N, W, F), lambda b: (b, 0, 0, 0)),  # x (node series)
            pl.BlockSpec((N, N), const2),                                    # adjacency mask
            pl.BlockSpec((W, H), const2),                                    # positional encoding
            pl.BlockSpec((nh, H), const2),                                   # head channel mask
            pl.BlockSpec((F, H), const2), pl.BlockSpec((1, H), const2),      # embed
            pl.BlockSpec((3, H, H), const3), pl.BlockSpec((3, 1, H), const3),# qkv (stacked)
            pl.BlockSpec((H, H), const2), pl.BlockSpec((1, H), const2),      # out proj
            pl.BlockSpec((1, H), const2), pl.BlockSpec((1, H), const2),      # ln1
            pl.BlockSpec((H, FF), const2), pl.BlockSpec((1, FF), const2),    # ff1
            pl.BlockSpec((FF, H), const2), pl.BlockSpec((1, H), const2),     # ff2
            pl.BlockSpec((1, H), const2), pl.BlockSpec((1, H), const2),      # ln2
            pl.BlockSpec((H, H), const2),                                    # gat1 W
            pl.BlockSpec((nh, H), const2), pl.BlockSpec((nh, H), const2),    # gat1 a_src/a_dst
            pl.BlockSpec((1, H), const2),                                    # gat1 bias
            pl.BlockSpec((H, H), const2),                                    # gat2 W
            pl.BlockSpec((1, H), const2), pl.BlockSpec((1, H), const2),      # gat2 a_src/a_dst
            pl.BlockSpec((1, H), const2),                                    # gat2 bias
            pl.BlockSpec((H, T * F), const2), pl.BlockSpec((1, T * F), const2),  # decoder
        ],
        out_specs=pl.BlockSpec((pl.Squeezed(), N, T * F), lambda b: (b, 0, 0)),
        out_shape=jax.ShapeDtypeStruct((B, N, T * F), jnp.float32),
        compiler_params=pltpu.CompilerParams(
            dimension_semantics=("parallel",),
            vmem_limit_bytes=32 * 1024 * 1024),
        cost_estimate=cost,
    )(
        x_series, adj, params["pos_enc"], head_mask,
        params["w_emb"], r2(params["b_emb"]),
        w_qkv, b_qkv,
        params["w_o"], r2(params["b_o"]),
        r2(params["ln1_g"]), r2(params["ln1_b"]),
        params["w_ff1"], r2(params["b_ff1"]),
        params["w_ff2"], r2(params["b_ff2"]),
        r2(params["ln2_g"]), r2(params["ln2_b"]),
        params["gat1_w"], asrc1, adst1, r2(params["gat1_b"]),
        params["gat2_w"], params["gat2_asrc"], params["gat2_adst"], r2(params["gat2_b"]),
        params["w_dec"], r2(params["b_dec"]),
    )
    # 'b n (t f) -> b t n f' : tiny host-side reshape/transpose of a lane-dense result
    return jnp.transpose(out_flat.reshape(B, N, T, F), (0, 2, 1, 3))


# ----------------------------------------------------------------------------
# Main
# ----------------------------------------------------------------------------
if __name__ == "__main__":
    B, W, N, F = 2, 8, 16, 4        # batch, window, nodes, input_size
    HIDDEN, HEADS, HORIZON = 32, 8, 4

    key = jax.random.PRNGKey(0)
    k_x, k_p = jax.random.split(key)

    x = jax.random.normal(k_x, (B, W, N, F), jnp.float32)

    # simple bidirectional ring graph over N nodes
    src = jnp.concatenate([jnp.arange(N), (jnp.arange(N) + 1) % N])
    dst = jnp.concatenate([(jnp.arange(N) + 1) % N, jnp.arange(N)])
    edge_index = jnp.stack([src, dst]).astype(jnp.int32)                 # (2, 2N)
    edge_weight = jnp.ones((edge_index.shape[1],), jnp.float32)

    params = make_params(k_p, F, W, HORIZON, HIDDEN, HEADS)

    fwd = jax.jit(functools.partial(temporal_gat_forward, params))
    out = fwd(x, edge_index, edge_weight)
    jax.block_until_ready(out)

    assert out.shape == (B, HORIZON, N, F), out.shape
    assert jnp.all(jnp.isfinite(out))
    print("KERNEL_OK")
</pallas_src>

<mosaic_0001>
module attributes {stable_mosaic.version = 11 : i64} {
  func.func @_temporal_gat_kernel(%arg0: i32, %arg1: memref<1x16x8x4xf32, #tpu.memory_space<vmem>>, %arg2: memref<16x16xf32, #tpu.memory_space<vmem>>, %arg3: memref<8x32xf32, #tpu.memory_space<vmem>>, %arg4: memref<8x32xf32, #tpu.memory_space<vmem>>, %arg5: memref<4x32xf32, #tpu.memory_space<vmem>>, %arg6: memref<1x32xf32, #tpu.memory_space<vmem>>, %arg7: memref<3x32x32xf32, #tpu.memory_space<vmem>>, %arg8: memref<3x1x32xf32, #tpu.memory_space<vmem>>, %arg9: memref<32x32xf32, #tpu.memory_space<vmem>>, %arg10: memref<1x32xf32, #tpu.memory_space<vmem>>, %arg11: memref<1x32xf32, #tpu.memory_space<vmem>>, %arg12: memref<1x32xf32, #tpu.memory_space<vmem>>, %arg13: memref<32x128xf32, #tpu.memory_space<vmem>>, %arg14: memref<1x128xf32, #tpu.memory_space<vmem>>, %arg15: memref<128x32xf32, #tpu.memory_space<vmem>>, %arg16: memref<1x32xf32, #tpu.memory_space<vmem>>, %arg17: memref<1x32xf32, #tpu.memory_space<vmem>>, %arg18: memref<1x32xf32, #tpu.memory_space<vmem>>, %arg19: memref<32x32xf32, #tpu.memory_space<vmem>>, %arg20: memref<8x32xf32, #tpu.memory_space<vmem>>, %arg21: memref<8x32xf32, #tpu.memory_space<vmem>>, %arg22: memref<1x32xf32, #tpu.memory_space<vmem>>, %arg23: memref<32x32xf32, #tpu.memory_space<vmem>>, %arg24: memref<1x32xf32, #tpu.memory_space<vmem>>, %arg25: memref<1x32xf32, #tpu.memory_space<vmem>>, %arg26: memref<1x32xf32, #tpu.memory_space<vmem>>, %arg27: memref<32x16xf32, #tpu.memory_space<vmem>>, %arg28: memref<1x16xf32, #tpu.memory_space<vmem>>, %arg29: memref<1x16x16xf32, #tpu.memory_space<vmem>>) attributes {dimension_semantics = [#tpu.dimension_semantics<parallel>], iteration_bounds = array<i64: 2>, scalar_prefetch = 0 : i64, scratch_operands = 0 : i64, tpu.core_type = #tpu.core_type<tc>, window_params = [{transform_indices = @transform_0, window_bounds = array<i64: 1, 16, 8, 4>}, {pipeline_mode = #tpu.pipeline_mode<synchronous>, transform_indices = @transform_1, window_bounds = array<i64: 16, 16>}, {pipeline_mode = #tpu.pipeline_mode<synchronous>, transform_indices = @transform_2, window_bounds = array<i64: 8, 32>}, {pipeline_mode = #tpu.pipeline_mode<synchronous>, transform_indices = @transform_3, window_bounds = array<i64: 8, 32>}, {pipeline_mode = #tpu.pipeline_mode<synchronous>, transform_indices = @transform_4, window_bounds = array<i64: 4, 32>}, {pipeline_mode = #tpu.pipeline_mode<synchronous>, transform_indices = @transform_5, window_bounds = array<i64: 1, 32>}, {pipeline_mode = #tpu.pipeline_mode<synchronous>, transform_indices = @transform_6, window_bounds = array<i64: 3, 32, 32>}, {pipeline_mode = #tpu.pipeline_mode<synchronous>, transform_indices = @transform_7, window_bounds = array<i64: 3, 1, 32>}, {pipeline_mode = #tpu.pipeline_mode<synchronous>, transform_indices = @transform_8, window_bounds = array<i64: 32, 32>}, {pipeline_mode = #tpu.pipeline_mode<synchronous>, transform_indices = @transform_9, window_bounds = array<i64: 1, 32>}, {pipeline_mode = #tpu.pipeline_mode<synchronous>, transform_indices = @transform_10, window_bounds = array<i64: 1, 32>}, {pipeline_mode = #tpu.pipeline_mode<synchronous>, transform_indices = @transform_11, window_bounds = array<i64: 1, 32>}, {pipeline_mode = #tpu.pipeline_mode<synchronous>, transform_indices = @transform_12, window_bounds = array<i64: 32, 128>}, {pipeline_mode = #tpu.pipeline_mode<synchronous>, transform_indices = @transform_13, window_bounds = array<i64: 1, 128>}, {pipeline_mode = #tpu.pipeline_mode<synchronous>, transform_indices = @transform_14, window_bounds = array<i64: 128, 32>}, {pipeline_mode = #tpu.pipeline_mode<synchronous>, transform_indices = @transform_15, window_bounds = array<i64: 1, 32>}, {pipeline_mode = #tpu.pipeline_mode<synchronous>, transform_indices = @transform_16, window_bounds = array<i64: 1, 32>}, {pipeline_mode = #tpu.pipeline_mode<synchronous>, transform_indices = @transform_17, window_bounds = array<i64: 1, 32>}, {pipeline_mode = #tpu.pipeline_mode<synchronous>, transform_indices = @transform_18, window_bounds = array<i64: 32, 32>}, {pipeline_mode = #tpu.pipeline_mode<synchronous>, transform_indices = @transform_19, window_bounds = array<i64: 8, 32>}, {pipeline_mode = #tpu.pipeline_mode<synchronous>, transform_indices = @transform_20, window_bounds = array<i64: 8, 32>}, {pipeline_mode = #tpu.pipeline_mode<synchronous>, transform_indices = @transform_21, window_bounds = array<i64: 1, 32>}, {pipeline_mode = #tpu.pipeline_mode<synchronous>, transform_indices = @transform_22, window_bounds = array<i64: 32, 32>}, {pipeline_mode = #tpu.pipeline_mode<synchronous>, transform_indices = @transform_23, window_bounds = array<i64: 1, 32>}, {pipeline_mode = #tpu.pipeline_mode<synchronous>, transform_indices = @transform_24, window_bounds = array<i64: 1, 32>}, {pipeline_mode = #tpu.pipeline_mode<synchronous>, transform_indices = @transform_25, window_bounds = array<i64: 1, 32>}, {pipeline_mode = #tpu.pipeline_mode<synchronous>, transform_indices = @transform_26, window_bounds = array<i64: 32, 16>}, {pipeline_mode = #tpu.pipeline_mode<synchronous>, transform_indices = @transform_27, window_bounds = array<i64: 1, 16>}, {transform_indices = @transform_28, window_bounds = array<i64: 1, 16, 16>}]} {
    %c0 = arith.constant 0 : index
    %c0_0 = arith.constant 0 : index
    %0 = vector.load %arg4[%c0, %c0_0] : memref<8x32xf32, #tpu.memory_space<vmem>>, vector<8x32xf32>
    %c0_1 = arith.constant 0 : index
    %c0_2 = arith.constant 0 : index
    %c0_3 = arith.constant 0 : index
    %c0_4 = arith.constant 0 : index
    %1 = vector.load %arg1[%c0_1, %c0_2, %c0_3, %c0_4] : memref<1x16x8x4xf32, #tpu.memory_space<vmem>>, vector<1x16x8x4xf32>
    %2 = vector.shape_cast %1 : vector<1x16x8x4xf32> to vector<16x8x4xf32>
    %3 = vector.shape_cast %2 : vector<16x8x4xf32> to vector<128x4xf32>
    %c0_5 = arith.constant 0 : index
    %c0_6 = arith.constant 0 : index
    %4 = vector.load %arg5[%c0_5, %c0_6] : memref<4x32xf32, #tpu.memory_space<vmem>>, vector<4x32xf32>
    %cst = arith.constant dense<0.000000e+00> : vector<128x32xf32>
    %5 = tpu.matmul %3, %4, %cst {dimension_numbers = #tpu.dot_dimension_numbers<[1], [0], [0], [1], [0, 0, 1, 1], [], []>} : vector<128x4xf32>, vector<4x32xf32>, vector<128x32xf32> -> vector<128x32xf32>
    %c0_7 = arith.constant 0 : index
    %c0_8 = arith.constant 0 : index
    %6 = vector.load %arg6[%c0_7, %c0_8] : memref<1x32xf32, #tpu.memory_space<vmem>>, vector<1x32xf32>
    %7 = vector.broadcast %6 : vector<1x32xf32> to vector<128x32xf32>
    %8 = arith.addf %5, %7 : vector<128x32xf32>
    %9 = vector.shape_cast %8 : vector<128x32xf32> to vector<16x8x32xf32>
    %c0_9 = arith.constant 0 : index
    %c0_10 = arith.constant 0 : index
    %10 = vector.load %arg3[%c0_9, %c0_10] : memref<8x32xf32, #tpu.memory_space<vmem>>, vector<8x32xf32>
    %11 = vector.shape_cast %10 : vector<8x32xf32> to vector<1x8x32xf32>
    %12 = vector.broadcast %11 : vector<1x8x32xf32> to vector<16x8x32xf32>
    %13 = arith.addf %9, %12 : vector<16x8x32xf32>
    %14 = vector.shape_cast %13 : vector<16x8x32xf32> to vector<128x32xf32>
    %15 = vector.extract_strided_slice %13 {offsets = [0, 7, 0], sizes = [16, 1, 32], strides = [1, 1, 1]} : vector<16x8x32xf32> to vector<16x1x32xf32>
    %16 = vector.shape_cast %15 : vector<16x1x32xf32> to vector<16x32xf32>
    %c1 = arith.constant 1 : index
    %c0_11 = arith.constant 0 : index
    %c0_12 = arith.constant 0 : index
    %17 = vector.load %arg7[%c1, %c0_11, %c0_12] : memref<3x32x32xf32, #tpu.memory_space<vmem>>, vector<1x32x32xf32>
    %18 = vector.shape_cast %17 : vector<1x32x32xf32> to vector<32x32xf32>
    %cst_13 = arith.constant dense<0.000000e+00> : vector<128x32xf32>
    %19 = tpu.matmul %14, %18, %cst_13 {dimension_numbers = #tpu.dot_dimension_numbers<[1], [0], [0], [1], [0, 0, 1, 1], [], []>} : vector<128x32xf32>, vector<32x32xf32>, vector<128x32xf32> -> vector<128x32xf32>
    %c1_14 = arith.constant 1 : index
    %c0_15 = arith.constant 0 : index
    %c0_16 = arith.constant 0 : index
    %20 = vector.load %arg8[%c1_14, %c0_15, %c0_16] : memref<3x1x32xf32, #tpu.memory_space<vmem>>, vector<1x1x32xf32>
    %21 = vector.shape_cast %20 : vector<1x1x32xf32> to vector<1x32xf32>
    %22 = vector.broadcast %21 : vector<1x32xf32> to vector<128x32xf32>
    %23 = arith.addf %19, %22 : vector<128x32xf32>
    %24 = vector.shape_cast %23 : vector<128x32xf32> to vector<16x8x32xf32>
    %c2 = arith.constant 2 : index
    %c0_17 = arith.constant 0 : index
    %c0_18 = arith.constant 0 : index
    %25 = vector.load %arg7[%c2, %c0_17, %c0_18] : memref<3x32x32xf32, #tpu.memory_space<vmem>>, vector<1x32x32xf32>
    %26 = vector.shape_cast %25 : vector<1x32x32xf32> to vector<32x32xf32>
    %cst_19 = arith.constant dense<0.000000e+00> : vector<128x32xf32>
    %27 = tpu.matmul %14, %26, %cst_19 {dimension_numbers = #tpu.dot_dimension_numbers<[1], [0], [0], [1], [0, 0, 1, 1], [], []>} : vector<128x32xf32>, vector<32x32xf32>, vector<128x32xf32> -> vector<128x32xf32>
    %c2_20 = arith.constant 2 : index
    %c0_21 = arith.constant 0 : index
    %c0_22 = arith.constant 0 : index
    %28 = vector.load %arg8[%c2_20, %c0_21, %c0_22] : memref<3x1x32xf32, #tpu.memory_space<vmem>>, vector<1x1x32xf32>
    %29 = vector.shape_cast %28 : vector<1x1x32xf32> to vector<1x32xf32>
    %30 = vector.broadcast %29 : vector<1x32xf32> to vector<128x32xf32>
    %31 = arith.addf %27, %30 : vector<128x32xf32>
    %32 = vector.shape_cast %31 : vector<128x32xf32> to vector<16x8x32xf32>
    %c0_23 = arith.constant 0 : index
    %c0_24 = arith.constant 0 : index
    %c0_25 = arith.constant 0 : index
    %33 = vector.load %arg7[%c0_23, %c0_24, %c0_25] : memref<3x32x32xf32, #tpu.memory_space<vmem>>, vector<1x32x32xf32>
    %34 = vector.shape_cast %33 : vector<1x32x32xf32> to vector<32x32xf32>
    %cst_26 = arith.constant dense<0.000000e+00> : vector<16x32xf32>
    %35 = tpu.matmul %16, %34, %cst_26 {dimension_numbers = #tpu.dot_dimension_numbers<[1], [0], [0], [1], [0, 0, 1, 1], [], []>} : vector<16x32xf32>, vector<32x32xf32>, vector<16x32xf32> -> vector<16x32xf32>
    %c0_27 = arith.constant 0 : index
    %c0_28 = arith.constant 0 : index
    %c0_29 = arith.constant 0 : index
    %36 = vector.load %arg8[%c0_27, %c0_28, %c0_29] : memref<3x1x32xf32, #tpu.memory_space<vmem>>, vector<1x1x32xf32>
    %37 = vector.shape_cast %36 : vector<1x1x32xf32> to vector<1x32xf32>
    %38 = vector.broadcast %37 : vector<1x32xf32> to vector<16x32xf32>
    %39 = arith.addf %35, %38 : vector<16x32xf32>
    %cst_30 = arith.constant 5.000000e-01 : f32
    %40 = vector.broadcast %cst_30 : f32 to vector<16x32xf32>
    %41 = arith.mulf %39, %40 : vector<16x32xf32>
    %42 = vector.shape_cast %41 : vector<16x32xf32> to vector<16x1x32xf32>
    %43 = vector.shape_cast %0 : vector<8x32xf32> to vector<1x8x32xf32>
    %44 = vector.broadcast %42 : vector<16x1x32xf32> to vector<16x8x32xf32>
    %45 = vector.broadcast %43 : vector<1x8x32xf32> to vector<16x8x32xf32>
    %46 = arith.mulf %44, %45 : vector<16x8x32xf32>
    "tpu.trace_start"() <{level = 10 : i32, message = "nhc,njc->nhj"}> : () -> ()
    %cst_31 = arith.constant dense<0.000000e+00> : vector<16x8x8xf32>
    %47 = tpu.matmul %46, %24, %cst_31 {dimension_numbers = #tpu.dot_dimension_numbers<[2], [2], [1], [1], [0, 0, 0, 1, 1, 1], [0], [0]>} : vector<16x8x32xf32>, vector<16x8x32xf32>, vector<16x8x8xf32> -> vector<16x8x8xf32>
    "tpu.trace_stop"() : () -> ()
    %cst_32 = arith.constant dense<0xFF800000> : vector<16x8xf32>
    %48 = vector.multi_reduction <maximumf>, %47, %cst_32 [2] : vector<16x8x8xf32> to vector<16x8xf32>
    %49 = vector.shape_cast %48 : vector<16x8xf32> to vector<16x8x1xf32>
    %50 = vector.broadcast %49 : vector<16x8x1xf32> to vector<16x8x8xf32>
    %51 = arith.subf %47, %50 : vector<16x8x8xf32>
    %52 = math.exp %51 : vector<16x8x8xf32>
    %cst_33 = arith.constant dense<0.000000e+00> : vector<16x8xf32>
    %53 = vector.multi_reduction <add>, %52, %cst_33 [2] : vector<16x8x8xf32> to vector<16x8xf32>
    %54 = vector.shape_cast %53 : vector<16x8xf32> to vector<16x8x1xf32>
    %55 = tpu.reciprocal %54 {approx = true} : vector<16x8x1xf32> -> vector<16x8x1xf32>
    %56 = vector.broadcast %55 : vector<16x8x1xf32> to vector<16x8x8xf32>
    %57 = arith.mulf %52, %56 : vector<16x8x8xf32>
    "tpu.trace_start"() <{level = 10 : i32, message = "nhj,njc->nhc"}> : () -> ()
    %cst_34 = arith.constant dense<0.000000e+00> : vector<16x8x32xf32>
    %58 = tpu.matmul %57, %32, %cst_34 {dimension_numbers = #tpu.dot_dimension_numbers<[2], [1], [1], [2], [0, 0, 0, 1, 1, 2], [0], [0]>} : vector<16x8x8xf32>, vector<16x8x32xf32>, vector<16x8x32xf32> -> vector<16x8x32xf32>
    "tpu.trace_stop"() : () -> ()
    %59 = vector.shape_cast %0 : vector<8x32xf32> to vector<1x8x32xf32>
    %60 = vector.broadcast %59 : vector<1x8x32xf32> to vector<16x8x32xf32>
    %61 = arith.mulf %58, %60 : vector<16x8x32xf32>
    %cst_35 = arith.constant dense<0.000000e+00> : vector<16x32xf32>
    %62 = vector.multi_reduction <add>, %61, %cst_35 [1] : vector<16x8x32xf32> to vector<16x32xf32>
    %c0_36 = arith.constant 0 : index
    %c0_37 = arith.constant 0 : index
    %63 = vector.load %arg9[%c0_36, %c0_37] : memref<32x32xf32, #tpu.memory_space<vmem>>, vector<32x32xf32>
    %cst_38 = arith.constant dense<0.000000e+00> : vector<16x32xf32>
    %64 = tpu.matmul %62, %63, %cst_38 {dimension_numbers = #tpu.dot_dimension_numbers<[1], [0], [0], [1], [0, 0, 1, 1], [], []>} : vector<16x32xf32>, vector<32x32xf32>, vector<16x32xf32> -> vector<16x32xf32>
    %65 = arith.addf %16, %64 : vector<16x32xf32>
    %c0_39 = arith.constant 0 : index
    %c0_40 = arith.constant 0 : index
    %66 = vector.load %arg10[%c0_39, %c0_40] : memref<1x32xf32, #tpu.memory_space<vmem>>, vector<1x32xf32>
    %67 = vector.broadcast %66 : vector<1x32xf32> to vector<16x32xf32>
    %68 = arith.addf %65, %67 : vector<16x32xf32>
    %c0_41 = arith.constant 0 : index
    %c0_42 = arith.constant 0 : index
    %69 = vector.load %arg11[%c0_41, %c0_42] : memref<1x32xf32, #tpu.memory_space<vmem>>, vector<1x32xf32>
    %c0_43 = arith.constant 0 : index
    %c0_44 = arith.constant 0 : index
    %70 = vector.load %arg12[%c0_43, %c0_44] : memref<1x32xf32, #tpu.memory_space<vmem>>, vector<1x32xf32>
    %cst_45 = arith.constant dense<0.000000e+00> : vector<16xf32>
    %71 = vector.multi_reduction <add>, %68, %cst_45 [1] : vector<16x32xf32> to vector<16xf32>
    %72 = vector.shape_cast %71 : vector<16xf32> to vector<16x1xf32>
    %cst_46 = arith.constant 3.200000e+01 : f32
    %73 = vector.broadcast %cst_46 : f32 to vector<16x1xf32>
    %74 = arith.divf %72, %73 : vector<16x1xf32>
    %75 = vector.broadcast %74 : vector<16x1xf32> to vector<16x32xf32>
    %76 = arith.subf %68, %75 : vector<16x32xf32>
    %77 = arith.mulf %76, %76 : vector<16x32xf32>
    %cst_47 = arith.constant dense<0.000000e+00> : vector<16xf32>
    %78 = vector.multi_reduction <add>, %77, %cst_47 [1] : vector<16x32xf32> to vector<16xf32>
    %79 = vector.shape_cast %78 : vector<16xf32> to vector<16x1xf32>
    %cst_48 = arith.constant 3.200000e+01 : f32
    %80 = vector.broadcast %cst_48 : f32 to vector<16x1xf32>
    %81 = arith.divf %79, %80 : vector<16x1xf32>
    %82 = vector.broadcast %74 : vector<16x1xf32> to vector<16x32xf32>
    %83 = arith.subf %68, %82 : vector<16x32xf32>
    %cst_49 = arith.constant 9.99999974E-6 : f32
    %84 = vector.broadcast %cst_49 : f32 to vector<16x1xf32>
    %85 = arith.addf %81, %84 : vector<16x1xf32>
    %86 = math.rsqrt %85 : vector<16x1xf32>
    %87 = vector.broadcast %86 : vector<16x1xf32> to vector<16x32xf32>
    %88 = arith.mulf %83, %87 : vector<16x32xf32>
    %89 = vector.broadcast %69 : vector<1x32xf32> to vector<16x32xf32>
    %90 = arith.mulf %88, %89 : vector<16x32xf32>
    %91 = vector.broadcast %70 : vector<1x32xf32> to vector<16x32xf32>
    %92 = arith.addf %90, %91 : vector<16x32xf32>
    %c0_50 = arith.constant 0 : index
    %c0_51 = arith.constant 0 : index
    %93 = vector.load %arg13[%c0_50, %c0_51] : memref<32x128xf32, #tpu.memory_space<vmem>>, vector<32x128xf32>
    %cst_52 = arith.constant dense<0.000000e+00> : vector<16x128xf32>
    %94 = tpu.matmul %92, %93, %cst_52 {dimension_numbers = #tpu.dot_dimension_numbers<[1], [0], [0], [1], [0, 0, 1, 1], [], []>} : vector<16x32xf32>, vector<32x128xf32>, vector<16x128xf32> -> vector<16x128xf32>
    %c0_53 = arith.constant 0 : index
    %c0_54 = arith.constant 0 : index
    %95 = vector.load %arg14[%c0_53, %c0_54] : memref<1x128xf32, #tpu.memory_space<vmem>>, vector<1x128xf32>
    %96 = vector.broadcast %95 : vector<1x128xf32> to vector<16x128xf32>
    %97 = arith.addf %94, %96 : vector<16x128xf32>
    %cst_55 = arith.constant 0.000000e+00 : f32
    %98 = vector.broadcast %cst_55 : f32 to vector<16x128xf32>
    %99 = arith.maximumf %97, %98 : vector<16x128xf32>
    %c0_56 = arith.constant 0 : index
    %c0_57 = arith.constant 0 : index
    %100 = vector.load %arg15[%c0_56, %c0_57] : memref<128x32xf32, #tpu.memory_space<vmem>>, vector<128x32xf32>
    %cst_58 = arith.constant dense<0.000000e+00> : vector<16x32xf32>
    %101 = tpu.matmul %99, %100, %cst_58 {dimension_numbers = #tpu.dot_dimension_numbers<[1], [0], [0], [1], [0, 0, 1, 1], [], []>} : vector<16x128xf32>, vector<128x32xf32>, vector<16x32xf32> -> vector<16x32xf32>
    %c0_59 = arith.constant 0 : index
    %c0_60 = arith.constant 0 : index
    %102 = vector.load %arg16[%c0_59, %c0_60] : memref<1x32xf32, #tpu.memory_space<vmem>>, vector<1x32xf32>
    %103 = vector.broadcast %102 : vector<1x32xf32> to vector<16x32xf32>
    %104 = arith.addf %101, %103 : vector<16x32xf32>
    %105 = arith.addf %92, %104 : vector<16x32xf32>
    %c0_61 = arith.constant 0 : index
    %c0_62 = arith.constant 0 : index
    %106 = vector.load %arg17[%c0_61, %c0_62] : memref<1x32xf32, #tpu.memory_space<vmem>>, vector<1x32xf32>
    %c0_63 = arith.constant 0 : index
    %c0_64 = arith.constant 0 : index
    %107 = vector.load %arg18[%c0_63, %c0_64] : memref<1x32xf32, #tpu.memory_space<vmem>>, vector<1x32xf32>
    %cst_65 = arith.constant dense<0.000000e+00> : vector<16xf32>
    %108 = vector.multi_reduction <add>, %105, %cst_65 [1] : vector<16x32xf32> to vector<16xf32>
    %109 = vector.shape_cast %108 : vector<16xf32> to vector<16x1xf32>
    %cst_66 = arith.constant 3.200000e+01 : f32
    %110 = vector.broadcast %cst_66 : f32 to vector<16x1xf32>
    %111 = arith.divf %109, %110 : vector<16x1xf32>
    %112 = vector.broadcast %111 : vector<16x1xf32> to vector<16x32xf32>
    %113 = arith.subf %105, %112 : vector<16x32xf32>
    %114 = arith.mulf %113, %113 : vector<16x32xf32>
    %cst_67 = arith.constant dense<0.000000e+00> : vector<16xf32>
    %115 = vector.multi_reduction <add>, %114, %cst_67 [1] : vector<16x32xf32> to vector<16xf32>
    %116 = vector.shape_cast %115 : vector<16xf32> to vector<16x1xf32>
    %cst_68 = arith.constant 3.200000e+01 : f32
    %117 = vector.broadcast %cst_68 : f32 to vector<16x1xf32>
    %118 = arith.divf %116, %117 : vector<16x1xf32>
    %119 = vector.broadcast %111 : vector<16x1xf32> to vector<16x32xf32>
    %120 = arith.subf %105, %119 : vector<16x32xf32>
    %cst_69 = arith.constant 9.99999974E-6 : f32
    %121 = vector.broadcast %cst_69 : f32 to vector<16x1xf32>
    %122 = arith.addf %118, %121 : vector<16x1xf32>
    %123 = math.rsqrt %122 : vector<16x1xf32>
    %124 = vector.broadcast %123 : vector<16x1xf32> to vector<16x32xf32>
    %125 = arith.mulf %120, %124 : vector<16x32xf32>
    %126 = vector.broadcast %106 : vector<1x32xf32> to vector<16x32xf32>
    %127 = arith.mulf %125, %126 : vector<16x32xf32>
    %128 = vector.broadcast %107 : vector<1x32xf32> to vector<16x32xf32>
    %129 = arith.addf %127, %128 : vector<16x32xf32>
    %c0_70 = arith.constant 0 : index
    %c0_71 = arith.constant 0 : index
    %130 = vector.load %arg2[%c0_70, %c0_71] : memref<16x16xf32, #tpu.memory_space<vmem>>, vector<16x16xf32>
    %cst_72 = arith.constant 0.000000e+00 : f32
    %131 = vector.broadcast %cst_72 : f32 to vector<16x16xf32>
    %132 = arith.cmpf ogt, %130, %131 : vector<16x16xf32>
    %c0_73 = arith.constant 0 : index
    %c0_74 = arith.constant 0 : index
    %133 = vector.load %arg19[%c0_73, %c0_74] : memref<32x32xf32, #tpu.memory_space<vmem>>, vector<32x32xf32>
    %cst_75 = arith.constant dense<0.000000e+00> : vector<16x32xf32>
    %134 = tpu.matmul %129, %133, %cst_75 {dimension_numbers = #tpu.dot_dimension_numbers<[1], [0], [0], [1], [0, 0, 1, 1], [], []>} : vector<16x32xf32>, vector<32x32xf32>, vector<16x32xf32> -> vector<16x32xf32>
    %c0_76 = arith.constant 0 : index
    %c0_77 = arith.constant 0 : index
    %135 = vector.load %arg20[%c0_76, %c0_77] : memref<8x32xf32, #tpu.memory_space<vmem>>, vector<8x32xf32>
    "tpu.trace_start"() <{level = 10 : i32, message = "hc,nc->hn"}> : () -> ()
    %cst_78 = arith.constant dense<0.000000e+00> : vector<8x16xf32>
    %136 = tpu.matmul %135, %134, %cst_78 {dimension_numbers = #tpu.dot_dimension_numbers<[1], [1], [0], [0], [0, 0, 1, 0], [], []>} : vector<8x32xf32>, vector<16x32xf32>, vector<8x16xf32> -> vector<8x16xf32>
    "tpu.trace_stop"() : () -> ()
    %c0_79 = arith.constant 0 : index
    %c0_80 = arith.constant 0 : index
    %137 = vector.load %arg21[%c0_79, %c0_80] : memref<8x32xf32, #tpu.memory_space<vmem>>, vector<8x32xf32>
    "tpu.trace_start"() <{level = 10 : i32, message = "hc,nc->hn"}> : () -> ()
    %cst_81 = arith.constant dense<0.000000e+00> : vector<8x16xf32>
    %138 = tpu.matmul %137, %134, %cst_81 {dimension_numbers = #tpu.dot_dimension_numbers<[1], [1], [0], [0], [0, 0, 1, 0], [], []>} : vector<8x32xf32>, vector<16x32xf32>, vector<8x16xf32> -> vector<8x16xf32>
    "tpu.trace_stop"() : () -> ()
    %139 = vector.shape_cast %138 : vector<8x16xf32> to vector<8x16x1xf32>
    %140 = vector.shape_cast %136 : vector<8x16xf32> to vector<8x1x16xf32>
    %141 = vector.broadcast %139 : vector<8x16x1xf32> to vector<8x16x16xf32>
    %142 = vector.broadcast %140 : vector<8x1x16xf32> to vector<8x16x16xf32>
    %143 = arith.addf %141, %142 : vector<8x16x16xf32>
    %cst_82 = arith.constant 0.000000e+00 : f32
    %144 = vector.broadcast %cst_82 : f32 to vector<8x16x16xf32>
    %145 = arith.cmpf ogt, %143, %144 : vector<8x16x16xf32>
    %cst_83 = arith.constant 2.000000e-01 : f32
    %146 = vector.broadcast %cst_83 : f32 to vector<8x16x16xf32>
    %147 = arith.mulf %146, %143 : vector<8x16x16xf32>
    %148 = arith.select %145, %143, %147 : vector<8x16x16xi1>, vector<8x16x16xf32>
    %149 = vector.shape_cast %132 : vector<16x16xi1> to vector<1x16x16xi1>
    %cst_84 = arith.constant -1.000000e+30 : f32
    %150 = vector.shape_cast %149 : vector<1x16x16xi1> to vector<1x16x16xi1>
    %151 = vector.broadcast %150 : vector<1x16x16xi1> to vector<8x16x16xi1>
    %152 = vector.broadcast %cst_84 : f32 to vector<8x16x16xf32>
    %153 = arith.select %151, %148, %152 : vector<8x16x16xi1>, vector<8x16x16xf32>
    %cst_85 = arith.constant dense<0xFF800000> : vector<8x16xf32>
    %154 = vector.multi_reduction <maximumf>, %153, %cst_85 [2] : vector<8x16x16xf32> to vector<8x16xf32>
    %155 = vector.shape_cast %154 : vector<8x16xf32> to vector<8x16x1xf32>
    %156 = vector.broadcast %155 : vector<8x16x1xf32> to vector<8x16x16xf32>
    %157 = arith.subf %153, %156 : vector<8x16x16xf32>
    %158 = math.exp %157 : vector<8x16x16xf32>
    %cst_86 = arith.constant dense<0.000000e+00> : vector<8x16xf32>
    %159 = vector.multi_reduction <add>, %158, %cst_86 [2] : vector<8x16x16xf32> to vector<8x16xf32>
    %160 = vector.shape_cast %159 : vector<8x16xf32> to vector<8x16x1xf32>
    %161 = tpu.reciprocal %160 {approx = true} : vector<8x16x1xf32> -> vector<8x16x1xf32>
    %162 = vector.broadcast %161 : vector<8x16x1xf32> to vector<8x16x16xf32>
    %163 = arith.mulf %158, %162 : vector<8x16x16xf32>
    %164 = vector.shape_cast %163 : vector<8x16x16xf32> to vector<128x16xf32>
    %cst_87 = arith.constant dense<0.000000e+00> : vector<128x32xf32>
    %165 = tpu.matmul %164, %134, %cst_87 {dimension_numbers = #tpu.dot_dimension_numbers<[1], [0], [0], [1], [0, 0, 1, 1], [], []>} : vector<128x16xf32>, vector<16x32xf32>, vector<128x32xf32> -> vector<128x32xf32>
    %166 = vector.shape_cast %165 : vector<128x32xf32> to vector<8x16x32xf32>
    %167 = vector.shape_cast %0 : vector<8x32xf32> to vector<8x1x32xf32>
    %168 = vector.broadcast %167 : vector<8x1x32xf32> to vector<8x16x32xf32>
    %169 = arith.mulf %166, %168 : vector<8x16x32xf32>
    %cst_88 = arith.constant dense<0.000000e+00> : vector<16x32xf32>
    %170 = vector.multi_reduction <add>, %169, %cst_88 [0] : vector<8x16x32xf32> to vector<16x32xf32>
    %c0_89 = arith.constant 0 : index
    %c0_90 = arith.constant 0 : index
    %171 = vector.load %arg22[%c0_89, %c0_90] : memref<1x32xf32, #tpu.memory_space<vmem>>, vector<1x32xf32>
    %172 = vector.broadcast %171 : vector<1x32xf32> to vector<16x32xf32>
    %173 = arith.addf %170, %172 : vector<16x32xf32>
    %cst_91 = arith.constant 0.000000e+00 : f32
    %174 = vector.broadcast %cst_91 : f32 to vector<16x32xf32>
    %175 = arith.cmpf ogt, %173, %174 : vector<16x32xf32>
    %cst_92 = arith.constant 0.000000e+00 : f32
    %176 = vector.broadcast %cst_92 : f32 to vector<16x32xf32>
    %177 = arith.minimumf %173, %176 : vector<16x32xf32>
    %178 = math.exp %177 : vector<16x32xf32>
    %cst_93 = arith.constant 1.000000e+00 : f32
    %179 = vector.broadcast %cst_93 : f32 to vector<16x32xf32>
    %180 = arith.subf %178, %179 : vector<16x32xf32>
    %181 = arith.select %175, %173, %180 : vector<16x32xi1>, vector<16x32xf32>
    %c0_94 = arith.constant 0 : index
    %c0_95 = arith.constant 0 : index
    %182 = vector.load %arg23[%c0_94, %c0_95] : memref<32x32xf32, #tpu.memory_space<vmem>>, vector<32x32xf32>
    %cst_96 = arith.constant dense<0.000000e+00> : vector<16x32xf32>
    %183 = tpu.matmul %181, %182, %cst_96 {dimension_numbers = #tpu.dot_dimension_numbers<[1], [0], [0], [1], [0, 0, 1, 1], [], []>} : vector<16x32xf32>, vector<32x32xf32>, vector<16x32xf32> -> vector<16x32xf32>
    %c0_97 = arith.constant 0 : index
    %c0_98 = arith.constant 0 : index
    %184 = vector.load %arg24[%c0_97, %c0_98] : memref<1x32xf32, #tpu.memory_space<vmem>>, vector<1x32xf32>
    "tpu.trace_start"() <{level = 10 : i32, message = "hc,nc->hn"}> : () -> ()
    %cst_99 = arith.constant dense<0.000000e+00> : vector<1x16xf32>
    %185 = tpu.matmul %184, %183, %cst_99 {dimension_numbers = #tpu.dot_dimension_numbers<[1], [1], [0], [0], [0, 0, 1, 0], [], []>} : vector<1x32xf32>, vector<16x32xf32>, vector<1x16xf32> -> vector<1x16xf32>
    "tpu.trace_stop"() : () -> ()
    %c0_100 = arith.constant 0 : index
    %c0_101 = arith.constant 0 : index
    %186 = vector.load %arg25[%c0_100, %c0_101] : memref<1x32xf32, #tpu.memory_space<vmem>>, vector<1x32xf32>
    "tpu.trace_start"() <{level = 10 : i32, message = "hc,nc->hn"}> : () -> ()
    %cst_102 = arith.constant dense<0.000000e+00> : vector<1x16xf32>
    %187 = tpu.matmul %186, %183, %cst_102 {dimension_numbers = #tpu.dot_dimension_numbers<[1], [1], [0], [0], [0, 0, 1, 0], [], []>} : vector<1x32xf32>, vector<16x32xf32>, vector<1x16xf32> -> vector<1x16xf32>
    "tpu.trace_stop"() : () -> ()
    %188 = vector.shape_cast %187 : vector<1x16xf32> to vector<1x16x1xf32>
    %189 = vector.shape_cast %185 : vector<1x16xf32> to vector<1x1x16xf32>
    %190 = vector.broadcast %188 : vector<1x16x1xf32> to vector<1x16x16xf32>
    %191 = vector.broadcast %189 : vector<1x1x16xf32> to vector<1x16x16xf32>
    %192 = arith.addf %190, %191 : vector<1x16x16xf32>
    %cst_103 = arith.constant 0.000000e+00 : f32
    %193 = vector.broadcast %cst_103 : f32 to vector<1x16x16xf32>
    %194 = arith.cmpf ogt, %192, %193 : vector<1x16x16xf32>
    %cst_104 = arith.constant 2.000000e-01 : f32
    %195 = vector.broadcast %cst_104 : f32 to vector<1x16x16xf32>
    %196 = arith.mulf %195, %192 : vector<1x16x16xf32>
    %197 = arith.select %194, %192, %196 : vector<1x16x16xi1>, vector<1x16x16xf32>
    %198 = vector.shape_cast %132 : vector<16x16xi1> to vector<1x16x16xi1>
    %cst_105 = arith.constant -1.000000e+30 : f32
    %199 = vector.broadcast %cst_105 : f32 to vector<1x16x16xf32>
    %200 = arith.select %198, %197, %199 : vector<1x16x16xi1>, vector<1x16x16xf32>
    %cst_106 = arith.constant dense<0xFF800000> : vector<1x16xf32>
    %201 = vector.multi_reduction <maximumf>, %200, %cst_106 [2] : vector<1x16x16xf32> to vector<1x16xf32>
    %202 = vector.shape_cast %201 : vector<1x16xf32> to vector<1x16x1xf32>
    %203 = vector.broadcast %202 : vector<1x16x1xf32> to vector<1x16x16xf32>
    %204 = arith.subf %200, %203 : vector<1x16x16xf32>
    %205 = math.exp %204 : vector<1x16x16xf32>
    %cst_107 = arith.constant dense<0.000000e+00> : vector<1x16xf32>
    %206 = vector.multi_reduction <add>, %205, %cst_107 [2] : vector<1x16x16xf32> to vector<1x16xf32>
    %207 = vector.shape_cast %206 : vector<1x16xf32> to vector<1x16x1xf32>
    %208 = tpu.reciprocal %207 {approx = true} : vector<1x16x1xf32> -> vector<1x16x1xf32>
    %209 = vector.broadcast %208 : vector<1x16x1xf32> to vector<1x16x16xf32>
    %210 = arith.mulf %205, %209 : vector<1x16x16xf32>
    %211 = vector.shape_cast %210 : vector<1x16x16xf32> to vector<16x16xf32>
    %cst_108 = arith.constant dense<0.000000e+00> : vector<16x32xf32>
    %212 = tpu.matmul %211, %183, %cst_108 {dimension_numbers = #tpu.dot_dimension_numbers<[1], [0], [0], [1], [0, 0, 1, 1], [], []>} : vector<16x16xf32>, vector<16x32xf32>, vector<16x32xf32> -> vector<16x32xf32>
    %c0_109 = arith.constant 0 : index
    %c0_110 = arith.constant 0 : index
    %213 = vector.load %arg26[%c0_109, %c0_110] : memref<1x32xf32, #tpu.memory_space<vmem>>, vector<1x32xf32>
    %214 = vector.broadcast %213 : vector<1x32xf32> to vector<16x32xf32>
    %215 = arith.addf %212, %214 : vector<16x32xf32>
    %c0_111 = arith.constant 0 : index
    %c0_112 = arith.constant 0 : index
    %216 = vector.load %arg27[%c0_111, %c0_112] : memref<32x16xf32, #tpu.memory_space<vmem>>, vector<32x16xf32>
    %cst_113 = arith.constant dense<0.000000e+00> : vector<16x16xf32>
    %217 = tpu.matmul %215, %216, %cst_113 {dimension_numbers = #tpu.dot_dimension_numbers<[1], [0], [0], [1], [0, 0, 1, 1], [], []>} : vector<16x32xf32>, vector<32x16xf32>, vector<16x16xf32> -> vector<16x16xf32>
    %c0_114 = arith.constant 0 : index
    %c0_115 = arith.constant 0 : index
    %218 = vector.load %arg28[%c0_114, %c0_115] : memref<1x16xf32, #tpu.memory_space<vmem>>, vector<1x16xf32>
    %219 = vector.broadcast %218 : vector<1x16xf32> to vector<16x16xf32>
    %220 = arith.addf %217, %219 : vector<16x16xf32>
    %c0_116 = arith.constant 0 : index
    %c0_117 = arith.constant 0 : index
    %c0_118 = arith.constant 0 : index
    %221 = vector.load %arg29[%c0_116, %c0_117, %c0_118] : memref<1x16x16xf32, #tpu.memory_space<vmem>>, vector<1x16x16xf32>
    %222 = vector.shape_cast %221 : vector<1x16x16xf32> to vector<16x16xf32>
    %223 = vector.shape_cast %220 : vector<16x16xf32> to vector<1x16x16xf32>
    tpu.vector_store %arg29[%c0_116, %c0_117, %c0_118], %223 {strides = array<i32>} : memref<1x16x16xf32, #tpu.memory_space<vmem>>, vector<1x16x16xf32>,
    return
  }
  func.func @transform_0(%arg0: i32) -> (i32, i32, i32, i32) {
    %c0_i32 = arith.constant 0 : i32
    %c0_i32_0 = arith.constant 0 : i32
    %c0_i32_1 = arith.constant 0 : i32
    %c0_i32_2 = arith.constant 0 : i32
    return %arg0, %c0_i32, %c0_i32_0, %c0_i32_1 : i32, i32, i32, i32
  }
  func.func @transform_1(%arg0: i32) -> (i32, i32) {
    %c0_i32 = arith.constant 0 : i32
    %c0_i32_0 = arith.constant 0 : i32
    %c0_i32_1 = arith.constant 0 : i32
    return %c0_i32, %c0_i32_0 : i32, i32
  }
  func.func @transform_2(%arg0: i32) -> (i32, i32) {
    %c0_i32 = arith.constant 0 : i32
    %c0_i32_0 = arith.constant 0 : i32
    %c0_i32_1 = arith.constant 0 : i32
    return %c0_i32, %c0_i32_0 : i32, i32
  }
  func.func @transform_3(%arg0: i32) -> (i32, i32) {
    %c0_i32 = arith.constant 0 : i32
    %c0_i32_0 = arith.constant 0 : i32
    %c0_i32_1 = arith.constant 0 : i32
    return %c0_i32, %c0_i32_0 : i32, i32
  }
  func.func @transform_4(%arg0: i32) -> (i32, i32) {
    %c0_i32 = arith.constant 0 : i32
    %c0_i32_0 = arith.constant 0 : i32
    %c0_i32_1 = arith.constant 0 : i32
    return %c0_i32, %c0_i32_0 : i32, i32
  }
  func.func @transform_5(%arg0: i32) -> (i32, i32) {
    %c0_i32 = arith.constant 0 : i32
    %c0_i32_0 = arith.constant 0 : i32
    %c0_i32_1 = arith.constant 0 : i32
    return %c0_i32, %c0_i32_0 : i32, i32
  }
  func.func @transform_6(%arg0: i32) -> (i32, i32, i32) {
    %c0_i32 = arith.constant 0 : i32
    %c0_i32_0 = arith.constant 0 : i32
    %c0_i32_1 = arith.constant 0 : i32
    %c0_i32_2 = arith.constant 0 : i32
    return %c0_i32, %c0_i32_0, %c0_i32_1 : i32, i32, i32
  }
  func.func @transform_7(%arg0: i32) -> (i32, i32, i32) {
    %c0_i32 = arith.constant 0 : i32
    %c0_i32_0 = arith.constant 0 : i32
    %c0_i32_1 = arith.constant 0 : i32
    %c0_i32_2 = arith.constant 0 : i32
    return %c0_i32, %c0_i32_0, %c0_i32_1 : i32, i32, i32
  }
  func.func @transform_8(%arg0: i32) -> (i32, i32) {
    %c0_i32 = arith.constant 0 : i32
    %c0_i32_0 = arith.constant 0 : i32
    %c0_i32_1 = arith.constant 0 : i32
    return %c0_i32, %c0_i32_0 : i32, i32
  }
  func.func @transform_9(%arg0: i32) -> (i32, i32) {
    %c0_i32 = arith.constant 0 : i32
    %c0_i32_0 = arith.constant 0 : i32
    %c0_i32_1 = arith.constant 0 : i32
    return %c0_i32, %c0_i32_0 : i32, i32
  }
  func.func @transform_10(%arg0: i32) -> (i32, i32) {
    %c0_i32 = arith.constant 0 : i32
    %c0_i32_0 = arith.constant 0 : i32
    %c0_i32_1 = arith.constant 0 : i32
    return %c0_i32, %c0_i32_0 : i32, i32
  }
  func.func @transform_11(%arg0: i32) -> (i32, i32) {
    %c0_i32 = arith.constant 0 : i32
    %c0_i32_0 = arith.constant 0 : i32
    %c0_i32_1 = arith.constant 0 : i32
    return %c0_i32, %c0_i32_0 : i32, i32
  }
  func.func @transform_12(%arg0: i32) -> (i32, i32) {
    %c0_i32 = arith.constant 0 : i32
    %c0_i32_0 = arith.constant 0 : i32
    %c0_i32_1 = arith.constant 0 : i32
    return %c0_i32, %c0_i32_0 : i32, i32
  }
  func.func @transform_13(%arg0: i32) -> (i32, i32) {
    %c0_i32 = arith.constant 0 : i32
    %c0_i32_0 = arith.constant 0 : i32
    %c0_i32_1 = arith.constant 0 : i32
    return %c0_i32, %c0_i32_0 : i32, i32
  }
  func.func @transform_14(%arg0: i32) -> (i32, i32) {
    %c0_i32 = arith.constant 0 : i32
    %c0_i32_0 = arith.constant 0 : i32
    %c0_i32_1 = arith.constant 0 : i32
    return %c0_i32, %c0_i32_0 : i32, i32
  }
  func.func @transform_15(%arg0: i32) -> (i32, i32) {
    %c0_i32 = arith.constant 0 : i32
    %c0_i32_0 = arith.constant 0 : i32
    %c0_i32_1 = arith.constant 0 : i32
    return %c0_i32, %c0_i32_0 : i32, i32
  }
  func.func @transform_16(%arg0: i32) -> (i32, i32) {
    %c0_i32 = arith.constant 0 : i32
    %c0_i32_0 = arith.constant 0 : i32
    %c0_i32_1 = arith.constant 0 : i32
    return %c0_i32, %c0_i32_0 : i32, i32
  }
  func.func @transform_17(%arg0: i32) -> (i32, i32) {
    %c0_i32 = arith.constant 0 : i32
    %c0_i32_0 = arith.constant 0 : i32
    %c0_i32_1 = arith.constant 0 : i32
    return %c0_i32, %c0_i32_0 : i32, i32
  }
  func.func @transform_18(%arg0: i32) -> (i32, i32) {
    %c0_i32 = arith.constant 0 : i32
    %c0_i32_0 = arith.constant 0 : i32
    %c0_i32_1 = arith.constant 0 : i32
    return %c0_i32, %c0_i32_0 : i32, i32
  }
  func.func @transform_19(%arg0: i32) -> (i32, i32) {
    %c0_i32 = arith.constant 0 : i32
    %c0_i32_0 = arith.constant 0 : i32
    %c0_i32_1 = arith.constant 0 : i32
    return %c0_i32, %c0_i32_0 : i32, i32
  }
  func.func @transform_20(%arg0: i32) -> (i32, i32) {
    %c0_i32 = arith.constant 0 : i32
    %c0_i32_0 = arith.constant 0 : i32
    %c0_i32_1 = arith.constant 0 : i32
    return %c0_i32, %c0_i32_0 : i32, i32
  }
  func.func @transform_21(%arg0: i32) -> (i32, i32) {
    %c0_i32 = arith.constant 0 : i32
    %c0_i32_0 = arith.constant 0 : i32
    %c0_i32_1 = arith.constant 0 : i32
    return %c0_i32, %c0_i32_0 : i32, i32
  }
  func.func @transform_22(%arg0: i32) -> (i32, i32) {
    %c0_i32 = arith.constant 0 : i32
    %c0_i32_0 = arith.constant 0 : i32
    %c0_i32_1 = arith.constant 0 : i32
    return %c0_i32, %c0_i32_0 : i32, i32
  }
  func.func @transform_23(%arg0: i32) -> (i32, i32) {
    %c0_i32 = arith.constant 0 : i32
    %c0_i32_0 = arith.constant 0 : i32
    %c0_i32_1 = arith.constant 0 : i32
    return %c0_i32, %c0_i32_0 : i32, i32
  }
  func.func @transform_24(%arg0: i32) -> (i32, i32) {
    %c0_i32 = arith.constant 0 : i32
    %c0_i32_0 = arith.constant 0 : i32
    %c0_i32_1 = arith.constant 0 : i32
    return %c0_i32, %c0_i32_0 : i32, i32
  }
  func.func @transform_25(%arg0: i32) -> (i32, i32) {
    %c0_i32 = arith.constant 0 : i32
    %c0_i32_0 = arith.constant 0 : i32
    %c0_i32_1 = arith.constant 0 : i32
    return %c0_i32, %c0_i32_0 : i32, i32
  }
  func.func @transform_26(%arg0: i32) -> (i32, i32) {
    %c0_i32 = arith.constant 0 : i32
    %c0_i32_0 = arith.constant 0 : i32
    %c0_i32_1 = arith.constant 0 : i32
    return %c0_i32, %c0_i32_0 : i32, i32
  }
  func.func @transform_27(%arg0: i32) -> (i32, i32) {
    %c0_i32 = arith.constant 0 : i32
    %c0_i32_0 = arith.constant 0 : i32
    %c0_i32_1 = arith.constant 0 : i32
    return %c0_i32, %c0_i32_0 : i32, i32
  }
  func.func @transform_28(%arg0: i32) -> (i32, i32, i32) {
    %c0_i32 = arith.constant 0 : i32
    %c0_i32_0 = arith.constant 0 : i32
    %c0_i32_1 = arith.constant 0 : i32
    return %arg0, %c0_i32, %c0_i32_0 : i32, i32, i32
  }
}

</mosaic_0001>

<llo_original>
// kernel: temporal_gat_forward.1
$region0: #{temporal_gat_forward.1}
  #allocation0 [shape = 'u32[]', space=smem, size = 0x4, offset = 0x4, fixed_abs, tag = 'smem constant byte address 0x4 - core index']
  #allocation1 [shape = 'u32[144,128]{1,0:T(1,128)}', space=vmem, size = 0x12000, scoped, tag = 'internal scratch']
  %s0 = inlined_call_operand.vmem [shape: f32[2,16,8,4], index: 0, kind: input, shape index: {}]
  %s1 = inlined_call_operand.vmem [shape: f32[16,16], index: 1, kind: input, shape index: {}]
  %s2 = inlined_call_operand.vmem [shape: f32[8,32], index: 2, kind: input, shape index: {}]
  %s3 = inlined_call_operand.vmem [shape: f32[8,32], index: 3, kind: input, shape index: {}]
  %s4 = inlined_call_operand.vmem [shape: f32[4,32], index: 4, kind: input, shape index: {}]
  %s5 = inlined_call_operand.vmem [shape: f32[1,32], index: 5, kind: input, shape index: {}, may-alias: {5,9,11,15,17,21,25}]
  %s6 = inlined_call_operand.vmem [shape: f32[3,32,32], index: 6, kind: input, shape index: {}]
  %s7 = inlined_call_operand.vmem [shape: f32[3,1,32], index: 7, kind: input, shape index: {}]
  %s8 = inlined_call_operand.vmem [shape: f32[32,32], index: 8, kind: input, shape index: {}]
  %s9 = inlined_call_operand.vmem [shape: f32[1,32], index: 9, kind: input, shape index: {}, may-alias: {5,9,11,15,17,21,25}]
  %s10 = inlined_call_operand.vmem [shape: f32[1,32], index: 10, kind: input, shape index: {}, may-alias: {10,16}]
  %s11 = inlined_call_operand.vmem [shape: f32[1,32], index: 11, kind: input, shape index: {}, may-alias: {5,9,11,15,17,21,25}]
  %s12 = inlined_call_operand.vmem [shape: f32[32,128], index: 12, kind: input, shape index: {}]
  %s13 = inlined_call_operand.vmem [shape: f32[1,128], index: 13, kind: input, shape index: {}]
  %s14 = inlined_call_operand.vmem [shape: f32[128,32], index: 14, kind: input, shape index: {}]
  %s15 = inlined_call_operand.vmem [shape: f32[1,32], index: 15, kind: input, shape index: {}, may-alias: {5,9,11,15,17,21,25}]
  %s16 = inlined_call_operand.vmem [shape: f32[1,32], index: 16, kind: input, shape index: {}, may-alias: {10,16}]
  %s17 = inlined_call_operand.vmem [shape: f32[1,32], index: 17, kind: input, shape index: {}, may-alias: {5,9,11,15,17,21,25}]
  %s18 = inlined_call_operand.vmem [shape: f32[32,32], index: 18, kind: input, shape index: {}]
  %s19 = inlined_call_operand.vmem [shape: f32[8,32], index: 19, kind: input, shape index: {}]
  %s20 = inlined_call_operand.vmem [shape: f32[8,32], index: 20, kind: input, shape index: {}]
  %s21 = inlined_call_operand.vmem [shape: f32[1,32], index: 21, kind: input, shape index: {}, may-alias: {5,9,11,15,17,21,25}]
  %s22 = inlined_call_operand.vmem [shape: f32[32,32], index: 22, kind: input, shape index: {}]
  %s23 = inlined_call_operand.vmem [shape: f32[1,32], index: 23, kind: input, shape index: {}]
  %s24 = inlined_call_operand.vmem [shape: f32[1,32], index: 24, kind: input, shape index: {}]
  %s25 = inlined_call_operand.vmem [shape: f32[1,32], index: 25, kind: input, shape index: {}, may-alias: {5,9,11,15,17,21,25}]
  %s26 = inlined_call_operand.vmem [shape: f32[32,16], index: 26, kind: input, shape index: {}]
  %s27 = inlined_call_operand.vmem [shape: f32[1,16], index: 27, kind: input, shape index: {}]
  %s28 = inlined_call_operand.vmem [shape: f32[2,16,16], index: 28, kind: output, shape index: {}]
  %s29 = sld [smem:[#allocation0]]
  $region145: #{temporal_gat_forward.1} parent=0
    _
  %s31 = ssub.s32 1, %s29
  %s32 = scalar_select 0, %s31, %s29
  loop: start=0, step=1, limit=4
  $region2: #{temporal_gat_forward.1} parent=0 // loop_pre_header
    _
  $region3: #{temporal_gat_forward.1} parent=0 // loop_header
    %s34 = sphi 0, %s38
    %p35 = scmp.ge.s32.totalorder %s34, 4
    %s44 = sphi 0, %s46
    %s47 = sphi 0, %s44
    %s48 = sphi 0, %s47
    %s64 = sphi 0, %s48
    %s68 = sphi 0, %s68
    %s70 = sphi 0, %s68
    %s71 = sphi 0, %s70
    %s85 = sphi 0, %s71
    %s89 = sphi 0, %s89
    %s91 = sphi 0, %s89
    %s92 = sphi 0, %s91
    %s106 = sphi 0, %s92
    %s110 = sphi 0, %s110
    %s112 = sphi 0, %s110
    %s113 = sphi 0, %s112
    %s127 = sphi 0, %s113
    %s131 = sphi 0, %s131
    %s133 = sphi 0, %s131
    %s134 = sphi 0, %s133
    %s148 = sphi 0, %s134
    %s152 = sphi 0, %s152
    %s154 = sphi 0, %s152
    %s155 = sphi 0, %s154
    %s169 = sphi 0, %s155
    %s173 = sphi 0, %s173
    %s175 = sphi 0, %s173
    %s176 = sphi 0, %s175
    %s190 = sphi 0, %s176
    %s194 = sphi 0, %s194
    %s196 = sphi 0, %s194
    %s197 = sphi 0, %s196
    %s211 = sphi 0, %s197
    %s215 = sphi 0, %s215
    %s217 = sphi 0, %s215
    %s218 = sphi 0, %s217
    %s232 = sphi 0, %s218
    %s236 = sphi 0, %s236
    %s238 = sphi 0, %s236
    %s239 = sphi 0, %s238
    %s253 = sphi 0, %s239
    %s257 = sphi 0, %s257
    %s259 = sphi 0, %s257
    %s260 = sphi 0, %s259
    %s274 = sphi 0, %s260
    %s278 = sphi 0, %s278
    %s280 = sphi 0, %s278
    %s281 = sphi 0, %s280
    %s295 = sphi 0, %s281
    %s299 = sphi 0, %s299
    %s301 = sphi 0, %s299
    %s302 = sphi 0, %s301
    %s316 = sphi 0, %s302
    %s320 = sphi 0, %s320
    %s322 = sphi 0, %s320
    %s323 = sphi 0, %s322
    %s337 = sphi 0, %s323
    %s341 = sphi 0, %s341
    %s343 = sphi 0, %s341
    %s344 = sphi 0, %s343
    %s358 = sphi 0, %s344
    %s362 = sphi 0, %s362
    %s364 = sphi 0, %s362
    %s365 = sphi 0, %s364
    %s379 = sphi 0, %s365
    %s383 = sphi 0, %s383
    %s385 = sphi 0, %s383
    %s386 = sphi 0, %s385
    %s400 = sphi 0, %s386
    %s404 = sphi 0, %s404
    %s406 = sphi 0, %s404
    %s407 = sphi 0, %s406
    %s421 = sphi 0, %s407
    %s425 = sphi 0, %s425
    %s427 = sphi 0, %s425
    %s428 = sphi 0, %s427
    %s442 = sphi 0, %s428
    %s446 = sphi 0, %s446
    %s448 = sphi 0, %s446
    %s449 = sphi 0, %s448
    %s463 = sphi 0, %s449
    %s467 = sphi 0, %s467
    %s469 = sphi 0, %s467
    %s470 = sphi 0, %s469
    %s484 = sphi 0, %s470
    %s488 = sphi 0, %s488
    %s490 = sphi 0, %s488
    %s491 = sphi 0, %s490
    %s505 = sphi 0, %s491
    %s509 = sphi 0, %s509
    %s511 = sphi 0, %s509
    %s512 = sphi 0, %s511
    %s526 = sphi 0, %s512
    %s530 = sphi 0, %s530
    %s532 = sphi 0, %s530
    %s533 = sphi 0, %s532
    %s547 = sphi 0, %s533
    %s551 = sphi 0, %s551
    %s553 = sphi 0, %s551
    %s554 = sphi 0, %s553
    %s568 = sphi 0, %s554
    %s572 = sphi 0, %s572
    %s574 = sphi 0, %s572
    %s575 = sphi 0, %s574
    %s589 = sphi 0, %s575
    %s593 = sphi 0, %s593
    %s595 = sphi 0, %s593
    %s596 = sphi 0, %s595
    %s610 = sphi 0, %s596
    %s614 = sphi 0, %s614
    %s616 = sphi 0, %s614
    %s617 = sphi 0, %s616
    %s631 = sphi 0, %s617
    %s637 = sphi 0, %s639
    %s640 = sphi 0, %s637
    %s641 = sphi 0, %s640
    %s657 = sphi 0, %s641
  $region4: #{temporal_gat_forward.1} parent=0 // loop_header_branch
    %37 = sbr.rel (%p35) target = $region8
  $region5: #{temporal_gat_forward.1} parent=0 // loop_body
    %s39 = ssub.s32 %s34, 1
    %s40 = ssub.s32 %s34, 2
    %s41 = sadd.s32 %s34, 1
    %s42 = ssub.s32 %s34, %s41
    %p43 = scmp.eq.s32.totalorder %s42, 0
    %s45 = sadd.s32 %s44, 1
    %s46 = scalar_select %p43, %s44, %s45
    %p49 = pneg %p43
    %p50 = scmp.eq.s32.totalorder %s34, 1
    %p51 = por %p49, %p50
    %p52 = scmp.ne.s32.totalorder %s44, %s47
    %p53 = scmp.eq.s32.totalorder %s34, 0
    %p54 = por %p52, %p53
    %p55 = scmp.ne.s32.totalorder %s44, %s47
    %p56 = scmp.eq.s32.totalorder %s39, 1
    %p57 = por %p55, %p56
    %p58 = scmp.ne.s32.totalorder %s47, %s48
    %p59 = scmp.eq.s32.totalorder %s39, 0
    %p60 = por %p58, %p59
    %p61 = scmp.ne.s32.totalorder %s47, %s48
    %p62 = scmp.eq.s32.totalorder %s40, 1
    %p63 = por %p61, %p62
    %p65 = scmp.ne.s32.totalorder %s48, %s64
    %p66 = scmp.eq.s32.totalorder %s40, 0
    %p67 = por %p65, %p66
    %s69 = sadd.s32 %s68, 1
    %p72 = scmp.eq.s32.totalorder %s34, 1
    %p73 = scmp.ne.s32.totalorder %s68, %s70
    %p74 = scmp.eq.s32.totalorder %s34, 0
    %p75 = por %p73, %p74
    %p76 = scmp.ne.s32.totalorder %s68, %s70
    %p77 = scmp.eq.s32.totalorder %s39, 1
    %p78 = por %p76, %p77
    %p79 = scmp.ne.s32.totalorder %s70, %s71
    %p80 = scmp.eq.s32.totalorder %s39, 0
    %p81 = por %p79, %p80
    %p82 = scmp.ne.s32.totalorder %s70, %s71
    %p83 = scmp.eq.s32.totalorder %s40, 1
    %p84 = por %p82, %p83
    %p86 = scmp.ne.s32.totalorder %s71, %s85
    %p87 = scmp.eq.s32.totalorder %s40, 0
    %p88 = por %p86, %p87
    %s90 = sadd.s32 %s89, 1
    %p93 = scmp.eq.s32.totalorder %s34, 1
    %p94 = scmp.ne.s32.totalorder %s89, %s91
    %p95 = scmp.eq.s32.totalorder %s34, 0
    %p96 = por %p94, %p95
    %p97 = scmp.ne.s32.totalorder %s89, %s91
    %p98 = scmp.eq.s32.totalorder %s39, 1
    %p99 = por %p97, %p98
    %p100 = scmp.ne.s32.totalorder %s91, %s92
    %p101 = scmp.eq.s32.totalorder %s39, 0
    %p102 = por %p100, %p101
    %p103 = scmp.ne.s32.totalorder %s91, %s92
    %p104 = scmp.eq.s32.totalorder %s40, 1
    %p105 = por %p103, %p104
    %p107 = scmp.ne.s32.totalorder %s92, %s106
    %p108 = scmp.eq.s32.totalorder %s40, 0
    %p109 = por %p107, %p108
    %s111 = sadd.s32 %s110, 1
    %p114 = scmp.eq.s32.totalorder %s34, 1
    %p115 = scmp.ne.s32.totalorder %s110, %s112
    %p116 = scmp.eq.s32.totalorder %s34, 0
    %p117 = por %p115, %p116
    %p118 = scmp.ne.s32.totalorder %s110, %s112
    %p119 = scmp.eq.s32.totalorder %s39, 1
    %p120 = por %p118, %p119
    %p121 = scmp.ne.s32.totalorder %s112, %s113
    %p122 = scmp.eq.s32.totalorder %s39, 0
    %p123 = por %p121, %p122
    %p124 = scmp.ne.s32.totalorder %s112, %s113
    %p125 = scmp.eq.s32.totalorder %s40, 1
    %p126 = por %p124, %p125
    %p128 = scmp.ne.s32.totalorder %s113, %s127
    %p129 = scmp.eq.s32.totalorder %s40, 0
    %p130 = por %p128, %p129
    %s132 = sadd.s32 %s131, 1
    %p135 = scmp.eq.s32.totalorder %s34, 1
    %p136 = scmp.ne.s32.totalorder %s131, %s133
    %p137 = scmp.eq.s32.totalorder %s34, 0
    %p138 = por %p136, %p137
    %p139 = scmp.ne.s32.totalorder %s131, %s133
    %p140 = scmp.eq.s32.totalorder %s39, 1
    %p141 = por %p139, %p140
    %p142 = scmp.ne.s32.totalorder %s133, %s134
    %p143 = scmp.eq.s32.totalorder %s39, 0
    %p144 = por %p142, %p143
    %p145 = scmp.ne.s32.totalorder %s133, %s134
    %p146 = scmp.eq.s32.totalorder %s40, 1
    %p147 = por %p145, %p146
    %p149 = scmp.ne.s32.totalorder %s134, %s148
    %p150 = scmp.eq.s32.totalorder %s40, 0
    %p151 = por %p149, %p150
    %s153 = sadd.s32 %s152, 1
    %p156 = scmp.eq.s32.totalorder %s34, 1
    %p157 = scmp.ne.s32.totalorder %s152, %s154
    %p158 = scmp.eq.s32.totalorder %s34, 0
    %p159 = por %p157, %p158
    %p160 = scmp.ne.s32.totalorder %s152, %s154
    %p161 = scmp.eq.s32.totalorder %s39, 1
    %p162 = por %p160, %p161
    %p163 = scmp.ne.s32.totalorder %s154, %s155
    %p164 = scmp.eq.s32.totalorder %s39, 0
    %p165 = por %p163, %p164
    %p166 = scmp.ne.s32.totalorder %s154, %s155
    %p167 = scmp.eq.s32.totalorder %s40, 1
    %p168 = por %p166, %p167
    %p170 = scmp.ne.s32.totalorder %s155, %s169
    %p171 = scmp.eq.s32.totalorder %s40, 0
    %p172 = por %p170, %p171
    %s174 = sadd.s32 %s173, 1
    %p177 = scmp.eq.s32.totalorder %s34, 1
    %p178 = scmp.ne.s32.totalorder %s173, %s175
    %p179 = scmp.eq.s32.totalorder %s34, 0
    %p180 = por %p178, %p179
    %p181 = scmp.ne.s32.totalorder %s173, %s175
    %p182 = scmp.eq.s32.totalorder %s39, 1
    %p183 = por %p181, %p182
    %p184 = scmp.ne.s32.totalorder %s175, %s176
    %p185 = scmp.eq.s32.totalorder %s39, 0
    %p186 = por %p184, %p185
    %p187 = scmp.ne.s32.totalorder %s175, %s176
    %p188 = scmp.eq.s32.totalorder %s40, 1
    %p189 = por %p187, %p188
    %p191 = scmp.ne.s32.totalorder %s176, %s190
    %p192 = scmp.eq.s32.totalorder %s40, 0
    %p193 = por %p191, %p192
    %s195 = sadd.s32 %s194, 1
    %p198 = scmp.eq.s32.totalorder %s34, 1
    %p199 = scmp.ne.s32.totalorder %s194, %s196
    %p200 = scmp.eq.s32.totalorder %s34, 0
    %p201 = por %p199, %p200
    %p202 = scmp.ne.s32.totalorder %s194, %s196
    %p203 = scmp.eq.s32.totalorder %s39, 1
    %p204 = por %p202, %p203
    %p205 = scmp.ne.s32.totalorder %s196, %s197
    %p206 = scmp.eq.s32.totalorder %s39, 0
    %p207 = por %p205, %p206
    %p208 = scmp.ne.s32.totalorder %s196, %s197
    %p209 = scmp.eq.s32.totalorder %s40, 1
    %p210 = por %p208, %p209
    %p212 = scmp.ne.s32.totalorder %s197, %s211
    %p213 = scmp.eq.s32.totalorder %s40, 0
    %p214 = por %p212, %p213
    %s216 = sadd.s32 %s215, 1
    %p219 = scmp.eq.s32.totalorder %s34, 1
    %p220 = scmp.ne.s32.totalorder %s215, %s217
    %p221 = scmp.eq.s32.totalorder %s34, 0
    %p222 = por %p220, %p221
    %p223 = scmp.ne.s32.totalorder %s215, %s217
    %p224 = scmp.eq.s32.totalorder %s39, 1
    %p225 = por %p223, %p224
    %p226 = scmp.ne.s32.totalorder %s217, %s218
    %p227 = scmp.eq.s32.totalorder %s39, 0
    %p228 = por %p226, %p227
    %p229 = scmp.ne.s32.totalorder %s217, %s218
    %p230 = scmp.eq.s32.totalorder %s40, 1
    %p231 = por %p229, %p230
    %p233 = scmp.ne.s32.totalorder %s218, %s232
    %p234 = scmp.eq.s32.totalorder %s40, 0
    %p235 = por %p233, %p234
    %s237 = sadd.s32 %s236, 1
    %p240 = scmp.eq.s32.totalorder %s34, 1
    %p241 = scmp.ne.s32.totalorder %s236, %s238
    %p242 = scmp.eq.s32.totalorder %s34, 0
    %p243 = por %p241, %p242
    %p244 = scmp.ne.s32.totalorder %s236, %s238
    %p245 = scmp.eq.s32.totalorder %s39, 1
    %p246 = por %p244, %p245
    %p247 = scmp.ne.s32.totalorder %s238, %s239
    %p248 = scmp.eq.s32.totalorder %s39, 0
    %p249 = por %p247, %p248
    %p250 = scmp.ne.s32.totalorder %s238, %s239
    %p251 = scmp.eq.s32.totalorder %s40, 1
    %p252 = por %p250, %p251
    %p254 = scmp.ne.s32.totalorder %s239, %s253
    %p255 = scmp.eq.s32.totalorder %s40, 0
    %p256 = por %p254, %p255
    %s258 = sadd.s32 %s257, 1
    %p261 = scmp.eq.s32.totalorder %s34, 1
    %p262 = scmp.ne.s32.totalorder %s257, %s259
    %p263 = scmp.eq.s32.totalorder %s34, 0
    %p264 = por %p262, %p263
    %p265 = scmp.ne.s32.totalorder %s257, %s259
    %p266 = scmp.eq.s32.totalorder %s39, 1
    %p267 = por %p265, %p266
    %p268 = scmp.ne.s32.totalorder %s259, %s260
    %p269 = scmp.eq.s32.totalorder %s39, 0
    %p270 = por %p268, %p269
    %p271 = scmp.ne.s32.totalorder %s259, %s260
    %p272 = scmp.eq.s32.totalorder %s40, 1
    %p273 = por %p271, %p272
    %p275 = scmp.ne.s32.totalorder %s260, %s274
    %p276 = scmp.eq.s32.totalorder %s40, 0
    %p277 = por %p275, %p276
    %s279 = sadd.s32 %s278, 1
    %p282 = scmp.eq.s32.totalorder %s34, 1
    %p283 = scmp.ne.s32.totalorder %s278, %s280
    %p284 = scmp.eq.s32.totalorder %s34, 0
    %p285 = por %p283, %p284
    %p286 = scmp.ne.s32.totalorder %s278, %s280
    %p287 = scmp.eq.s32.totalorder %s39, 1
    %p288 = por %p286, %p287
    %p289 = scmp.ne.s32.totalorder %s280, %s281
    %p290 = scmp.eq.s32.totalorder %s39, 0
    %p291 = por %p289, %p290
    %p292 = scmp.ne.s32.totalorder %s280, %s281
    %p293 = scmp.eq.s32.totalorder %s40, 1
    %p294 = por %p292, %p293
    %p296 = scmp.ne.s32.totalorder %s281, %s295
    %p297 = scmp.eq.s32.totalorder %s40, 0
    %p298 = por %p296, %p297
    %s300 = sadd.s32 %s299, 1
    %p303 = scmp.eq.s32.totalorder %s34, 1
    %p304 = scmp.ne.s32.totalorder %s299, %s301
    %p305 = scmp.eq.s32.totalorder %s34, 0
    %p306 = por %p304, %p305
    %p307 = scmp.ne.s32.totalorder %s299, %s301
    %p308 = scmp.eq.s32.totalorder %s39, 1
    %p309 = por %p307, %p308
    %p310 = scmp.ne.s32.totalorder %s301, %s302
    %p311 = scmp.eq.s32.totalorder %s39, 0
    %p312 = por %p310, %p311
    %p313 = scmp.ne.s32.totalorder %s301, %s302
    %p314 = scmp.eq.s32.totalorder %s40, 1
    %p315 = por %p313, %p314
    %p317 = scmp.ne.s32.totalorder %s302, %s316
    %p318 = scmp.eq.s32.totalorder %s40, 0
    %p319 = por %p317, %p318
    %s321 = sadd.s32 %s320, 1
    %p324 = scmp.eq.s32.totalorder %s34, 1
    %p325 = scmp.ne.s32.totalorder %s320, %s322
    %p326 = scmp.eq.s32.totalorder %s34, 0
    %p327 = por %p325, %p326
    %p328 = scmp.ne.s32.totalorder %s320, %s322
    %p329 = scmp.eq.s32.totalorder %s39, 1
    %p330 = por %p328, %p329
    %p331 = scmp.ne.s32.totalorder %s322, %s323
    %p332 = scmp.eq.s32.totalorder %s39, 0
    %p333 = por %p331, %p332
    %p334 = scmp.ne.s32.totalorder %s322, %s323
    %p335 = scmp.eq.s32.totalorder %s40, 1
    %p336 = por %p334, %p335
    %p338 = scmp.ne.s32.totalorder %s323, %s337
    %p339 = scmp.eq.s32.totalorder %s40, 0
    %p340 = por %p338, %p339
    %s342 = sadd.s32 %s341, 1
    %p345 = scmp.eq.s32.totalorder %s34, 1
    %p346 = scmp.ne.s32.totalorder %s341, %s343
    %p347 = scmp.eq.s32.totalorder %s34, 0
    %p348 = por %p346, %p347
    %p349 = scmp.ne.s32.totalorder %s341, %s343
    %p350 = scmp.eq.s32.totalorder %s39, 1
    %p351 = por %p349, %p350
    %p352 = scmp.ne.s32.totalorder %s343, %s344
    %p353 = scmp.eq.s32.totalorder %s39, 0
    %p354 = por %p352, %p353
    %p355 = scmp.ne.s32.totalorder %s343, %s344
    %p356 = scmp.eq.s32.totalorder %s40, 1
    %p357 = por %p355, %p356
    %p359 = scmp.ne.s32.totalorder %s344, %s358
    %p360 = scmp.eq.s32.totalorder %s40, 0
    %p361 = por %p359, %p360
    %s363 = sadd.s32 %s362, 1
    %p366 = scmp.eq.s32.totalorder %s34, 1
    %p367 = scmp.ne.s32.totalorder %s362, %s364
    %p368 = scmp.eq.s32.totalorder %s34, 0
    %p369 = por %p367, %p368
    %p370 = scmp.ne.s32.totalorder %s362, %s364
    %p371 = scmp.eq.s32.totalorder %s39, 1
    %p372 = por %p370, %p371
    %p373 = scmp.ne.s32.totalorder %s364, %s365
    %p374 = scmp.eq.s32.totalorder %s39, 0
    %p375 = por %p373, %p374
    %p376 = scmp.ne.s32.totalorder %s364, %s365
    %p377 = scmp.eq.s32.totalorder %s40, 1
    %p378 = por %p376, %p377
    %p380 = scmp.ne.s32.totalorder %s365, %s379
    %p381 = scmp.eq.s32.totalorder %s40, 0
    %p382 = por %p380, %p381
    %s384 = sadd.s32 %s383, 1
    %p387 = scmp.eq.s32.totalorder %s34, 1
    %p388 = scmp.ne.s32.totalorder %s383, %s385
    %p389 = scmp.eq.s32.totalorder %s34, 0
    %p390 = por %p388, %p389
    %p391 = scmp.ne.s32.totalorder %s383, %s385
    %p392 = scmp.eq.s32.totalorder %s39, 1
    %p393 = por %p391, %p392
    %p394 = scmp.ne.s32.totalorder %s385, %s386
    %p395 = scmp.eq.s32.totalorder %s39, 0
    %p396 = por %p394, %p395
    %p397 = scmp.ne.s32.totalorder %s385, %s386
    %p398 = scmp.eq.s32.totalorder %s40, 1
    %p399 = por %p397, %p398
    %p401 = scmp.ne.s32.totalorder %s386, %s400
    %p402 = scmp.eq.s32.totalorder %s40, 0
    %p403 = por %p401, %p402
    %s405 = sadd.s32 %s404, 1
    %p408 = scmp.eq.s32.totalorder %s34, 1
    %p409 = scmp.ne.s32.totalorder %s404, %s406
    %p410 = scmp.eq.s32.totalorder %s34, 0
    %p411 = por %p409, %p410
    %p412 = scmp.ne.s32.totalorder %s404, %s406
    %p413 = scmp.eq.s32.totalorder %s39, 1
    %p414 = por %p412, %p413
    %p415 = scmp.ne.s32.totalorder %s406, %s407
    %p416 = scmp.eq.s32.totalorder %s39, 0
    %p417 = por %p415, %p416
    %p418 = scmp.ne.s32.totalorder %s406, %s407
    %p419 = scmp.eq.s32.totalorder %s40, 1
    %p420 = por %p418, %p419
    %p422 = scmp.ne.s32.totalorder %s407, %s421
    %p423 = scmp.eq.s32.totalorder %s40, 0
    %p424 = por %p422, %p423
    %s426 = sadd.s32 %s425, 1
    %p429 = scmp.eq.s32.totalorder %s34, 1
    %p430 = scmp.ne.s32.totalorder %s425, %s427
    %p431 = scmp.eq.s32.totalorder %s34, 0
    %p432 = por %p430, %p431
    %p433 = scmp.ne.s32.totalorder %s425, %s427
    %p434 = scmp.eq.s32.totalorder %s39, 1
    %p435 = por %p433, %p434
    %p436 = scmp.ne.s32.totalorder %s427, %s428
    %p437 = scmp.eq.s32.totalorder %s39, 0
    %p438 = por %p436, %p437
    %p439 = scmp.ne.s32.totalorder %s427, %s428
    %p440 = scmp.eq.s32.totalorder %s40, 1
    %p441 = por %p439, %p440
    %p443 = scmp.ne.s32.totalorder %s428, %s442
    %p444 = scmp.eq.s32.totalorder %s40, 0
    %p445 = por %p443, %p444
    %s447 = sadd.s32 %s446, 1
    %p450 = scmp.eq.s32.totalorder %s34, 1
    %p451 = scmp.ne.s32.totalorder %s446, %s448
    %p452 = scmp.eq.s32.totalorder %s34, 0
    %p453 = por %p451, %p452
    %p454 = scmp.ne.s32.totalorder %s446, %s448
    %p455 = scmp.eq.s32.totalorder %s39, 1
    %p456 = por %p454, %p455
    %p457 = scmp.ne.s32.totalorder %s448, %s449
    %p458 = scmp.eq.s32.totalorder %s39, 0
    %p459 = por %p457, %p458
    %p460 = scmp.ne.s32.totalorder %s448, %s449
    %p461 = scmp.eq.s32.totalorder %s40, 1
    %p462 = por %p460, %p461
    %p464 = scmp.ne.s32.totalorder %s449, %s463
    %p465 = scmp.eq.s32.totalorder %s40, 0
    %p466 = por %p464, %p465
    %s468 = sadd.s32 %s467, 1
    %p471 = scmp.eq.s32.totalorder %s34, 1
    %p472 = scmp.ne.s32.totalorder %s467, %s469
    %p473 = scmp.eq.s32.totalorder %s34, 0
    %p474 = por %p472, %p473
    %p475 = scmp.ne.s32.totalorder %s467, %s469
    %p476 = scmp.eq.s32.totalorder %s39, 1
    %p477 = por %p475, %p476
    %p478 = scmp.ne.s32.totalorder %s469, %s470
    %p479 = scmp.eq.s32.totalorder %s39, 0
    %p480 = por %p478, %p479
    %p481 = scmp.ne.s32.totalorder %s469, %s470
    %p482 = scmp.eq.s32.totalorder %s40, 1
    %p483 = por %p481, %p482
    %p485 = scmp.ne.s32.totalorder %s470, %s484
    %p486 = scmp.eq.s32.totalorder %s40, 0
    %p487 = por %p485, %p486
    %s489 = sadd.s32 %s488, 1
    %p492 = scmp.eq.s32.totalorder %s34, 1
    %p493 = scmp.ne.s32.totalorder %s488, %s490
    %p494 = scmp.eq.s32.totalorder %s34, 0
    %p495 = por %p493, %p494
    %p496 = scmp.ne.s32.totalorder %s488, %s490
    %p497 = scmp.eq.s32.totalorder %s39, 1
    %p498 = por %p496, %p497
    %p499 = scmp.ne.s32.totalorder %s490, %s491
    %p500 = scmp.eq.s32.totalorder %s39, 0
    %p501 = por %p499, %p500
    %p502 = scmp.ne.s32.totalorder %s490, %s491
    %p503 = scmp.eq.s32.totalorder %s40, 1
    %p504 = por %p502, %p503
    %p506 = scmp.ne.s32.totalorder %s491, %s505
    %p507 = scmp.eq.s32.totalorder %s40, 0
    %p508 = por %p506, %p507
    %s510 = sadd.s32 %s509, 1
    %p513 = scmp.eq.s32.totalorder %s34, 1
    %p514 = scmp.ne.s32.totalorder %s509, %s511
    %p515 = scmp.eq.s32.totalorder %s34, 0
    %p516 = por %p514, %p515
    %p517 = scmp.ne.s32.totalorder %s509, %s511
    %p518 = scmp.eq.s32.totalorder %s39, 1
    %p519 = por %p517, %p518
    %p520 = scmp.ne.s32.totalorder %s511, %s512
    %p521 = scmp.eq.s32.totalorder %s39, 0
    %p522 = por %p520, %p521
    %p523 = scmp.ne.s32.totalorder %s511, %s512
    %p524 = scmp.eq.s32.totalorder %s40, 1
    %p525 = por %p523, %p524
    %p527 = scmp.ne.s32.totalorder %s512, %s526
    %p528 = scmp.eq.s32.totalorder %s40, 0
    %p529 = por %p527, %p528
    %s531 = sadd.s32 %s530, 1
    %p534 = scmp.eq.s32.totalorder %s34, 1
    %p535 = scmp.ne.s32.totalorder %s530, %s532
    %p536 = scmp.eq.s32.totalorder %s34, 0
    %p537 = por %p535, %p536
    %p538 = scmp.ne.s32.totalorder %s530, %s532
    %p539 = scmp.eq.s32.totalorder %s39, 1
    %p540 = por %p538, %p539
    %p541 = scmp.ne.s32.totalorder %s532, %s533
    %p542 = scmp.eq.s32.totalorder %s39, 0
    %p543 = por %p541, %p542
    %p544 = scmp.ne.s32.totalorder %s532, %s533
    %p545 = scmp.eq.s32.totalorder %s40, 1
    %p546 = por %p544, %p545
    %p548 = scmp.ne.s32.totalorder %s533, %s547
    %p549 = scmp.eq.s32.totalorder %s40, 0
    %p550 = por %p548, %p549
    %s552 = sadd.s32 %s551, 1
    %p555 = scmp.eq.s32.totalorder %s34, 1
    %p556 = scmp.ne.s32.totalorder %s551, %s553
    %p557 = scmp.eq.s32.totalorder %s34, 0
    %p558 = por %p556, %p557
    %p559 = scmp.ne.s32.totalorder %s551, %s553
    %p560 = scmp.eq.s32.totalorder %s39, 1
    %p561 = por %p559, %p560
    %p562 = scmp.ne.s32.totalorder %s553, %s554
    %p563 = scmp.eq.s32.totalorder %s39, 0
    %p564 = por %p562, %p563
    %p565 = scmp.ne.s32.totalorder %s553, %s554
    %p566 = scmp.eq.s32.totalorder %s40, 1
    %p567 = por %p565, %p566
    %p569 = scmp.ne.s32.totalorder %s554, %s568
    %p570 = scmp.eq.s32.totalorder %s40, 0
    %p571 = por %p569, %p570
    %s573 = sadd.s32 %s572, 1
    %p576 = scmp.eq.s32.totalorder %s34, 1
    %p577 = scmp.ne.s32.totalorder %s572, %s574
    %p578 = scmp.eq.s32.totalorder %s34, 0
    %p579 = por %p577, %p578
    %p580 = scmp.ne.s32.totalorder %s572, %s574
    %p581 = scmp.eq.s32.totalorder %s39, 1
    %p582 = por %p580, %p581
    %p583 = scmp.ne.s32.totalorder %s574, %s575
    %p584 = scmp.eq.s32.totalorder %s39, 0
    %p585 = por %p583, %p584
    %p586 = scmp.ne.s32.totalorder %s574, %s575
    %p587 = scmp.eq.s32.totalorder %s40, 1
    %p588 = por %p586, %p587
    %p590 = scmp.ne.s32.totalorder %s575, %s589
    %p591 = scmp.eq.s32.totalorder %s40, 0
    %p592 = por %p590, %p591
    %s594 = sadd.s32 %s593, 1
    %p597 = scmp.eq.s32.totalorder %s34, 1
    %p598 = scmp.ne.s32.totalorder %s593, %s595
    %p599 = scmp.eq.s32.totalorder %s34, 0
    %p600 = por %p598, %p599
    %p601 = scmp.ne.s32.totalorder %s593, %s595
    %p602 = scmp.eq.s32.totalorder %s39, 1
    %p603 = por %p601, %p602
    %p604 = scmp.ne.s32.totalorder %s595, %s596
    %p605 = scmp.eq.s32.totalorder %s39, 0
    %p606 = por %p604, %p605
    %p607 = scmp.ne.s32.totalorder %s595, %s596
    %p608 = scmp.eq.s32.totalorder %s40, 1
    %p609 = por %p607, %p608
    %p611 = scmp.ne.s32.totalorder %s596, %s610
    %p612 = scmp.eq.s32.totalorder %s40, 0
    %p613 = por %p611, %p612
    %s615 = sadd.s32 %s614, 1
    %p618 = scmp.eq.s32.totalorder %s34, 1
    %p619 = scmp.ne.s32.totalorder %s614, %s616
    %p620 = scmp.eq.s32.totalorder %s34, 0
    %p621 = por %p619, %p620
    %p622 = scmp.ne.s32.totalorder %s614, %s616
    %p623 = scmp.eq.s32.totalorder %s39, 1
    %p624 = por %p622, %p623
    %p625 = scmp.ne.s32.totalorder %s616, %s617
    %p626 = scmp.eq.s32.totalorder %s39, 0
    %p627 = por %p625, %p626
    %p628 = scmp.ne.s32.totalorder %s616, %s617
    %p629 = scmp.eq.s32.totalorder %s40, 1
    %p630 = por %p628, %p629
    %p632 = scmp.ne.s32.totalorder %s617, %s631
    %p633 = scmp.eq.s32.totalorder %s40, 0
    %p634 = por %p632, %p633
    %s635 = ssub.s32 %s34, %s41
    %p636 = scmp.eq.s32.totalorder %s635, 0
    %s638 = sadd.s32 %s637, 1
    %s639 = scalar_select %p636, %s637, %s638
    %p642 = pneg %p636
    %p643 = scmp.eq.s32.totalorder %s34, 1
    %p644 = por %p642, %p643
    %p645 = scmp.ne.s32.totalorder %s637, %s640
    %p646 = scmp.eq.s32.totalorder %s34, 0
    %p647 = por %p645, %p646
    %p648 = scmp.ne.s32.totalorder %s637, %s640
    %p649 = scmp.eq.s32.totalorder %s39, 1
    %p650 = por %p648, %p649
    %p651 = scmp.ne.s32.totalorder %s640, %s641
    %p652 = scmp.eq.s32.totalorder %s39, 0
    %p653 = por %p651, %p652
    %p654 = scmp.ne.s32.totalorder %s640, %s641
    %p655 = scmp.eq.s32.totalorder %s40, 1
    %p656 = por %p654, %p655
    %p658 = scmp.ne.s32.totalorder %s641, %s657
    %p659 = scmp.eq.s32.totalorder %s40, 0
    %p660 = por %p658, %p659
    %p661 = scmp.le.s32.totalorder 1, %s34
    %p662 = scmp.lt.s32.totalorder %s34, 3
    %p663 = pnand %p661, %p662
    %p664 = pneg %p663
    // Predicated region
    $region9: #{temporal_gat_forward.1} parent=5 // pred_check
      _
    $region10: #{temporal_gat_forward.1} parent=5 // pred_check_branch
      %666 = sbr.rel (%p663) target = $region12
    $region11: #{temporal_gat_forward.1} parent=5 // pred_region
      %s667 = ssub.s32 %s34, 1
      // Predicated region
      $region13: #{temporal_gat_forward.1} parent=11 // pred_check
        %p668 = pneg %p81
      $region14: #{temporal_gat_forward.1} parent=11 // pred_check_branch
        %670 = sbr.rel (%p668) target = $region16
      $region15: #{temporal_gat_forward.1} parent=11 // pred_region
        _
      $region16: #{temporal_gat_forward.1} parent=11 // pred_fallthru
        _
      // Predicated region
      $region17: #{temporal_gat_forward.1} parent=11 // pred_check
        %p671 = pneg %p102
      $region18: #{temporal_gat_forward.1} parent=11 // pred_check_branch
        %673 = sbr.rel (%p671) target = $region20
      $region19: #{temporal_gat_forward.1} parent=11 // pred_region
        _
      $region20: #{temporal_gat_forward.1} parent=11 // pred_fallthru
        _
      // Predicated region
      $region21: #{temporal_gat_forward.1} parent=11 // pred_check
        %p674 = pneg %p123
      $region22: #{temporal_gat_forward.1} parent=11 // pred_check_branch
        %676 = sbr.rel (%p674) target = $region24
      $region23: #{temporal_gat_forward.1} parent=11 // pred_region
        _
      $region24: #{temporal_gat_forward.1} parent=11 // pred_fallthru
        _
      // Predicated region
      $region25: #{temporal_gat_forward.1} parent=11 // pred_check
        %p677 = pneg %p144
      $region26: #{temporal_gat_forward.1} parent=11 // pred_check_branch
        %679 = sbr.rel (%p677) target = $region28
      $region27: #{temporal_gat_forward.1} parent=11 // pred_region
        _
      $region28: #{temporal_gat_forward.1} parent=11 // pred_fallthru
        _
      // Predicated region
      $region29: #{temporal_gat_forward.1} parent=11 // pred_check
        %p680 = pneg %p165
      $region30: #{temporal_gat_forward.1} parent=11 // pred_check_branch
        %682 = sbr.rel (%p680) target = $region32
      $region31: #{temporal_gat_forward.1} parent=11 // pred_region
        _
      $region32: #{temporal_gat_forward.1} parent=11 // pred_fallthru
        _
      // Predicated region
      $region33: #{temporal_gat_forward.1} parent=11 // pred_check
        %p683 = pneg %p186
      $region34: #{temporal_gat_forward.1} parent=11 // pred_check_branch
        %685 = sbr.rel (%p683) target = $region36
      $region35: #{temporal_gat_forward.1} parent=11 // pred_region
        _
      $region36: #{temporal_gat_forward.1} parent=11 // pred_fallthru
        _
      // Predicated region
      $region37: #{temporal_gat_forward.1} parent=11 // pred_check
        %p686 = pneg %p207
      $region38: #{temporal_gat_forward.1} parent=11 // pred_check_branch
        %688 = sbr.rel (%p686) target = $region40
      $region39: #{temporal_gat_forward.1} parent=11 // pred_region
        _
      $region40: #{temporal_gat_forward.1} parent=11 // pred_fallthru
        _
      // Predicated region
      $region41: #{temporal_gat_forward.1} parent=11 // pred_check
        %p689 = pneg %p228
      $region42: #{temporal_gat_forward.1} parent=11 // pred_check_branch
        %691 = sbr.rel (%p689) target = $region44
      $region43: #{temporal_gat_forward.1} parent=11 // pred_region
        _
      $region44: #{temporal_gat_forward.1} parent=11 // pred_fallthru
        _
      // Predicated region
      $region45: #{temporal_gat_forward.1} parent=11 // pred_check
        %p692 = pneg %p249
      $region46: #{temporal_gat_forward.1} parent=11 // pred_check_branch
        %694 = sbr.rel (%p692) target = $region48
      $region47: #{temporal_gat_forward.1} parent=11 // pred_region
        _
      $region48: #{temporal_gat_forward.1} parent=11 // pred_fallthru
        _
      // Predicated region
      $region49: #{temporal_gat_forward.1} parent=11 // pred_check
        %p695 = pneg %p270
      $region50: #{temporal_gat_forward.1} parent=11 // pred_check_branch
        %697 = sbr.rel (%p695) target = $region52
      $region51: #{temporal_gat_forward.1} parent=11 // pred_region
        _
      $region52: #{temporal_gat_forward.1} parent=11 // pred_fallthru
        _
      // Predicated region
      $region53: #{temporal_gat_forward.1} parent=11 // pred_check
        %p698 = pneg %p291
      $region54: #{temporal_gat_forward.1} parent=11 // pred_check_branch
        %700 = sbr.rel (%p698) target = $region56
      $region55: #{temporal_gat_forward.1} parent=11 // pred_region
        _
      $region56: #{temporal_gat_forward.1} parent=11 // pred_fallthru
        _
      // Predicated region
      $region57: #{temporal_gat_forward.1} parent=11 // pred_check
        %p701 = pneg %p312
      $region58: #{temporal_gat_forward.1} parent=11 // pred_check_branch
        %703 = sbr.rel (%p701) target = $region60
      $region59: #{temporal_gat_forward.1} parent=11 // pred_region
        _
      $region60: #{temporal_gat_forward.1} parent=11 // pred_fallthru
        _
      // Predicated region
      $region61: #{temporal_gat_forward.1} parent=11 // pred_check
        %p704 = pneg %p333
      $region62: #{temporal_gat_forward.1} parent=11 // pred_check_branch
        %706 = sbr.rel (%p704) target = $region64
      $region63: #{temporal_gat_forward.1} parent=11 // pred_region
        _
      $region64: #{temporal_gat_forward.1} parent=11 // pred_fallthru
        _
      // Predicated region
      $region65: #{temporal_gat_forward.1} parent=11 // pred_check
        %p707 = pneg %p354
      $region66: #{temporal_gat_forward.1} parent=11 // pred_check_branch
        %709 = sbr.rel (%p707) target = $region68
      $region67: #{temporal_gat_forward.1} parent=11 // pred_region
        _
      $region68: #{temporal_gat_forward.1} parent=11 // pred_fallthru
        _
      // Predicated region
      $region69: #{temporal_gat_forward.1} parent=11 // pred_check
        %p710 = pneg %p375
      $region70: #{temporal_gat_forward.1} parent=11 // pred_check_branch
        %712 = sbr.rel (%p710) target = $region72
      $region71: #{temporal_gat_forward.1} parent=11 // pred_region
        _
      $region72: #{temporal_gat_forward.1} parent=11 // pred_fallthru
        _
      // Predicated region
      $region73: #{temporal_gat_forward.1} parent=11 // pred_check
        %p713 = pneg %p396
      $region74: #{temporal_gat_forward.1} parent=11 // pred_check_branch
        %715 = sbr.rel (%p713) target = $region76
      $region75: #{temporal_gat_forward.1} parent=11 // pred_region
        _
      $region76: #{temporal_gat_forward.1} parent=11 // pred_fallthru
        _
      // Predicated region
      $region77: #{temporal_gat_forward.1} parent=11 // pred_check
        %p716 = pneg %p417
      $region78: #{temporal_gat_forward.1} parent=11 // pred_check_branch
        %718 = sbr.rel (%p716) target = $region80
      $region79: #{temporal_gat_forward.1} parent=11 // pred_region
        _
      $region80: #{temporal_gat_forward.1} parent=11 // pred_fallthru
        _
      // Predicated region
      $region81: #{temporal_gat_forward.1} parent=11 // pred_check
        %p719 = pneg %p438
      $region82: #{temporal_gat_forward.1} parent=11 // pred_check_branch
        %721 = sbr.rel (%p719) target = $region84
      $region83: #{temporal_gat_forward.1} parent=11 // pred_region
        _
      $region84: #{temporal_gat_forward.1} parent=11 // pred_fallthru
        _
      // Predicated region
      $region85: #{temporal_gat_forward.1} parent=11 // pred_check
        %p722 = pneg %p459
      $region86: #{temporal_gat_forward.1} parent=11 // pred_check_branch
        %724 = sbr.rel (%p722) target = $region88
      $region87: #{temporal_gat_forward.1} parent=11 // pred_region
        _
      $region88: #{temporal_gat_forward.1} parent=11 // pred_fallthru
        _
      // Predicated region
      $region89: #{temporal_gat_forward.1} parent=11 // pred_check
        %p725 = pneg %p480
      $region90: #{temporal_gat_forward.1} parent=11 // pred_check_branch
        %727 = sbr.rel (%p725) target = $region92
      $region91: #{temporal_gat_forward.1} parent=11 // pred_region
        _
      $region92: #{temporal_gat_forward.1} parent=11 // pred_fallthru
        _
      // Predicated region
      $region93: #{temporal_gat_forward.1} parent=11 // pred_check
        %p728 = pneg %p501
      $region94: #{temporal_gat_forward.1} parent=11 // pred_check_branch
        %730 = sbr.rel (%p728) target = $region96
      $region95: #{temporal_gat_forward.1} parent=11 // pred_region
        _
      $region96: #{temporal_gat_forward.1} parent=11 // pred_fallthru
        _
      // Predicated region
      $region97: #{temporal_gat_forward.1} parent=11 // pred_check
        %p731 = pneg %p522
      $region98: #{temporal_gat_forward.1} parent=11 // pred_check_branch
        %733 = sbr.rel (%p731) target = $region100
      $region99: #{temporal_gat_forward.1} parent=11 // pred_region
        _
      $region100: #{temporal_gat_forward.1} parent=11 // pred_fallthru
        _
      // Predicated region
      $region101: #{temporal_gat_forward.1} parent=11 // pred_check
        %p734 = pneg %p543
      $region102: #{temporal_gat_forward.1} parent=11 // pred_check_branch
        %736 = sbr.rel (%p734) target = $region104
      $region103: #{temporal_gat_forward.1} parent=11 // pred_region
        _
      $region104: #{temporal_gat_forward.1} parent=11 // pred_fallthru
        _
      // Predicated region
      $region105: #{temporal_gat_forward.1} parent=11 // pred_check
        %p737 = pneg %p564
      $region106: #{temporal_gat_forward.1} parent=11 // pred_check_branch
        %739 = sbr.rel (%p737) target = $region108
      $region107: #{temporal_gat_forward.1} parent=11 // pred_region
        _
      $region108: #{temporal_gat_forward.1} parent=11 // pred_fallthru
        _
      // Predicated region
      $region109: #{temporal_gat_forward.1} parent=11 // pred_check
        %p740 = pneg %p585
      $region110: #{temporal_gat_forward.1} parent=11 // pred_check_branch
        %742 = sbr.rel (%p740) target = $region112
      $region111: #{temporal_gat_forward.1} parent=11 // pred_region
        _
      $region112: #{temporal_gat_forward.1} parent=11 // pred_fallthru
        _
      // Predicated region
      $region113: #{temporal_gat_forward.1} parent=11 // pred_check
        %p743 = pneg %p606
      $region114: #{temporal_gat_forward.1} parent=11 // pred_check_branch
        %745 = sbr.rel (%p743) target = $region116
      $region115: #{temporal_gat_forward.1} parent=11 // pred_region
        _
      $region116: #{temporal_gat_forward.1} parent=11 // pred_fallthru
        _
      // Predicated region
      $region117: #{temporal_gat_forward.1} parent=11 // pred_check
        %p746 = pneg %p627
      $region118: #{temporal_gat_forward.1} parent=11 // pred_check_branch
        %748 = sbr.rel (%p746) target = $region120
      $region119: #{temporal_gat_forward.1} parent=11 // pred_region
        _
      $region120: #{temporal_gat_forward.1} parent=11 // pred_fallthru
        _
    $region12: #{temporal_gat_forward.1} parent=5 // pred_fallthru
      _
    %p749 = scmp.lt.s32.totalorder %s34, 2
    // Predicated region
    $region121: #{temporal_gat_forward.1} parent=5 // pred_check
      %p750 = pneg %p749
    $region122: #{temporal_gat_forward.1} parent=5 // pred_check_branch
      %752 = sbr.rel (%p750) target = $region124
    $region123: #{temporal_gat_forward.1} parent=5 // pred_region
      // Predicated region
      $region125: #{temporal_gat_forward.1} parent=123 // pred_check
        %p753 = pneg %p54
      $region126: #{temporal_gat_forward.1} parent=123 // pred_check_branch
        %755 = sbr.rel (%p753) target = $region128
      $region127: #{temporal_gat_forward.1} parent=123 // pred_region
        %p756 = scmp.lt.s32.totalorder %s34, 1
        %s757 = scalar_select %p756, %s34, 1
        %s758 = smul.addr %s757, 16
        %s759 = smul.addr %s758, 8
        %s760 = scalar_lea.vmem %s0, %s759
      $region128: #{temporal_gat_forward.1} parent=123 // pred_fallthru
        _
    $region124: #{temporal_gat_forward.1} parent=5 // pred_fallthru
      _
    %p761 = scmp.le.s32.totalorder 1, %s34
    %p762 = scmp.lt.s32.totalorder %s34, 3
    %p763 = pnand %p761, %p762
    %p764 = pneg %p763
    // Predicated region
    $region129: #{temporal_gat_forward.1} parent=5 // pred_check
      _
    $region130: #{temporal_gat_forward.1} parent=5 // pred_check_branch
      %766 = sbr.rel (%p763) target = $region132
    $region131: #{temporal_gat_forward.1} parent=5 // pred_region
      %s767 = ssub.s32 %s34, 1
      %p768 = scmp.lt.s32.totalorder %s39, 1
      %s769 = scalar_select %p768, %s39, 1
      %s770 = smul.addr %s769, 16
      %s771 = smul.addr %s770, 8
      %s772 = scalar_lea.vmem %s0, %s771
      %p773 = pneg %p60
      %p774 = pneg %p57
      %p775 = pneg %p81
      %p776 = pneg %p78
      %p777 = pneg %p102
      %p778 = pneg %p99
      %p779 = pneg %p123
      %p780 = pneg %p120
      %p781 = pneg %p144
      %p782 = pneg %p141
      %p783 = pneg %p165
      %p784 = pneg %p162
      %p785 = pneg %p186
      %p786 = pneg %p183
      %p787 = pneg %p207
      %p788 = pneg %p204
      %p789 = pneg %p228
      %p790 = pneg %p225
      %p791 = pneg %p249
      %p792 = pneg %p246
      %p793 = pneg %p270
      %p794 = pneg %p267
      %p795 = pneg %p291
      %p796 = pneg %p288
      %p797 = pneg %p312
      %p798 = pneg %p309
      %p799 = pneg %p333
      %p800 = pneg %p330
      %p801 = pneg %p354
      %p802 = pneg %p351
      %p803 = pneg %p375
      %p804 = pneg %p372
      %p805 = pneg %p396
      %p806 = pneg %p393
      %p807 = pneg %p417
      %p808 = pneg %p414
      %p809 = pneg %p438
      %p810 = pneg %p435
      %p811 = pneg %p459
      %p812 = pneg %p456
      %p813 = pneg %p480
      %p814 = pneg %p477
      %p815 = pneg %p501
      %p816 = pneg %p498
      %p817 = pneg %p522
      %p818 = pneg %p519
      %p819 = pneg %p543
      %p820 = pneg %p540
      %p821 = pneg %p564
      %p822 = pneg %p561
      %p823 = pneg %p585
      %p824 = pneg %p582
      %p825 = pneg %p606
      %p826 = pneg %p603
      %p827 = pneg %p627
      %p828 = pneg %p624
      %p829 = pneg %p653
      %p830 = pneg %p650
      %p831 = scmp.lt.s32.totalorder %s39, 1
      %s832 = scalar_select %p831, %s39, 1
      %s833 = smul.addr %s832, 2
      %s834 = smul.addr %s833, 8
      %s835 = scalar_lea.vmem %s28, %s834
      %p836 = scmp.lt.s32.totalorder %s39, 1
      %s837 = scalar_select %p836, %s39, 1
      %s838 = smul.addr %s837, 16
      %s839 = smul.addr %s838, 8
      %s840 = scalar_lea.vmem %s0, %s839
      %p841 = scmp.lt.s32.totalorder %s39, 1
      %s842 = scalar_select %p841, %s39, 1
      %s843 = smul.addr %s842, 2
      %s844 = smul.addr %s843, 8
      %s845 = scalar_lea.vmem %s28, %s844
      %v846 = vld [vmem:[%s3] sm:$0xff]
      %v847 = vld [vmem:[%s840] sm:$0xff]
      %v848 = vld [vmem:[%s840 + $0x8] sm:$0xff]
      %v849 = vld [vmem:[%s840 + $0x10] sm:$0xff]
      %v850 = vld [vmem:[%s840 + $0x18] sm:$0xff]
      %v851 = vld [vmem:[%s840 + $0x20] sm:$0xff]
      %v852 = vld [vmem:[%s840 + $0x28] sm:$0xff]
      %v853 = vld [vmem:[%s840 + $0x30] sm:$0xff]
      %v854 = vld [vmem:[%s840 + $0x38] sm:$0xff]
      %v855 = vld [vmem:[%s840 + $0x40] sm:$0xff]
      %v856 = vld [vmem:[%s840 + $0x48] sm:$0xff]
      %v857 = vld [vmem:[%s840 + $0x50] sm:$0xff]
      %v858 = vld [vmem:[%s840 + $0x58] sm:$0xff]
      %v859 = vld [vmem:[%s840 + $0x60] sm:$0xff]
      %v860 = vld [vmem:[%s840 + $0x68] sm:$0xff]
      %v861 = vld [vmem:[%s840 + $0x70] sm:$0xff]
      %v862 = vld [vmem:[%s840 + $0x78] sm:$0xff]
      %v863 = vld [vmem:[%s4] sm:$0xf]
      %v864 = vld [vmem:[%s5] sm:$0x1]
      %v866 = vlaneseq
      %v867 = vshrl.u32 %v866, 7
      %v868 = vsub.s32 0, %v867
      %v869 = vrot.slane %v864, %v868
      %vm871 = vcmask 31744
      %v873 = vsel %vm871, %v847, 0
      %v876 = vsel %vm871, %v848, 0
      %v879 = vsel %vm871, %v849, 0
      %v882 = vsel %vm871, %v850, 0
      %v885 = vsel %vm871, %v851, 0
      %v888 = vsel %vm871, %v852, 0
      %v891 = vsel %vm871, %v853, 0
      %v894 = vsel %vm871, %v854, 0
      %v897 = vsel %vm871, %v855, 0
      %v900 = vsel %vm871, %v856, 0
      %v903 = vsel %vm871, %v857, 0
      %v906 = vsel %vm871, %v858, 0
      %v909 = vsel %vm871, %v859, 0
      %v912 = vsel %vm871, %v860, 0
      %v915 = vsel %vm871, %v861, 0
      %v918 = vsel %vm871, %v862, 0
      %vm920 = vcmask 1043456
      %v922 = vsel %vm920, %v863, 0
      %924 = vmatprep.subr.mxu0 0.0
      %925 = vmatpush1.msra.mxu0 %v922
      %926 = vmatprep.subr.mxu0 0.0
      %927 = vmatpush1.msra.mxu0 0.0
      %928 = vmatprep.subr.mxu0 0.0
      %929 = vmatpush1.msra.mxu0 0.0
      %930 = vmatprep.subr.mxu0 0.0
      %931 = vmatpush1.msra.mxu0 0.0
      %932 = vmatprep.subr.mxu0 0.0
      %933 = vmatpush1.msra.mxu0 0.0
      %934 = vmatprep.subr.mxu0 0.0
      %935 = vmatpush1.msra.mxu0 0.0
      %936 = vmatprep.subr.mxu0 0.0
      %937 = vmatpush1.msra.mxu0 0.0
      %938 = vmatprep.subr.mxu0 0.0
      %939 = vmatpush1.msra.mxu0 0.0
      %940 = vmatprep.subr.mxu0 0.0
      %941 = vmatpush1.msra.mxu0 0.0
      %942 = vmatprep.subr.mxu0 0.0
      %943 = vmatpush1.msra.mxu0 0.0
      %944 = vmatprep.subr.mxu0 0.0
      %945 = vmatpush1.msra.mxu0 0.0
      %946 = vmatprep.subr.mxu0 0.0
      %947 = vmatpush1.msra.mxu0 0.0
      %948 = vmatprep.subr.mxu0 0.0
      %949 = vmatpush1.msra.mxu0 0.0
      %950 = vmatprep.subr.mxu0 0.0
      %951 = vmatpush1.msra.mxu0 0.0
      %952 = vmatprep.subr.mxu0 0.0
      %953 = vmatpush1.msra.mxu0 0.0
      %954 = vmatprep.subr.mxu0 0.0
      %955 = vmatpush1.msra.mxu0 0.0
      %956 = vmatprep.subr.mxu0 0.0
      %957 = vmatpush1.msra.mxu0 0.0
      %958 = vmatprep.subr.mxu0 0.0
      %959 = vmatpush1.msra.mxu0 0.0
      %960 = vmatprep.subr.mxu0 0.0
      %961 = vmatpush1.msra.mxu0 0.0
      %962 = vmatprep.subr.mxu0 0.0
      %963 = vmatpush1.msra.mxu0 0.0
      %964 = vmatprep.subr.mxu0 0.0
      %965 = vmatpush1.msra.mxu0 0.0
      %966 = vmatprep.subr.mxu0 0.0
      %967 = vmatpush1.msra.mxu0 0.0
      %968 = vmatprep.subr.mxu0 0.0
      %969 = vmatpush1.msra.mxu0 0.0
      %970 = vmatprep.subr.mxu0 0.0
      %971 = vmatpush1.msra.mxu0 0.0
      %972 = vmatprep.subr.mxu0 0.0
      %973 = vmatpush1.msra.mxu0 0.0
      %974 = vmatprep.subr.mxu0 0.0
      %975 = vmatpush1.msra.mxu0 0.0
      %976 = vmatprep.subr.mxu0 0.0
      %977 = vmatpush1.msra.mxu0 0.0
      %978 = vmatprep.subr.mxu0 0.0
      %979 = vmatpush1.msra.mxu0 0.0
      %980 = vmatprep.subr.mxu0 0.0
      %981 = vmatpush1.msra.mxu0 0.0
      %982 = vmatprep.subr.mxu0 0.0
      %983 = vmatpush1.msra.mxu0 0.0
      %984 = vmatprep.subr.mxu0 0.0
      %985 = vmatpush1.msra.mxu0 0.0
      %986 = vmatprep.subr.mxu0 0.0
      %987 = vmatpush1.msra.mxu0 0.0
      %988 = vmatprep.mubr.f32.mxu0 0.0
      %989 = vmatmul.mubr.f32.gmra.mrb[0].mxu0 %v873
      %v990 = vpop.f32.mrb[0].mxu0
      %v991 = vadd.f32 %v869, %v990
      %v992 = vpop.f32.mrb[0].mxu0
      %993 = vmatprep.mubr.f32.mxu0 0.0
      %994 = vmatmul.mubr.f32.gmra.mrb[0].mxu0 %v876
      %v995 = vpop.f32.mrb[0].mxu0
      %v996 = vadd.f32 %v869, %v995
      %v997 = vpop.f32.mrb[0].mxu0
      %998 = vmatprep.mubr.f32.mxu0 0.0
      %999 = vmatmul.mubr.f32.gmra.mrb[0].mxu0 %v879
      %v1000 = vpop.f32.mrb[0].mxu0
      %v1001 = vadd.f32 %v869, %v1000
      %v1002 = vpop.f32.mrb[0].mxu0
      %1003 = vmatprep.mubr.f32.mxu0 0.0
      %1004 = vmatmul.mubr.f32.gmra.mrb[0].mxu0 %v882
      %v1005 = vpop.f32.mrb[0].mxu0
      %v1006 = vadd.f32 %v869, %v1005
      %v1007 = vpop.f32.mrb[0].mxu0
      %1008 = vmatprep.mubr.f32.mxu0 0.0
      %1009 = vmatmul.mubr.f32.gmra.mrb[0].mxu0 %v885
      %v1010 = vpop.f32.mrb[0].mxu0
      %v1011 = vadd.f32 %v869, %v1010
      %v1012 = vpop.f32.mrb[0].mxu0
      %1013 = vmatprep.mubr.f32.mxu0 0.0
      %1014 = vmatmul.mubr.f32.gmra.mrb[0].mxu0 %v888
      %v1015 = vpop.f32.mrb[0].mxu0
      %v1016 = vadd.f32 %v869, %v1015
      %v1017 = vpop.f32.mrb[0].mxu0
      %1018 = vmatprep.mubr.f32.mxu0 0.0
      %1019 = vmatmul.mubr.f32.gmra.mrb[0].mxu0 %v891
      %v1020 = vpop.f32.mrb[0].mxu0
      %v1021 = vadd.f32 %v869, %v1020
      %v1022 = vpop.f32.mrb[0].mxu0
      %1023 = vmatprep.mubr.f32.mxu0 0.0
      %1024 = vmatmul.mubr.f32.gmra.mrb[0].mxu0 %v894
      %v1025 = vpop.f32.mrb[0].mxu0
      %v1026 = vadd.f32 %v869, %v1025
      %v1027 = vpop.f32.mrb[0].mxu0
      %1028 = vmatprep.mubr.f32.mxu0 0.0
      %1029 = vmatmul.mubr.f32.gmra.mrb[0].mxu0 %v897
      %v1030 = vpop.f32.mrb[0].mxu0
      %v1031 = vadd.f32 %v869, %v1030
      %v1032 = vpop.f32.mrb[0].mxu0
      %1033 = vmatprep.mubr.f32.mxu0 0.0
      %1034 = vmatmul.mubr.f32.gmra.mrb[0].mxu0 %v900
      %v1035 = vpop.f32.mrb[0].mxu0
      %v1036 = vadd.f32 %v869, %v1035
      %v1037 = vpop.f32.mrb[0].mxu0
      %1038 = vmatprep.mubr.f32.mxu0 0.0
      %1039 = vmatmul.mubr.f32.gmra.mrb[0].mxu0 %v903
      %v1040 = vpop.f32.mrb[0].mxu0
      %v1041 = vadd.f32 %v869, %v1040
      %v1042 = vpop.f32.mrb[0].mxu0
      %1043 = vmatprep.mubr.f32.mxu0 0.0
      %1044 = vmatmul.mubr.f32.gmra.mrb[0].mxu0 %v906
      %v1045 = vpop.f32.mrb[0].mxu0
      %v1046 = vadd.f32 %v869, %v1045
      %v1047 = vpop.f32.mrb[0].mxu0
      %1048 = vmatprep.mubr.f32.mxu0 0.0
      %1049 = vmatmul.mubr.f32.gmra.mrb[0].mxu0 %v909
      %v1050 = vpop.f32.mrb[0].mxu0
      %v1051 = vadd.f32 %v869, %v1050
      %v1052 = vpop.f32.mrb[0].mxu0
      %1053 = vmatprep.mubr.f32.mxu0 0.0
      %1054 = vmatmul.mubr.f32.gmra.mrb[0].mxu0 %v912
      %v1055 = vpop.f32.mrb[0].mxu0
      %v1056 = vadd.f32 %v869, %v1055
      %v1057 = vpop.f32.mrb[0].mxu0
      %1058 = vmatprep.mubr.f32.mxu0 0.0
      %1059 = vmatmul.mubr.f32.gmra.mrb[0].mxu0 %v915
      %v1060 = vpop.f32.mrb[0].mxu0
      %v1061 = vadd.f32 %v869, %v1060
      %v1062 = vpop.f32.mrb[0].mxu0
      %1063 = vmatprep.mubr.f32.mxu0 0.0
      %1064 = vmatmul.mubr.f32.gmra.mrb[0].mxu0 %v918
      %v1065 = vpop.f32.mrb[0].mxu0
      %v1066 = vadd.f32 %v869, %v1065
      %v1067 = vpop.f32.mrb[0].mxu0
      %1068 = vdwg.mxu0
      %v1069 = vld [vmem:[%s2] sm:$0xff]
      %v1070 = vadd.f32 %v991, %v1069
      %v1071 = vadd.f32 %v996, %v1069
      %v1072 = vadd.f32 %v1001, %v1069
      %v1073 = vadd.f32 %v1006, %v1069
      %v1074 = vadd.f32 %v1011, %v1069
      %v1075 = vadd.f32 %v1016, %v1069
      %v1076 = vadd.f32 %v1021, %v1069
      %v1077 = vadd.f32 %v1026, %v1069
      %v1078 = vadd.f32 %v1031, %v1069
      %v1079 = vadd.f32 %v1036, %v1069
      %v1080 = vadd.f32 %v1041, %v1069
      %v1081 = vadd.f32 %v1046, %v1069
      %v1082 = vadd.f32 %v1051, %v1069
      %v1083 = vadd.f32 %v1056, %v1069
      %v1084 = vadd.f32 %v1061, %v1069
      %v1085 = vadd.f32 %v1066, %v1069
      %s1086 = scalar_lea.vmem %s6, 32
      %v1087 = vld [vmem:[%s1086] sm:$0xff]
      %v1088 = vld [vmem:[%s1086 + $0x8] sm:$0xff]
      %v1089 = vld [vmem:[%s1086 + $0x10] sm:$0xff]
      %v1090 = vld [vmem:[%s1086 + $0x18] sm:$0xff]
      %s1091 = scalar_lea.vmem %s7, 1
      %v1092 = vld [vmem:[%s1091] sm:$0x1]
      %v1094 = vlaneseq
      %v1095 = vshrl.u32 %v1094, 7
      %v1096 = vsub.s32 0, %v1095
      %v1097 = vrot.slane %v1092, %v1096
      %vm1099 = vcmask 261120
      %v1101 = vsel %vm1099, %v1070, 0
      %v1104 = vsel %vm1099, %v1071, 0
      %v1107 = vsel %vm1099, %v1072, 0
      %v1110 = vsel %vm1099, %v1073, 0
      %v1113 = vsel %vm1099, %v1074, 0
      %v1116 = vsel %vm1099, %v1075, 0
      %v1119 = vsel %vm1099, %v1076, 0
      %v1122 = vsel %vm1099, %v1077, 0
      %v1125 = vsel %vm1099, %v1078, 0
      %v1128 = vsel %vm1099, %v1079, 0
      %v1131 = vsel %vm1099, %v1080, 0
      %v1134 = vsel %vm1099, %v1081, 0
      %v1137 = vsel %vm1099, %v1082, 0
      %v1140 = vsel %vm1099, %v1083, 0
      %v1143 = vsel %vm1099, %v1084, 0
      %v1146 = vsel %vm1099, %v1085, 0
      %1148 = vmatprep.subr.mxu0 0.0
      %1149 = vmatpush1.msra.mxu0 %v1087
      %1150 = vmatprep.subr.mxu0 0.0
      %1151 = vmatpush1.msra.mxu0 %v1088
      %1152 = vmatprep.subr.mxu0 0.0
      %1153 = vmatpush1.msra.mxu0 %v1089
      %1154 = vmatprep.subr.mxu0 0.0
      %1155 = vmatpush1.msra.mxu0 %v1090
      %1156 = vmatprep.subr.mxu0 0.0
      %1157 = vmatpush1.msra.mxu0 0.0
      %1158 = vmatprep.subr.mxu0 0.0
      %1159 = vmatpush1.msra.mxu0 0.0
      %1160 = vmatprep.subr.mxu0 0.0
      %1161 = vmatpush1.msra.mxu0 0.0
      %1162 = vmatprep.subr.mxu0 0.0
      %1163 = vmatpush1.msra.mxu0 0.0
      %1164 = vmatprep.subr.mxu0 0.0
      %1165 = vmatpush1.msra.mxu0 0.0
      %1166 = vmatprep.subr.mxu0 0.0
      %1167 = vmatpush1.msra.mxu0 0.0
      %1168 = vmatprep.subr.mxu0 0.0
      %1169 = vmatpush1.msra.mxu0 0.0
      %1170 = vmatprep.subr.mxu0 0.0
      %1171 = vmatpush1.msra.mxu0 0.0
      %1172 = vmatprep.subr.mxu0 0.0
      %1173 = vmatpush1.msra.mxu0 0.0
      %1174 = vmatprep.subr.mxu0 0.0
      %1175 = vmatpush1.msra.mxu0 0.0
      %1176 = vmatprep.subr.mxu0 0.0
      %1177 = vmatpush1.msra.mxu0 0.0
      %1178 = vmatprep.subr.mxu0 0.0
      %1179 = vmatpush1.msra.mxu0 0.0
      %1180 = vmatprep.subr.mxu0 0.0
      %1181 = vmatpush1.msra.mxu0 0.0
      %1182 = vmatprep.subr.mxu0 0.0
      %1183 = vmatpush1.msra.mxu0 0.0
      %1184 = vmatprep.subr.mxu0 0.0
      %1185 = vmatpush1.msra.mxu0 0.0
      %1186 = vmatprep.subr.mxu0 0.0
      %1187 = vmatpush1.msra.mxu0 0.0
      %1188 = vmatprep.subr.mxu0 0.0
      %1189 = vmatpush1.msra.mxu0 0.0
      %1190 = vmatprep.subr.mxu0 0.0
      %1191 = vmatpush1.msra.mxu0 0.0
      %1192 = vmatprep.subr.mxu0 0.0
      %1193 = vmatpush1.msra.mxu0 0.0
      %1194 = vmatprep.subr.mxu0 0.0
      %1195 = vmatpush1.msra.mxu0 0.0
      %1196 = vmatprep.subr.mxu0 0.0
      %1197 = vmatpush1.msra.mxu0 0.0
      %1198 = vmatprep.subr.mxu0 0.0
      %1199 = vmatpush1.msra.mxu0 0.0
      %1200 = vmatprep.subr.mxu0 0.0
      %1201 = vmatpush1.msra.mxu0 0.0
      %1202 = vmatprep.subr.mxu0 0.0
      %1203 = vmatpush1.msra.mxu0 0.0
      %1204 = vmatprep.subr.mxu0 0.0
      %1205 = vmatpush1.msra.mxu0 0.0
      %1206 = vmatprep.subr.mxu0 0.0
      %1207 = vmatpush1.msra.mxu0 0.0
      %1208 = vmatprep.subr.mxu0 0.0
      %1209 = vmatpush1.msra.mxu0 0.0
      %1210 = vmatprep.subr.mxu0 0.0
      %1211 = vmatpush1.msra.mxu0 0.0
      %1212 = vmatprep.mubr.f32.mxu0 0.0
      %1213 = vmatmul.mubr.f32.gmra.mrb[0].mxu0 %v1101
      %v1214 = vpop.f32.mrb[0].mxu0
      %v1215 = vadd.f32 %v1097, %v1214
      %v1216 = vpop.f32.mrb[0].mxu0
      %1217 = vmatprep.mubr.f32.mxu0 0.0
      %1218 = vmatmul.mubr.f32.gmra.mrb[0].mxu0 %v1104
      %v1219 = vpop.f32.mrb[0].mxu0
      %v1220 = vadd.f32 %v1097, %v1219
      %v1221 = vpop.f32.mrb[0].mxu0
      %1222 = vmatprep.mubr.f32.mxu0 0.0
      %1223 = vmatmul.mubr.f32.gmra.mrb[0].mxu0 %v1107
      %v1224 = vpop.f32.mrb[0].mxu0
      %v1225 = vadd.f32 %v1097, %v1224
      %v1226 = vpop.f32.mrb[0].mxu0
      %1227 = vmatprep.mubr.f32.mxu0 0.0
      %1228 = vmatmul.mubr.f32.gmra.mrb[0].mxu0 %v1110
      %v1229 = vpop.f32.mrb[0].mxu0
      %v1230 = vadd.f32 %v1097, %v1229
      %v1231 = vpop.f32.mrb[0].mxu0
      %1232 = vmatprep.mubr.f32.mxu0 0.0
      %1233 = vmatmul.mubr.f32.gmra.mrb[0].mxu0 %v1113
      %v1234 = vpop.f32.mrb[0].mxu0
      %v1235 = vadd.f32 %v1097, %v1234
      %v1236 = vpop.f32.mrb[0].mxu0
      %1237 = vmatprep.mubr.f32.mxu0 0.0
      %1238 = vmatmul.mubr.f32.gmra.mrb[0].mxu0 %v1116
      %v1239 = vpop.f32.mrb[0].mxu0
      %v1240 = vadd.f32 %v1097, %v1239
      %v1241 = vpop.f32.mrb[0].mxu0
      %1242 = vmatprep.mubr.f32.mxu0 0.0
      %1243 = vmatmul.mubr.f32.gmra.mrb[0].mxu0 %v1119
      %v1244 = vpop.f32.mrb[0].mxu0
      %v1245 = vadd.f32 %v1097, %v1244
      %v1246 = vpop.f32.mrb[0].mxu0
      %1247 = vmatprep.mubr.f32.mxu0 0.0
      %1248 = vmatmul.mubr.f32.gmra.mrb[0].mxu0 %v1122
      %v1249 = vpop.f32.mrb[0].mxu0
      %v1250 = vadd.f32 %v1097, %v1249
      %v1251 = vpop.f32.mrb[0].mxu0
      %1252 = vmatprep.mubr.f32.mxu0 0.0
      %1253 = vmatmul.mubr.f32.gmra.mrb[0].mxu0 %v1125
      %v1254 = vpop.f32.mrb[0].mxu0
      %v1255 = vadd.f32 %v1097, %v1254
      %v1256 = vpop.f32.mrb[0].mxu0
      %1257 = vmatprep.mubr.f32.mxu0 0.0
      %1258 = vmatmul.mubr.f32.gmra.mrb[0].mxu0 %v1128
      %v1259 = vpop.f32.mrb[0].mxu0
      %v1260 = vadd.f32 %v1097, %v1259
      %v1261 = vpop.f32.mrb[0].mxu0
      %1262 = vmatprep.mubr.f32.mxu0 0.0
      %1263 = vmatmul.mubr.f32.gmra.mrb[0].mxu0 %v1131
      %v1264 = vpop.f32.mrb[0].mxu0
      %v1265 = vadd.f32 %v1097, %v1264
      %v1266 = vpop.f32.mrb[0].mxu0
      %1267 = vmatprep.mubr.f32.mxu0 0.0
      %1268 = vmatmul.mubr.f32.gmra.mrb[0].mxu0 %v1134
      %v1269 = vpop.f32.mrb[0].mxu0
      %v1270 = vadd.f32 %v1097, %v1269
      %v1271 = vpop.f32.mrb[0].mxu0
      %1272 = vmatprep.mubr.f32.mxu0 0.0
      %1273 = vmatmul.mubr.f32.gmra.mrb[0].mxu0 %v1137
      %v1274 = vpop.f32.mrb[0].mxu0
      %v1275 = vadd.f32 %v1097, %v1274
      %v1276 = vpop.f32.mrb[0].mxu0
      %1277 = vmatprep.mubr.f32.mxu0 0.0
      %1278 = vmatmul.mubr.f32.gmra.mrb[0].mxu0 %v1140
      %v1279 = vpop.f32.mrb[0].mxu0
      %v1280 = vadd.f32 %v1097, %v1279
      %v1281 = vpop.f32.mrb[0].mxu0
      %1282 = vmatprep.mubr.f32.mxu0 0.0
      %1283 = vmatmul.mubr.f32.gmra.mrb[0].mxu0 %v1143
      %v1284 = vpop.f32.mrb[0].mxu0
      %v1285 = vadd.f32 %v1097, %v1284
      %v1286 = vpop.f32.mrb[0].mxu0
      %1287 = vmatprep.mubr.f32.mxu0 0.0
      %1288 = vmatmul.mubr.f32.gmra.mrb[0].mxu0 %v1146
      %v1289 = vpop.f32.mrb[0].mxu0
      %v1290 = vadd.f32 %v1097, %v1289
      %v1291 = vpop.f32.mrb[0].mxu0
      %1292 = vdwg.mxu0
      %s1293 = scalar_lea.vmem %s6, 64
      %v1294 = vld [vmem:[%s1293] sm:$0xff]
      %v1295 = vld [vmem:[%s1293 + $0x8] sm:$0xff]
      %v1296 = vld [vmem:[%s1293 + $0x10] sm:$0xff]
      %v1297 = vld [vmem:[%s1293 + $0x18] sm:$0xff]
      %s1298 = scalar_lea.vmem %s7, 2
      %v1299 = vld [vmem:[%s1298] sm:$0x1]
      %v1301 = vlaneseq
      %v1302 = vshrl.u32 %v1301, 7
      %v1303 = vsub.s32 0, %v1302
      %v1304 = vrot.slane %v1299, %v1303
      %1306 = vmatprep.subr.mxu0 0.0
      %1307 = vmatpush1.msra.mxu0 %v1294
      %1308 = vmatprep.subr.mxu0 0.0
      %1309 = vmatpush1.msra.mxu0 %v1295
      %1310 = vmatprep.subr.mxu0 0.0
      %1311 = vmatpush1.msra.mxu0 %v1296
      %1312 = vmatprep.subr.mxu0 0.0
      %1313 = vmatpush1.msra.mxu0 %v1297
      %1314 = vmatprep.subr.mxu0 0.0
      %1315 = vmatpush1.msra.mxu0 0.0
      %1316 = vmatprep.subr.mxu0 0.0
      %1317 = vmatpush1.msra.mxu0 0.0
      %1318 = vmatprep.subr.mxu0 0.0
      %1319 = vmatpush1.msra.mxu0 0.0
      %1320 = vmatprep.subr.mxu0 0.0
      %1321 = vmatpush1.msra.mxu0 0.0
      %1322 = vmatprep.subr.mxu0 0.0
      %1323 = vmatpush1.msra.mxu0 0.0
      %1324 = vmatprep.subr.mxu0 0.0
      %1325 = vmatpush1.msra.mxu0 0.0
      %1326 = vmatprep.subr.mxu0 0.0
      %1327 = vmatpush1.msra.mxu0 0.0
      %1328 = vmatprep.subr.mxu0 0.0
      %1329 = vmatpush1.msra.mxu0 0.0
      %1330 = vmatprep.subr.mxu0 0.0
      %1331 = vmatpush1.msra.mxu0 0.0
      %1332 = vmatprep.subr.mxu0 0.0
      %1333 = vmatpush1.msra.mxu0 0.0
      %1334 = vmatprep.subr.mxu0 0.0
      %1335 = vmatpush1.msra.mxu0 0.0
      %1336 = vmatprep.subr.mxu0 0.0
      %1337 = vmatpush1.msra.mxu0 0.0
      %1338 = vmatprep.subr.mxu0 0.0
      %1339 = vmatpush1.msra.mxu0 0.0
      %1340 = vmatprep.subr.mxu0 0.0
      %1341 = vmatpush1.msra.mxu0 0.0
      %1342 = vmatprep.subr.mxu0 0.0
      %1343 = vmatpush1.msra.mxu0 0.0
      %1344 = vmatprep.subr.mxu0 0.0
      %1345 = vmatpush1.msra.mxu0 0.0
      %1346 = vmatprep.subr.mxu0 0.0
      %1347 = vmatpush1.msra.mxu0 0.0
      %1348 = vmatprep.subr.mxu0 0.0
      %1349 = vmatpush1.msra.mxu0 0.0
      %1350 = vmatprep.subr.mxu0 0.0
      %1351 = vmatpush1.msra.mxu0 0.0
      %1352 = vmatprep.subr.mxu0 0.0
      %1353 = vmatpush1.msra.mxu0 0.0
      %1354 = vmatprep.subr.mxu0 0.0
      %1355 = vmatpush1.msra.mxu0 0.0
      %1356 = vmatprep.subr.mxu0 0.0
      %1357 = vmatpush1.msra.mxu0 0.0
      %1358 = vmatprep.subr.mxu0 0.0
      %1359 = vmatpush1.msra.mxu0 0.0
      %1360 = vmatprep.subr.mxu0 0.0
      %1361 = vmatpush1.msra.mxu0 0.0
      %1362 = vmatprep.subr.mxu0 0.0
      %1363 = vmatpush1.msra.mxu0 0.0
      %1364 = vmatprep.subr.mxu0 0.0
      %1365 = vmatpush1.msra.mxu0 0.0
      %1366 = vmatprep.subr.mxu0 0.0
      %1367 = vmatpush1.msra.mxu0 0.0
      %1368 = vmatprep.subr.mxu0 0.0
      %1369 = vmatpush1.msra.mxu0 0.0
      %1370 = vmatprep.mubr.f32.mxu0 0.0
      %1371 = vmatmul.mubr.f32.gmra.mrb[0].mxu0 %v1101
      %v1372 = vpop.f32.mrb[0].mxu0
      %v1373 = vadd.f32 %v1304, %v1372
      %v1374 = vpop.f32.mrb[0].mxu0
      %1375 = vmatprep.mubr.f32.mxu0 0.0
      %1376 = vmatmul.mubr.f32.gmra.mrb[0].mxu0 %v1104
      %v1377 = vpop.f32.mrb[0].mxu0
      %v1378 = vadd.f32 %v1304, %v1377
      %v1379 = vpop.f32.mrb[0].mxu0
      %1380 = vmatprep.mubr.f32.mxu0 0.0
      %1381 = vmatmul.mubr.f32.gmra.mrb[0].mxu0 %v1107
      %v1382 = vpop.f32.mrb[0].mxu0
      %v1383 = vadd.f32 %v1304, %v1382
      %v1384 = vpop.f32.mrb[0].mxu0
      %1385 = vmatprep.mubr.f32.mxu0 0.0
      %1386 = vmatmul.mubr.f32.gmra.mrb[0].mxu0 %v1110
      %v1387 = vpop.f32.mrb[0].mxu0
      %v1388 = vadd.f32 %v1304, %v1387
      %v1389 = vpop.f32.mrb[0].mxu0
      %1390 = vmatprep.mubr.f32.mxu0 0.0
      %1391 = vmatmul.mubr.f32.gmra.mrb[0].mxu0 %v1113
      %v1392 = vpop.f32.mrb[0].mxu0
      %v1393 = vadd.f32 %v1304, %v1392
      %v1394 = vpop.f32.mrb[0].mxu0
      %1395 = vmatprep.mubr.f32.mxu0 0.0
      %1396 = vmatmul.mubr.f32.gmra.mrb[0].mxu0 %v1116
      %v1397 = vpop.f32.mrb[0].mxu0
      %v1398 = vadd.f32 %v1304, %v1397
      %v1399 = vpop.f32.mrb[0].mxu0
      %1400 = vmatprep.mubr.f32.mxu0 0.0
      %1401 = vmatmul.mubr.f32.gmra.mrb[0].mxu0 %v1119
      %v1402 = vpop.f32.mrb[0].mxu0
      %v1403 = vadd.f32 %v1304, %v1402
      %v1404 = vpop.f32.mrb[0].mxu0
      %1405 = vmatprep.mubr.f32.mxu0 0.0
      %1406 = vmatmul.mubr.f32.gmra.mrb[0].mxu0 %v1122
      %v1407 = vpop.f32.mrb[0].mxu0
      %v1408 = vadd.f32 %v1304, %v1407
      %v1409 = vpop.f32.mrb[0].mxu0
      %1410 = vmatprep.mubr.f32.mxu0 0.0
      %1411 = vmatmul.mubr.f32.gmra.mrb[0].mxu0 %v1125
      %v1412 = vpop.f32.mrb[0].mxu0
      %v1413 = vadd.f32 %v1304, %v1412
      %v1414 = vpop.f32.mrb[0].mxu0
      %1415 = vmatprep.mubr.f32.mxu0 0.0
      %1416 = vmatmul.mubr.f32.gmra.mrb[0].mxu0 %v1128
      %v1417 = vpop.f32.mrb[0].mxu0
      %v1418 = vadd.f32 %v1304, %v1417
      %v1419 = vpop.f32.mrb[0].mxu0
      %1420 = vmatprep.mubr.f32.mxu0 0.0
      %1421 = vmatmul.mubr.f32.gmra.mrb[0].mxu0 %v1131
      %v1422 = vpop.f32.mrb[0].mxu0
      %v1423 = vadd.f32 %v1304, %v1422
      %v1424 = vpop.f32.mrb[0].mxu0
      %1425 = vmatprep.mubr.f32.mxu0 0.0
      %1426 = vmatmul.mubr.f32.gmra.mrb[0].mxu0 %v1134
      %v1427 = vpop.f32.mrb[0].mxu0
      %v1428 = vadd.f32 %v1304, %v1427
      %v1429 = vpop.f32.mrb[0].mxu0
      %1430 = vmatprep.mubr.f32.mxu0 0.0
      %1431 = vmatmul.mubr.f32.gmra.mrb[0].mxu0 %v1137
      %v1432 = vpop.f32.mrb[0].mxu0
      %v1433 = vadd.f32 %v1304, %v1432
      %v1434 = vpop.f32.mrb[0].mxu0
      %1435 = vmatprep.mubr.f32.mxu0 0.0
      %1436 = vmatmul.mubr.f32.gmra.mrb[0].mxu0 %v1140
      %v1437 = vpop.f32.mrb[0].mxu0
      %v1438 = vadd.f32 %v1304, %v1437
      %v1439 = vpop.f32.mrb[0].mxu0
      %1440 = vmatprep.mubr.f32.mxu0 0.0
      %1441 = vmatmul.mubr.f32.gmra.mrb[0].mxu0 %v1143
      %v1442 = vpop.f32.mrb[0].mxu0
      %v1443 = vadd.f32 %v1304, %v1442
      %v1444 = vpop.f32.mrb[0].mxu0
      %1445 = vmatprep.mubr.f32.mxu0 0.0
      %1446 = vmatmul.mubr.f32.gmra.mrb[0].mxu0 %v1146
      %v1447 = vpop.f32.mrb[0].mxu0
      %v1448 = vadd.f32 %v1304, %v1447
      %v1449 = vpop.f32.mrb[0].mxu0
      %1450 = vdwg.mxu0
      %v1451 = vld [vmem:[%s6] sm:$0xff]
      %v1452 = vld [vmem:[%s6 + $0x8] sm:$0xff]
      %v1453 = vld [vmem:[%s6 + $0x10] sm:$0xff]
      %v1454 = vld [vmem:[%s6 + $0x18] sm:$0xff]
      %v1455 = vld [vmem:[%s7] sm:$0x1]
      %v1457 = vlaneseq
      %v1458 = vshrl.u32 %v1457, 7
      %v1459 = vsub.s32 0, %v1458
      %v1460 = vrot.slane %v1455, %v1459
      %v1462 = vrot.slane %v1070, 7
      %v1463 = vrot.slane %v1071, 6
      %vm1464 = vcmask 1041409
      %v1465 = vsel %vm1464, %v1463, %v1462
      %v1466 = vrot.slane %v1072, 5
      %vm1467 = vcmask 1042434
      %v1468 = vsel %vm1467, %v1466, %v1465
      %v1469 = vrot.slane %v1073, 4
      %vm1470 = vcmask 1043459
      %v1471 = vsel %vm1470, %v1469, %v1468
      %v1472 = vrot.slane %v1074, 3
      %vm1473 = vcmask 1044484
      %v1474 = vsel %vm1473, %v1472, %v1471
      %v1475 = vrot.slane %v1075, 2
      %vm1476 = vcmask 1045509
      %v1477 = vsel %vm1476, %v1475, %v1474
      %v1478 = vrot.slane %v1076, 1
      %vm1479 = vcmask 1046534
      %v1480 = vsel %vm1479, %v1478, %v1477
      %vm1481 = vcmask 1047559
      %v1482 = vsel %vm1481, %v1077, %v1480
      %v1483 = vrot.slane %v1078, 7
      %v1484 = vrot.slane %v1079, 6
      %v1485 = vsel %vm1464, %v1484, %v1483
      %v1486 = vrot.slane %v1080, 5
      %v1487 = vsel %vm1467, %v1486, %v1485
      %v1488 = vrot.slane %v1081, 4
      %v1489 = vsel %vm1470, %v1488, %v1487
      %v1490 = vrot.slane %v1082, 3
      %v1491 = vsel %vm1473, %v1490, %v1489
      %v1492 = vrot.slane %v1083, 2
      %v1493 = vsel %vm1476, %v1492, %v1491
      %v1494 = vrot.slane %v1084, 1
      %v1495 = vsel %vm1479, %v1494, %v1493
      %v1496 = vsel %vm1481, %v1085, %v1495
      %v1497 = vsel %vm1099, %v1482, 0
      %v1499 = vsel %vm1099, %v1496, 0
      %1501 = vmatprep.subr.mxu0 0.0
      %1502 = vmatpush1.msra.mxu0 %v1451
      %1503 = vmatprep.subr.mxu0 0.0
      %1504 = vmatpush1.msra.mxu0 %v1452
      %1505 = vmatprep.subr.mxu0 0.0
      %1506 = vmatpush1.msra.mxu0 %v1453
      %1507 = vmatprep.subr.mxu0 0.0
      %1508 = vmatpush1.msra.mxu0 %v1454
      %1509 = vmatprep.subr.mxu0 0.0
      %1510 = vmatpush1.msra.mxu0 0.0
      %1511 = vmatprep.subr.mxu0 0.0
      %1512 = vmatpush1.msra.mxu0 0.0
      %1513 = vmatprep.subr.mxu0 0.0
      %1514 = vmatpush1.msra.mxu0 0.0
      %1515 = vmatprep.subr.mxu0 0.0
      %1516 = vmatpush1.msra.mxu0 0.0
      %1517 = vmatprep.subr.mxu0 0.0
      %1518 = vmatpush1.msra.mxu0 0.0
      %1519 = vmatprep.subr.mxu0 0.0
      %1520 = vmatpush1.msra.mxu0 0.0
      %1521 = vmatprep.subr.mxu0 0.0
      %1522 = vmatpush1.msra.mxu0 0.0
      %1523 = vmatprep.subr.mxu0 0.0
      %1524 = vmatpush1.msra.mxu0 0.0
      %1525 = vmatprep.subr.mxu0 0.0
      %1526 = vmatpush1.msra.mxu0 0.0
      %1527 = vmatprep.subr.mxu0 0.0
      %1528 = vmatpush1.msra.mxu0 0.0
      %1529 = vmatprep.subr.mxu0 0.0
      %1530 = vmatpush1.msra.mxu0 0.0
      %1531 = vmatprep.subr.mxu0 0.0
      %1532 = vmatpush1.msra.mxu0 0.0
      %1533 = vmatprep.subr.mxu0 0.0
      %1534 = vmatpush1.msra.mxu0 0.0
      %1535 = vmatprep.subr.mxu0 0.0
      %1536 = vmatpush1.msra.mxu0 0.0
      %1537 = vmatprep.subr.mxu0 0.0
      %1538 = vmatpush1.msra.mxu0 0.0
      %1539 = vmatprep.subr.mxu0 0.0
      %1540 = vmatpush1.msra.mxu0 0.0
      %1541 = vmatprep.subr.mxu0 0.0
      %1542 = vmatpush1.msra.mxu0 0.0
      %1543 = vmatprep.subr.mxu0 0.0
      %1544 = vmatpush1.msra.mxu0 0.0
      %1545 = vmatprep.subr.mxu0 0.0
      %1546 = vmatpush1.msra.mxu0 0.0
      %1547 = vmatprep.subr.mxu0 0.0
      %1548 = vmatpush1.msra.mxu0 0.0
      %1549 = vmatprep.subr.mxu0 0.0
      %1550 = vmatpush1.msra.mxu0 0.0
      %1551 = vmatprep.subr.mxu0 0.0
      %1552 = vmatpush1.msra.mxu0 0.0
      %1553 = vmatprep.subr.mxu0 0.0
      %1554 = vmatpush1.msra.mxu0 0.0
      %1555 = vmatprep.subr.mxu0 0.0
      %1556 = vmatpush1.msra.mxu0 0.0
      %1557 = vmatprep.subr.mxu0 0.0
      %1558 = vmatpush1.msra.mxu0 0.0
      %1559 = vmatprep.subr.mxu0 0.0
      %1560 = vmatpush1.msra.mxu0 0.0
      %1561 = vmatprep.subr.mxu0 0.0
      %1562 = vmatpush1.msra.mxu0 0.0
      %1563 = vmatprep.subr.mxu0 0.0
      %1564 = vmatpush1.msra.mxu0 0.0
      %1565 = vmatprep.mubr.f32.mxu0 0.0
      %1566 = vmatmul.mubr.f32.gmra.mrb[0].mxu0 %v1497
      %v1567 = vpop.f32.mrb[0].mxu0
      %v1568 = vadd.f32 %v1460, %v1567
      %v1569 = vpop.f32.mrb[0].mxu0
      %1570 = vmatprep.mubr.f32.mxu0 0.0
      %1571 = vmatmul.mubr.f32.gmra.mrb[0].mxu0 %v1499
      %v1572 = vpop.f32.mrb[0].mxu0
      %v1573 = vadd.f32 %v1460, %v1572
      %v1574 = vpop.f32.mrb[0].mxu0
      %1575 = vdwg.mxu0
      %v1576 = vmul.f32 %v1568, 0.5
      %v1577 = vmul.f32 %v1573, 0.5
      %v1580 = vcombine.high %v1576, %v1576
      %v1582 = vunpack.c.l.s4 1966171168
      %v1583 = vunpack.c.0.s8 %v1582
      %v1584 = vlaneseq
      %v1585 = vshrl.u32 %v1584, 7
      %v1586 = vsub.s32 %v1583, %v1585
      %v1587 = vrot.slane %v1576, %v1586
      %v1589 = vunpack.c.l.s4 1966171168
      %v1590 = vunpack.c.0.s8 %v1589
      %v1591 = vlaneseq
      %v1592 = vshrl.u32 %v1591, 7
      %v1593 = vsub.s32 %v1590, %v1592
      %v1594 = vrot.slane %v1580, %v1593
      %v1595 = vcombine.high %v1587, %v1587
      %v1596 = vcombine.high %v1594, %v1594
      %v1598 = vunpack.c.l.s4 1966171168
      %v1599 = vunpack.c.0.s8 %v1598
      %v1600 = vlaneseq
      %v1601 = vshrl.u32 %v1600, 7
      %v1602 = vsub.s32 %v1599, %v1601
      %v1603 = vrot.slane %v1587, %v1602
      %v1605 = vunpack.c.l.s4 1966171168
      %v1606 = vunpack.c.0.s8 %v1605
      %v1607 = vlaneseq
      %v1608 = vshrl.u32 %v1607, 7
      %v1609 = vsub.s32 %v1606, %v1608
      %v1610 = vrot.slane %v1594, %v1609
      %v1612 = vunpack.c.l.s4 1966171168
      %v1613 = vunpack.c.0.s8 %v1612
      %v1614 = vlaneseq
      %v1615 = vshrl.u32 %v1614, 7
      %v1616 = vsub.s32 %v1613, %v1615
      %v1617 = vrot.slane %v1595, %v1616
      %v1619 = vunpack.c.l.s4 1966171168
      %v1620 = vunpack.c.0.s8 %v1619
      %v1621 = vlaneseq
      %v1622 = vshrl.u32 %v1621, 7
      %v1623 = vsub.s32 %v1620, %v1622
      %v1624 = vrot.slane %v1596, %v1623
      %v1625 = vcombine.high %v1603, %v1603
      %v1626 = vcombine.high %v1610, %v1610
      %v1627 = vcombine.high %v1617, %v1617
      %v1628 = vcombine.high %v1624, %v1624
      %v1629 = vcombine.high %v1577, %v1577
      %v1631 = vunpack.c.l.s4 1966171168
      %v1632 = vunpack.c.0.s8 %v1631
      %v1633 = vlaneseq
      %v1634 = vshrl.u32 %v1633, 7
      %v1635 = vsub.s32 %v1632, %v1634
      %v1636 = vrot.slane %v1577, %v1635
      %v1638 = vunpack.c.l.s4 1966171168
      %v1639 = vunpack.c.0.s8 %v1638
      %v1640 = vlaneseq
      %v1641 = vshrl.u32 %v1640, 7
      %v1642 = vsub.s32 %v1639, %v1641
      %v1643 = vrot.slane %v1629, %v1642
      %v1644 = vcombine.high %v1636, %v1636
      %v1645 = vcombine.high %v1643, %v1643
      %v1647 = vunpack.c.l.s4 1966171168
      %v1648 = vunpack.c.0.s8 %v1647
      %v1649 = vlaneseq
      %v1650 = vshrl.u32 %v1649, 7
      %v1651 = vsub.s32 %v1648, %v1650
      %v1652 = vrot.slane %v1636, %v1651
      %v1654 = vunpack.c.l.s4 1966171168
      %v1655 = vunpack.c.0.s8 %v1654
      %v1656 = vlaneseq
      %v1657 = vshrl.u32 %v1656, 7
      %v1658 = vsub.s32 %v1655, %v1657
      %v1659 = vrot.slane %v1643, %v1658
      %v1661 = vunpack.c.l.s4 1966171168
      %v1662 = vunpack.c.0.s8 %v1661
      %v1663 = vlaneseq
      %v1664 = vshrl.u32 %v1663, 7
      %v1665 = vsub.s32 %v1662, %v1664
      %v1666 = vrot.slane %v1644, %v1665
      %v1668 = vunpack.c.l.s4 1966171168
      %v1669 = vunpack.c.0.s8 %v1668
      %v1670 = vlaneseq
      %v1671 = vshrl.u32 %v1670, 7
      %v1672 = vsub.s32 %v1669, %v1671
      %v1673 = vrot.slane %v1645, %v1672
      %v1674 = vcombine.high %v1652, %v1652
      %v1675 = vcombine.high %v1659, %v1659
      %v1676 = vcombine.high %v1666, %v1666
      %v1677 = vcombine.high %v1673, %v1673
      %v1678 = vlaneseq
      %v1679 = vshrl.u32 %v1678, 7
      %v1680 = vsub.s32 0, %v1679
      %v1681 = vrot.slane %v1603, %v1680
      %v1682 = vlaneseq
      %v1683 = vshrl.u32 %v1682, 7
      %v1684 = vsub.s32 0, %v1683
      %v1685 = vrot.slane %v1617, %v1684
      %v1686 = vlaneseq
      %v1687 = vshrl.u32 %v1686, 7
      %v1688 = vsub.s32 0, %v1687
      %v1689 = vrot.slane %v1625, %v1688
      %v1690 = vlaneseq
      %v1691 = vshrl.u32 %v1690, 7
      %v1692 = vsub.s32 0, %v1691
      %v1693 = vrot.slane %v1627, %v1692
      %v1694 = vlaneseq
      %v1695 = vshrl.u32 %v1694, 7
      %v1696 = vsub.s32 0, %v1695
      %v1697 = vrot.slane %v1610, %v1696
      %v1698 = vlaneseq
      %v1699 = vshrl.u32 %v1698, 7
      %v1700 = vsub.s32 0, %v1699
      %v1701 = vrot.slane %v1624, %v1700
      %v1702 = vlaneseq
      %v1703 = vshrl.u32 %v1702, 7
      %v1704 = vsub.s32 0, %v1703
      %v1705 = vrot.slane %v1626, %v1704
      %v1706 = vlaneseq
      %v1707 = vshrl.u32 %v1706, 7
      %v1708 = vsub.s32 0, %v1707
      %v1709 = vrot.slane %v1628, %v1708
      %v1710 = vlaneseq
      %v1711 = vshrl.u32 %v1710, 7
      %v1712 = vsub.s32 0, %v1711
      %v1713 = vrot.slane %v1652, %v1712
      %v1714 = vlaneseq
      %v1715 = vshrl.u32 %v1714, 7
      %v1716 = vsub.s32 0, %v1715
      %v1717 = vrot.slane %v1666, %v1716
      %v1718 = vlaneseq
      %v1719 = vshrl.u32 %v1718, 7
      %v1720 = vsub.s32 0, %v1719
      %v1721 = vrot.slane %v1674, %v1720
      %v1722 = vlaneseq
      %v1723 = vshrl.u32 %v1722, 7
      %v1724 = vsub.s32 0, %v1723
      %v1725 = vrot.slane %v1676, %v1724
      %v1726 = vlaneseq
      %v1727 = vshrl.u32 %v1726, 7
      %v1728 = vsub.s32 0, %v1727
      %v1729 = vrot.slane %v1659, %v1728
      %v1730 = vlaneseq
      %v1731 = vshrl.u32 %v1730, 7
      %v1732 = vsub.s32 0, %v1731
      %v1733 = vrot.slane %v1673, %v1732
      %v1734 = vlaneseq
      %v1735 = vshrl.u32 %v1734, 7
      %v1736 = vsub.s32 0, %v1735
      %v1737 = vrot.slane %v1675, %v1736
      %v1738 = vlaneseq
      %v1739 = vshrl.u32 %v1738, 7
      %v1740 = vsub.s32 0, %v1739
      %v1741 = vrot.slane %v1677, %v1740
      %v1758 = vmul.f32 %v1681, %v846
      %v1759 = vmul.f32 %v1685, %v846
      %v1760 = vmul.f32 %v1689, %v846
      %v1761 = vmul.f32 %v1693, %v846
      %v1762 = vmul.f32 %v1697, %v846
      %v1763 = vmul.f32 %v1701, %v846
      %v1764 = vmul.f32 %v1705, %v846
      %v1765 = vmul.f32 %v1709, %v846
      %v1766 = vmul.f32 %v1713, %v846
      %v1767 = vmul.f32 %v1717, %v846
      %v1768 = vmul.f32 %v1721, %v846
      %v1769 = vmul.f32 %v1725, %v846
      %v1770 = vmul.f32 %v1729, %v846
      %v1771 = vmul.f32 %v1733, %v846
      %v1772 = vmul.f32 %v1737, %v846
      %v1773 = vmul.f32 %v1741, %v846
      %v1775 = vsel %vm1099, %v1758, 0
      %v1778 = vsel %vm1099, %v1215, 0
      %1780 = vmatprep.subr.mxu0 0.0
      %1781 = vmatpush1.xpose.msra.mxu0 %v1778
      %1782 = vmatprep.subr.mxu0 0.0
      %1783 = vmatpush1.xpose.msra.mxu0 0.0
      %1784 = vmatprep.subr.mxu0 0.0
      %1785 = vmatpush1.xpose.msra.mxu0 0.0
      %1786 = vmatprep.subr.mxu0 0.0
      %1787 = vmatpush1.xpose.msra.mxu0 0.0
      %1788 = vmatprep.subr.mxu0 0.0
      %1789 = vmatpush1.xpose.msra.mxu0 0.0
      %1790 = vmatprep.subr.mxu0 0.0
      %1791 = vmatpush1.xpose.msra.mxu0 0.0
      %1792 = vmatprep.subr.mxu0 0.0
      %1793 = vmatpush1.xpose.msra.mxu0 0.0
      %1794 = vmatprep.subr.mxu0 0.0
      %1795 = vmatpush1.xpose.msra.mxu0 0.0
      %1796 = vmatprep.subr.mxu0 0.0
      %1797 = vmatpush1.xpose.msra.mxu0 0.0
      %1798 = vmatprep.subr.mxu0 0.0
      %1799 = vmatpush1.xpose.msra.mxu0 0.0
      %1800 = vmatprep.subr.mxu0 0.0
      %1801 = vmatpush1.xpose.msra.mxu0 0.0
      %1802 = vmatprep.subr.mxu0 0.0
      %1803 = vmatpush1.xpose.msra.mxu0 0.0
      %1804 = vmatprep.subr.mxu0 0.0
      %1805 = vmatpush1.xpose.msra.mxu0 0.0
      %1806 = vmatprep.subr.mxu0 0.0
      %1807 = vmatpush1.xpose.msra.mxu0 0.0
      %1808 = vmatprep.subr.mxu0 0.0
      %1809 = vmatpush1.xpose.msra.mxu0 0.0
      %1810 = vmatprep.subr.mxu0 0.0
      %1811 = vmatpush1.xpose.msra.mxu0 0.0
      %1812 = vmatprep.subr.mxu0 0.0
      %1813 = vmatpush1.xpose.msra.mxu0 0.0
      %1814 = vmatprep.subr.mxu0 0.0
      %1815 = vmatpush1.xpose.msra.mxu0 0.0
      %1816 = vmatprep.subr.mxu0 0.0
      %1817 = vmatpush1.xpose.msra.mxu0 0.0
      %1818 = vmatprep.subr.mxu0 0.0
      %1819 = vmatpush1.xpose.msra.mxu0 0.0
      %1820 = vmatprep.subr.mxu0 0.0
      %1821 = vmatpush1.xpose.msra.mxu0 0.0
      %1822 = vmatprep.subr.mxu0 0.0
      %1823 = vmatpush1.xpose.msra.mxu0 0.0
      %1824 = vmatprep.subr.mxu0 0.0
      %1825 = vmatpush1.xpose.msra.mxu0 0.0
      %1826 = vmatprep.subr.mxu0 0.0
      %1827 = vmatpush1.xpose.msra.mxu0 0.0
      %1828 = vmatprep.subr.mxu0 0.0
      %1829 = vmatpush1.xpose.msra.mxu0 0.0
      %1830 = vmatprep.subr.mxu0 0.0
      %1831 = vmatpush1.xpose.msra.mxu0 0.0
      %1832 = vmatprep.subr.mxu0 0.0
      %1833 = vmatpush1.xpose.msra.mxu0 0.0
      %1834 = vmatprep.subr.mxu0 0.0
      %1835 = vmatpush1.xpose.msra.mxu0 0.0
      %1836 = vmatprep.subr.mxu0 0.0
      %1837 = vmatpush1.xpose.msra.mxu0 0.0
      %1838 = vmatprep.subr.mxu0 0.0
      %1839 = vmatpush1.xpose.msra.mxu0 0.0
      %1840 = vmatprep.subr.mxu0 0.0
      %1841 = vmatpush1.xpose.msra.mxu0 0.0
      %1842 = vmatprep.subr.mxu0 0.0
      %1843 = vmatpush1.xpose.msra.mxu0 0.0
      %1844 = vmatprep.mubr.f32.mxu0 0.0
      %1845 = vmatmul.mubr.f32.gmra.mrb[0].mxu0 %v1775
      %v1846 = vpop.f32.mrb[0].mxu0
      %v1847 = vadd.f32 0.0, %v1846
      %v1848 = vpop.f32.mrb[0].mxu0
      %1849 = vdwg.mxu0
      %v1851 = vsel %vm1099, %v1759, 0
      %v1854 = vsel %vm1099, %v1220, 0
      %1856 = vmatprep.subr.mxu0 0.0
      %1857 = vmatpush1.xpose.msra.mxu0 %v1854
      %1858 = vmatprep.subr.mxu0 0.0
      %1859 = vmatpush1.xpose.msra.mxu0 0.0
      %1860 = vmatprep.subr.mxu0 0.0
      %1861 = vmatpush1.xpose.msra.mxu0 0.0
      %1862 = vmatprep.subr.mxu0 0.0
      %1863 = vmatpush1.xpose.msra.mxu0 0.0
      %1864 = vmatprep.subr.mxu0 0.0
      %1865 = vmatpush1.xpose.msra.mxu0 0.0
      %1866 = vmatprep.subr.mxu0 0.0
      %1867 = vmatpush1.xpose.msra.mxu0 0.0
      %1868 = vmatprep.subr.mxu0 0.0
      %1869 = vmatpush1.xpose.msra.mxu0 0.0
      %1870 = vmatprep.subr.mxu0 0.0
      %1871 = vmatpush1.xpose.msra.mxu0 0.0
      %1872 = vmatprep.subr.mxu0 0.0
      %1873 = vmatpush1.xpose.msra.mxu0 0.0
      %1874 = vmatprep.subr.mxu0 0.0
      %1875 = vmatpush1.xpose.msra.mxu0 0.0
      %1876 = vmatprep.subr.mxu0 0.0
      %1877 = vmatpush1.xpose.msra.mxu0 0.0
      %1878 = vmatprep.subr.mxu0 0.0
      %1879 = vmatpush1.xpose.msra.mxu0 0.0
      %1880 = vmatprep.subr.mxu0 0.0
      %1881 = vmatpush1.xpose.msra.mxu0 0.0
      %1882 = vmatprep.subr.mxu0 0.0
      %1883 = vmatpush1.xpose.msra.mxu0 0.0
      %1884 = vmatprep.subr.mxu0 0.0
      %1885 = vmatpush1.xpose.msra.mxu0 0.0
      %1886 = vmatprep.subr.mxu0 0.0
      %1887 = vmatpush1.xpose.msra.mxu0 0.0
      %1888 = vmatprep.subr.mxu0 0.0
      %1889 = vmatpush1.xpose.msra.mxu0 0.0
      %1890 = vmatprep.subr.mxu0 0.0
      %1891 = vmatpush1.xpose.msra.mxu0 0.0
      %1892 = vmatprep.subr.mxu0 0.0
      %1893 = vmatpush1.xpose.msra.mxu0 0.0
      %1894 = vmatprep.subr.mxu0 0.0
      %1895 = vmatpush1.xpose.msra.mxu0 0.0
      %1896 = vmatprep.subr.mxu0 0.0
      %1897 = vmatpush1.xpose.msra.mxu0 0.0
      %1898 = vmatprep.subr.mxu0 0.0
      %1899 = vmatpush1.xpose.msra.mxu0 0.0
      %1900 = vmatprep.subr.mxu0 0.0
      %1901 = vmatpush1.xpose.msra.mxu0 0.0
      %1902 = vmatprep.subr.mxu0 0.0
      %1903 = vmatpush1.xpose.msra.mxu0 0.0
      %1904 = vmatprep.subr.mxu0 0.0
      %1905 = vmatpush1.xpose.msra.mxu0 0.0
      %1906 = vmatprep.subr.mxu0 0.0
      %1907 = vmatpush1.xpose.msra.mxu0 0.0
      %1908 = vmatprep.subr.mxu0 0.0
      %1909 = vmatpush1.xpose.msra.mxu0 0.0
      %1910 = vmatprep.subr.mxu0 0.0
      %1911 = vmatpush1.xpose.msra.mxu0 0.0
      %1912 = vmatprep.subr.mxu0 0.0
      %1913 = vmatpush1.xpose.msra.mxu0 0.0
      %1914 = vmatprep.subr.mxu0 0.0
      %1915 = vmatpush1.xpose.msra.mxu0 0.0
      %1916 = vmatprep.subr.mxu0 0.0
      %1917 = vmatpush1.xpose.msra.mxu0 0.0
      %1918 = vmatprep.subr.mxu0 0.0
      %1919 = vmatpush1.xpose.msra.mxu0 0.0
      %1920 = vmatprep.mubr.f32.mxu0 0.0
      %1921 = vmatmul.mubr.f32.gmra.mrb[0].mxu0 %v1851
      %v1922 = vpop.f32.mrb[0].mxu0
      %v1923 = vadd.f32 0.0, %v1922
      %v1924 = vpop.f32.mrb[0].mxu0
      %1925 = vdwg.mxu0
      %v1927 = vsel %vm1099, %v1760, 0
      %v1930 = vsel %vm1099, %v1225, 0
      %1932 = vmatprep.subr.mxu0 0.0
      %1933 = vmatpush1.xpose.msra.mxu0 %v1930
      %1934 = vmatprep.subr.mxu0 0.0
      %1935 = vmatpush1.xpose.msra.mxu0 0.0
      %1936 = vmatprep.subr.mxu0 0.0
      %1937 = vmatpush1.xpose.msra.mxu0 0.0
      %1938 = vmatprep.subr.mxu0 0.0
      %1939 = vmatpush1.xpose.msra.mxu0 0.0
      %1940 = vmatprep.subr.mxu0 0.0
      %1941 = vmatpush1.xpose.msra.mxu0 0.0
      %1942 = vmatprep.subr.mxu0 0.0
      %1943 = vmatpush1.xpose.msra.mxu0 0.0
      %1944 = vmatprep.subr.mxu0 0.0
      %1945 = vmatpush1.xpose.msra.mxu0 0.0
      %1946 = vmatprep.subr.mxu0 0.0
      %1947 = vmatpush1.xpose.msra.mxu0 0.0
      %1948 = vmatprep.subr.mxu0 0.0
      %1949 = vmatpush1.xpose.msra.mxu0 0.0
      %1950 = vmatprep.subr.mxu0 0.0
      %1951 = vmatpush1.xpose.msra.mxu0 0.0
      %1952 = vmatprep.subr.mxu0 0.0
      %1953 = vmatpush1.xpose.msra.mxu0 0.0
      %1954 = vmatprep.subr.mxu0 0.0
      %1955 = vmatpush1.xpose.msra.mxu0 0.0
      %1956 = vmatprep.subr.mxu0 0.0
      %1957 = vmatpush1.xpose.msra.mxu0 0.0
      %1958 = vmatprep.subr.mxu0 0.0
      %1959 = vmatpush1.xpose.msra.mxu0 0.0
      %1960 = vmatprep.subr.mxu0 0.0
      %1961 = vmatpush1.xpose.msra.mxu0 0.0
      %1962 = vmatprep.subr.mxu0 0.0
      %1963 = vmatpush1.xpose.msra.mxu0 0.0
      %1964 = vmatprep.subr.mxu0 0.0
      %1965 = vmatpush1.xpose.msra.mxu0 0.0
      %1966 = vmatprep.subr.mxu0 0.0
      %1967 = vmatpush1.xpose.msra.mxu0 0.0
      %1968 = vmatprep.subr.mxu0 0.0
      %1969 = vmatpush1.xpose.msra.mxu0 0.0
      %1970 = vmatprep.subr.mxu0 0.0
      %1971 = vmatpush1.xpose.msra.mxu0 0.0
      %1972 = vmatprep.subr.mxu0 0.0
      %1973 = vmatpush1.xpose.msra.mxu0 0.0
      %1974 = vmatprep.subr.mxu0 0.0
      %1975 = vmatpush1.xpose.msra.mxu0 0.0
      %1976 = vmatprep.subr.mxu0 0.0
      %1977 = vmatpush1.xpose.msra.mxu0 0.0
      %1978 = vmatprep.subr.mxu0 0.0
      %1979 = vmatpush1.xpose.msra.mxu0 0.0
      %1980 = vmatprep.subr.mxu0 0.0
      %1981 = vmatpush1.xpose.msra.mxu0 0.0
      %1982 = vmatprep.subr.mxu0 0.0
      %1983 = vmatpush1.xpose.msra.mxu0 0.0
      %1984 = vmatprep.subr.mxu0 0.0
      %1985 = vmatpush1.xpose.msra.mxu0 0.0
      %1986 = vmatprep.subr.mxu0 0.0
      %1987 = vmatpush1.xpose.msra.mxu0 0.0
      %1988 = vmatprep.subr.mxu0 0.0
      %1989 = vmatpush1.xpose.msra.mxu0 0.0
      %1990 = vmatprep.subr.mxu0 0.0
      %1991 = vmatpush1.xpose.msra.mxu0 0.0
      %1992 = vmatprep.subr.mxu0 0.0
      %1993 = vmatpush1.xpose.msra.mxu0 0.0
      %1994 = vmatprep.subr.mxu0 0.0
      %1995 = vmatpush1.xpose.msra.mxu0 0.0
      %1996 = vmatprep.mubr.f32.mxu0 0.0
      %1997 = vmatmul.mubr.f32.gmra.mrb[0].mxu0 %v1927
      %v1998 = vpop.f32.mrb[0].mxu0
      %v1999 = vadd.f32 0.0, %v1998
      %v2000 = vpop.f32.mrb[0].mxu0
      %2001 = vdwg.mxu0
      %v2003 = vsel %vm1099, %v1761, 0
      %v2006 = vsel %vm1099, %v1230, 0
      %2008 = vmatprep.subr.mxu0 0.0
      %2009 = vmatpush1.xpose.msra.mxu0 %v2006
      %2010 = vmatprep.subr.mxu0 0.0
      %2011 = vmatpush1.xpose.msra.mxu0 0.0
      %2012 = vmatprep.subr.mxu0 0.0
      %2013 = vmatpush1.xpose.msra.mxu0 0.0
      %2014 = vmatprep.subr.mxu0 0.0
      %2015 = vmatpush1.xpose.msra.mxu0 0.0
      %2016 = vmatprep.subr.mxu0 0.0
      %2017 = vmatpush1.xpose.msra.mxu0 0.0
      %2018 = vmatprep.subr.mxu0 0.0
      %2019 = vmatpush1.xpose.msra.mxu0 0.0
      %2020 = vmatprep.subr.mxu0 0.0
      %2021 = vmatpush1.xpose.msra.mxu0 0.0
      %2022 = vmatprep.subr.mxu0 0.0
      %2023 = vmatpush1.xpose.msra.mxu0 0.0
      %2024 = vmatprep.subr.mxu0 0.0
      %2025 = vmatpush1.xpose.msra.mxu0 0.0
      %2026 = vmatprep.subr.mxu0 0.0
      %2027 = vmatpush1.xpose.msra.mxu0 0.0
      %2028 = vmatprep.subr.mxu0 0.0
      %2029 = vmatpush1.xpose.msra.mxu0 0.0
      %2030 = vmatprep.subr.mxu0 0.0
      %2031 = vmatpush1.xpose.msra.mxu0 0.0
      %2032 = vmatprep.subr.mxu0 0.0
      %2033 = vmatpush1.xpose.msra.mxu0 0.0
      %2034 = vmatprep.subr.mxu0 0.0
      %2035 = vmatpush1.xpose.msra.mxu0 0.0
      %2036 = vmatprep.subr.mxu0 0.0
      %2037 = vmatpush1.xpose.msra.mxu0 0.0
      %2038 = vmatprep.subr.mxu0 0.0
      %2039 = vmatpush1.xpose.msra.mxu0 0.0
      %2040 = vmatprep.subr.mxu0 0.0
      %2041 = vmatpush1.xpose.msra.mxu0 0.0
      %2042 = vmatprep.subr.mxu0 0.0
      %2043 = vmatpush1.xpose.msra.mxu0 0.0
      %2044 = vmatprep.subr.mxu0 0.0
      %2045 = vmatpush1.xpose.msra.mxu0 0.0
      %2046 = vmatprep.subr.mxu0 0.0
      %2047 = vmatpush1.xpose.msra.mxu0 0.0
      %2048 = vmatprep.subr.mxu0 0.0
      %2049 = vmatpush1.xpose.msra.mxu0 0.0
      %2050 = vmatprep.subr.mxu0 0.0
      %2051 = vmatpush1.xpose.msra.mxu0 0.0
      %2052 = vmatprep.subr.mxu0 0.0
      %2053 = vmatpush1.xpose.msra.mxu0 0.0
      %2054 = vmatprep.subr.mxu0 0.0
      %2055 = vmatpush1.xpose.msra.mxu0 0.0
      %2056 = vmatprep.subr.mxu0 0.0
      %2057 = vmatpush1.xpose.msra.mxu0 0.0
      %2058 = vmatprep.subr.mxu0 0.0
      %2059 = vmatpush1.xpose.msra.mxu0 0.0
      %2060 = vmatprep.subr.mxu0 0.0
      %2061 = vmatpush1.xpose.msra.mxu0 0.0
      %2062 = vmatprep.subr.mxu0 0.0
      %2063 = vmatpush1.xpose.msra.mxu0 0.0
      %2064 = vmatprep.subr.mxu0 0.0
      %2065 = vmatpush1.xpose.msra.mxu0 0.0
      %2066 = vmatprep.subr.mxu0 0.0
      %2067 = vmatpush1.xpose.msra.mxu0 0.0
      %2068 = vmatprep.subr.mxu0 0.0
      %2069 = vmatpush1.xpose.msra.mxu0 0.0
      %2070 = vmatprep.subr.mxu0 0.0
      %2071 = vmatpush1.xpose.msra.mxu0 0.0
      %2072 = vmatprep.mubr.f32.mxu0 0.0
      %2073 = vmatmul.mubr.f32.gmra.mrb[0].mxu0 %v2003
      %v2074 = vpop.f32.mrb[0].mxu0
      %v2075 = vadd.f32 0.0, %v2074
      %v2076 = vpop.f32.mrb[0].mxu0
      %2077 = vdwg.mxu0
      %v2079 = vsel %vm1099, %v1762, 0
      %v2082 = vsel %vm1099, %v1235, 0
      %2084 = vmatprep.subr.mxu0 0.0
      %2085 = vmatpush1.xpose.msra.mxu0 %v2082
      %2086 = vmatprep.subr.mxu0 0.0
      %2087 = vmatpush1.xpose.msra.mxu0 0.0
      %2088 = vmatprep.subr.mxu0 0.0
      %2089 = vmatpush1.xpose.msra.mxu0 0.0
      %2090 = vmatprep.subr.mxu0 0.0
      %2091 = vmatpush1.xpose.msra.mxu0 0.0
      %2092 = vmatprep.subr.mxu0 0.0
      %2093 = vmatpush1.xpose.msra.mxu0 0.0
      %2094 = vmatprep.subr.mxu0 0.0
      %2095 = vmatpush1.xpose.msra.mxu0 0.0
      %2096 = vmatprep.subr.mxu0 0.0
      %2097 = vmatpush1.xpose.msra.mxu0 0.0
      %2098 = vmatprep.subr.mxu0 0.0
      %2099 = vmatpush1.xpose.msra.mxu0 0.0
      %2100 = vmatprep.subr.mxu0 0.0
      %2101 = vmatpush1.xpose.msra.mxu0 0.0
      %2102 = vmatprep.subr.mxu0 0.0
      %2103 = vmatpush1.xpose.msra.mxu0 0.0
      %2104 = vmatprep.subr.mxu0 0.0
      %2105 = vmatpush1.xpose.msra.mxu0 0.0
      %2106 = vmatprep.subr.mxu0 0.0
      %2107 = vmatpush1.xpose.msra.mxu0 0.0
      %2108 = vmatprep.subr.mxu0 0.0
      %2109 = vmatpush1.xpose.msra.mxu0 0.0
      %2110 = vmatprep.subr.mxu0 0.0
      %2111 = vmatpush1.xpose.msra.mxu0 0.0
      %2112 = vmatprep.subr.mxu0 0.0
      %2113 = vmatpush1.xpose.msra.mxu0 0.0
      %2114 = vmatprep.subr.mxu0 0.0
      %2115 = vmatpush1.xpose.msra.mxu0 0.0
      %2116 = vmatprep.subr.mxu0 0.0
      %2117 = vmatpush1.xpose.msra.mxu0 0.0
      %2118 = vmatprep.subr.mxu0 0.0
      %2119 = vmatpush1.xpose.msra.mxu0 0.0
      %2120 = vmatprep.subr.mxu0 0.0
      %2121 = vmatpush1.xpose.msra.mxu0 0.0
      %2122 = vmatprep.subr.mxu0 0.0
      %2123 = vmatpush1.xpose.msra.mxu0 0.0
      %2124 = vmatprep.subr.mxu0 0.0
      %2125 = vmatpush1.xpose.msra.mxu0 0.0
      %2126 = vmatprep.subr.mxu0 0.0
      %2127 = vmatpush1.xpose.msra.mxu0 0.0
      %2128 = vmatprep.subr.mxu0 0.0
      %2129 = vmatpush1.xpose.msra.mxu0 0.0
      %2130 = vmatprep.subr.mxu0 0.0
      %2131 = vmatpush1.xpose.msra.mxu0 0.0
      %2132 = vmatprep.subr.mxu0 0.0
      %2133 = vmatpush1.xpose.msra.mxu0 0.0
      %2134 = vmatprep.subr.mxu0 0.0
      %2135 = vmatpush1.xpose.msra.mxu0 0.0
      %2136 = vmatprep.subr.mxu0 0.0
      %2137 = vmatpush1.xpose.msra.mxu0 0.0
      %2138 = vmatprep.subr.mxu0 0.0
      %2139 = vmatpush1.xpose.msra.mxu0 0.0
      %2140 = vmatprep.subr.mxu0 0.0
      %2141 = vmatpush1.xpose.msra.mxu0 0.0
      %2142 = vmatprep.subr.mxu0 0.0
      %2143 = vmatpush1.xpose.msra.mxu0 0.0
      %2144 = vmatprep.subr.mxu0 0.0
      %2145 = vmatpush1.xpose.msra.mxu0 0.0
      %2146 = vmatprep.subr.mxu0 0.0
      %2147 = vmatpush1.xpose.msra.mxu0 0.0
      %2148 = vmatprep.mubr.f32.mxu0 0.0
      %2149 = vmatmul.mubr.f32.gmra.mrb[0].mxu0 %v2079
      %v2150 = vpop.f32.mrb[0].mxu0
      %v2151 = vadd.f32 0.0, %v2150
      %v2152 = vpop.f32.mrb[0].mxu0
      %2153 = vdwg.mxu0
      %v2155 = vsel %vm1099, %v1763, 0
      %v2158 = vsel %vm1099, %v1240, 0
      %2160 = vmatprep.subr.mxu0 0.0
      %2161 = vmatpush1.xpose.msra.mxu0 %v2158
      %2162 = vmatprep.subr.mxu0 0.0
      %2163 = vmatpush1.xpose.msra.mxu0 0.0
      %2164 = vmatprep.subr.mxu0 0.0
      %2165 = vmatpush1.xpose.msra.mxu0 0.0
      %2166 = vmatprep.subr.mxu0 0.0
      %2167 = vmatpush1.xpose.msra.mxu0 0.0
      %2168 = vmatprep.subr.mxu0 0.0
      %2169 = vmatpush1.xpose.msra.mxu0 0.0
      %2170 = vmatprep.subr.mxu0 0.0
      %2171 = vmatpush1.xpose.msra.mxu0 0.0
      %2172 = vmatprep.subr.mxu0 0.0
      %2173 = vmatpush1.xpose.msra.mxu0 0.0
      %2174 = vmatprep.subr.mxu0 0.0
      %2175 = vmatpush1.xpose.msra.mxu0 0.0
      %2176 = vmatprep.subr.mxu0 0.0
      %2177 = vmatpush1.xpose.msra.mxu0 0.0
      %2178 = vmatprep.subr.mxu0 0.0
      %2179 = vmatpush1.xpose.msra.mxu0 0.0
      %2180 = vmatprep.subr.mxu0 0.0
      %2181 = vmatpush1.xpose.msra.mxu0 0.0
      %2182 = vmatprep.subr.mxu0 0.0
      %2183 = vmatpush1.xpose.msra.mxu0 0.0
      %2184 = vmatprep.subr.mxu0 0.0
      %2185 = vmatpush1.xpose.msra.mxu0 0.0
      %2186 = vmatprep.subr.mxu0 0.0
      %2187 = vmatpush1.xpose.msra.mxu0 0.0
      %2188 = vmatprep.subr.mxu0 0.0
      %2189 = vmatpush1.xpose.msra.mxu0 0.0
      %2190 = vmatprep.subr.mxu0 0.0
      %2191 = vmatpush1.xpose.msra.mxu0 0.0
      %2192 = vmatprep.subr.mxu0 0.0
      %2193 = vmatpush1.xpose.msra.mxu0 0.0
      %2194 = vmatprep.subr.mxu0 0.0
      %2195 = vmatpush1.xpose.msra.mxu0 0.0
      %2196 = vmatprep.subr.mxu0 0.0
      %2197 = vmatpush1.xpose.msra.mxu0 0.0
      %2198 = vmatprep.subr.mxu0 0.0
      %2199 = vmatpush1.xpose.msra.mxu0 0.0
      %2200 = vmatprep.subr.mxu0 0.0
      %2201 = vmatpush1.xpose.msra.mxu0 0.0
      %2202 = vmatprep.subr.mxu0 0.0
      %2203 = vmatpush1.xpose.msra.mxu0 0.0
      %2204 = vmatprep.subr.mxu0 0.0
      %2205 = vmatpush1.xpose.msra.mxu0 0.0
      %2206 = vmatprep.subr.mxu0 0.0
      %2207 = vmatpush1.xpose.msra.mxu0 0.0
      %2208 = vmatprep.subr.mxu0 0.0
      %2209 = vmatpush1.xpose.msra.mxu0 0.0
      %2210 = vmatprep.subr.mxu0 0.0
      %2211 = vmatpush1.xpose.msra.mxu0 0.0
      %2212 = vmatprep.subr.mxu0 0.0
      %2213 = vmatpush1.xpose.msra.mxu0 0.0
      %2214 = vmatprep.subr.mxu0 0.0
      %2215 = vmatpush1.xpose.msra.mxu0 0.0
      %2216 = vmatprep.subr.mxu0 0.0
      %2217 = vmatpush1.xpose.msra.mxu0 0.0
      %2218 = vmatprep.subr.mxu0 0.0
      %2219 = vmatpush1.xpose.msra.mxu0 0.0
      %2220 = vmatprep.subr.mxu0 0.0
      %2221 = vmatpush1.xpose.msra.mxu0 0.0
      %2222 = vmatprep.subr.mxu0 0.0
      %2223 = vmatpush1.xpose.msra.mxu0 0.0
      %2224 = vmatprep.mubr.f32.mxu0 0.0
      %2225 = vmatmul.mubr.f32.gmra.mrb[0].mxu0 %v2155
      %v2226 = vpop.f32.mrb[0].mxu0
      %v2227 = vadd.f32 0.0, %v2226
      %v2228 = vpop.f32.mrb[0].mxu0
      %2229 = vdwg.mxu0
      %v2231 = vsel %vm1099, %v1764, 0
      %v2234 = vsel %vm1099, %v1245, 0
      %2236 = vmatprep.subr.mxu0 0.0
      %2237 = vmatpush1.xpose.msra.mxu0 %v2234
      %2238 = vmatprep.subr.mxu0 0.0
      %2239 = vmatpush1.xpose.msra.mxu0 0.0
      %2240 = vmatprep.subr.mxu0 0.0
      %2241 = vmatpush1.xpose.msra.mxu0 0.0
      %2242 = vmatprep.subr.mxu0 0.0
      %2243 = vmatpush1.xpose.msra.mxu0 0.0
      %2244 = vmatprep.subr.mxu0 0.0
      %2245 = vmatpush1.xpose.msra.mxu0 0.0
      %2246 = vmatprep.subr.mxu0 0.0
      %2247 = vmatpush1.xpose.msra.mxu0 0.0
      %2248 = vmatprep.subr.mxu0 0.0
      %2249 = vmatpush1.xpose.msra.mxu0 0.0
      %2250 = vmatprep.subr.mxu0 0.0
      %2251 = vmatpush1.xpose.msra.mxu0 0.0
      %2252 = vmatprep.subr.mxu0 0.0
      %2253 = vmatpush1.xpose.msra.mxu0 0.0
      %2254 = vmatprep.subr.mxu0 0.0
      %2255 = vmatpush1.xpose.msra.mxu0 0.0
      %2256 = vmatprep.subr.mxu0 0.0
      %2257 = vmatpush1.xpose.msra.mxu0 0.0
      %2258 = vmatprep.subr.mxu0 0.0
      %2259 = vmatpush1.xpose.msra.mxu0 0.0
      %2260 = vmatprep.subr.mxu0 0.0
      %2261 = vmatpush1.xpose.msra.mxu0 0.0
      %2262 = vmatprep.subr.mxu0 0.0
      %2263 = vmatpush1.xpose.msra.mxu0 0.0
      %2264 = vmatprep.subr.mxu0 0.0
      %2265 = vmatpush1.xpose.msra.mxu0 0.0
      %2266 = vmatprep.subr.mxu0 0.0
      %2267 = vmatpush1.xpose.msra.mxu0 0.0
      %2268 = vmatprep.subr.mxu0 0.0
      %2269 = vmatpush1.xpose.msra.mxu0 0.0
      %2270 = vmatprep.subr.mxu0 0.0
      %2271 = vmatpush1.xpose.msra.mxu0 0.0
      %2272 = vmatprep.subr.mxu0 0.0
      %2273 = vmatpush1.xpose.msra.mxu0 0.0
      %2274 = vmatprep.subr.mxu0 0.0
      %2275 = vmatpush1.xpose.msra.mxu0 0.0
      %2276 = vmatprep.subr.mxu0 0.0
      %2277 = vmatpush1.xpose.msra.mxu0 0.0
      %2278 = vmatprep.subr.mxu0 0.0
      %2279 = vmatpush1.xpose.msra.mxu0 0.0
      %2280 = vmatprep.subr.mxu0 0.0
      %2281 = vmatpush1.xpose.msra.mxu0 0.0
      %2282 = vmatprep.subr.mxu0 0.0
      %2283 = vmatpush1.xpose.msra.mxu0 0.0
      %2284 = vmatprep.subr.mxu0 0.0
      %2285 = vmatpush1.xpose.msra.mxu0 0.0
      %2286 = vmatprep.subr.mxu0 0.0
      %2287 = vmatpush1.xpose.msra.mxu0 0.0
      %2288 = vmatprep.subr.mxu0 0.0
      %2289 = vmatpush1.xpose.msra.mxu0 0.0
      %2290 = vmatprep.subr.mxu0 0.0
      %2291 = vmatpush1.xpose.msra.mxu0 0.0
      %2292 = vmatprep.subr.mxu0 0.0
      %2293 = vmatpush1.xpose.msra.mxu0 0.0
      %2294 = vmatprep.subr.mxu0 0.0
      %2295 = vmatpush1.xpose.msra.mxu0 0.0
      %2296 = vmatprep.subr.mxu0 0.0
      %2297 = vmatpush1.xpose.msra.mxu0 0.0
      %2298 = vmatprep.subr.mxu0 0.0
      %2299 = vmatpush1.xpose.msra.mxu0 0.0
      %2300 = vmatprep.mubr.f32.mxu0 0.0
      %2301 = vmatmul.mubr.f32.gmra.mrb[0].mxu0 %v2231
      %v2302 = vpop.f32.mrb[0].mxu0
      %v2303 = vadd.f32 0.0, %v2302
      %v2304 = vpop.f32.mrb[0].mxu0
      %2305 = vdwg.mxu0
      %v2307 = vsel %vm1099, %v1765, 0
      %v2310 = vsel %vm1099, %v1250, 0
      %2312 = vmatprep.subr.mxu0 0.0
      %2313 = vmatpush1.xpose.msra.mxu0 %v2310
      %2314 = vmatprep.subr.mxu0 0.0
      %2315 = vmatpush1.xpose.msra.mxu0 0.0
      %2316 = vmatprep.subr.mxu0 0.0
      %2317 = vmatpush1.xpose.msra.mxu0 0.0
      %2318 = vmatprep.subr.mxu0 0.0
      %2319 = vmatpush1.xpose.msra.mxu0 0.0
      %2320 = vmatprep.subr.mxu0 0.0
      %2321 = vmatpush1.xpose.msra.mxu0 0.0
      %2322 = vmatprep.subr.mxu0 0.0
      %2323 = vmatpush1.xpose.msra.mxu0 0.0
      %2324 = vmatprep.subr.mxu0 0.0
      %2325 = vmatpush1.xpose.msra.mxu0 0.0
      %2326 = vmatprep.subr.mxu0 0.0
      %2327 = vmatpush1.xpose.msra.mxu0 0.0
      %2328 = vmatprep.subr.mxu0 0.0
      %2329 = vmatpush1.xpose.msra.mxu0 0.0
      %2330 = vmatprep.subr.mxu0 0.0
      %2331 = vmatpush1.xpose.msra.mxu0 0.0
      %2332 = vmatprep.subr.mxu0 0.0
      %2333 = vmatpush1.xpose.msra.mxu0 0.0
      %2334 = vmatprep.subr.mxu0 0.0
      %2335 = vmatpush1.xpose.msra.mxu0 0.0
      %2336 = vmatprep.subr.mxu0 0.0
      %2337 = vmatpush1.xpose.msra.mxu0 0.0
      %2338 = vmatprep.subr.mxu0 0.0
      %2339 = vmatpush1.xpose.msra.mxu0 0.0
      %2340 = vmatprep.subr.mxu0 0.0
      %2341 = vmatpush1.xpose.msra.mxu0 0.0
      %2342 = vmatprep.subr.mxu0 0.0
      %2343 = vmatpush1.xpose.msra.mxu0 0.0
      %2344 = vmatprep.subr.mxu0 0.0
      %2345 = vmatpush1.xpose.msra.mxu0 0.0
      %2346 = vmatprep.subr.mxu0 0.0
      %2347 = vmatpush1.xpose.msra.mxu0 0.0
      %2348 = vmatprep.subr.mxu0 0.0
      %2349 = vmatpush1.xpose.msra.mxu0 0.0
      %2350 = vmatprep.subr.mxu0 0.0
      %2351 = vmatpush1.xpose.msra.mxu0 0.0
      %2352 = vmatprep.subr.mxu0 0.0
      %2353 = vmatpush1.xpose.msra.mxu0 0.0
      %2354 = vmatprep.subr.mxu0 0.0
      %2355 = vmatpush1.xpose.msra.mxu0 0.0
      %2356 = vmatprep.subr.mxu0 0.0
      %2357 = vmatpush1.xpose.msra.mxu0 0.0
      %2358 = vmatprep.subr.mxu0 0.0
      %2359 = vmatpush1.xpose.msra.mxu0 0.0
      %2360 = vmatprep.subr.mxu0 0.0
      %2361 = vmatpush1.xpose.msra.mxu0 0.0
      %2362 = vmatprep.subr.mxu0 0.0
      %2363 = vmatpush1.xpose.msra.mxu0 0.0
      %2364 = vmatprep.subr.mxu0 0.0
      %2365 = vmatpush1.xpose.msra.mxu0 0.0
      %2366 = vmatprep.subr.mxu0 0.0
      %2367 = vmatpush1.xpose.msra.mxu0 0.0
      %2368 = vmatprep.subr.mxu0 0.0
      %2369 = vmatpush1.xpose.msra.mxu0 0.0
      %2370 = vmatprep.subr.mxu0 0.0
      %2371 = vmatpush1.xpose.msra.mxu0 0.0
      %2372 = vmatprep.subr.mxu0 0.0
      %2373 = vmatpush1.xpose.msra.mxu0 0.0
      %2374 = vmatprep.subr.mxu0 0.0
      %2375 = vmatpush1.xpose.msra.mxu0 0.0
      %2376 = vmatprep.mubr.f32.mxu0 0.0
      %2377 = vmatmul.mubr.f32.gmra.mrb[0].mxu0 %v2307
      %v2378 = vpop.f32.mrb[0].mxu0
      %v2379 = vadd.f32 0.0, %v2378
      %v2380 = vpop.f32.mrb[0].mxu0
      %2381 = vdwg.mxu0
      %v2383 = vsel %vm1099, %v1766, 0
      %v2386 = vsel %vm1099, %v1255, 0
      %2388 = vmatprep.subr.mxu0 0.0
      %2389 = vmatpush1.xpose.msra.mxu0 %v2386
      %2390 = vmatprep.subr.mxu0 0.0
      %2391 = vmatpush1.xpose.msra.mxu0 0.0
      %2392 = vmatprep.subr.mxu0 0.0
      %2393 = vmatpush1.xpose.msra.mxu0 0.0
      %2394 = vmatprep.subr.mxu0 0.0
      %2395 = vmatpush1.xpose.msra.mxu0 0.0
      %2396 = vmatprep.subr.mxu0 0.0
      %2397 = vmatpush1.xpose.msra.mxu0 0.0
      %2398 = vmatprep.subr.mxu0 0.0
      %2399 = vmatpush1.xpose.msra.mxu0 0.0
      %2400 = vmatprep.subr.mxu0 0.0
      %2401 = vmatpush1.xpose.msra.mxu0 0.0
      %2402 = vmatprep.subr.mxu0 0.0
      %2403 = vmatpush1.xpose.msra.mxu0 0.0
      %2404 = vmatprep.subr.mxu0 0.0
      %2405 = vmatpush1.xpose.msra.mxu0 0.0
      %2406 = vmatprep.subr.mxu0 0.0
      %2407 = vmatpush1.xpose.msra.mxu0 0.0
      %2408 = vmatprep.subr.mxu0 0.0
      %2409 = vmatpush1.xpose.msra.mxu0 0.0
      %2410 = vmatprep.subr.mxu0 0.0
      %2411 = vmatpush1.xpose.msra.mxu0 0.0
      %2412 = vmatprep.subr.mxu0 0.0
      %2413 = vmatpush1.xpose.msra.mxu0 0.0
      %2414 = vmatprep.subr.mxu0 0.0
      %2415 = vmatpush1.xpose.msra.mxu0 0.0
      %2416 = vmatprep.subr.mxu0 0.0
      %2417 = vmatpush1.xpose.msra.mxu0 0.0
      %2418 = vmatprep.subr.mxu0 0.0
      %2419 = vmatpush1.xpose.msra.mxu0 0.0
      %2420 = vmatprep.subr.mxu0 0.0
      %2421 = vmatpush1.xpose.msra.mxu0 0.0
      %2422 = vmatprep.subr.mxu0 0.0
      %2423 = vmatpush1.xpose.msra.mxu0 0.0
      %2424 = vmatprep.subr.mxu0 0.0
      %2425 = vmatpush1.xpose.msra.mxu0 0.0
      %2426 = vmatprep.subr.mxu0 0.0
      %2427 = vmatpush1.xpose.msra.mxu0 0.0
      %2428 = vmatprep.subr.mxu0 0.0
      %2429 = vmatpush1.xpose.msra.mxu0 0.0
      %2430 = vmatprep.subr.mxu0 0.0
      %2431 = vmatpush1.xpose.msra.mxu0 0.0
      %2432 = vmatprep.subr.mxu0 0.0
      %2433 = vmatpush1.xpose.msra.mxu0 0.0
      %2434 = vmatprep.subr.mxu0 0.0
      %2435 = vmatpush1.xpose.msra.mxu0 0.0
      %2436 = vmatprep.subr.mxu0 0.0
      %2437 = vmatpush1.xpose.msra.mxu0 0.0
      %2438 = vmatprep.subr.mxu0 0.0
      %2439 = vmatpush1.xpose.msra.mxu0 0.0
      %2440 = vmatprep.subr.mxu0 0.0
      %2441 = vmatpush1.xpose.msra.mxu0 0.0
      %2442 = vmatprep.subr.mxu0 0.0
      %2443 = vmatpush1.xpose.msra.mxu0 0.0
      %2444 = vmatprep.subr.mxu0 0.0
      %2445 = vmatpush1.xpose.msra.mxu0 0.0
      %2446 = vmatprep.subr.mxu0 0.0
      %2447 = vmatpush1.xpose.msra.mxu0 0.0
      %2448 = vmatprep.subr.mxu0 0.0
      %2449 = vmatpush1.xpose.msra.mxu0 0.0
      %2450 = vmatprep.subr.mxu0 0.0
      %2451 = vmatpush1.xpose.msra.mxu0 0.0
      %2452 = vmatprep.mubr.f32.mxu0 0.0
      %2453 = vmatmul.mubr.f32.gmra.mrb[0].mxu0 %v2383
      %v2454 = vpop.f32.mrb[0].mxu0
      %v2455 = vadd.f32 0.0, %v2454
      %v2456 = vpop.f32.mrb[0].mxu0
      %2457 = vdwg.mxu0
      %v2459 = vsel %vm1099, %v1767, 0
      %v2462 = vsel %vm1099, %v1260, 0
      %2464 = vmatprep.subr.mxu0 0.0
      %2465 = vmatpush1.xpose.msra.mxu0 %v2462
      %2466 = vmatprep.subr.mxu0 0.0
      %2467 = vmatpush1.xpose.msra.mxu0 0.0
      %2468 = vmatprep.subr.mxu0 0.0
      %2469 = vmatpush1.xpose.msra.mxu0 0.0
      %2470 = vmatprep.subr.mxu0 0.0
      %2471 = vmatpush1.xpose.msra.mxu0 0.0
      %2472 = vmatprep.subr.mxu0 0.0
      %2473 = vmatpush1.xpose.msra.mxu0 0.0
      %2474 = vmatprep.subr.mxu0 0.0
      %2475 = vmatpush1.xpose.msra.mxu0 0.0
      %2476 = vmatprep.subr.mxu0 0.0
      %2477 = vmatpush1.xpose.msra.mxu0 0.0
      %2478 = vmatprep.subr.mxu0 0.0
      %2479 = vmatpush1.xpose.msra.mxu0 0.0
      %2480 = vmatprep.subr.mxu0 0.0
      %2481 = vmatpush1.xpose.msra.mxu0 0.0
      %2482 = vmatprep.subr.mxu0 0.0
      %2483 = vmatpush1.xpose.msra.mxu0 0.0
      %2484 = vmatprep.subr.mxu0 0.0
      %2485 = vmatpush1.xpose.msra.mxu0 0.0
      %2486 = vmatprep.subr.mxu0 0.0
      %2487 = vmatpush1.xpose.msra.mxu0 0.0
      %2488 = vmatprep.subr.mxu0 0.0
      %2489 = vmatpush1.xpose.msra.mxu0 0.0
      %2490 = vmatprep.subr.mxu0 0.0
      %2491 = vmatpush1.xpose.msra.mxu0 0.0
      %2492 = vmatprep.subr.mxu0 0.0
      %2493 = vmatpush1.xpose.msra.mxu0 0.0
      %2494 = vmatprep.subr.mxu0 0.0
      %2495 = vmatpush1.xpose.msra.mxu0 0.0
      %2496 = vmatprep.subr.mxu0 0.0
      %2497 = vmatpush1.xpose.msra.mxu0 0.0
      %2498 = vmatprep.subr.mxu0 0.0
      %2499 = vmatpush1.xpose.msra.mxu0 0.0
      %2500 = vmatprep.subr.mxu0 0.0
      %2501 = vmatpush1.xpose.msra.mxu0 0.0
      %2502 = vmatprep.subr.mxu0 0.0
      %2503 = vmatpush1.xpose.msra.mxu0 0.0
      %2504 = vmatprep.subr.mxu0 0.0
      %2505 = vmatpush1.xpose.msra.mxu0 0.0
      %2506 = vmatprep.subr.mxu0 0.0
      %2507 = vmatpush1.xpose.msra.mxu0 0.0
      %2508 = vmatprep.subr.mxu0 0.0
      %2509 = vmatpush1.xpose.msra.mxu0 0.0
      %2510 = vmatprep.subr.mxu0 0.0
      %2511 = vmatpush1.xpose.msra.mxu0 0.0
      %2512 = vmatprep.subr.mxu0 0.0
      %2513 = vmatpush1.xpose.msra.mxu0 0.0
      %2514 = vmatprep.subr.mxu0 0.0
      %2515 = vmatpush1.xpose.msra.mxu0 0.0
      %2516 = vmatprep.subr.mxu0 0.0
      %2517 = vmatpush1.xpose.msra.mxu0 0.0
      %2518 = vmatprep.subr.mxu0 0.0
      %2519 = vmatpush1.xpose.msra.mxu0 0.0
      %2520 = vmatprep.subr.mxu0 0.0
      %2521 = vmatpush1.xpose.msra.mxu0 0.0
      %2522 = vmatprep.subr.mxu0 0.0
      %2523 = vmatpush1.xpose.msra.mxu0 0.0
      %2524 = vmatprep.subr.mxu0 0.0
      %2525 = vmatpush1.xpose.msra.mxu0 0.0
      %2526 = vmatprep.subr.mxu0 0.0
      %2527 = vmatpush1.xpose.msra.mxu0 0.0
      %2528 = vmatprep.mubr.f32.mxu0 0.0
      %2529 = vmatmul.mubr.f32.gmra.mrb[0].mxu0 %v2459
      %v2530 = vpop.f32.mrb[0].mxu0
      %v2531 = vadd.f32 0.0, %v2530
      %v2532 = vpop.f32.mrb[0].mxu0
      %2533 = vdwg.mxu0
      %v2535 = vsel %vm1099, %v1768, 0
      %v2538 = vsel %vm1099, %v1265, 0
      %2540 = vmatprep.subr.mxu0 0.0
      %2541 = vmatpush1.xpose.msra.mxu0 %v2538
      %2542 = vmatprep.subr.mxu0 0.0
      %2543 = vmatpush1.xpose.msra.mxu0 0.0
      %2544 = vmatprep.subr.mxu0 0.0
      %2545 = vmatpush1.xpose.msra.mxu0 0.0
      %2546 = vmatprep.subr.mxu0 0.0
      %2547 = vmatpush1.xpose.msra.mxu0 0.0
      %2548 = vmatprep.subr.mxu0 0.0
      %2549 = vmatpush1.xpose.msra.mxu0 0.0
      %2550 = vmatprep.subr.mxu0 0.0
      %2551 = vmatpush1.xpose.msra.mxu0 0.0
      %2552 = vmatprep.subr.mxu0 0.0
      %2553 = vmatpush1.xpose.msra.mxu0 0.0
      %2554 = vmatprep.subr.mxu0 0.0
      %2555 = vmatpush1.xpose.msra.mxu0 0.0
      %2556 = vmatprep.subr.mxu0 0.0
      %2557 = vmatpush1.xpose.msra.mxu0 0.0
      %2558 = vmatprep.subr.mxu0 0.0
      %2559 = vmatpush1.xpose.msra.mxu0 0.0
      %2560 = vmatprep.subr.mxu0 0.0
      %2561 = vmatpush1.xpose.msra.mxu0 0.0
      %2562 = vmatprep.subr.mxu0 0.0
      %2563 = vmatpush1.xpose.msra.mxu0 0.0
      %2564 = vmatprep.subr.mxu0 0.0
      %2565 = vmatpush1.xpose.msra.mxu0 0.0
      %2566 = vmatprep.subr.mxu0 0.0
      %2567 = vmatpush1.xpose.msra.mxu0 0.0
      %2568 = vmatprep.subr.mxu0 0.0
      %2569 = vmatpush1.xpose.msra.mxu0 0.0
      %2570 = vmatprep.subr.mxu0 0.0
      %2571 = vmatpush1.xpose.msra.mxu0 0.0
      %2572 = vmatprep.subr.mxu0 0.0
      %2573 = vmatpush1.xpose.msra.mxu0 0.0
      %2574 = vmatprep.subr.mxu0 0.0
      %2575 = vmatpush1.xpose.msra.mxu0 0.0
      %2576 = vmatprep.subr.mxu0 0.0
      %2577 = vmatpush1.xpose.msra.mxu0 0.0
      %2578 = vmatprep.subr.mxu0 0.0
      %2579 = vmatpush1.xpose.msra.mxu0 0.0
      %2580 = vmatprep.subr.mxu0 0.0
      %2581 = vmatpush1.xpose.msra.mxu0 0.0
      %2582 = vmatprep.subr.mxu0 0.0
      %2583 = vmatpush1.xpose.msra.mxu0 0.0
      %2584 = vmatprep.subr.mxu0 0.0
      %2585 = vmatpush1.xpose.msra.mxu0 0.0
      %2586 = vmatprep.subr.mxu0 0.0
      %2587 = vmatpush1.xpose.msra.mxu0 0.0
      %2588 = vmatprep.subr.mxu0 0.0
      %2589 = vmatpush1.xpose.msra.mxu0 0.0
      %2590 = vmatprep.subr.mxu0 0.0
      %2591 = vmatpush1.xpose.msra.mxu0 0.0
      %2592 = vmatprep.subr.mxu0 0.0
      %2593 = vmatpush1.xpose.msra.mxu0 0.0
      %2594 = vmatprep.subr.mxu0 0.0
      %2595 = vmatpush1.xpose.msra.mxu0 0.0
      %2596 = vmatprep.subr.mxu0 0.0
      %2597 = vmatpush1.xpose.msra.mxu0 0.0
      %2598 = vmatprep.subr.mxu0 0.0
      %2599 = vmatpush1.xpose.msra.mxu0 0.0
      %2600 = vmatprep.subr.mxu0 0.0
      %2601 = vmatpush1.xpose.msra.mxu0 0.0
      %2602 = vmatprep.subr.mxu0 0.0
      %2603 = vmatpush1.xpose.msra.mxu0 0.0
      %2604 = vmatprep.mubr.f32.mxu0 0.0
      %2605 = vmatmul.mubr.f32.gmra.mrb[0].mxu0 %v2535
      %v2606 = vpop.f32.mrb[0].mxu0
      %v2607 = vadd.f32 0.0, %v2606
      %v2608 = vpop.f32.mrb[0].mxu0
      %2609 = vdwg.mxu0
      %v2611 = vsel %vm1099, %v1769, 0
      %v2614 = vsel %vm1099, %v1270, 0
      %2616 = vmatprep.subr.mxu0 0.0
      %2617 = vmatpush1.xpose.msra.mxu0 %v2614
      %2618 = vmatprep.subr.mxu0 0.0
      %2619 = vmatpush1.xpose.msra.mxu0 0.0
      %2620 = vmatprep.subr.mxu0 0.0
      %2621 = vmatpush1.xpose.msra.mxu0 0.0
      %2622 = vmatprep.subr.mxu0 0.0
      %2623 = vmatpush1.xpose.msra.mxu0 0.0
      %2624 = vmatprep.subr.mxu0 0.0
      %2625 = vmatpush1.xpose.msra.mxu0 0.0
      %2626 = vmatprep.subr.mxu0 0.0
      %2627 = vmatpush1.xpose.msra.mxu0 0.0
      %2628 = vmatprep.subr.mxu0 0.0
      %2629 = vmatpush1.xpose.msra.mxu0 0.0
      %2630 = vmatprep.subr.mxu0 0.0
      %2631 = vmatpush1.xpose.msra.mxu0 0.0
      %2632 = vmatprep.subr.mxu0 0.0
      %2633 = vmatpush1.xpose.msra.mxu0 0.0
      %2634 = vmatprep.subr.mxu0 0.0
      %2635 = vmatpush1.xpose.msra.mxu0 0.0
      %2636 = vmatprep.subr.mxu0 0.0
      %2637 = vmatpush1.xpose.msra.mxu0 0.0
      %2638 = vmatprep.subr.mxu0 0.0
      %2639 = vmatpush1.xpose.msra.mxu0 0.0
      %2640 = vmatprep.subr.mxu0 0.0
      %2641 = vmatpush1.xpose.msra.mxu0 0.0
      %2642 = vmatprep.subr.mxu0 0.0
      %2643 = vmatpush1.xpose.msra.mxu0 0.0
      %2644 = vmatprep.subr.mxu0 0.0
      %2645 = vmatpush1.xpose.msra.mxu0 0.0
      %2646 = vmatprep.subr.mxu0 0.0
      %2647 = vmatpush1.xpose.msra.mxu0 0.0
      %2648 = vmatprep.subr.mxu0 0.0
      %2649 = vmatpush1.xpose.msra.mxu0 0.0
      %2650 = vmatprep.subr.mxu0 0.0
      %2651 = vmatpush1.xpose.msra.mxu0 0.0
      %2652 = vmatprep.subr.mxu0 0.0
      %2653 = vmatpush1.xpose.msra.mxu0 0.0
      %2654 = vmatprep.subr.mxu0 0.0
      %2655 = vmatpush1.xpose.msra.mxu0 0.0
      %2656 = vmatprep.subr.mxu0 0.0
      %2657 = vmatpush1.xpose.msra.mxu0 0.0
      %2658 = vmatprep.subr.mxu0 0.0
      %2659 = vmatpush1.xpose.msra.mxu0 0.0
      %2660 = vmatprep.subr.mxu0 0.0
      %2661 = vmatpush1.xpose.msra.mxu0 0.0
      %2662 = vmatprep.subr.mxu0 0.0
      %2663 = vmatpush1.xpose.msra.mxu0 0.0
      %2664 = vmatprep.subr.mxu0 0.0
      %2665 = vmatpush1.xpose.msra.mxu0 0.0
      %2666 = vmatprep.subr.mxu0 0.0
      %2667 = vmatpush1.xpose.msra.mxu0 0.0
      %2668 = vmatprep.subr.mxu0 0.0
      %2669 = vmatpush1.xpose.msra.mxu0 0.0
      %2670 = vmatprep.subr.mxu0 0.0
      %2671 = vmatpush1.xpose.msra.mxu0 0.0
      %2672 = vmatprep.subr.mxu0 0.0
      %2673 = vmatpush1.xpose.msra.mxu0 0.0
      %2674 = vmatprep.subr.mxu0 0.0
      %2675 = vmatpush1.xpose.msra.mxu0 0.0
      %2676 = vmatprep.subr.mxu0 0.0
      %2677 = vmatpush1.xpose.msra.mxu0 0.0
      %2678 = vmatprep.subr.mxu0 0.0
      %2679 = vmatpush1.xpose.msra.mxu0 0.0
      %2680 = vmatprep.mubr.f32.mxu0 0.0
      %2681 = vmatmul.mubr.f32.gmra.mrb[0].mxu0 %v2611
      %v2682 = vpop.f32.mrb[0].mxu0
      %v2683 = vadd.f32 0.0, %v2682
      %v2684 = vpop.f32.mrb[0].mxu0
      %2685 = vdwg.mxu0
      %v2687 = vsel %vm1099, %v1770, 0
      %v2690 = vsel %vm1099, %v1275, 0
      %2692 = vmatprep.subr.mxu0 0.0
      %2693 = vmatpush1.xpose.msra.mxu0 %v2690
      %2694 = vmatprep.subr.mxu0 0.0
      %2695 = vmatpush1.xpose.msra.mxu0 0.0
      %2696 = vmatprep.subr.mxu0 0.0
      %2697 = vmatpush1.xpose.msra.mxu0 0.0
      %2698 = vmatprep.subr.mxu0 0.0
      %2699 = vmatpush1.xpose.msra.mxu0 0.0
      %2700 = vmatprep.subr.mxu0 0.0
      %2701 = vmatpush1.xpose.msra.mxu0 0.0
      %2702 = vmatprep.subr.mxu0 0.0
      %2703 = vmatpush1.xpose.msra.mxu0 0.0
      %2704 = vmatprep.subr.mxu0 0.0
      %2705 = vmatpush1.xpose.msra.mxu0 0.0
      %2706 = vmatprep.subr.mxu0 0.0
      %2707 = vmatpush1.xpose.msra.mxu0 0.0
      %2708 = vmatprep.subr.mxu0 0.0
      %2709 = vmatpush1.xpose.msra.mxu0 0.0
      %2710 = vmatprep.subr.mxu0 0.0
      %2711 = vmatpush1.xpose.msra.mxu0 0.0
      %2712 = vmatprep.subr.mxu0 0.0
      %2713 = vmatpush1.xpose.msra.mxu0 0.0
      %2714 = vmatprep.subr.mxu0 0.0
      %2715 = vmatpush1.xpose.msra.mxu0 0.0
      %2716 = vmatprep.subr.mxu0 0.0
      %2717 = vmatpush1.xpose.msra.mxu0 0.0
      %2718 = vmatprep.subr.mxu0 0.0
      %2719 = vmatpush1.xpose.msra.mxu0 0.0
      %2720 = vmatprep.subr.mxu0 0.0
      %2721 = vmatpush1.xpose.msra.mxu0 0.0
      %2722 = vmatprep.subr.mxu0 0.0
      %2723 = vmatpush1.xpose.msra.mxu0 0.0
      %2724 = vmatprep.subr.mxu0 0.0
      %2725 = vmatpush1.xpose.msra.mxu0 0.0
      %2726 = vmatprep.subr.mxu0 0.0
      %2727 = vmatpush1.xpose.msra.mxu0 0.0
      %2728 = vmatprep.subr.mxu0 0.0
      %2729 = vmatpush1.xpose.msra.mxu0 0.0
      %2730 = vmatprep.subr.mxu0 0.0
      %2731 = vmatpush1.xpose.msra.mxu0 0.0
      %2732 = vmatprep.subr.mxu0 0.0
      %2733 = vmatpush1.xpose.msra.mxu0 0.0
      %2734 = vmatprep.subr.mxu0 0.0
      %2735 = vmatpush1.xpose.msra.mxu0 0.0
      %2736 = vmatprep.subr.mxu0 0.0
      %2737 = vmatpush1.xpose.msra.mxu0 0.0
      %2738 = vmatprep.subr.mxu0 0.0
      %2739 = vmatpush1.xpose.msra.mxu0 0.0
      %2740 = vmatprep.subr.mxu0 0.0
      %2741 = vmatpush1.xpose.msra.mxu0 0.0
      %2742 = vmatprep.subr.mxu0 0.0
      %2743 = vmatpush1.xpose.msra.mxu0 0.0
      %2744 = vmatprep.subr.mxu0 0.0
      %2745 = vmatpush1.xpose.msra.mxu0 0.0
      %2746 = vmatprep.subr.mxu0 0.0
      %2747 = vmatpush1.xpose.msra.mxu0 0.0
      %2748 = vmatprep.subr.mxu0 0.0
      %2749 = vmatpush1.xpose.msra.mxu0 0.0
      %2750 = vmatprep.subr.mxu0 0.0
      %2751 = vmatpush1.xpose.msra.mxu0 0.0
      %2752 = vmatprep.subr.mxu0 0.0
      %2753 = vmatpush1.xpose.msra.mxu0 0.0
      %2754 = vmatprep.subr.mxu0 0.0
      %2755 = vmatpush1.xpose.msra.mxu0 0.0
      %2756 = vmatprep.mubr.f32.mxu0 0.0
      %2757 = vmatmul.mubr.f32.gmra.mrb[0].mxu0 %v2687
      %v2758 = vpop.f32.mrb[0].mxu0
      %v2759 = vadd.f32 0.0, %v2758
      %v2760 = vpop.f32.mrb[0].mxu0
      %2761 = vdwg.mxu0
      %v2763 = vsel %vm1099, %v1771, 0
      %v2766 = vsel %vm1099, %v1280, 0
      %2768 = vmatprep.subr.mxu0 0.0
      %2769 = vmatpush1.xpose.msra.mxu0 %v2766
      %2770 = vmatprep.subr.mxu0 0.0
      %2771 = vmatpush1.xpose.msra.mxu0 0.0
      %2772 = vmatprep.subr.mxu0 0.0
      %2773 = vmatpush1.xpose.msra.mxu0 0.0
      %2774 = vmatprep.subr.mxu0 0.0
      %2775 = vmatpush1.xpose.msra.mxu0 0.0
      %2776 = vmatprep.subr.mxu0 0.0
      %2777 = vmatpush1.xpose.msra.mxu0 0.0
      %2778 = vmatprep.subr.mxu0 0.0
      %2779 = vmatpush1.xpose.msra.mxu0 0.0
      %2780 = vmatprep.subr.mxu0 0.0
      %2781 = vmatpush1.xpose.msra.mxu0 0.0
      %2782 = vmatprep.subr.mxu0 0.0
      %2783 = vmatpush1.xpose.msra.mxu0 0.0
      %2784 = vmatprep.subr.mxu0 0.0
      %2785 = vmatpush1.xpose.msra.mxu0 0.0
      %2786 = vmatprep.subr.mxu0 0.0
      %2787 = vmatpush1.xpose.msra.mxu0 0.0
      %2788 = vmatprep.subr.mxu0 0.0
      %2789 = vmatpush1.xpose.msra.mxu0 0.0
      %2790 = vmatprep.subr.mxu0 0.0
      %2791 = vmatpush1.xpose.msra.mxu0 0.0
      %2792 = vmatprep.subr.mxu0 0.0
      %2793 = vmatpush1.xpose.msra.mxu0 0.0
      %2794 = vmatprep.subr.mxu0 0.0
      %2795 = vmatpush1.xpose.msra.mxu0 0.0
      %2796 = vmatprep.subr.mxu0 0.0
      %2797 = vmatpush1.xpose.msra.mxu0 0.0
      %2798 = vmatprep.subr.mxu0 0.0
      %2799 = vmatpush1.xpose.msra.mxu0 0.0
      %2800 = vmatprep.subr.mxu0 0.0
      %2801 = vmatpush1.xpose.msra.mxu0 0.0
      %2802 = vmatprep.subr.mxu0 0.0
      %2803 = vmatpush1.xpose.msra.mxu0 0.0
      %2804 = vmatprep.subr.mxu0 0.0
      %2805 = vmatpush1.xpose.msra.mxu0 0.0
      %2806 = vmatprep.subr.mxu0 0.0
      %2807 = vmatpush1.xpose.msra.mxu0 0.0
      %2808 = vmatprep.subr.mxu0 0.0
      %2809 = vmatpush1.xpose.msra.mxu0 0.0
      %2810 = vmatprep.subr.mxu0 0.0
      %2811 = vmatpush1.xpose.msra.mxu0 0.0
      %2812 = vmatprep.subr.mxu0 0.0
      %2813 = vmatpush1.xpose.msra.mxu0 0.0
      %2814 = vmatprep.subr.mxu0 0.0
      %2815 = vmatpush1.xpose.msra.mxu0 0.0
      %2816 = vmatprep.subr.mxu0 0.0
      %2817 = vmatpush1.xpose.msra.mxu0 0.0
      %2818 = vmatprep.subr.mxu0 0.0
      %2819 = vmatpush1.xpose.msra.mxu0 0.0
      %2820 = vmatprep.subr.mxu0 0.0
      %2821 = vmatpush1.xpose.msra.mxu0 0.0
      %2822 = vmatprep.subr.mxu0 0.0
      %2823 = vmatpush1.xpose.msra.mxu0 0.0
      %2824 = vmatprep.subr.mxu0 0.0
      %2825 = vmatpush1.xpose.msra.mxu0 0.0
      %2826 = vmatprep.subr.mxu0 0.0
      %2827 = vmatpush1.xpose.msra.mxu0 0.0
      %2828 = vmatprep.subr.mxu0 0.0
      %2829 = vmatpush1.xpose.msra.mxu0 0.0
      %2830 = vmatprep.subr.mxu0 0.0
      %2831 = vmatpush1.xpose.msra.mxu0 0.0
      %2832 = vmatprep.mubr.f32.mxu0 0.0
      %2833 = vmatmul.mubr.f32.gmra.mrb[0].mxu0 %v2763
      %v2834 = vpop.f32.mrb[0].mxu0
      %v2835 = vadd.f32 0.0, %v2834
      %v2836 = vpop.f32.mrb[0].mxu0
      %2837 = vdwg.mxu0
      %v2839 = vsel %vm1099, %v1772, 0
      %v2842 = vsel %vm1099, %v1285, 0
      %2844 = vmatprep.subr.mxu0 0.0
      %2845 = vmatpush1.xpose.msra.mxu0 %v2842
      %2846 = vmatprep.subr.mxu0 0.0
      %2847 = vmatpush1.xpose.msra.mxu0 0.0
      %2848 = vmatprep.subr.mxu0 0.0
      %2849 = vmatpush1.xpose.msra.mxu0 0.0
      %2850 = vmatprep.subr.mxu0 0.0
      %2851 = vmatpush1.xpose.msra.mxu0 0.0
      %2852 = vmatprep.subr.mxu0 0.0
      %2853 = vmatpush1.xpose.msra.mxu0 0.0
      %2854 = vmatprep.subr.mxu0 0.0
      %2855 = vmatpush1.xpose.msra.mxu0 0.0
      %2856 = vmatprep.subr.mxu0 0.0
      %2857 = vmatpush1.xpose.msra.mxu0 0.0
      %2858 = vmatprep.subr.mxu0 0.0
      %2859 = vmatpush1.xpose.msra.mxu0 0.0
      %2860 = vmatprep.subr.mxu0 0.0
      %2861 = vmatpush1.xpose.msra.mxu0 0.0
      %2862 = vmatprep.subr.mxu0 0.0
      %2863 = vmatpush1.xpose.msra.mxu0 0.0
      %2864 = vmatprep.subr.mxu0 0.0
      %2865 = vmatpush1.xpose.msra.mxu0 0.0
      %2866 = vmatprep.subr.mxu0 0.0
      %2867 = vmatpush1.xpose.msra.mxu0 0.0
      %2868 = vmatprep.subr.mxu0 0.0
      %2869 = vmatpush1.xpose.msra.mxu0 0.0
      %2870 = vmatprep.subr.mxu0 0.0
      %2871 = vmatpush1.xpose.msra.mxu0 0.0
      %2872 = vmatprep.subr.mxu0 0.0
      %2873 = vmatpush1.xpose.msra.mxu0 0.0
      %2874 = vmatprep.subr.mxu0 0.0
      %2875 = vmatpush1.xpose.msra.mxu0 0.0
      %2876 = vmatprep.subr.mxu0 0.0
      %2877 = vmatpush1.xpose.msra.mxu0 0.0
      %2878 = vmatprep.subr.mxu0 0.0
      %2879 = vmatpush1.xpose.msra.mxu0 0.0
      %2880 = vmatprep.subr.mxu0 0.0
      %2881 = vmatpush1.xpose.msra.mxu0 0.0
      %2882 = vmatprep.subr.mxu0 0.0
      %2883 = vmatpush1.xpose.msra.mxu0 0.0
      %2884 = vmatprep.subr.mxu0 0.0
      %2885 = vmatpush1.xpose.msra.mxu0 0.0
      %2886 = vmatprep.subr.mxu0 0.0
      %2887 = vmatpush1.xpose.msra.mxu0 0.0
      %2888 = vmatprep.subr.mxu0 0.0
      %2889 = vmatpush1.xpose.msra.mxu0 0.0
      %2890 = vmatprep.subr.mxu0 0.0
      %2891 = vmatpush1.xpose.msra.mxu0 0.0
      %2892 = vmatprep.subr.mxu0 0.0
      %2893 = vmatpush1.xpose.msra.mxu0 0.0
      %2894 = vmatprep.subr.mxu0 0.0
      %2895 = vmatpush1.xpose.msra.mxu0 0.0
      %2896 = vmatprep.subr.mxu0 0.0
      %2897 = vmatpush1.xpose.msra.mxu0 0.0
      %2898 = vmatprep.subr.mxu0 0.0
      %2899 = vmatpush1.xpose.msra.mxu0 0.0
      %2900 = vmatprep.subr.mxu0 0.0
      %2901 = vmatpush1.xpose.msra.mxu0 0.0
      %2902 = vmatprep.subr.mxu0 0.0
      %2903 = vmatpush1.xpose.msra.mxu0 0.0
      %2904 = vmatprep.subr.mxu0 0.0
      %2905 = vmatpush1.xpose.msra.mxu0 0.0
      %2906 = vmatprep.subr.mxu0 0.0
      %2907 = vmatpush1.xpose.msra.mxu0 0.0
      %2908 = vmatprep.mubr.f32.mxu0 0.0
      %2909 = vmatmul.mubr.f32.gmra.mrb[0].mxu0 %v2839
      %v2910 = vpop.f32.mrb[0].mxu0
      %v2911 = vadd.f32 0.0, %v2910
      %v2912 = vpop.f32.mrb[0].mxu0
      %2913 = vdwg.mxu0
      %v2915 = vsel %vm1099, %v1773, 0
      %v2918 = vsel %vm1099, %v1290, 0
      %2920 = vmatprep.subr.mxu0 0.0
      %2921 = vmatpush1.xpose.msra.mxu0 %v2918
      %2922 = vmatprep.subr.mxu0 0.0
      %2923 = vmatpush1.xpose.msra.mxu0 0.0
      %2924 = vmatprep.subr.mxu0 0.0
      %2925 = vmatpush1.xpose.msra.mxu0 0.0
      %2926 = vmatprep.subr.mxu0 0.0
      %2927 = vmatpush1.xpose.msra.mxu0 0.0
      %2928 = vmatprep.subr.mxu0 0.0
      %2929 = vmatpush1.xpose.msra.mxu0 0.0
      %2930 = vmatprep.subr.mxu0 0.0
      %2931 = vmatpush1.xpose.msra.mxu0 0.0
      %2932 = vmatprep.subr.mxu0 0.0
      %2933 = vmatpush1.xpose.msra.mxu0 0.0
      %2934 = vmatprep.subr.mxu0 0.0
      %2935 = vmatpush1.xpose.msra.mxu0 0.0
      %2936 = vmatprep.subr.mxu0 0.0
      %2937 = vmatpush1.xpose.msra.mxu0 0.0
      %2938 = vmatprep.subr.mxu0 0.0
      %2939 = vmatpush1.xpose.msra.mxu0 0.0
      %2940 = vmatprep.subr.mxu0 0.0
      %2941 = vmatpush1.xpose.msra.mxu0 0.0
      %2942 = vmatprep.subr.mxu0 0.0
      %2943 = vmatpush1.xpose.msra.mxu0 0.0
      %2944 = vmatprep.subr.mxu0 0.0
      %2945 = vmatpush1.xpose.msra.mxu0 0.0
      %2946 = vmatprep.subr.mxu0 0.0
      %2947 = vmatpush1.xpose.msra.mxu0 0.0
      %2948 = vmatprep.subr.mxu0 0.0
      %2949 = vmatpush1.xpose.msra.mxu0 0.0
      %2950 = vmatprep.subr.mxu0 0.0
      %2951 = vmatpush1.xpose.msra.mxu0 0.0
      %2952 = vmatprep.subr.mxu0 0.0
      %2953 = vmatpush1.xpose.msra.mxu0 0.0
      %2954 = vmatprep.subr.mxu0 0.0
      %2955 = vmatpush1.xpose.msra.mxu0 0.0
      %2956 = vmatprep.subr.mxu0 0.0
      %2957 = vmatpush1.xpose.msra.mxu0 0.0
      %2958 = vmatprep.subr.mxu0 0.0
      %2959 = vmatpush1.xpose.msra.mxu0 0.0
      %2960 = vmatprep.subr.mxu0 0.0
      %2961 = vmatpush1.xpose.msra.mxu0 0.0
      %2962 = vmatprep.subr.mxu0 0.0
      %2963 = vmatpush1.xpose.msra.mxu0 0.0
      %2964 = vmatprep.subr.mxu0 0.0
      %2965 = vmatpush1.xpose.msra.mxu0 0.0
      %2966 = vmatprep.subr.mxu0 0.0
      %2967 = vmatpush1.xpose.msra.mxu0 0.0
      %2968 = vmatprep.subr.mxu0 0.0
      %2969 = vmatpush1.xpose.msra.mxu0 0.0
      %2970 = vmatprep.subr.mxu0 0.0
      %2971 = vmatpush1.xpose.msra.mxu0 0.0
      %2972 = vmatprep.subr.mxu0 0.0
      %2973 = vmatpush1.xpose.msra.mxu0 0.0
      %2974 = vmatprep.subr.mxu0 0.0
      %2975 = vmatpush1.xpose.msra.mxu0 0.0
      %2976 = vmatprep.subr.mxu0 0.0
      %2977 = vmatpush1.xpose.msra.mxu0 0.0
      %2978 = vmatprep.subr.mxu0 0.0
      %2979 = vmatpush1.xpose.msra.mxu0 0.0
      %2980 = vmatprep.subr.mxu0 0.0
      %2981 = vmatpush1.xpose.msra.mxu0 0.0
      %2982 = vmatprep.subr.mxu0 0.0
      %2983 = vmatpush1.xpose.msra.mxu0 0.0
      %2984 = vmatprep.mubr.f32.mxu0 0.0
      %2985 = vmatmul.mubr.f32.gmra.mrb[0].mxu0 %v2915
      %v2986 = vpop.f32.mrb[0].mxu0
      %v2987 = vadd.f32 0.0, %v2986
      %v2988 = vpop.f32.mrb[0].mxu0
      %2989 = vdwg.mxu0
      %vm2990 = vcmask 64512
      %v2991 = vsel %vm2990, %v1847, -inf
      %2992 = vmax.xlane.f32.xlu0 %v2991
      %v2993 = vpop.xlane.xlu0 %2992
      %v2994 = vsel %vm2990, %v1923, -inf
      %2995 = vmax.xlane.f32.xlu0 %v2994
      %v2996 = vpop.xlane.xlu0 %2995
      %v2997 = vsel %vm2990, %v1999, -inf
      %2998 = vmax.xlane.f32.xlu0 %v2997
      %v2999 = vpop.xlane.xlu0 %2998
      %v3000 = vsel %vm2990, %v2075, -inf
      %3001 = vmax.xlane.f32.xlu0 %v3000
      %v3002 = vpop.xlane.xlu0 %3001
      %v3003 = vsel %vm2990, %v2151, -inf
      %3004 = vmax.xlane.f32.xlu0 %v3003
      %v3005 = vpop.xlane.xlu0 %3004
      %v3006 = vsel %vm2990, %v2227, -inf
      %3007 = vmax.xlane.f32.xlu0 %v3006
      %v3008 = vpop.xlane.xlu0 %3007
      %v3009 = vsel %vm2990, %v2303, -inf
      %3010 = vmax.xlane.f32.xlu0 %v3009
      %v3011 = vpop.xlane.xlu0 %3010
      %v3012 = vsel %vm2990, %v2379, -inf
      %3013 = vmax.xlane.f32.xlu0 %v3012
      %v3014 = vpop.xlane.xlu0 %3013
      %v3015 = vsel %vm2990, %v2455, -inf
      %3016 = vmax.xlane.f32.xlu0 %v3015
      %v3017 = vpop.xlane.xlu0 %3016
      %v3018 = vsel %vm2990, %v2531, -inf
      %3019 = vmax.xlane.f32.xlu0 %v3018
      %v3020 = vpop.xlane.xlu0 %3019
      %v3021 = vsel %vm2990, %v2607, -inf
      %3022 = vmax.xlane.f32.xlu0 %v3021
      %v3023 = vpop.xlane.xlu0 %3022
      %v3024 = vsel %vm2990, %v2683, -inf
      %3025 = vmax.xlane.f32.xlu0 %v3024
      %v3026 = vpop.xlane.xlu0 %3025
      %v3027 = vsel %vm2990, %v2759, -inf
      %3028 = vmax.xlane.f32.xlu0 %v3027
      %v3029 = vpop.xlane.xlu0 %3028
      %v3030 = vsel %vm2990, %v2835, -inf
      %3031 = vmax.xlane.f32.xlu0 %v3030
      %v3032 = vpop.xlane.xlu0 %3031
      %v3033 = vsel %vm2990, %v2911, -inf
      %3034 = vmax.xlane.f32.xlu0 %v3033
      %v3035 = vpop.xlane.xlu0 %3034
      %v3036 = vsel %vm2990, %v2987, -inf
      %3037 = vmax.xlane.f32.xlu0 %v3036
      %v3038 = vpop.xlane.xlu0 %3037
      %v3039 = vsub.f32 %v1847, %v2993
      %v3040 = vsub.f32 %v1923, %v2996
      %v3041 = vsub.f32 %v1999, %v2999
      %v3042 = vsub.f32 %v2075, %v3002
      %v3043 = vsub.f32 %v2151, %v3005
      %v3044 = vsub.f32 %v2227, %v3008
      %v3045 = vsub.f32 %v2303, %v3011
      %v3046 = vsub.f32 %v2379, %v3014
      %v3047 = vsub.f32 %v2455, %v3017
      %v3048 = vsub.f32 %v2531, %v3020
      %v3049 = vsub.f32 %v2607, %v3023
      %v3050 = vsub.f32 %v2683, %v3026
      %v3051 = vsub.f32 %v2759, %v3029
      %v3052 = vsub.f32 %v2835, %v3032
      %v3053 = vsub.f32 %v2911, %v3035
      %v3054 = vsub.f32 %v2987, %v3038
      %v3055 = vmul.f32 %v3039, 1.442695
      %v3056 = vpow.pop %v3055
      %v3057 = vmul.f32 %v3040, 1.442695
      %v3058 = vpow.pop %v3057
      %v3059 = vmul.f32 %v3041, 1.442695
      %v3060 = vpow.pop %v3059
      %v3061 = vmul.f32 %v3042, 1.442695
      %v3062 = vpow.pop %v3061
      %v3063 = vmul.f32 %v3043, 1.442695
      %v3064 = vpow.pop %v3063
      %v3065 = vmul.f32 %v3044, 1.442695
      %v3066 = vpow.pop %v3065
      %v3067 = vmul.f32 %v3045, 1.442695
      %v3068 = vpow.pop %v3067
      %v3069 = vmul.f32 %v3046, 1.442695
      %v3070 = vpow.pop %v3069
      %v3071 = vmul.f32 %v3047, 1.442695
      %v3072 = vpow.pop %v3071
      %v3073 = vmul.f32 %v3048, 1.442695
      %v3074 = vpow.pop %v3073
      %v3075 = vmul.f32 %v3049, 1.442695
      %v3076 = vpow.pop %v3075
      %v3077 = vmul.f32 %v3050, 1.442695
      %v3078 = vpow.pop %v3077
      %v3079 = vmul.f32 %v3051, 1.442695
      %v3080 = vpow.pop %v3079
      %v3081 = vmul.f32 %v3052, 1.442695
      %v3082 = vpow.pop %v3081
      %v3083 = vmul.f32 %v3053, 1.442695
      %v3084 = vpow.pop %v3083
      %v3085 = vmul.f32 %v3054, 1.442695
      %v3086 = vpow.pop %v3085
      %v3087 = vsel %vm2990, %v3056, 0.0
      %3088 = vadd.xlane.f32.xlu0 %v3087
      %v3089 = vpop.xlane.xlu0 %3088
      %v3090 = vsel %vm2990, %v3058, 0.0
      %3091 = vadd.xlane.f32.xlu0 %v3090
      %v3092 = vpop.xlane.xlu0 %3091
      %v3093 = vsel %vm2990, %v3060, 0.0
      %3094 = vadd.xlane.f32.xlu0 %v3093
      %v3095 = vpop.xlane.xlu0 %3094
      %v3096 = vsel %vm2990, %v3062, 0.0
      %3097 = vadd.xlane.f32.xlu0 %v3096
      %v3098 = vpop.xlane.xlu0 %3097
      %v3099 = vsel %vm2990, %v3064, 0.0
      %3100 = vadd.xlane.f32.xlu0 %v3099
      %v3101 = vpop.xlane.xlu0 %3100
      %v3102 = vsel %vm2990, %v3066, 0.0
      %3103 = vadd.xlane.f32.xlu0 %v3102
      %v3104 = vpop.xlane.xlu0 %3103
      %v3105 = vsel %vm2990, %v3068, 0.0
      %3106 = vadd.xlane.f32.xlu0 %v3105
      %v3107 = vpop.xlane.xlu0 %3106
      %v3108 = vsel %vm2990, %v3070, 0.0
      %3109 = vadd.xlane.f32.xlu0 %v3108
      %v3110 = vpop.xlane.xlu0 %3109
      %v3111 = vsel %vm2990, %v3072, 0.0
      %3112 = vadd.xlane.f32.xlu0 %v3111
      %v3113 = vpop.xlane.xlu0 %3112
      %v3114 = vsel %vm2990, %v3074, 0.0
      %3115 = vadd.xlane.f32.xlu0 %v3114
      %v3116 = vpop.xlane.xlu0 %3115
      %v3117 = vsel %vm2990, %v3076, 0.0
      %3118 = vadd.xlane.f32.xlu0 %v3117
      %v3119 = vpop.xlane.xlu0 %3118
      %v3120 = vsel %vm2990, %v3078, 0.0
      %3121 = vadd.xlane.f32.xlu0 %v3120
      %v3122 = vpop.xlane.xlu0 %3121
      %v3123 = vsel %vm2990, %v3080, 0.0
      %3124 = vadd.xlane.f32.xlu0 %v3123
      %v3125 = vpop.xlane.xlu0 %3124
      %v3126 = vsel %vm2990, %v3082, 0.0
      %3127 = vadd.xlane.f32.xlu0 %v3126
      %v3128 = vpop.xlane.xlu0 %3127
      %v3129 = vsel %vm2990, %v3084, 0.0
      %3130 = vadd.xlane.f32.xlu0 %v3129
      %v3131 = vpop.xlane.xlu0 %3130
      %v3132 = vsel %vm2990, %v3086, 0.0
      %3133 = vadd.xlane.f32.xlu0 %v3132
      %v3134 = vpop.xlane.xlu0 %3133
      %v3135 = vrcp.pop %v3089
      %v3136 = vrcp.pop %v3092
      %v3137 = vrcp.pop %v3095
      %v3138 = vrcp.pop %v3098
      %v3139 = vrcp.pop %v3101
      %v3140 = vrcp.pop %v3104
      %v3141 = vrcp.pop %v3107
      %v3142 = vrcp.pop %v3110
      %v3143 = vrcp.pop %v3113
      %v3144 = vrcp.pop %v3116
      %v3145 = vrcp.pop %v3119
      %v3146 = vrcp.pop %v3122
      %v3147 = vrcp.pop %v3125
      %v3148 = vrcp.pop %v3128
      %v3149 = vrcp.pop %v3131
      %v3150 = vrcp.pop %v3134
      %v3151 = vmul.f32 %v3056, %v3135
      %v3152 = vmul.f32 %v3058, %v3136
      %v3153 = vmul.f32 %v3060, %v3137
      %v3154 = vmul.f32 %v3062, %v3138
      %v3155 = vmul.f32 %v3064, %v3139
      %v3156 = vmul.f32 %v3066, %v3140
      %v3157 = vmul.f32 %v3068, %v3141
      %v3158 = vmul.f32 %v3070, %v3142
      %v3159 = vmul.f32 %v3072, %v3143
      %v3160 = vmul.f32 %v3074, %v3144
      %v3161 = vmul.f32 %v3076, %v3145
      %v3162 = vmul.f32 %v3078, %v3146
      %v3163 = vmul.f32 %v3080, %v3147
      %v3164 = vmul.f32 %v3082, %v3148
      %v3165 = vmul.f32 %v3084, %v3149
      %v3166 = vmul.f32 %v3086, %v3150
      %v3168 = vsel %vm2990, %v3151, 0
      %3170 = vmatprep.subr.mxu0 0.0
      %3171 = vmatpush1.msra.mxu0 %v1373
      %3172 = vmatprep.subr.mxu0 0.0
      %3173 = vmatpush1.msra.mxu0 0.0
      %3174 = vmatprep.subr.mxu0 0.0
      %3175 = vmatpush1.msra.mxu0 0.0
      %3176 = vmatprep.subr.mxu0 0.0
      %3177 = vmatpush1.msra.mxu0 0.0
      %3178 = vmatprep.subr.mxu0 0.0
      %3179 = vmatpush1.msra.mxu0 0.0
      %3180 = vmatprep.subr.mxu0 0.0
      %3181 = vmatpush1.msra.mxu0 0.0
      %3182 = vmatprep.subr.mxu0 0.0
      %3183 = vmatpush1.msra.mxu0 0.0
      %3184 = vmatprep.subr.mxu0 0.0
      %3185 = vmatpush1.msra.mxu0 0.0
      %3186 = vmatprep.subr.mxu0 0.0
      %3187 = vmatpush1.msra.mxu0 0.0
      %3188 = vmatprep.subr.mxu0 0.0
      %3189 = vmatpush1.msra.mxu0 0.0
      %3190 = vmatprep.subr.mxu0 0.0
      %3191 = vmatpush1.msra.mxu0 0.0
      %3192 = vmatprep.subr.mxu0 0.0
      %3193 = vmatpush1.msra.mxu0 0.0
      %3194 = vmatprep.subr.mxu0 0.0
      %3195 = vmatpush1.msra.mxu0 0.0
      %3196 = vmatprep.subr.mxu0 0.0
      %3197 = vmatpush1.msra.mxu0 0.0
      %3198 = vmatprep.subr.mxu0 0.0
      %3199 = vmatpush1.msra.mxu0 0.0
      %3200 = vmatprep.subr.mxu0 0.0
      %3201 = vmatpush1.msra.mxu0 0.0
      %3202 = vmatprep.subr.mxu0 0.0
      %3203 = vmatpush1.msra.mxu0 0.0
      %3204 = vmatprep.subr.mxu0 0.0
      %3205 = vmatpush1.msra.mxu0 0.0
      %3206 = vmatprep.subr.mxu0 0.0
      %3207 = vmatpush1.msra.mxu0 0.0
      %3208 = vmatprep.subr.mxu0 0.0
      %3209 = vmatpush1.msra.mxu0 0.0
      %3210 = vmatprep.subr.mxu0 0.0
      %3211 = vmatpush1.msra.mxu0 0.0
      %3212 = vmatprep.subr.mxu0 0.0
      %3213 = vmatpush1.msra.mxu0 0.0
      %3214 = vmatprep.subr.mxu0 0.0
      %3215 = vmatpush1.msra.mxu0 0.0
      %3216 = vmatprep.subr.mxu0 0.0
      %3217 = vmatpush1.msra.mxu0 0.0
      %3218 = vmatprep.subr.mxu0 0.0
      %3219 = vmatpush1.msra.mxu0 0.0
      %3220 = vmatprep.subr.mxu0 0.0
      %3221 = vmatpush1.msra.mxu0 0.0
      %3222 = vmatprep.subr.mxu0 0.0
      %3223 = vmatpush1.msra.mxu0 0.0
      %3224 = vmatprep.subr.mxu0 0.0
      %3225 = vmatpush1.msra.mxu0 0.0
      %3226 = vmatprep.subr.mxu0 0.0
      %3227 = vmatpush1.msra.mxu0 0.0
      %3228 = vmatprep.subr.mxu0 0.0
      %3229 = vmatpush1.msra.mxu0 0.0
      %3230 = vmatprep.subr.mxu0 0.0
      %3231 = vmatpush1.msra.mxu0 0.0
      %3232 = vmatprep.subr.mxu0 0.0
      %3233 = vmatpush1.msra.mxu0 0.0
      %3234 = vmatprep.mubr.f32.mxu0 0.0
      %3235 = vmatmul.mubr.f32.gmra.mrb[0].mxu0 %v3168
      %v3236 = vpop.f32.mrb[0].mxu0
      %v3237 = vadd.f32 0.0, %v3236
      %v3238 = vpop.f32.mrb[0].mxu0
      %3239 = vdwg.mxu0
      %v3241 = vsel %vm2990, %v3152, 0
      %3243 = vmatprep.subr.mxu0 0.0
      %3244 = vmatpush1.msra.mxu0 %v1378
      %3245 = vmatprep.subr.mxu0 0.0
      %3246 = vmatpush1.msra.mxu0 0.0
      %3247 = vmatprep.subr.mxu0 0.0
      %3248 = vmatpush1.msra.mxu0 0.0
      %3249 = vmatprep.subr.mxu0 0.0
      %3250 = vmatpush1.msra.mxu0 0.0
      %3251 = vmatprep.subr.mxu0 0.0
      %3252 = vmatpush1.msra.mxu0 0.0
      %3253 = vmatprep.subr.mxu0 0.0
      %3254 = vmatpush1.msra.mxu0 0.0
      %3255 = vmatprep.subr.mxu0 0.0
      %3256 = vmatpush1.msra.mxu0 0.0
      %3257 = vmatprep.subr.mxu0 0.0
      %3258 = vmatpush1.msra.mxu0 0.0
      %3259 = vmatprep.subr.mxu0 0.0
      %3260 = vmatpush1.msra.mxu0 0.0
      %3261 = vmatprep.subr.mxu0 0.0
      %3262 = vmatpush1.msra.mxu0 0.0
      %3263 = vmatprep.subr.mxu0 0.0
      %3264 = vmatpush1.msra.mxu0 0.0
      %3265 = vmatprep.subr.mxu0 0.0
      %3266 = vmatpush1.msra.mxu0 0.0
      %3267 = vmatprep.subr.mxu0 0.0
      %3268 = vmatpush1.msra.mxu0 0.0
      %3269 = vmatprep.subr.mxu0 0.0
      %3270 = vmatpush1.msra.mxu0 0.0
      %3271 = vmatprep.subr.mxu0 0.0
      %3272 = vmatpush1.msra.mxu0 0.0
      %3273 = vmatprep.subr.mxu0 0.0
      %3274 = vmatpush1.msra.mxu0 0.0
      %3275 = vmatprep.subr.mxu0 0.0
      %3276 = vmatpush1.msra.mxu0 0.0
      %3277 = vmatprep.subr.mxu0 0.0
      %3278 = vmatpush1.msra.mxu0 0.0
      %3279 = vmatprep.subr.mxu0 0.0
      %3280 = vmatpush1.msra.mxu0 0.0
      %3281 = vmatprep.subr.mxu0 0.0
      %3282 = vmatpush1.msra.mxu0 0.0
      %3283 = vmatprep.subr.mxu0 0.0
      %3284 = vmatpush1.msra.mxu0 0.0
      %3285 = vmatprep.subr.mxu0 0.0
      %3286 = vmatpush1.msra.mxu0 0.0
      %3287 = vmatprep.subr.mxu0 0.0
      %3288 = vmatpush1.msra.mxu0 0.0
      %3289 = vmatprep.subr.mxu0 0.0
      %3290 = vmatpush1.msra.mxu0 0.0
      %3291 = vmatprep.subr.mxu0 0.0
      %3292 = vmatpush1.msra.mxu0 0.0
      %3293 = vmatprep.subr.mxu0 0.0
      %3294 = vmatpush1.msra.mxu0 0.0
      %3295 = vmatprep.subr.mxu0 0.0
      %3296 = vmatpush1.msra.mxu0 0.0
      %3297 = vmatprep.subr.mxu0 0.0
      %3298 = vmatpush1.msra.mxu0 0.0
      %3299 = vmatprep.subr.mxu0 0.0
      %3300 = vmatpush1.msra.mxu0 0.0
      %3301 = vmatprep.subr.mxu0 0.0
      %3302 = vmatpush1.msra.mxu0 0.0
      %3303 = vmatprep.subr.mxu0 0.0
      %3304 = vmatpush1.msra.mxu0 0.0
      %3305 = vmatprep.subr.mxu0 0.0
      %3306 = vmatpush1.msra.mxu0 0.0
      %3307 = vmatprep.mubr.f32.mxu0 0.0
      %3308 = vmatmul.mubr.f32.gmra.mrb[0].mxu0 %v3241
      %v3309 = vpop.f32.mrb[0].mxu0
      %v3310 = vadd.f32 0.0, %v3309
      %v3311 = vpop.f32.mrb[0].mxu0
      %3312 = vdwg.mxu0
      %v3314 = vsel %vm2990, %v3153, 0
      %3316 = vmatprep.subr.mxu0 0.0
      %3317 = vmatpush1.msra.mxu0 %v1383
      %3318 = vmatprep.subr.mxu0 0.0
      %3319 = vmatpush1.msra.mxu0 0.0
      %3320 = vmatprep.subr.mxu0 0.0
      %3321 = vmatpush1.msra.mxu0 0.0
      %3322 = vmatprep.subr.mxu0 0.0
      %3323 = vmatpush1.msra.mxu0 0.0
      %3324 = vmatprep.subr.mxu0 0.0
      %3325 = vmatpush1.msra.mxu0 0.0
      %3326 = vmatprep.subr.mxu0 0.0
      %3327 = vmatpush1.msra.mxu0 0.0
      %3328 = vmatprep.subr.mxu0 0.0
      %3329 = vmatpush1.msra.mxu0 0.0
      %3330 = vmatprep.subr.mxu0 0.0
      %3331 = vmatpush1.msra.mxu0 0.0
      %3332 = vmatprep.subr.mxu0 0.0
      %3333 = vmatpush1.msra.mxu0 0.0
      %3334 = vmatprep.subr.mxu0 0.0
      %3335 = vmatpush1.msra.mxu0 0.0
      %3336 = vmatprep.subr.mxu0 0.0
      %3337 = vmatpush1.msra.mxu0 0.0
      %3338 = vmatprep.subr.mxu0 0.0
      %3339 = vmatpush1.msra.mxu0 0.0
      %3340 = vmatprep.subr.mxu0 0.0
      %3341 = vmatpush1.msra.mxu0 0.0
      %3342 = vmatprep.subr.mxu0 0.0
      %3343 = vmatpush1.msra.mxu0 0.0
      %3344 = vmatprep.subr.mxu0 0.0
      %3345 = vmatpush1.msra.mxu0 0.0
      %3346 = vmatprep.subr.mxu0 0.0
      %3347 = vmatpush1.msra.mxu0 0.0
      %3348 = vmatprep.subr.mxu0 0.0
      %3349 = vmatpush1.msra.mxu0 0.0
      %3350 = vmatprep.subr.mxu0 0.0
      %3351 = vmatpush1.msra.mxu0 0.0
      %3352 = vmatprep.subr.mxu0 0.0
      %3353 = vmatpush1.msra.mxu0 0.0
      %3354 = vmatprep.subr.mxu0 0.0
      %3355 = vmatpush1.msra.mxu0 0.0
      %3356 = vmatprep.subr.mxu0 0.0
      %3357 = vmatpush1.msra.mxu0 0.0
      %3358 = vmatprep.subr.mxu0 0.0
      %3359 = vmatpush1.msra.mxu0 0.0
      %3360 = vmatprep.subr.mxu0 0.0
      %3361 = vmatpush1.msra.mxu0 0.0
      %3362 = vmatprep.subr.mxu0 0.0
      %3363 = vmatpush1.msra.mxu0 0.0
      %3364 = vmatprep.subr.mxu0 0.0
      %3365 = vmatpush1.msra.mxu0 0.0
      %3366 = vmatprep.subr.mxu0 0.0
      %3367 = vmatpush1.msra.mxu0 0.0
      %3368 = vmatprep.subr.mxu0 0.0
      %3369 = vmatpush1.msra.mxu0 0.0
      %3370 = vmatprep.subr.mxu0 0.0
      %3371 = vmatpush1.msra.mxu0 0.0
      %3372 = vmatprep.subr.mxu0 0.0
      %3373 = vmatpush1.msra.mxu0 0.0
      %3374 = vmatprep.subr.mxu0 0.0
      %3375 = vmatpush1.msra.mxu0 0.0
      %3376 = vmatprep.subr.mxu0 0.0
      %3377 = vmatpush1.msra.mxu0 0.0
      %3378 = vmatprep.subr.mxu0 0.0
      %3379 = vmatpush1.msra.mxu0 0.0
      %3380 = vmatprep.mubr.f32.mxu0 0.0
      %3381 = vmatmul.mubr.f32.gmra.mrb[0].mxu0 %v3314
      %v3382 = vpop.f32.mrb[0].mxu0
      %v3383 = vadd.f32 0.0, %v3382
      %v3384 = vpop.f32.mrb[0].mxu0
      %3385 = vdwg.mxu0
      %v3387 = vsel %vm2990, %v3154, 0
      %3389 = vmatprep.subr.mxu0 0.0
      %3390 = vmatpush1.msra.mxu0 %v1388
      %3391 = vmatprep.subr.mxu0 0.0
      %3392 = vmatpush1.msra.mxu0 0.0
      %3393 = vmatprep.subr.mxu0 0.0
      %3394 = vmatpush1.msra.mxu0 0.0
      %3395 = vmatprep.subr.mxu0 0.0
      %3396 = vmatpush1.msra.mxu0 0.0
      %3397 = vmatprep.subr.mxu0 0.0
      %3398 = vmatpush1.msra.mxu0 0.0
      %3399 = vmatprep.subr.mxu0 0.0
      %3400 = vmatpush1.msra.mxu0 0.0
      %3401 = vmatprep.subr.mxu0 0.0
      %3402 = vmatpush1.msra.mxu0 0.0
      %3403 = vmatprep.subr.mxu0 0.0
      %3404 = vmatpush1.msra.mxu0 0.0
      %3405 = vmatprep.subr.mxu0 0.0
      %3406 = vmatpush1.msra.mxu0 0.0
      %3407 = vmatprep.subr.mxu0 0.0
      %3408 = vmatpush1.msra.mxu0 0.0
      %3409 = vmatprep.subr.mxu0 0.0
      %3410 = vmatpush1.msra.mxu0 0.0
      %3411 = vmatprep.subr.mxu0 0.0
      %3412 = vmatpush1.msra.mxu0 0.0
      %3413 = vmatprep.subr.mxu0 0.0
      %3414 = vmatpush1.msra.mxu0 0.0
      %3415 = vmatprep.subr.mxu0 0.0
      %3416 = vmatpush1.msra.mxu0 0.0
      %3417 = vmatprep.subr.mxu0 0.0
      %3418 = vmatpush1.msra.mxu0 0.0
      %3419 = vmatprep.subr.mxu0 0.0
      %3420 = vmatpush1.msra.mxu0 0.0
      %3421 = vmatprep.subr.mxu0 0.0
      %3422 = vmatpush1.msra.mxu0 0.0
      %3423 = vmatprep.subr.mxu0 0.0
      %3424 = vmatpush1.msra.mxu0 0.0
      %3425 = vmatprep.subr.mxu0 0.0
      %3426 = vmatpush1.msra.mxu0 0.0
      %3427 = vmatprep.subr.mxu0 0.0
      %3428 = vmatpush1.msra.mxu0 0.0
      %3429 = vmatprep.subr.mxu0 0.0
      %3430 = vmatpush1.msra.mxu0 0.0
      %3431 = vmatprep.subr.mxu0 0.0
      %3432 = vmatpush1.msra.mxu0 0.0
      %3433 = vmatprep.subr.mxu0 0.0
      %3434 = vmatpush1.msra.mxu0 0.0
      %3435 = vmatprep.subr.mxu0 0.0
      %3436 = vmatpush1.msra.mxu0 0.0
      %3437 = vmatprep.subr.mxu0 0.0
      %3438 = vmatpush1.msra.mxu0 0.0
      %3439 = vmatprep.subr.mxu0 0.0
      %3440 = vmatpush1.msra.mxu0 0.0
      %3441 = vmatprep.subr.mxu0 0.0
      %3442 = vmatpush1.msra.mxu0 0.0
      %3443 = vmatprep.subr.mxu0 0.0
      %3444 = vmatpush1.msra.mxu0 0.0
      %3445 = vmatprep.subr.mxu0 0.0
      %3446 = vmatpush1.msra.mxu0 0.0
      %3447 = vmatprep.subr.mxu0 0.0
      %3448 = vmatpush1.msra.mxu0 0.0
      %3449 = vmatprep.subr.mxu0 0.0
      %3450 = vmatpush1.msra.mxu0 0.0
      %3451 = vmatprep.subr.mxu0 0.0
      %3452 = vmatpush1.msra.mxu0 0.0
      %3453 = vmatprep.mubr.f32.mxu0 0.0
      %3454 = vmatmul.mubr.f32.gmra.mrb[0].mxu0 %v3387
      %v3455 = vpop.f32.mrb[0].mxu0
      %v3456 = vadd.f32 0.0, %v3455
      %v3457 = vpop.f32.mrb[0].mxu0
      %3458 = vdwg.mxu0
      %v3460 = vsel %vm2990, %v3155, 0
      %3462 = vmatprep.subr.mxu0 0.0
      %3463 = vmatpush1.msra.mxu0 %v1393
      %3464 = vmatprep.subr.mxu0 0.0
      %3465 = vmatpush1.msra.mxu0 0.0
      %3466 = vmatprep.subr.mxu0 0.0
      %3467 = vmatpush1.msra.mxu0 0.0
      %3468 = vmatprep.subr.mxu0 0.0
      %3469 = vmatpush1.msra.mxu0 0.0
      %3470 = vmatprep.subr.mxu0 0.0
      %3471 = vmatpush1.msra.mxu0 0.0
      %3472 = vmatprep.subr.mxu0 0.0
      %3473 = vmatpush1.msra.mxu0 0.0
      %3474 = vmatprep.subr.mxu0 0.0
      %3475 = vmatpush1.msra.mxu0 0.0
      %3476 = vmatprep.subr.mxu0 0.0
      %3477 = vmatpush1.msra.mxu0 0.0
      %3478 = vmatprep.subr.mxu0 0.0
      %3479 = vmatpush1.msra.mxu0 0.0
      %3480 = vmatprep.subr.mxu0 0.0
      %3481 = vmatpush1.msra.mxu0 0.0
      %3482 = vmatprep.subr.mxu0 0.0
      %3483 = vmatpush1.msra.mxu0 0.0
      %3484 = vmatprep.subr.mxu0 0.0
      %3485 = vmatpush1.msra.mxu0 0.0
      %3486 = vmatprep.subr.mxu0 0.0
      %3487 = vmatpush1.msra.mxu0 0.0
      %3488 = vmatprep.subr.mxu0 0.0
      %3489 = vmatpush1.msra.mxu0 0.0
      %3490 = vmatprep.subr.mxu0 0.0
      %3491 = vmatpush1.msra.mxu0 0.0
      %3492 = vmatprep.subr.mxu0 0.0
      %3493 = vmatpush1.msra.mxu0 0.0
      %3494 = vmatprep.subr.mxu0 0.0
      %3495 = vmatpush1.msra.mxu0 0.0
      %3496 = vmatprep.subr.mxu0 0.0
      %3497 = vmatpush1.msra.mxu0 0.0
      %3498 = vmatprep.subr.mxu0 0.0
      %3499 = vmatpush1.msra.mxu0 0.0
      %3500 = vmatprep.subr.mxu0 0.0
      %3501 = vmatpush1.msra.mxu0 0.0
      %3502 = vmatprep.subr.mxu0 0.0
      %3503 = vmatpush1.msra.mxu0 0.0
      %3504 = vmatprep.subr.mxu0 0.0
      %3505 = vmatpush1.msra.mxu0 0.0
      %3506 = vmatprep.subr.mxu0 0.0
      %3507 = vmatpush1.msra.mxu0 0.0
      %3508 = vmatprep.subr.mxu0 0.0
      %3509 = vmatpush1.msra.mxu0 0.0
      %3510 = vmatprep.subr.mxu0 0.0
      %3511 = vmatpush1.msra.mxu0 0.0
      %3512 = vmatprep.subr.mxu0 0.0
      %3513 = vmatpush1.msra.mxu0 0.0
      %3514 = vmatprep.subr.mxu0 0.0
      %3515 = vmatpush1.msra.mxu0 0.0
      %3516 = vmatprep.subr.mxu0 0.0
      %3517 = vmatpush1.msra.mxu0 0.0
      %3518 = vmatprep.subr.mxu0 0.0
      %3519 = vmatpush1.msra.mxu0 0.0
      %3520 = vmatprep.subr.mxu0 0.0
      %3521 = vmatpush1.msra.mxu0 0.0
      %3522 = vmatprep.subr.mxu0 0.0
      %3523 = vmatpush1.msra.mxu0 0.0
      %3524 = vmatprep.subr.mxu0 0.0
      %3525 = vmatpush1.msra.mxu0 0.0
      %3526 = vmatprep.mubr.f32.mxu0 0.0
      %3527 = vmatmul.mubr.f32.gmra.mrb[0].mxu0 %v3460
      %v3528 = vpop.f32.mrb[0].mxu0
      %v3529 = vadd.f32 0.0, %v3528
      %v3530 = vpop.f32.mrb[0].mxu0
      %3531 = vdwg.mxu0
      %v3533 = vsel %vm2990, %v3156, 0
      %3535 = vmatprep.subr.mxu0 0.0
      %3536 = vmatpush1.msra.mxu0 %v1398
      %3537 = vmatprep.subr.mxu0 0.0
      %3538 = vmatpush1.msra.mxu0 0.0
      %3539 = vmatprep.subr.mxu0 0.0
      %3540 = vmatpush1.msra.mxu0 0.0
      %3541 = vmatprep.subr.mxu0 0.0
      %3542 = vmatpush1.msra.mxu0 0.0
      %3543 = vmatprep.subr.mxu0 0.0
      %3544 = vmatpush1.msra.mxu0 0.0
      %3545 = vmatprep.subr.mxu0 0.0
      %3546 = vmatpush1.msra.mxu0 0.0
      %3547 = vmatprep.subr.mxu0 0.0
      %3548 = vmatpush1.msra.mxu0 0.0
      %3549 = vmatprep.subr.mxu0 0.0
      %3550 = vmatpush1.msra.mxu0 0.0
      %3551 = vmatprep.subr.mxu0 0.0
      %3552 = vmatpush1.msra.mxu0 0.0
      %3553 = vmatprep.subr.mxu0 0.0
      %3554 = vmatpush1.msra.mxu0 0.0
      %3555 = vmatprep.subr.mxu0 0.0
      %3556 = vmatpush1.msra.mxu0 0.0
      %3557 = vmatprep.subr.mxu0 0.0
      %3558 = vmatpush1.msra.mxu0 0.0
      %3559 = vmatprep.subr.mxu0 0.0
      %3560 = vmatpush1.msra.mxu0 0.0
      %3561 = vmatprep.subr.mxu0 0.0
      %3562 = vmatpush1.msra.mxu0 0.0
      %3563 = vmatprep.subr.mxu0 0.0
      %3564 = vmatpush1.msra.mxu0 0.0
      %3565 = vmatprep.subr.mxu0 0.0
      %3566 = vmatpush1.msra.mxu0 0.0
      %3567 = vmatprep.subr.mxu0 0.0
      %3568 = vmatpush1.msra.mxu0 0.0
      %3569 = vmatprep.subr.mxu0 0.0
      %3570 = vmatpush1.msra.mxu0 0.0
      %3571 = vmatprep.subr.mxu0 0.0
      %3572 = vmatpush1.msra.mxu0 0.0
      %3573 = vmatprep.subr.mxu0 0.0
      %3574 = vmatpush1.msra.mxu0 0.0
      %3575 = vmatprep.subr.mxu0 0.0
      %3576 = vmatpush1.msra.mxu0 0.0
      %3577 = vmatprep.subr.mxu0 0.0
      %3578 = vmatpush1.msra.mxu0 0.0
      %3579 = vmatprep.subr.mxu0 0.0
      %3580 = vmatpush1.msra.mxu0 0.0
      %3581 = vmatprep.subr.mxu0 0.0
      %3582 = vmatpush1.msra.mxu0 0.0
      %3583 = vmatprep.subr.mxu0 0.0
      %3584 = vmatpush1.msra.mxu0 0.0
      %3585 = vmatprep.subr.mxu0 0.0
      %3586 = vmatpush1.msra.mxu0 0.0
      %3587 = vmatprep.subr.mxu0 0.0
      %3588 = vmatpush1.msra.mxu0 0.0
      %3589 = vmatprep.subr.mxu0 0.0
      %3590 = vmatpush1.msra.mxu0 0.0
      %3591 = vmatprep.subr.mxu0 0.0
      %3592 = vmatpush1.msra.mxu0 0.0
      %3593 = vmatprep.subr.mxu0 0.0
      %3594 = vmatpush1.msra.mxu0 0.0
      %3595 = vmatprep.subr.mxu0 0.0
      %3596 = vmatpush1.msra.mxu0 0.0
      %3597 = vmatprep.subr.mxu0 0.0
      %3598 = vmatpush1.msra.mxu0 0.0
      %3599 = vmatprep.mubr.f32.mxu0 0.0
      %3600 = vmatmul.mubr.f32.gmra.mrb[0].mxu0 %v3533
      %v3601 = vpop.f32.mrb[0].mxu0
      %v3602 = vadd.f32 0.0, %v3601
      %v3603 = vpop.f32.mrb[0].mxu0
      %3604 = vdwg.mxu0
      %v3606 = vsel %vm2990, %v3157, 0
      %3608 = vmatprep.subr.mxu0 0.0
      %3609 = vmatpush1.msra.mxu0 %v1403
      %3610 = vmatprep.subr.mxu0 0.0
      %3611 = vmatpush1.msra.mxu0 0.0
      %3612 = vmatprep.subr.mxu0 0.0
      %3613 = vmatpush1.msra.mxu0 0.0
      %3614 = vmatprep.subr.mxu0 0.0
      %3615 = vmatpush1.msra.mxu0 0.0
      %3616 = vmatprep.subr.mxu0 0.0
      %3617 = vmatpush1.msra.mxu0 0.0
      %3618 = vmatprep.subr.mxu0 0.0
      %3619 = vmatpush1.msra.mxu0 0.0
      %3620 = vmatprep.subr.mxu0 0.0
      %3621 = vmatpush1.msra.mxu0 0.0
      %3622 = vmatprep.subr.mxu0 0.0
      %3623 = vmatpush1.msra.mxu0 0.0
      %3624 = vmatprep.subr.mxu0 0.0
      %3625 = vmatpush1.msra.mxu0 0.0
      %3626 = vmatprep.subr.mxu0 0.0
      %3627 = vmatpush1.msra.mxu0 0.0
      %3628 = vmatprep.subr.mxu0 0.0
      %3629 = vmatpush1.msra.mxu0 0.0
      %3630 = vmatprep.subr.mxu0 0.0
      %3631 = vmatpush1.msra.mxu0 0.0
      %3632 = vmatprep.subr.mxu0 0.0
      %3633 = vmatpush1.msra.mxu0 0.0
      %3634 = vmatprep.subr.mxu0 0.0
      %3635 = vmatpush1.msra.mxu0 0.0
      %3636 = vmatprep.subr.mxu0 0.0
      %3637 = vmatpush1.msra.mxu0 0.0
      %3638 = vmatprep.subr.mxu0 0.0
      %3639 = vmatpush1.msra.mxu0 0.0
      %3640 = vmatprep.subr.mxu0 0.0
      %3641 = vmatpush1.msra.mxu0 0.0
      %3642 = vmatprep.subr.mxu0 0.0
      %3643 = vmatpush1.msra.mxu0 0.0
      %3644 = vmatprep.subr.mxu0 0.0
      %3645 = vmatpush1.msra.mxu0 0.0
      %3646 = vmatprep.subr.mxu0 0.0
      %3647 = vmatpush1.msra.mxu0 0.0
      %3648 = vmatprep.subr.mxu0 0.0
      %3649 = vmatpush1.msra.mxu0 0.0
      %3650 = vmatprep.subr.mxu0 0.0
      %3651 = vmatpush1.msra.mxu0 0.0
      %3652 = vmatprep.subr.mxu0 0.0
      %3653 = vmatpush1.msra.mxu0 0.0
      %3654 = vmatprep.subr.mxu0 0.0
      %3655 = vmatpush1.msra.mxu0 0.0
      %3656 = vmatprep.subr.mxu0 0.0
      %3657 = vmatpush1.msra.mxu0 0.0
      %3658 = vmatprep.subr.mxu0 0.0
      %3659 = vmatpush1.msra.mxu0 0.0
      %3660 = vmatprep.subr.mxu0 0.0
      %3661 = vmatpush1.msra.mxu0 0.0
      %3662 = vmatprep.subr.mxu0 0.0
      %3663 = vmatpush1.msra.mxu0 0.0
      %3664 = vmatprep.subr.mxu0 0.0
      %3665 = vmatpush1.msra.mxu0 0.0
      %3666 = vmatprep.subr.mxu0 0.0
      %3667 = vmatpush1.msra.mxu0 0.0
      %3668 = vmatprep.subr.mxu0 0.0
      %3669 = vmatpush1.msra.mxu0 0.0
      %3670 = vmatprep.subr.mxu0 0.0
      %3671 = vmatpush1.msra.mxu0 0.0
      %3672 = vmatprep.mubr.f32.mxu0 0.0
      %3673 = vmatmul.mubr.f32.gmra.mrb[0].mxu0 %v3606
      %v3674 = vpop.f32.mrb[0].mxu0
      %v3675 = vadd.f32 0.0, %v3674
      %v3676 = vpop.f32.mrb[0].mxu0
      %3677 = vdwg.mxu0
      %v3679 = vsel %vm2990, %v3158, 0
      %3681 = vmatprep.subr.mxu0 0.0
      %3682 = vmatpush1.msra.mxu0 %v1408
      %3683 = vmatprep.subr.mxu0 0.0
      %3684 = vmatpush1.msra.mxu0 0.0
      %3685 = vmatprep.subr.mxu0 0.0
      %3686 = vmatpush1.msra.mxu0 0.0
      %3687 = vmatprep.subr.mxu0 0.0
      %3688 = vmatpush1.msra.mxu0 0.0
      %3689 = vmatprep.subr.mxu0 0.0
      %3690 = vmatpush1.msra.mxu0 0.0
      %3691 = vmatprep.subr.mxu0 0.0
      %3692 = vmatpush1.msra.mxu0 0.0
      %3693 = vmatprep.subr.mxu0 0.0
      %3694 = vmatpush1.msra.mxu0 0.0
      %3695 = vmatprep.subr.mxu0 0.0
      %3696 = vmatpush1.msra.mxu0 0.0
      %3697 = vmatprep.subr.mxu0 0.0
      %3698 = vmatpush1.msra.mxu0 0.0
      %3699 = vmatprep.subr.mxu0 0.0
      %3700 = vmatpush1.msra.mxu0 0.0
      %3701 = vmatprep.subr.mxu0 0.0
      %3702 = vmatpush1.msra.mxu0 0.0
      %3703 = vmatprep.subr.mxu0 0.0
      %3704 = vmatpush1.msra.mxu0 0.0
      %3705 = vmatprep.subr.mxu0 0.0
      %3706 = vmatpush1.msra.mxu0 0.0
      %3707 = vmatprep.subr.mxu0 0.0
      %3708 = vmatpush1.msra.mxu0 0.0
      %3709 = vmatprep.subr.mxu0 0.0
      %3710 = vmatpush1.msra.mxu0 0.0
      %3711 = vmatprep.subr.mxu0 0.0
      %3712 = vmatpush1.msra.mxu0 0.0
      %3713 = vmatprep.subr.mxu0 0.0
      %3714 = vmatpush1.msra.mxu0 0.0
      %3715 = vmatprep.subr.mxu0 0.0
      %3716 = vmatpush1.msra.mxu0 0.0
      %3717 = vmatprep.subr.mxu0 0.0
      %3718 = vmatpush1.msra.mxu0 0.0
      %3719 = vmatprep.subr.mxu0 0.0
      %3720 = vmatpush1.msra.mxu0 0.0
      %3721 = vmatprep.subr.mxu0 0.0
      %3722 = vmatpush1.msra.mxu0 0.0
      %3723 = vmatprep.subr.mxu0 0.0
      %3724 = vmatpush1.msra.mxu0 0.0
      %3725 = vmatprep.subr.mxu0 0.0
      %3726 = vmatpush1.msra.mxu0 0.0
      %3727 = vmatprep.subr.mxu0 0.0
      %3728 = vmatpush1.msra.mxu0 0.0
      %3729 = vmatprep.subr.mxu0 0.0
      %3730 = vmatpush1.msra.mxu0 0.0
      %3731 = vmatprep.subr.mxu0 0.0
      %3732 = vmatpush1.msra.mxu0 0.0
      %3733 = vmatprep.subr.mxu0 0.0
      %3734 = vmatpush1.msra.mxu0 0.0
      %3735 = vmatprep.subr.mxu0 0.0
      %3736 = vmatpush1.msra.mxu0 0.0
      %3737 = vmatprep.subr.mxu0 0.0
      %3738 = vmatpush1.msra.mxu0 0.0
      %3739 = vmatprep.subr.mxu0 0.0
      %3740 = vmatpush1.msra.mxu0 0.0
      %3741 = vmatprep.subr.mxu0 0.0
      %3742 = vmatpush1.msra.mxu0 0.0
      %3743 = vmatprep.subr.mxu0 0.0
      %3744 = vmatpush1.msra.mxu0 0.0
      %3745 = vmatprep.mubr.f32.mxu0 0.0
      %3746 = vmatmul.mubr.f32.gmra.mrb[0].mxu0 %v3679
      %v3747 = vpop.f32.mrb[0].mxu0
      %v3748 = vadd.f32 0.0, %v3747
      %v3749 = vpop.f32.mrb[0].mxu0
      %3750 = vdwg.mxu0
      %v3752 = vsel %vm2990, %v3159, 0
      %3754 = vmatprep.subr.mxu0 0.0
      %3755 = vmatpush1.msra.mxu0 %v1413
      %3756 = vmatprep.subr.mxu0 0.0
      %3757 = vmatpush1.msra.mxu0 0.0
      %3758 = vmatprep.subr.mxu0 0.0
      %3759 = vmatpush1.msra.mxu0 0.0
      %3760 = vmatprep.subr.mxu0 0.0
      %3761 = vmatpush1.msra.mxu0 0.0
      %3762 = vmatprep.subr.mxu0 0.0
      %3763 = vmatpush1.msra.mxu0 0.0
      %3764 = vmatprep.subr.mxu0 0.0
      %3765 = vmatpush1.msra.mxu0 0.0
      %3766 = vmatprep.subr.mxu0 0.0
      %3767 = vmatpush1.msra.mxu0 0.0
      %3768 = vmatprep.subr.mxu0 0.0
      %3769 = vmatpush1.msra.mxu0 0.0
      %3770 = vmatprep.subr.mxu0 0.0
      %3771 = vmatpush1.msra.mxu0 0.0
      %3772 = vmatprep.subr.mxu0 0.0
      %3773 = vmatpush1.msra.mxu0 0.0
      %3774 = vmatprep.subr.mxu0 0.0
      %3775 = vmatpush1.msra.mxu0 0.0
      %3776 = vmatprep.subr.mxu0 0.0
      %3777 = vmatpush1.msra.mxu0 0.0
      %3778 = vmatprep.subr.mxu0 0.0
      %3779 = vmatpush1.msra.mxu0 0.0
      %3780 = vmatprep.subr.mxu0 0.0
      %3781 = vmatpush1.msra.mxu0 0.0
      %3782 = vmatprep.subr.mxu0 0.0
      %3783 = vmatpush1.msra.mxu0 0.0
      %3784 = vmatprep.subr.mxu0 0.0
      %3785 = vmatpush1.msra.mxu0 0.0
      %3786 = vmatprep.subr.mxu0 0.0
      %3787 = vmatpush1.msra.mxu0 0.0
      %3788 = vmatprep.subr.mxu0 0.0
      %3789 = vmatpush1.msra.mxu0 0.0
      %3790 = vmatprep.subr.mxu0 0.0
      %3791 = vmatpush1.msra.mxu0 0.0
      %3792 = vmatprep.subr.mxu0 0.0
      %3793 = vmatpush1.msra.mxu0 0.0
      %3794 = vmatprep.subr.mxu0 0.0
      %3795 = vmatpush1.msra.mxu0 0.0
      %3796 = vmatprep.subr.mxu0 0.0
      %3797 = vmatpush1.msra.mxu0 0.0
      %3798 = vmatprep.subr.mxu0 0.0
      %3799 = vmatpush1.msra.mxu0 0.0
      %3800 = vmatprep.subr.mxu0 0.0
      %3801 = vmatpush1.msra.mxu0 0.0
      %3802 = vmatprep.subr.mxu0 0.0
      %3803 = vmatpush1.msra.mxu0 0.0
      %3804 = vmatprep.subr.mxu0 0.0
      %3805 = vmatpush1.msra.mxu0 0.0
      %3806 = vmatprep.subr.mxu0 0.0
      %3807 = vmatpush1.msra.mxu0 0.0
      %3808 = vmatprep.subr.mxu0 0.0
      %3809 = vmatpush1.msra.mxu0 0.0
      %3810 = vmatprep.subr.mxu0 0.0
      %3811 = vmatpush1.msra.mxu0 0.0
      %3812 = vmatprep.subr.mxu0 0.0
      %3813 = vmatpush1.msra.mxu0 0.0
      %3814 = vmatprep.subr.mxu0 0.0
      %3815 = vmatpush1.msra.mxu0 0.0
      %3816 = vmatprep.subr.mxu0 0.0
      %3817 = vmatpush1.msra.mxu0 0.0
      %3818 = vmatprep.mubr.f32.mxu0 0.0
      %3819 = vmatmul.mubr.f32.gmra.mrb[0].mxu0 %v3752
      %v3820 = vpop.f32.mrb[0].mxu0
      %v3821 = vadd.f32 0.0, %v3820
      %v3822 = vpop.f32.mrb[0].mxu0
      %3823 = vdwg.mxu0
      %v3825 = vsel %vm2990, %v3160, 0
      %3827 = vmatprep.subr.mxu0 0.0
      %3828 = vmatpush1.msra.mxu0 %v1418
      %3829 = vmatprep.subr.mxu0 0.0
      %3830 = vmatpush1.msra.mxu0 0.0
      %3831 = vmatprep.subr.mxu0 0.0
      %3832 = vmatpush1.msra.mxu0 0.0
      %3833 = vmatprep.subr.mxu0 0.0
      %3834 = vmatpush1.msra.mxu0 0.0
      %3835 = vmatprep.subr.mxu0 0.0
      %3836 = vmatpush1.msra.mxu0 0.0
      %3837 = vmatprep.subr.mxu0 0.0
      %3838 = vmatpush1.msra.mxu0 0.0
      %3839 = vmatprep.subr.mxu0 0.0
      %3840 = vmatpush1.msra.mxu0 0.0
      %3841 = vmatprep.subr.mxu0 0.0
      %3842 = vmatpush1.msra.mxu0 0.0
      %3843 = vmatprep.subr.mxu0 0.0
      %3844 = vmatpush1.msra.mxu0 0.0
      %3845 = vmatprep.subr.mxu0 0.0
      %3846 = vmatpush1.msra.mxu0 0.0
      %3847 = vmatprep.subr.mxu0 0.0
      %3848 = vmatpush1.msra.mxu0 0.0
      %3849 = vmatprep.subr.mxu0 0.0
      %3850 = vmatpush1.msra.mxu0 0.0
      %3851 = vmatprep.subr.mxu0 0.0
      %3852 = vmatpush1.msra.mxu0 0.0
      %3853 = vmatprep.subr.mxu0 0.0
      %3854 = vmatpush1.msra.mxu0 0.0
      %3855 = vmatprep.subr.mxu0 0.0
      %3856 = vmatpush1.msra.mxu0 0.0
      %3857 = vmatprep.subr.mxu0 0.0
      %3858 = vmatpush1.msra.mxu0 0.0
      %3859 = vmatprep.subr.mxu0 0.0
      %3860 = vmatpush1.msra.mxu0 0.0
      %3861 = vmatprep.subr.mxu0 0.0
      %3862 = vmatpush1.msra.mxu0 0.0
      %3863 = vmatprep.subr.mxu0 0.0
      %3864 = vmatpush1.msra.mxu0 0.0
      %3865 = vmatprep.subr.mxu0 0.0
      %3866 = vmatpush1.msra.mxu0 0.0
      %3867 = vmatprep.subr.mxu0 0.0
      %3868 = vmatpush1.msra.mxu0 0.0
      %3869 = vmatprep.subr.mxu0 0.0
      %3870 = vmatpush1.msra.mxu0 0.0
      %3871 = vmatprep.subr.mxu0 0.0
      %3872 = vmatpush1.msra.mxu0 0.0
      %3873 = vmatprep.subr.mxu0 0.0
      %3874 = vmatpush1.msra.mxu0 0.0
      %3875 = vmatprep.subr.mxu0 0.0
      %3876 = vmatpush1.msra.mxu0 0.0
      %3877 = vmatprep.subr.mxu0 0.0
      %3878 = vmatpush1.msra.mxu0 0.0
      %3879 = vmatprep.subr.mxu0 0.0
      %3880 = vmatpush1.msra.mxu0 0.0
      %3881 = vmatprep.subr.mxu0 0.0
      %3882 = vmatpush1.msra.mxu0 0.0
      %3883 = vmatprep.subr.mxu0 0.0
      %3884 = vmatpush1.msra.mxu0 0.0
      %3885 = vmatprep.subr.mxu0 0.0
      %3886 = vmatpush1.msra.mxu0 0.0
      %3887 = vmatprep.subr.mxu0 0.0
      %3888 = vmatpush1.msra.mxu0 0.0
      %3889 = vmatprep.subr.mxu0 0.0
      %3890 = vmatpush1.msra.mxu0 0.0
      %3891 = vmatprep.mubr.f32.mxu0 0.0
      %3892 = vmatmul.mubr.f32.gmra.mrb[0].mxu0 %v3825
      %v3893 = vpop.f32.mrb[0].mxu0
      %v3894 = vadd.f32 0.0, %v3893
      %v3895 = vpop.f32.mrb[0].mxu0
      %3896 = vdwg.mxu0
      %v3898 = vsel %vm2990, %v3161, 0
      %3900 = vmatprep.subr.mxu0 0.0
      %3901 = vmatpush1.msra.mxu0 %v1423
      %3902 = vmatprep.subr.mxu0 0.0
      %3903 = vmatpush1.msra.mxu0 0.0
      %3904 = vmatprep.subr.mxu0 0.0
      %3905 = vmatpush1.msra.mxu0 0.0
      %3906 = vmatprep.subr.mxu0 0.0
      %3907 = vmatpush1.msra.mxu0 0.0
      %3908 = vmatprep.subr.mxu0 0.0
      %3909 = vmatpush1.msra.mxu0 0.0
      %3910 = vmatprep.subr.mxu0 0.0
      %3911 = vmatpush1.msra.mxu0 0.0
      %3912 = vmatprep.subr.mxu0 0.0
      %3913 = vmatpush1.msra.mxu0 0.0
      %3914 = vmatprep.subr.mxu0 0.0
      %3915 = vmatpush1.msra.mxu0 0.0
      %3916 = vmatprep.subr.mxu0 0.0
      %3917 = vmatpush1.msra.mxu0 0.0
      %3918 = vmatprep.subr.mxu0 0.0
      %3919 = vmatpush1.msra.mxu0 0.0
      %3920 = vmatprep.subr.mxu0 0.0
      %3921 = vmatpush1.msra.mxu0 0.0
      %3922 = vmatprep.subr.mxu0 0.0
      %3923 = vmatpush1.msra.mxu0 0.0
      %3924 = vmatprep.subr.mxu0 0.0
      %3925 = vmatpush1.msra.mxu0 0.0
      %3926 = vmatprep.subr.mxu0 0.0
      %3927 = vmatpush1.msra.mxu0 0.0
      %3928 = vmatprep.subr.mxu0 0.0
      %3929 = vmatpush1.msra.mxu0 0.0
      %3930 = vmatprep.subr.mxu0 0.0
      %3931 = vmatpush1.msra.mxu0 0.0
      %3932 = vmatprep.subr.mxu0 0.0
      %3933 = vmatpush1.msra.mxu0 0.0
      %3934 = vmatprep.subr.mxu0 0.0
      %3935 = vmatpush1.msra.mxu0 0.0
      %3936 = vmatprep.subr.mxu0 0.0
      %3937 = vmatpush1.msra.mxu0 0.0
      %3938 = vmatprep.subr.mxu0 0.0
      %3939 = vmatpush1.msra.mxu0 0.0
      %3940 = vmatprep.subr.mxu0 0.0
      %3941 = vmatpush1.msra.mxu0 0.0
      %3942 = vmatprep.subr.mxu0 0.0
      %3943 = vmatpush1.msra.mxu0 0.0
      %3944 = vmatprep.subr.mxu0 0.0
      %3945 = vmatpush1.msra.mxu0 0.0
      %3946 = vmatprep.subr.mxu0 0.0
      %3947 = vmatpush1.msra.mxu0 0.0
      %3948 = vmatprep.subr.mxu0 0.0
      %3949 = vmatpush1.msra.mxu0 0.0
      %3950 = vmatprep.subr.mxu0 0.0
      %3951 = vmatpush1.msra.mxu0 0.0
      %3952 = vmatprep.subr.mxu0 0.0
      %3953 = vmatpush1.msra.mxu0 0.0
      %3954 = vmatprep.subr.mxu0 0.0
      %3955 = vmatpush1.msra.mxu0 0.0
      %3956 = vmatprep.subr.mxu0 0.0
      %3957 = vmatpush1.msra.mxu0 0.0
      %3958 = vmatprep.subr.mxu0 0.0
      %3959 = vmatpush1.msra.mxu0 0.0
      %3960 = vmatprep.subr.mxu0 0.0
      %3961 = vmatpush1.msra.mxu0 0.0
      %3962 = vmatprep.subr.mxu0 0.0
      %3963 = vmatpush1.msra.mxu0 0.0
      %3964 = vmatprep.mubr.f32.mxu0 0.0
      %3965 = vmatmul.mubr.f32.gmra.mrb[0].mxu0 %v3898
      %v3966 = vpop.f32.mrb[0].mxu0
      %v3967 = vadd.f32 0.0, %v3966
      %v3968 = vpop.f32.mrb[0].mxu0
      %3969 = vdwg.mxu0
      %v3971 = vsel %vm2990, %v3162, 0
      %3973 = vmatprep.subr.mxu0 0.0
      %3974 = vmatpush1.msra.mxu0 %v1428
      %3975 = vmatprep.subr.mxu0 0.0
      %3976 = vmatpush1.msra.mxu0 0.0
      %3977 = vmatprep.subr.mxu0 0.0
      %3978 = vmatpush1.msra.mxu0 0.0
      %3979 = vmatprep.subr.mxu0 0.0
      %3980 = vmatpush1.msra.mxu0 0.0
      %3981 = vmatprep.subr.mxu0 0.0
      %3982 = vmatpush1.msra.mxu0 0.0
      %3983 = vmatprep.subr.mxu0 0.0
      %3984 = vmatpush1.msra.mxu0 0.0
      %3985 = vmatprep.subr.mxu0 0.0
      %3986 = vmatpush1.msra.mxu0 0.0
      %3987 = vmatprep.subr.mxu0 0.0
      %3988 = vmatpush1.msra.mxu0 0.0
      %3989 = vmatprep.subr.mxu0 0.0
      %3990 = vmatpush1.msra.mxu0 0.0
      %3991 = vmatprep.subr.mxu0 0.0
      %3992 = vmatpush1.msra.mxu0 0.0
      %3993 = vmatprep.subr.mxu0 0.0
      %3994 = vmatpush1.msra.mxu0 0.0
      %3995 = vmatprep.subr.mxu0 0.0
      %3996 = vmatpush1.msra.mxu0 0.0
      %3997 = vmatprep.subr.mxu0 0.0
      %3998 = vmatpush1.msra.mxu0 0.0
      %3999 = vmatprep.subr.mxu0 0.0
      %4000 = vmatpush1.msra.mxu0 0.0
      %4001 = vmatprep.subr.mxu0 0.0
      %4002 = vmatpush1.msra.mxu0 0.0
      %4003 = vmatprep.subr.mxu0 0.0
      %4004 = vmatpush1.msra.mxu0 0.0
      %4005 = vmatprep.subr.mxu0 0.0
      %4006 = vmatpush1.msra.mxu0 0.0
      %4007 = vmatprep.subr.mxu0 0.0
      %4008 = vmatpush1.msra.mxu0 0.0
      %4009 = vmatprep.subr.mxu0 0.0
      %4010 = vmatpush1.msra.mxu0 0.0
      %4011 = vmatprep.subr.mxu0 0.0
      %4012 = vmatpush1.msra.mxu0 0.0
      %4013 = vmatprep.subr.mxu0 0.0
      %4014 = vmatpush1.msra.mxu0 0.0
      %4015 = vmatprep.subr.mxu0 0.0
      %4016 = vmatpush1.msra.mxu0 0.0
      %4017 = vmatprep.subr.mxu0 0.0
      %4018 = vmatpush1.msra.mxu0 0.0
      %4019 = vmatprep.subr.mxu0 0.0
      %4020 = vmatpush1.msra.mxu0 0.0
      %4021 = vmatprep.subr.mxu0 0.0
      %4022 = vmatpush1.msra.mxu0 0.0
      %4023 = vmatprep.subr.mxu0 0.0
      %4024 = vmatpush1.msra.mxu0 0.0
      %4025 = vmatprep.subr.mxu0 0.0
      %4026 = vmatpush1.msra.mxu0 0.0
      %4027 = vmatprep.subr.mxu0 0.0
      %4028 = vmatpush1.msra.mxu0 0.0
      %4029 = vmatprep.subr.mxu0 0.0
      %4030 = vmatpush1.msra.mxu0 0.0
      %4031 = vmatprep.subr.mxu0 0.0
      %4032 = vmatpush1.msra.mxu0 0.0
      %4033 = vmatprep.subr.mxu0 0.0
      %4034 = vmatpush1.msra.mxu0 0.0
      %4035 = vmatprep.subr.mxu0 0.0
      %4036 = vmatpush1.msra.mxu0 0.0
      %4037 = vmatprep.mubr.f32.mxu0 0.0
      %4038 = vmatmul.mubr.f32.gmra.mrb[0].mxu0 %v3971
      %v4039 = vpop.f32.mrb[0].mxu0
      %v4040 = vadd.f32 0.0, %v4039
      %v4041 = vpop.f32.mrb[0].mxu0
      %4042 = vdwg.mxu0
      %v4044 = vsel %vm2990, %v3163, 0
      %4046 = vmatprep.subr.mxu0 0.0
      %4047 = vmatpush1.msra.mxu0 %v1433
      %4048 = vmatprep.subr.mxu0 0.0
      %4049 = vmatpush1.msra.mxu0 0.0
      %4050 = vmatprep.subr.mxu0 0.0
      %4051 = vmatpush1.msra.mxu0 0.0
      %4052 = vmatprep.subr.mxu0 0.0
      %4053 = vmatpush1.msra.mxu0 0.0
      %4054 = vmatprep.subr.mxu0 0.0
      %4055 = vmatpush1.msra.mxu0 0.0
      %4056 = vmatprep.subr.mxu0 0.0
      %4057 = vmatpush1.msra.mxu0 0.0
      %4058 = vmatprep.subr.mxu0 0.0
      %4059 = vmatpush1.msra.mxu0 0.0
      %4060 = vmatprep.subr.mxu0 0.0
      %4061 = vmatpush1.msra.mxu0 0.0
      %4062 = vmatprep.subr.mxu0 0.0
      %4063 = vmatpush1.msra.mxu0 0.0
      %4064 = vmatprep.subr.mxu0 0.0
      %4065 = vmatpush1.msra.mxu0 0.0
      %4066 = vmatprep.subr.mxu0 0.0
      %4067 = vmatpush1.msra.mxu0 0.0
      %4068 = vmatprep.subr.mxu0 0.0
      %4069 = vmatpush1.msra.mxu0 0.0
      %4070 = vmatprep.subr.mxu0 0.0
      %4071 = vmatpush1.msra.mxu0 0.0
      %4072 = vmatprep.subr.mxu0 0.0
      %4073 = vmatpush1.msra.mxu0 0.0
      %4074 = vmatprep.subr.mxu0 0.0
      %4075 = vmatpush1.msra.mxu0 0.0
      %4076 = vmatprep.subr.mxu0 0.0
      %4077 = vmatpush1.msra.mxu0 0.0
      %4078 = vmatprep.subr.mxu0 0.0
      %4079 = vmatpush1.msra.mxu0 0.0
      %4080 = vmatprep.subr.mxu0 0.0
      %4081 = vmatpush1.msra.mxu0 0.0
      %4082 = vmatprep.subr.mxu0 0.0
      %4083 = vmatpush1.msra.mxu0 0.0
      %4084 = vmatprep.subr.mxu0 0.0
      %4085 = vmatpush1.msra.mxu0 0.0
      %4086 = vmatprep.subr.mxu0 0.0
      %4087 = vmatpush1.msra.mxu0 0.0
      %4088 = vmatprep.subr.mxu0 0.0
      %4089 = vmatpush1.msra.mxu0 0.0
      %4090 = vmatprep.subr.mxu0 0.0
      %4091 = vmatpush1.msra.mxu0 0.0
      %4092 = vmatprep.subr.mxu0 0.0
      %4093 = vmatpush1.msra.mxu0 0.0
      %4094 = vmatprep.subr.mxu0 0.0
      %4095 = vmatpush1.msra.mxu0 0.0
      %4096 = vmatprep.subr.mxu0 0.0
      %4097 = vmatpush1.msra.mxu0 0.0
      %4098 = vmatprep.subr.mxu0 0.0
      %4099 = vmatpush1.msra.mxu0 0.0
      %4100 = vmatprep.subr.mxu0 0.0
      %4101 = vmatpush1.msra.mxu0 0.0
      %4102 = vmatprep.subr.mxu0 0.0
      %4103 = vmatpush1.msra.mxu0 0.0
      %4104 = vmatprep.subr.mxu0 0.0
      %4105 = vmatpush1.msra.mxu0 0.0
      %4106 = vmatprep.subr.mxu0 0.0
      %4107 = vmatpush1.msra.mxu0 0.0
      %4108 = vmatprep.subr.mxu0 0.0
      %4109 = vmatpush1.msra.mxu0 0.0
      %4110 = vmatprep.mubr.f32.mxu0 0.0
      %4111 = vmatmul.mubr.f32.gmra.mrb[0].mxu0 %v4044
      %v4112 = vpop.f32.mrb[0].mxu0
      %v4113 = vadd.f32 0.0, %v4112
      %v4114 = vpop.f32.mrb[0].mxu0
      %4115 = vdwg.mxu0
      %v4117 = vsel %vm2990, %v3164, 0
      %4119 = vmatprep.subr.mxu0 0.0
      %4120 = vmatpush1.msra.mxu0 %v1438
      %4121 = vmatprep.subr.mxu0 0.0
      %4122 = vmatpush1.msra.mxu0 0.0
      %4123 = vmatprep.subr.mxu0 0.0
      %4124 = vmatpush1.msra.mxu0 0.0
      %4125 = vmatprep.subr.mxu0 0.0
      %4126 = vmatpush1.msra.mxu0 0.0
      %4127 = vmatprep.subr.mxu0 0.0
      %4128 = vmatpush1.msra.mxu0 0.0
      %4129 = vmatprep.subr.mxu0 0.0
      %4130 = vmatpush1.msra.mxu0 0.0
      %4131 = vmatprep.subr.mxu0 0.0
      %4132 = vmatpush1.msra.mxu0 0.0
      %4133 = vmatprep.subr.mxu0 0.0
      %4134 = vmatpush1.msra.mxu0 0.0
      %4135 = vmatprep.subr.mxu0 0.0
      %4136 = vmatpush1.msra.mxu0 0.0
      %4137 = vmatprep.subr.mxu0 0.0
      %4138 = vmatpush1.msra.mxu0 0.0
      %4139 = vmatprep.subr.mxu0 0.0
      %4140 = vmatpush1.msra.mxu0 0.0
      %4141 = vmatprep.subr.mxu0 0.0
      %4142 = vmatpush1.msra.mxu0 0.0
      %4143 = vmatprep.subr.mxu0 0.0
      %4144 = vmatpush1.msra.mxu0 0.0
      %4145 = vmatprep.subr.mxu0 0.0
      %4146 = vmatpush1.msra.mxu0 0.0
      %4147 = vmatprep.subr.mxu0 0.0
      %4148 = vmatpush1.msra.mxu0 0.0
      %4149 = vmatprep.subr.mxu0 0.0
      %4150 = vmatpush1.msra.mxu0 0.0
      %4151 = vmatprep.subr.mxu0 0.0
      %4152 = vmatpush1.msra.mxu0 0.0
      %4153 = vmatprep.subr.mxu0 0.0
      %4154 = vmatpush1.msra.mxu0 0.0
      %4155 = vmatprep.subr.mxu0 0.0
      %4156 = vmatpush1.msra.mxu0 0.0
      %4157 = vmatprep.subr.mxu0 0.0
      %4158 = vmatpush1.msra.mxu0 0.0
      %4159 = vmatprep.subr.mxu0 0.0
      %4160 = vmatpush1.msra.mxu0 0.0
      %4161 = vmatprep.subr.mxu0 0.0
      %4162 = vmatpush1.msra.mxu0 0.0
      %4163 = vmatprep.subr.mxu0 0.0
      %4164 = vmatpush1.msra.mxu0 0.0
      %4165 = vmatprep.subr.mxu0 0.0
      %4166 = vmatpush1.msra.mxu0 0.0
      %4167 = vmatprep.subr.mxu0 0.0
      %4168 = vmatpush1.msra.mxu0 0.0
      %4169 = vmatprep.subr.mxu0 0.0
      %4170 = vmatpush1.msra.mxu0 0.0
      %4171 = vmatprep.subr.mxu0 0.0
      %4172 = vmatpush1.msra.mxu0 0.0
      %4173 = vmatprep.subr.mxu0 0.0
      %4174 = vmatpush1.msra.mxu0 0.0
      %4175 = vmatprep.subr.mxu0 0.0
      %4176 = vmatpush1.msra.mxu0 0.0
      %4177 = vmatprep.subr.mxu0 0.0
      %4178 = vmatpush1.msra.mxu0 0.0
      %4179 = vmatprep.subr.mxu0 0.0
      %4180 = vmatpush1.msra.mxu0 0.0
      %4181 = vmatprep.subr.mxu0 0.0
      %4182 = vmatpush1.msra.mxu0 0.0
      %4183 = vmatprep.mubr.f32.mxu0 0.0
      %4184 = vmatmul.mubr.f32.gmra.mrb[0].mxu0 %v4117
      %v4185 = vpop.f32.mrb[0].mxu0
      %v4186 = vadd.f32 0.0, %v4185
      %v4187 = vpop.f32.mrb[0].mxu0
      %4188 = vdwg.mxu0
      %v4190 = vsel %vm2990, %v3165, 0
      %4192 = vmatprep.subr.mxu0 0.0
      %4193 = vmatpush1.msra.mxu0 %v1443
      %4194 = vmatprep.subr.mxu0 0.0
      %4195 = vmatpush1.msra.mxu0 0.0
      %4196 = vmatprep.subr.mxu0 0.0
      %4197 = vmatpush1.msra.mxu0 0.0
      %4198 = vmatprep.subr.mxu0 0.0
      %4199 = vmatpush1.msra.mxu0 0.0
      %4200 = vmatprep.subr.mxu0 0.0
      %4201 = vmatpush1.msra.mxu0 0.0
      %4202 = vmatprep.subr.mxu0 0.0
      %4203 = vmatpush1.msra.mxu0 0.0
      %4204 = vmatprep.subr.mxu0 0.0
      %4205 = vmatpush1.msra.mxu0 0.0
      %4206 = vmatprep.subr.mxu0 0.0
      %4207 = vmatpush1.msra.mxu0 0.0
      %4208 = vmatprep.subr.mxu0 0.0
      %4209 = vmatpush1.msra.mxu0 0.0
      %4210 = vmatprep.subr.mxu0 0.0
      %4211 = vmatpush1.msra.mxu0 0.0
      %4212 = vmatprep.subr.mxu0 0.0
      %4213 = vmatpush1.msra.mxu0 0.0
      %4214 = vmatprep.subr.mxu0 0.0
      %4215 = vmatpush1.msra.mxu0 0.0
      %4216 = vmatprep.subr.mxu0 0.0
      %4217 = vmatpush1.msra.mxu0 0.0
      %4218 = vmatprep.subr.mxu0 0.0
      %4219 = vmatpush1.msra.mxu0 0.0
      %4220 = vmatprep.subr.mxu0 0.0
      %4221 = vmatpush1.msra.mxu0 0.0
      %4222 = vmatprep.subr.mxu0 0.0
      %4223 = vmatpush1.msra.mxu0 0.0
      %4224 = vmatprep.subr.mxu0 0.0
      %4225 = vmatpush1.msra.mxu0 0.0
      %4226 = vmatprep.subr.mxu0 0.0
      %4227 = vmatpush1.msra.mxu0 0.0
      %4228 = vmatprep.subr.mxu0 0.0
      %4229 = vmatpush1.msra.mxu0 0.0
      %4230 = vmatprep.subr.mxu0 0.0
      %4231 = vmatpush1.msra.mxu0 0.0
      %4232 = vmatprep.subr.mxu0 0.0
      %4233 = vmatpush1.msra.mxu0 0.0
      %4234 = vmatprep.subr.mxu0 0.0
      %4235 = vmatpush1.msra.mxu0 0.0
      %4236 = vmatprep.subr.mxu0 0.0
      %4237 = vmatpush1.msra.mxu0 0.0
      %4238 = vmatprep.subr.mxu0 0.0
      %4239 = vmatpush1.msra.mxu0 0.0
      %4240 = vmatprep.subr.mxu0 0.0
      %4241 = vmatpush1.msra.mxu0 0.0
      %4242 = vmatprep.subr.mxu0 0.0
      %4243 = vmatpush1.msra.mxu0 0.0
      %4244 = vmatprep.subr.mxu0 0.0
      %4245 = vmatpush1.msra.mxu0 0.0
      %4246 = vmatprep.subr.mxu0 0.0
      %4247 = vmatpush1.msra.mxu0 0.0
      %4248 = vmatprep.subr.mxu0 0.0
      %4249 = vmatpush1.msra.mxu0 0.0
      %4250 = vmatprep.subr.mxu0 0.0
      %4251 = vmatpush1.msra.mxu0 0.0
      %4252 = vmatprep.subr.mxu0 0.0
      %4253 = vmatpush1.msra.mxu0 0.0
      %4254 = vmatprep.subr.mxu0 0.0
      %4255 = vmatpush1.msra.mxu0 0.0
      %4256 = vmatprep.mubr.f32.mxu0 0.0
      %4257 = vmatmul.mubr.f32.gmra.mrb[0].mxu0 %v4190
      %v4258 = vpop.f32.mrb[0].mxu0
      %v4259 = vadd.f32 0.0, %v4258
      %v4260 = vpop.f32.mrb[0].mxu0
      %4261 = vdwg.mxu0
      %v4263 = vsel %vm2990, %v3166, 0
      %4265 = vmatprep.subr.mxu0 0.0
      %4266 = vmatpush1.msra.mxu0 %v1448
      %4267 = vmatprep.subr.mxu0 0.0
      %4268 = vmatpush1.msra.mxu0 0.0
      %4269 = vmatprep.subr.mxu0 0.0
      %4270 = vmatpush1.msra.mxu0 0.0
      %4271 = vmatprep.subr.mxu0 0.0
      %4272 = vmatpush1.msra.mxu0 0.0
      %4273 = vmatprep.subr.mxu0 0.0
      %4274 = vmatpush1.msra.mxu0 0.0
      %4275 = vmatprep.subr.mxu0 0.0
      %4276 = vmatpush1.msra.mxu0 0.0
      %4277 = vmatprep.subr.mxu0 0.0
      %4278 = vmatpush1.msra.mxu0 0.0
      %4279 = vmatprep.subr.mxu0 0.0
      %4280 = vmatpush1.msra.mxu0 0.0
      %4281 = vmatprep.subr.mxu0 0.0
      %4282 = vmatpush1.msra.mxu0 0.0
      %4283 = vmatprep.subr.mxu0 0.0
      %4284 = vmatpush1.msra.mxu0 0.0
      %4285 = vmatprep.subr.mxu0 0.0
      %4286 = vmatpush1.msra.mxu0 0.0
      %4287 = vmatprep.subr.mxu0 0.0
      %4288 = vmatpush1.msra.mxu0 0.0
      %4289 = vmatprep.subr.mxu0 0.0
      %4290 = vmatpush1.msra.mxu0 0.0
      %4291 = vmatprep.subr.mxu0 0.0
      %4292 = vmatpush1.msra.mxu0 0.0
      %4293 = vmatprep.subr.mxu0 0.0
      %4294 = vmatpush1.msra.mxu0 0.0
      %4295 = vmatprep.subr.mxu0 0.0
      %4296 = vmatpush1.msra.mxu0 0.0
      %4297 = vmatprep.subr.mxu0 0.0
      %4298 = vmatpush1.msra.mxu0 0.0
      %4299 = vmatprep.subr.mxu0 0.0
      %4300 = vmatpush1.msra.mxu0 0.0
      %4301 = vmatprep.subr.mxu0 0.0
      %4302 = vmatpush1.msra.mxu0 0.0
      %4303 = vmatprep.subr.mxu0 0.0
      %4304 = vmatpush1.msra.mxu0 0.0
      %4305 = vmatprep.subr.mxu0 0.0
      %4306 = vmatpush1.msra.mxu0 0.0
      %4307 = vmatprep.subr.mxu0 0.0
      %4308 = vmatpush1.msra.mxu0 0.0
      %4309 = vmatprep.subr.mxu0 0.0
      %4310 = vmatpush1.msra.mxu0 0.0
      %4311 = vmatprep.subr.mxu0 0.0
      %4312 = vmatpush1.msra.mxu0 0.0
      %4313 = vmatprep.subr.mxu0 0.0
      %4314 = vmatpush1.msra.mxu0 0.0
      %4315 = vmatprep.subr.mxu0 0.0
      %4316 = vmatpush1.msra.mxu0 0.0
      %4317 = vmatprep.subr.mxu0 0.0
      %4318 = vmatpush1.msra.mxu0 0.0
      %4319 = vmatprep.subr.mxu0 0.0
      %4320 = vmatpush1.msra.mxu0 0.0
      %4321 = vmatprep.subr.mxu0 0.0
      %4322 = vmatpush1.msra.mxu0 0.0
      %4323 = vmatprep.subr.mxu0 0.0
      %4324 = vmatpush1.msra.mxu0 0.0
      %4325 = vmatprep.subr.mxu0 0.0
      %4326 = vmatpush1.msra.mxu0 0.0
      %4327 = vmatprep.subr.mxu0 0.0
      %4328 = vmatpush1.msra.mxu0 0.0
      %4329 = vmatprep.mubr.f32.mxu0 0.0
      %4330 = vmatmul.mubr.f32.gmra.mrb[0].mxu0 %v4263
      %v4331 = vpop.f32.mrb[0].mxu0
      %v4332 = vadd.f32 0.0, %v4331
      %v4333 = vpop.f32.mrb[0].mxu0
      %4334 = vdwg.mxu0
      %v4335 = vmul.f32 %v3237, %v846
      %v4336 = vmul.f32 %v3310, %v846
      %v4337 = vmul.f32 %v3383, %v846
      %v4338 = vmul.f32 %v3456, %v846
      %v4339 = vmul.f32 %v3529, %v846
      %v4340 = vmul.f32 %v3602, %v846
      %v4341 = vmul.f32 %v3675, %v846
      %v4342 = vmul.f32 %v3748, %v846
      %v4343 = vmul.f32 %v3821, %v846
      %v4344 = vmul.f32 %v3894, %v846
      %v4345 = vmul.f32 %v3967, %v846
      %v4346 = vmul.f32 %v4040, %v846
      %v4347 = vmul.f32 %v4113, %v846
      %v4348 = vmul.f32 %v4186, %v846
      %v4349 = vmul.f32 %v4259, %v846
      %v4350 = vmul.f32 %v4332, %v846
      %v4351 = vsel %vm1099, %v4335, 0.0
      %v4352 = vrot.slane %v4351, 4
      %v4353 = vadd.f32 %v4351, %v4352
      %v4354 = vrot.slane %v4353, 2
      %v4355 = vadd.f32 %v4353, %v4354
      %v4356 = vrot.slane %v4355, 1
      %v4357 = vadd.f32 %v4355, %v4356
      %v4358 = vsel %vm1099, %v4336, 0.0
      %v4359 = vrot.slane %v4358, 4
      %v4360 = vadd.f32 %v4358, %v4359
      %v4361 = vrot.slane %v4360, 2
      %v4362 = vadd.f32 %v4360, %v4361
      %v4363 = vrot.slane %v4362, 1
      %v4364 = vadd.f32 %v4362, %v4363
      %v4365 = vsel %vm1099, %v4337, 0.0
      %v4366 = vrot.slane %v4365, 4
      %v4367 = vadd.f32 %v4365, %v4366
      %v4368 = vrot.slane %v4367, 2
      %v4369 = vadd.f32 %v4367, %v4368
      %v4370 = vrot.slane %v4369, 1
      %v4371 = vadd.f32 %v4369, %v4370
      %v4372 = vsel %vm1099, %v4338, 0.0
      %v4373 = vrot.slane %v4372, 4
      %v4374 = vadd.f32 %v4372, %v4373
      %v4375 = vrot.slane %v4374, 2
      %v4376 = vadd.f32 %v4374, %v4375
      %v4377 = vrot.slane %v4376, 1
      %v4378 = vadd.f32 %v4376, %v4377
      %v4379 = vsel %vm1099, %v4339, 0.0
      %v4380 = vrot.slane %v4379, 4
      %v4381 = vadd.f32 %v4379, %v4380
      %v4382 = vrot.slane %v4381, 2
      %v4383 = vadd.f32 %v4381, %v4382
      %v4384 = vrot.slane %v4383, 1
      %v4385 = vadd.f32 %v4383, %v4384
      %v4386 = vsel %vm1099, %v4340, 0.0
      %v4387 = vrot.slane %v4386, 4
      %v4388 = vadd.f32 %v4386, %v4387
      %v4389 = vrot.slane %v4388, 2
      %v4390 = vadd.f32 %v4388, %v4389
      %v4391 = vrot.slane %v4390, 1
      %v4392 = vadd.f32 %v4390, %v4391
      %v4393 = vsel %vm1099, %v4341, 0.0
      %v4394 = vrot.slane %v4393, 4
      %v4395 = vadd.f32 %v4393, %v4394
      %v4396 = vrot.slane %v4395, 2
      %v4397 = vadd.f32 %v4395, %v4396
      %v4398 = vrot.slane %v4397, 1
      %v4399 = vadd.f32 %v4397, %v4398
      %v4400 = vsel %vm1099, %v4342, 0.0
      %v4401 = vrot.slane %v4400, 4
      %v4402 = vadd.f32 %v4400, %v4401
      %v4403 = vrot.slane %v4402, 2
      %v4404 = vadd.f32 %v4402, %v4403
      %v4405 = vrot.slane %v4404, 1
      %v4406 = vadd.f32 %v4404, %v4405
      %v4407 = vsel %vm1099, %v4343, 0.0
      %v4408 = vrot.slane %v4407, 4
      %v4409 = vadd.f32 %v4407, %v4408
      %v4410 = vrot.slane %v4409, 2
      %v4411 = vadd.f32 %v4409, %v4410
      %v4412 = vrot.slane %v4411, 1
      %v4413 = vadd.f32 %v4411, %v4412
      %v4414 = vsel %vm1099, %v4344, 0.0
      %v4415 = vrot.slane %v4414, 4
      %v4416 = vadd.f32 %v4414, %v4415
      %v4417 = vrot.slane %v4416, 2
      %v4418 = vadd.f32 %v4416, %v4417
      %v4419 = vrot.slane %v4418, 1
      %v4420 = vadd.f32 %v4418, %v4419
      %v4421 = vsel %vm1099, %v4345, 0.0
      %v4422 = vrot.slane %v4421, 4
      %v4423 = vadd.f32 %v4421, %v4422
      %v4424 = vrot.slane %v4423, 2
      %v4425 = vadd.f32 %v4423, %v4424
      %v4426 = vrot.slane %v4425, 1
      %v4427 = vadd.f32 %v4425, %v4426
      %v4428 = vsel %vm1099, %v4346, 0.0
      %v4429 = vrot.slane %v4428, 4
      %v4430 = vadd.f32 %v4428, %v4429
      %v4431 = vrot.slane %v4430, 2
      %v4432 = vadd.f32 %v4430, %v4431
      %v4433 = vrot.slane %v4432, 1
      %v4434 = vadd.f32 %v4432, %v4433
      %v4435 = vsel %vm1099, %v4347, 0.0
      %v4436 = vrot.slane %v4435, 4
      %v4437 = vadd.f32 %v4435, %v4436
      %v4438 = vrot.slane %v4437, 2
      %v4439 = vadd.f32 %v4437, %v4438
      %v4440 = vrot.slane %v4439, 1
      %v4441 = vadd.f32 %v4439, %v4440
      %v4442 = vsel %vm1099, %v4348, 0.0
      %v4443 = vrot.slane %v4442, 4
      %v4444 = vadd.f32 %v4442, %v4443
      %v4445 = vrot.slane %v4444, 2
      %v4446 = vadd.f32 %v4444, %v4445
      %v4447 = vrot.slane %v4446, 1
      %v4448 = vadd.f32 %v4446, %v4447
      %v4449 = vsel %vm1099, %v4349, 0.0
      %v4450 = vrot.slane %v4449, 4
      %v4451 = vadd.f32 %v4449, %v4450
      %v4452 = vrot.slane %v4451, 2
      %v4453 = vadd.f32 %v4451, %v4452
      %v4454 = vrot.slane %v4453, 1
      %v4455 = vadd.f32 %v4453, %v4454
      %v4456 = vsel %vm1099, %v4350, 0.0
      %v4457 = vrot.slane %v4456, 4
      %v4458 = vadd.f32 %v4456, %v4457
      %v4459 = vrot.slane %v4458, 2
      %v4460 = vadd.f32 %v4458, %v4459
      %v4461 = vrot.slane %v4460, 1
      %v4462 = vadd.f32 %v4460, %v4461
      %v4463 = vld [vmem:[%s8] sm:$0xff]
      %v4464 = vld [vmem:[%s8 + $0x8] sm:$0xff]
      %v4465 = vld [vmem:[%s8 + $0x10] sm:$0xff]
      %v4466 = vld [vmem:[%s8 + $0x18] sm:$0xff]
      %v4483 = vsel %vm1464, %v4364, %v4357
      %v4484 = vsel %vm1467, %v4371, %v4483
      %v4485 = vsel %vm1470, %v4378, %v4484
      %v4486 = vsel %vm1473, %v4385, %v4485
      %v4487 = vsel %vm1476, %v4392, %v4486
      %v4488 = vsel %vm1479, %v4399, %v4487
      %v4489 = vsel %vm1481, %v4406, %v4488
      %v4490 = vsel %vm1464, %v4420, %v4413
      %v4491 = vsel %vm1467, %v4427, %v4490
      %v4492 = vsel %vm1470, %v4434, %v4491
      %v4493 = vsel %vm1473, %v4441, %v4492
      %v4494 = vsel %vm1476, %v4448, %v4493
      %v4495 = vsel %vm1479, %v4455, %v4494
      %v4496 = vsel %vm1481, %v4462, %v4495
      %v4497 = vsel %vm1099, %v4489, 0
      %v4499 = vsel %vm1099, %v4496, 0
      %4501 = vmatprep.subr.mxu0 0.0
      %4502 = vmatpush1.msra.mxu0 %v4463
      %4503 = vmatprep.subr.mxu0 0.0
      %4504 = vmatpush1.msra.mxu0 %v4464
      %4505 = vmatprep.subr.mxu0 0.0
      %4506 = vmatpush1.msra.mxu0 %v4465
      %4507 = vmatprep.subr.mxu0 0.0
      %4508 = vmatpush1.msra.mxu0 %v4466
      %4509 = vmatprep.subr.mxu0 0.0
      %4510 = vmatpush1.msra.mxu0 0.0
      %4511 = vmatprep.subr.mxu0 0.0
      %4512 = vmatpush1.msra.mxu0 0.0
      %4513 = vmatprep.subr.mxu0 0.0
      %4514 = vmatpush1.msra.mxu0 0.0
      %4515 = vmatprep.subr.mxu0 0.0
      %4516 = vmatpush1.msra.mxu0 0.0
      %4517 = vmatprep.subr.mxu0 0.0
      %4518 = vmatpush1.msra.mxu0 0.0
      %4519 = vmatprep.subr.mxu0 0.0
      %4520 = vmatpush1.msra.mxu0 0.0
      %4521 = vmatprep.subr.mxu0 0.0
      %4522 = vmatpush1.msra.mxu0 0.0
      %4523 = vmatprep.subr.mxu0 0.0
      %4524 = vmatpush1.msra.mxu0 0.0
      %4525 = vmatprep.subr.mxu0 0.0
      %4526 = vmatpush1.msra.mxu0 0.0
      %4527 = vmatprep.subr.mxu0 0.0
      %4528 = vmatpush1.msra.mxu0 0.0
      %4529 = vmatprep.subr.mxu0 0.0
      %4530 = vmatpush1.msra.mxu0 0.0
      %4531 = vmatprep.subr.mxu0 0.0
      %4532 = vmatpush1.msra.mxu0 0.0
      %4533 = vmatprep.subr.mxu0 0.0
      %4534 = vmatpush1.msra.mxu0 0.0
      %4535 = vmatprep.subr.mxu0 0.0
      %4536 = vmatpush1.msra.mxu0 0.0
      %4537 = vmatprep.subr.mxu0 0.0
      %4538 = vmatpush1.msra.mxu0 0.0
      %4539 = vmatprep.subr.mxu0 0.0
      %4540 = vmatpush1.msra.mxu0 0.0
      %4541 = vmatprep.subr.mxu0 0.0
      %4542 = vmatpush1.msra.mxu0 0.0
      %4543 = vmatprep.subr.mxu0 0.0
      %4544 = vmatpush1.msra.mxu0 0.0
      %4545 = vmatprep.subr.mxu0 0.0
      %4546 = vmatpush1.msra.mxu0 0.0
      %4547 = vmatprep.subr.mxu0 0.0
      %4548 = vmatpush1.msra.mxu0 0.0
      %4549 = vmatprep.subr.mxu0 0.0
      %4550 = vmatpush1.msra.mxu0 0.0
      %4551 = vmatprep.subr.mxu0 0.0
      %4552 = vmatpush1.msra.mxu0 0.0
      %4553 = vmatprep.subr.mxu0 0.0
      %4554 = vmatpush1.msra.mxu0 0.0
      %4555 = vmatprep.subr.mxu0 0.0
      %4556 = vmatpush1.msra.mxu0 0.0
      %4557 = vmatprep.subr.mxu0 0.0
      %4558 = vmatpush1.msra.mxu0 0.0
      %4559 = vmatprep.subr.mxu0 0.0
      %4560 = vmatpush1.msra.mxu0 0.0
      %4561 = vmatprep.subr.mxu0 0.0
      %4562 = vmatpush1.msra.mxu0 0.0
      %4563 = vmatprep.subr.mxu0 0.0
      %4564 = vmatpush1.msra.mxu0 0.0
      %4565 = vmatprep.mubr.f32.mxu0 0.0
      %4566 = vmatmul.mubr.f32.gmra.mrb[0].mxu0 %v4497
      %v4567 = vpop.f32.mrb[0].mxu0
      %v4568 = vadd.f32 0.0, %v4567
      %v4569 = vpop.f32.mrb[0].mxu0
      %4570 = vmatprep.mubr.f32.mxu0 0.0
      %4571 = vmatmul.mubr.f32.gmra.mrb[0].mxu0 %v4499
      %v4572 = vpop.f32.mrb[0].mxu0
      %v4573 = vadd.f32 0.0, %v4572
      %v4574 = vpop.f32.mrb[0].mxu0
      %4575 = vdwg.mxu0
      %v4578 = vrot.slane %v4568, 1
      %v4579 = vrot.slane %v4568, 2
      %v4580 = vrot.slane %v4568, 3
      %v4581 = vrot.slane %v4568, 4
      %v4582 = vrot.slane %v4568, 5
      %v4583 = vrot.slane %v4568, 6
      %v4584 = vrot.slane %v4568, 7
      %v4585 = vrot.slane %v4573, 1
      %v4586 = vrot.slane %v4573, 2
      %v4587 = vrot.slane %v4573, 3
      %v4588 = vrot.slane %v4573, 4
      %v4589 = vrot.slane %v4573, 5
      %v4590 = vrot.slane %v4573, 6
      %v4591 = vrot.slane %v4573, 7
      %v4608 = vadd.f32 %v1070, %v4578
      %v4609 = vadd.f32 %v1071, %v4579
      %v4610 = vadd.f32 %v1072, %v4580
      %v4611 = vadd.f32 %v1073, %v4581
      %v4612 = vadd.f32 %v1074, %v4582
      %v4613 = vadd.f32 %v1075, %v4583
      %v4614 = vadd.f32 %v1076, %v4584
      %v4615 = vadd.f32 %v1077, %v4568
      %v4616 = vadd.f32 %v1078, %v4585
      %v4617 = vadd.f32 %v1079, %v4586
      %v4618 = vadd.f32 %v1080, %v4587
      %v4619 = vadd.f32 %v1081, %v4588
      %v4620 = vadd.f32 %v1082, %v4589
      %v4621 = vadd.f32 %v1083, %v4590
      %v4622 = vadd.f32 %v1084, %v4591
      %v4623 = vadd.f32 %v1085, %v4573
      %v4624 = vld [vmem:[%s9] sm:$0x1]
      %v4626 = vlaneseq
      %v4627 = vshrl.u32 %v4626, 7
      %v4628 = vsub.s32 0, %v4627
      %v4629 = vrot.slane %v4624, %v4628
      %v4631 = vadd.f32 %v4608, %v4629
      %v4632 = vadd.f32 %v4609, %v4629
      %v4633 = vadd.f32 %v4610, %v4629
      %v4634 = vadd.f32 %v4611, %v4629
      %v4635 = vadd.f32 %v4612, %v4629
      %v4636 = vadd.f32 %v4613, %v4629
      %v4637 = vadd.f32 %v4614, %v4629
      %v4638 = vadd.f32 %v4615, %v4629
      %v4639 = vadd.f32 %v4616, %v4629
      %v4640 = vadd.f32 %v4617, %v4629
      %v4641 = vadd.f32 %v4618, %v4629
      %v4642 = vadd.f32 %v4619, %v4629
      %v4643 = vadd.f32 %v4620, %v4629
      %v4644 = vadd.f32 %v4621, %v4629
      %v4645 = vadd.f32 %v4622, %v4629
      %v4646 = vadd.f32 %v4623, %v4629
      %v4647 = vld [vmem:[%s10] sm:$0x1]
      %v4648 = vld [vmem:[%s11] sm:$0x1]
      %v4665 = vrot.slane %v4632, 7
      %v4666 = vrot.slane %v4633, 6
      %v4667 = vsel %vm1464, %v4666, %v4665
      %v4668 = vrot.slane %v4634, 5
      %v4669 = vsel %vm1467, %v4668, %v4667
      %v4670 = vrot.slane %v4635, 4
      %v4671 = vsel %vm1470, %v4670, %v4669
      %v4672 = vrot.slane %v4636, 3
      %v4673 = vsel %vm1473, %v4672, %v4671
      %v4674 = vrot.slane %v4637, 2
      %v4675 = vsel %vm1476, %v4674, %v4673
      %v4676 = vrot.slane %v4638, 1
      %v4677 = vsel %vm1479, %v4676, %v4675
      %v4678 = vsel %vm1481, %v4639, %v4677
      %v4679 = vrot.slane %v4640, 7
      %v4680 = vrot.slane %v4641, 6
      %v4681 = vsel %vm1464, %v4680, %v4679
      %v4682 = vrot.slane %v4642, 5
      %v4683 = vsel %vm1467, %v4682, %v4681
      %v4684 = vrot.slane %v4643, 4
      %v4685 = vsel %vm1470, %v4684, %v4683
      %v4686 = vrot.slane %v4644, 3
      %v4687 = vsel %vm1473, %v4686, %v4685
      %v4688 = vrot.slane %v4645, 2
      %v4689 = vsel %vm1476, %v4688, %v4687
      %v4690 = vrot.slane %v4646, 1
      %v4691 = vsel %vm1479, %v4690, %v4689
      %vm4695 = vcmask 261127
      %v4696 = vsel %vm4695, %v4631, 0.0
      %4697 = vadd.xlane.f32.xlu0 %v4696
      %v4698 = vpop.xlane.xlu0 %4697
      %v4699 = vsel %vm1099, %v4678, 0.0
      %4700 = vadd.xlane.f32.xlu0 %v4699
      %v4701 = vpop.xlane.xlu0 %4700
      %vm4702 = vcmask 260096
      %v4703 = vsel %vm4702, %v4691, 0.0
      %4704 = vadd.xlane.f32.xlu0 %v4703
      %v4705 = vpop.xlane.xlu0 %4704
      %v4706 = vrcp.pop 32.0
      %v4707 = vmul.f32 %v4698, %v4706
      %v4708 = vmul.f32 %v4701, %v4706
      %v4709 = vmul.f32 %v4705, %v4706
      %v4713 = vrot.slane %v4708, 1
      %v4714 = vrot.slane %v4708, 2
      %v4715 = vrot.slane %v4708, 3
      %v4716 = vrot.slane %v4708, 4
      %v4717 = vrot.slane %v4708, 5
      %v4718 = vrot.slane %v4708, 6
      %v4719 = vrot.slane %v4708, 7
      %v4720 = vrot.slane %v4709, 1
      %v4721 = vrot.slane %v4709, 2
      %v4722 = vrot.slane %v4709, 3
      %v4723 = vrot.slane %v4709, 4
      %v4724 = vrot.slane %v4709, 5
      %v4725 = vrot.slane %v4709, 6
      %v4726 = vrot.slane %v4709, 7
      %v4743 = vsub.f32 %v4631, %v4707
      %v4744 = vsub.f32 %v4632, %v4713
      %v4745 = vsub.f32 %v4633, %v4714
      %v4746 = vsub.f32 %v4634, %v4715
      %v4747 = vsub.f32 %v4635, %v4716
      %v4748 = vsub.f32 %v4636, %v4717
      %v4749 = vsub.f32 %v4637, %v4718
      %v4750 = vsub.f32 %v4638, %v4719
      %v4751 = vsub.f32 %v4639, %v4708
      %v4752 = vsub.f32 %v4640, %v4720
      %v4753 = vsub.f32 %v4641, %v4721
      %v4754 = vsub.f32 %v4642, %v4722
      %v4755 = vsub.f32 %v4643, %v4723
      %v4756 = vsub.f32 %v4644, %v4724
      %v4757 = vsub.f32 %v4645, %v4725
      %v4758 = vsub.f32 %v4646, %v4726
      %v4759 = vmul.f32 %v4743, %v4743
      %v4760 = vmul.f32 %v4744, %v4744
      %v4761 = vmul.f32 %v4745, %v4745
      %v4762 = vmul.f32 %v4746, %v4746
      %v4763 = vmul.f32 %v4747, %v4747
      %v4764 = vmul.f32 %v4748, %v4748
      %v4765 = vmul.f32 %v4749, %v4749
      %v4766 = vmul.f32 %v4750, %v4750
      %v4767 = vmul.f32 %v4751, %v4751
      %v4768 = vmul.f32 %v4752, %v4752
      %v4769 = vmul.f32 %v4753, %v4753
      %v4770 = vmul.f32 %v4754, %v4754
      %v4771 = vmul.f32 %v4755, %v4755
      %v4772 = vmul.f32 %v4756, %v4756
      %v4773 = vmul.f32 %v4757, %v4757
      %v4774 = vmul.f32 %v4758, %v4758
      %v4791 = vrot.slane %v4760, 7
      %v4792 = vrot.slane %v4761, 6
      %v4793 = vsel %vm1464, %v4792, %v4791
      %v4794 = vrot.slane %v4762, 5
      %v4795 = vsel %vm1467, %v4794, %v4793
      %v4796 = vrot.slane %v4763, 4
      %v4797 = vsel %vm1470, %v4796, %v4795
      %v4798 = vrot.slane %v4764, 3
      %v4799 = vsel %vm1473, %v4798, %v4797
      %v4800 = vrot.slane %v4765, 2
      %v4801 = vsel %vm1476, %v4800, %v4799
      %v4802 = vrot.slane %v4766, 1
      %v4803 = vsel %vm1479, %v4802, %v4801
      %v4804 = vsel %vm1481, %v4767, %v4803
      %v4805 = vrot.slane %v4768, 7
      %v4806 = vrot.slane %v4769, 6
      %v4807 = vsel %vm1464, %v4806, %v4805
      %v4808 = vrot.slane %v4770, 5
      %v4809 = vsel %vm1467, %v4808, %v4807
      %v4810 = vrot.slane %v4771, 4
      %v4811 = vsel %vm1470, %v4810, %v4809
      %v4812 = vrot.slane %v4772, 3
      %v4813 = vsel %vm1473, %v4812, %v4811
      %v4814 = vrot.slane %v4773, 2
      %v4815 = vsel %vm1476, %v4814, %v4813
      %v4816 = vrot.slane %v4774, 1
      %v4817 = vsel %vm1479, %v4816, %v4815
      %v4821 = vsel %vm4695, %v4759, 0.0
      %4822 = vadd.xlane.f32.xlu0 %v4821
      %v4823 = vpop.xlane.xlu0 %4822
      %v4824 = vsel %vm1099, %v4804, 0.0
      %4825 = vadd.xlane.f32.xlu0 %v4824
      %v4826 = vpop.xlane.xlu0 %4825
      %v4827 = vsel %vm4702, %v4817, 0.0
      %4828 = vadd.xlane.f32.xlu0 %v4827
      %v4829 = vpop.xlane.xlu0 %4828
      %v4830 = vmul.f32 %v4823, %v4706
      %v4831 = vmul.f32 %v4826, %v4706
      %v4832 = vmul.f32 %v4829, %v4706
      %v4833 = vadd.f32 %v4830, 1e-05
      %v4834 = vadd.f32 %v4831, 1e-05
      %v4835 = vadd.f32 %v4832, 1e-05
      %v4836 = vrsqrt.pop %v4833
      %v4837 = vrsqrt.pop %v4834
      %v4838 = vrsqrt.pop %v4835
      %v4842 = vrot.slane %v4837, 1
      %v4843 = vrot.slane %v4837, 2
      %v4844 = vrot.slane %v4837, 3
      %v4845 = vrot.slane %v4837, 4
      %v4846 = vrot.slane %v4837, 5
      %v4847 = vrot.slane %v4837, 6
      %v4848 = vrot.slane %v4837, 7
      %v4849 = vrot.slane %v4838, 1
      %v4850 = vrot.slane %v4838, 2
      %v4851 = vrot.slane %v4838, 3
      %v4852 = vrot.slane %v4838, 4
      %v4853 = vrot.slane %v4838, 5
      %v4854 = vrot.slane %v4838, 6
      %v4855 = vrot.slane %v4838, 7
      %v4872 = vmul.f32 %v4743, %v4836
      %v4873 = vmul.f32 %v4744, %v4842
      %v4874 = vmul.f32 %v4745, %v4843
      %v4875 = vmul.f32 %v4746, %v4844
      %v4876 = vmul.f32 %v4747, %v4845
      %v4877 = vmul.f32 %v4748, %v4846
      %v4878 = vmul.f32 %v4749, %v4847
      %v4879 = vmul.f32 %v4750, %v4848
      %v4880 = vmul.f32 %v4751, %v4837
      %v4881 = vmul.f32 %v4752, %v4849
      %v4882 = vmul.f32 %v4753, %v4850
      %v4883 = vmul.f32 %v4754, %v4851
      %v4884 = vmul.f32 %v4755, %v4852
      %v4885 = vmul.f32 %v4756, %v4853
      %v4886 = vmul.f32 %v4757, %v4854
      %v4887 = vmul.f32 %v4758, %v4855
      %v4889 = vlaneseq
      %v4890 = vshrl.u32 %v4889, 7
      %v4891 = vsub.s32 0, %v4890
      %v4892 = vrot.slane %v4647, %v4891
      %v4894 = vmul.f32 %v4872, %v4892
      %v4895 = vmul.f32 %v4873, %v4892
      %v4896 = vmul.f32 %v4874, %v4892
      %v4897 = vmul.f32 %v4875, %v4892
      %v4898 = vmul.f32 %v4876, %v4892
      %v4899 = vmul.f32 %v4877, %v4892
      %v4900 = vmul.f32 %v4878, %v4892
      %v4901 = vmul.f32 %v4879, %v4892
      %v4902 = vmul.f32 %v4880, %v4892
      %v4903 = vmul.f32 %v4881, %v4892
      %v4904 = vmul.f32 %v4882, %v4892
      %v4905 = vmul.f32 %v4883, %v4892
      %v4906 = vmul.f32 %v4884, %v4892
      %v4907 = vmul.f32 %v4885, %v4892
      %v4908 = vmul.f32 %v4886, %v4892
      %v4909 = vmul.f32 %v4887, %v4892
      %v4911 = vlaneseq
      %v4912 = vshrl.u32 %v4911, 7
      %v4913 = vsub.s32 0, %v4912
      %v4914 = vrot.slane %v4648, %v4913
      %v4916 = vadd.f32 %v4894, %v4914
      %v4917 = vadd.f32 %v4895, %v4914
      %v4918 = vadd.f32 %v4896, %v4914
      %v4919 = vadd.f32 %v4897, %v4914
      %v4920 = vadd.f32 %v4898, %v4914
      %v4921 = vadd.f32 %v4899, %v4914
      %v4922 = vadd.f32 %v4900, %v4914
      %v4923 = vadd.f32 %v4901, %v4914
      %v4924 = vadd.f32 %v4902, %v4914
      %v4925 = vadd.f32 %v4903, %v4914
      %v4926 = vadd.f32 %v4904, %v4914
      %v4927 = vadd.f32 %v4905, %v4914
      %v4928 = vadd.f32 %v4906, %v4914
      %v4929 = vadd.f32 %v4907, %v4914
      %v4930 = vadd.f32 %v4908, %v4914
      %v4931 = vadd.f32 %v4909, %v4914
      %v4932 = vld [vmem:[%s12] sm:$0xff]
      %v4933 = vld [vmem:[%s12 + $0x8] sm:$0xff]
      %v4934 = vld [vmem:[%s12 + $0x10] sm:$0xff]
      %v4935 = vld [vmem:[%s12 + $0x18] sm:$0xff]
      %v4936 = vld [vmem:[%s13] sm:$0x1]
      %v4938 = vlaneseq
      %v4939 = vshrl.u32 %v4938, 7
      %v4940 = vsub.s32 0, %v4939
      %v4941 = vrot.slane %v4936, %v4940
      %v4959 = vrot.slane %v4916, 7
      %v4960 = vrot.slane %v4917, 6
      %v4961 = vsel %vm1464, %v4960, %v4959
      %v4962 = vrot.slane %v4918, 5
      %v4963 = vsel %vm1467, %v4962, %v4961
      %v4964 = vrot.slane %v4919, 4
      %v4965 = vsel %vm1470, %v4964, %v4963
      %v4966 = vrot.slane %v4920, 3
      %v4967 = vsel %vm1473, %v4966, %v4965
      %v4968 = vrot.slane %v4921, 2
      %v4969 = vsel %vm1476, %v4968, %v4967
      %v4970 = vrot.slane %v4922, 1
      %v4971 = vsel %vm1479, %v4970, %v4969
      %v4972 = vsel %vm1481, %v4923, %v4971
      %v4973 = vrot.slane %v4924, 7
      %v4974 = vrot.slane %v4925, 6
      %v4975 = vsel %vm1464, %v4974, %v4973
      %v4976 = vrot.slane %v4926, 5
      %v4977 = vsel %vm1467, %v4976, %v4975
      %v4978 = vrot.slane %v4927, 4
      %v4979 = vsel %vm1470, %v4978, %v4977
      %v4980 = vrot.slane %v4928, 3
      %v4981 = vsel %vm1473, %v4980, %v4979
      %v4982 = vrot.slane %v4929, 2
      %v4983 = vsel %vm1476, %v4982, %v4981
      %v4984 = vrot.slane %v4930, 1
      %v4985 = vsel %vm1479, %v4984, %v4983
      %v4986 = vsel %vm1481, %v4931, %v4985
      %v4987 = vsel %vm1099, %v4972, 0
      %v4989 = vsel %vm1099, %v4986, 0
      %4991 = vmatprep.subr.mxu0 0.0
      %4992 = vmatpush1.msra.mxu0 %v4932
      %4993 = vmatprep.subr.mxu0 0.0
      %4994 = vmatpush1.msra.mxu0 %v4933
      %4995 = vmatprep.subr.mxu0 0.0
      %4996 = vmatpush1.msra.mxu0 %v4934
      %4997 = vmatprep.subr.mxu0 0.0
      %4998 = vmatpush1.msra.mxu0 %v4935
      %4999 = vmatprep.subr.mxu0 0.0
      %5000 = vmatpush1.msra.mxu0 0.0
      %5001 = vmatprep.subr.mxu0 0.0
      %5002 = vmatpush1.msra.mxu0 0.0
      %5003 = vmatprep.subr.mxu0 0.0
      %5004 = vmatpush1.msra.mxu0 0.0
      %5005 = vmatprep.subr.mxu0 0.0
      %5006 = vmatpush1.msra.mxu0 0.0
      %5007 = vmatprep.subr.mxu0 0.0
      %5008 = vmatpush1.msra.mxu0 0.0
      %5009 = vmatprep.subr.mxu0 0.0
      %5010 = vmatpush1.msra.mxu0 0.0
      %5011 = vmatprep.subr.mxu0 0.0
      %5012 = vmatpush1.msra.mxu0 0.0
      %5013 = vmatprep.subr.mxu0 0.0
      %5014 = vmatpush1.msra.mxu0 0.0
      %5015 = vmatprep.subr.mxu0 0.0
      %5016 = vmatpush1.msra.mxu0 0.0
      %5017 = vmatprep.subr.mxu0 0.0
      %5018 = vmatpush1.msra.mxu0 0.0
      %5019 = vmatprep.subr.mxu0 0.0
      %5020 = vmatpush1.msra.mxu0 0.0
      %5021 = vmatprep.subr.mxu0 0.0
      %5022 = vmatpush1.msra.mxu0 0.0
      %5023 = vmatprep.subr.mxu0 0.0
      %5024 = vmatpush1.msra.mxu0 0.0
      %5025 = vmatprep.subr.mxu0 0.0
      %5026 = vmatpush1.msra.mxu0 0.0
      %5027 = vmatprep.subr.mxu0 0.0
      %5028 = vmatpush1.msra.mxu0 0.0
      %5029 = vmatprep.subr.mxu0 0.0
      %5030 = vmatpush1.msra.mxu0 0.0
      %5031 = vmatprep.subr.mxu0 0.0
      %5032 = vmatpush1.msra.mxu0 0.0
      %5033 = vmatprep.subr.mxu0 0.0
      %5034 = vmatpush1.msra.mxu0 0.0
      %5035 = vmatprep.subr.mxu0 0.0
      %5036 = vmatpush1.msra.mxu0 0.0
      %5037 = vmatprep.subr.mxu0 0.0
      %5038 = vmatpush1.msra.mxu0 0.0
      %5039 = vmatprep.subr.mxu0 0.0
      %5040 = vmatpush1.msra.mxu0 0.0
      %5041 = vmatprep.subr.mxu0 0.0
      %5042 = vmatpush1.msra.mxu0 0.0
      %5043 = vmatprep.subr.mxu0 0.0
      %5044 = vmatpush1.msra.mxu0 0.0
      %5045 = vmatprep.subr.mxu0 0.0
      %5046 = vmatpush1.msra.mxu0 0.0
      %5047 = vmatprep.subr.mxu0 0.0
      %5048 = vmatpush1.msra.mxu0 0.0
      %5049 = vmatprep.subr.mxu0 0.0
      %5050 = vmatpush1.msra.mxu0 0.0
      %5051 = vmatprep.subr.mxu0 0.0
      %5052 = vmatpush1.msra.mxu0 0.0
      %5053 = vmatprep.subr.mxu0 0.0
      %5054 = vmatpush1.msra.mxu0 0.0
      %5055 = vmatprep.mubr.f32.mxu0 0.0
      %5056 = vmatmul.mubr.f32.gmra.mrb[0].mxu0 %v4987
      %v5057 = vpop.f32.mrb[0].mxu0
      %v5058 = vadd.f32 %v4941, %v5057
      %v5059 = vpop.f32.mrb[0].mxu0
      %5060 = vmatprep.mubr.f32.mxu0 0.0
      %5061 = vmatmul.mubr.f32.gmra.mrb[0].mxu0 %v4989
      %v5062 = vpop.f32.mrb[0].mxu0
      %v5063 = vadd.f32 %v4941, %v5062
      %v5064 = vpop.f32.mrb[0].mxu0
      %5065 = vdwg.mxu0
      %v5066 = vmax.f32 %v5058, 0.0
      %v5067 = vmax.f32 %v5063, 0.0
      %v5068 = vld [vmem:[%s14] sm:$0xff]
      %v5069 = vld [vmem:[%s14 + $0x8] sm:$0xff]
      %v5070 = vld [vmem:[%s14 + $0x10] sm:$0xff]
      %v5071 = vld [vmem:[%s14 + $0x18] sm:$0xff]
      %v5072 = vld [vmem:[%s14 + $0x20] sm:$0xff]
      %v5073 = vld [vmem:[%s14 + $0x28] sm:$0xff]
      %v5074 = vld [vmem:[%s14 + $0x30] sm:$0xff]
      %v5075 = vld [vmem:[%s14 + $0x38] sm:$0xff]
      %v5076 = vld [vmem:[%s14 + $0x40] sm:$0xff]
      %v5077 = vld [vmem:[%s14 + $0x48] sm:$0xff]
      %v5078 = vld [vmem:[%s14 + $0x50] sm:$0xff]
      %v5079 = vld [vmem:[%s14 + $0x58] sm:$0xff]
      %v5080 = vld [vmem:[%s14 + $0x60] sm:$0xff]
      %v5081 = vld [vmem:[%s14 + $0x68] sm:$0xff]
      %v5082 = vld [vmem:[%s14 + $0x70] sm:$0xff]
      %v5083 = vld [vmem:[%s14 + $0x78] sm:$0xff]
      %v5084 = vld [vmem:[%s15] sm:$0x1]
      %v5086 = vlaneseq
      %v5087 = vshrl.u32 %v5086, 7
      %v5088 = vsub.s32 0, %v5087
      %v5089 = vrot.slane %v5084, %v5088
      %5091 = vmatprep.subr.mxu0 0.0
      %5092 = vmatpush1.msra.mxu0 %v5068
      %5093 = vmatprep.subr.mxu0 0.0
      %5094 = vmatpush1.msra.mxu0 %v5069
      %5095 = vmatprep.subr.mxu0 0.0
      %5096 = vmatpush1.msra.mxu0 %v5070
      %5097 = vmatprep.subr.mxu0 0.0
      %5098 = vmatpush1.msra.mxu0 %v5071
      %5099 = vmatprep.subr.mxu0 0.0
      %5100 = vmatpush1.msra.mxu0 %v5072
      %5101 = vmatprep.subr.mxu0 0.0
      %5102 = vmatpush1.msra.mxu0 %v5073
      %5103 = vmatprep.subr.mxu0 0.0
      %5104 = vmatpush1.msra.mxu0 %v5074
      %5105 = vmatprep.subr.mxu0 0.0
      %5106 = vmatpush1.msra.mxu0 %v5075
      %5107 = vmatprep.subr.mxu0 0.0
      %5108 = vmatpush1.msra.mxu0 %v5076
      %5109 = vmatprep.subr.mxu0 0.0
      %5110 = vmatpush1.msra.mxu0 %v5077
      %5111 = vmatprep.subr.mxu0 0.0
      %5112 = vmatpush1.msra.mxu0 %v5078
      %5113 = vmatprep.subr.mxu0 0.0
      %5114 = vmatpush1.msra.mxu0 %v5079
      %5115 = vmatprep.subr.mxu0 0.0
      %5116 = vmatpush1.msra.mxu0 %v5080
      %5117 = vmatprep.subr.mxu0 0.0
      %5118 = vmatpush1.msra.mxu0 %v5081
      %5119 = vmatprep.subr.mxu0 0.0
      %5120 = vmatpush1.msra.mxu0 %v5082
      %5121 = vmatprep.subr.mxu0 0.0
      %5122 = vmatpush1.msra.mxu0 %v5083
      %5123 = vmatprep.subr.mxu0 0.0
      %5124 = vmatpush1.msra.mxu0 0.0
      %5125 = vmatprep.subr.mxu0 0.0
      %5126 = vmatpush1.msra.mxu0 0.0
      %5127 = vmatprep.subr.mxu0 0.0
      %5128 = vmatpush1.msra.mxu0 0.0
      %5129 = vmatprep.subr.mxu0 0.0
      %5130 = vmatpush1.msra.mxu0 0.0
      %5131 = vmatprep.subr.mxu0 0.0
      %5132 = vmatpush1.msra.mxu0 0.0
      %5133 = vmatprep.subr.mxu0 0.0
      %5134 = vmatpush1.msra.mxu0 0.0
      %5135 = vmatprep.subr.mxu0 0.0
      %5136 = vmatpush1.msra.mxu0 0.0
      %5137 = vmatprep.subr.mxu0 0.0
      %5138 = vmatpush1.msra.mxu0 0.0
      %5139 = vmatprep.subr.mxu0 0.0
      %5140 = vmatpush1.msra.mxu0 0.0
      %5141 = vmatprep.subr.mxu0 0.0
      %5142 = vmatpush1.msra.mxu0 0.0
      %5143 = vmatprep.subr.mxu0 0.0
      %5144 = vmatpush1.msra.mxu0 0.0
      %5145 = vmatprep.subr.mxu0 0.0
      %5146 = vmatpush1.msra.mxu0 0.0
      %5147 = vmatprep.subr.mxu0 0.0
      %5148 = vmatpush1.msra.mxu0 0.0
      %5149 = vmatprep.subr.mxu0 0.0
      %5150 = vmatpush1.msra.mxu0 0.0
      %5151 = vmatprep.subr.mxu0 0.0
      %5152 = vmatpush1.msra.mxu0 0.0
      %5153 = vmatprep.subr.mxu0 0.0
      %5154 = vmatpush1.msra.mxu0 0.0
      %5155 = vmatprep.mubr.f32.mxu0 0.0
      %5156 = vmatmul.mubr.f32.gmra.mrb[0].mxu0 %v5066
      %v5157 = vpop.f32.mrb[0].mxu0
      %v5158 = vadd.f32 %v5089, %v5157
      %v5159 = vpop.f32.mrb[0].mxu0
      %5160 = vmatprep.mubr.f32.mxu0 0.0
      %5161 = vmatmul.mubr.f32.gmra.mrb[0].mxu0 %v5067
      %v5162 = vpop.f32.mrb[0].mxu0
      %v5163 = vadd.f32 %v5089, %v5162
      %v5164 = vpop.f32.mrb[0].mxu0
      %5165 = vdwg.mxu0
      %v5168 = vrot.slane %v5158, 1
      %v5169 = vrot.slane %v5158, 2
      %v5170 = vrot.slane %v5158, 3
      %v5171 = vrot.slane %v5158, 4
      %v5172 = vrot.slane %v5158, 5
      %v5173 = vrot.slane %v5158, 6
      %v5174 = vrot.slane %v5158, 7
      %v5175 = vrot.slane %v5163, 1
      %v5176 = vrot.slane %v5163, 2
      %v5177 = vrot.slane %v5163, 3
      %v5178 = vrot.slane %v5163, 4
      %v5179 = vrot.slane %v5163, 5
      %v5180 = vrot.slane %v5163, 6
      %v5181 = vrot.slane %v5163, 7
      %v5198 = vadd.f32 %v4916, %v5168
      %v5199 = vadd.f32 %v4917, %v5169
      %v5200 = vadd.f32 %v4918, %v5170
      %v5201 = vadd.f32 %v4919, %v5171
      %v5202 = vadd.f32 %v4920, %v5172
      %v5203 = vadd.f32 %v4921, %v5173
      %v5204 = vadd.f32 %v4922, %v5174
      %v5205 = vadd.f32 %v4923, %v5158
      %v5206 = vadd.f32 %v4924, %v5175
      %v5207 = vadd.f32 %v4925, %v5176
      %v5208 = vadd.f32 %v4926, %v5177
      %v5209 = vadd.f32 %v4927, %v5178
      %v5210 = vadd.f32 %v4928, %v5179
      %v5211 = vadd.f32 %v4929, %v5180
      %v5212 = vadd.f32 %v4930, %v5181
      %v5213 = vadd.f32 %v4931, %v5163
      %v5214 = vld [vmem:[%s16] sm:$0x1]
      %v5215 = vld [vmem:[%s17] sm:$0x1]
      %v5232 = vrot.slane %v5199, 7
      %v5233 = vrot.slane %v5200, 6
      %v5234 = vsel %vm1464, %v5233, %v5232
      %v5235 = vrot.slane %v5201, 5
      %v5236 = vsel %vm1467, %v5235, %v5234
      %v5237 = vrot.slane %v5202, 4
      %v5238 = vsel %vm1470, %v5237, %v5236
      %v5239 = vrot.slane %v5203, 3
      %v5240 = vsel %vm1473, %v5239, %v5238
      %v5241 = vrot.slane %v5204, 2
      %v5242 = vsel %vm1476, %v5241, %v5240
      %v5243 = vrot.slane %v5205, 1
      %v5244 = vsel %vm1479, %v5243, %v5242
      %v5245 = vsel %vm1481, %v5206, %v5244
      %v5246 = vrot.slane %v5207, 7
      %v5247 = vrot.slane %v5208, 6
      %v5248 = vsel %vm1464, %v5247, %v5246
      %v5249 = vrot.slane %v5209, 5
      %v5250 = vsel %vm1467, %v5249, %v5248
      %v5251 = vrot.slane %v5210, 4
      %v5252 = vsel %vm1470, %v5251, %v5250
      %v5253 = vrot.slane %v5211, 3
      %v5254 = vsel %vm1473, %v5253, %v5252
      %v5255 = vrot.slane %v5212, 2
      %v5256 = vsel %vm1476, %v5255, %v5254
      %v5257 = vrot.slane %v5213, 1
      %v5258 = vsel %vm1479, %v5257, %v5256
      %v5262 = vsel %vm4695, %v5198, 0.0
      %5263 = vadd.xlane.f32.xlu0 %v5262
      %v5264 = vpop.xlane.xlu0 %5263
      %v5265 = vsel %vm1099, %v5245, 0.0
      %5266 = vadd.xlane.f32.xlu0 %v5265
      %v5267 = vpop.xlane.xlu0 %5266
      %v5268 = vsel %vm4702, %v5258, 0.0
      %5269 = vadd.xlane.f32.xlu0 %v5268
      %v5270 = vpop.xlane.xlu0 %5269
      %v5271 = vmul.f32 %v5264, %v4706
      %v5272 = vmul.f32 %v5267, %v4706
      %v5273 = vmul.f32 %v5270, %v4706
      %v5277 = vrot.slane %v5272, 1
      %v5278 = vrot.slane %v5272, 2
      %v5279 = vrot.slane %v5272, 3
      %v5280 = vrot.slane %v5272, 4
      %v5281 = vrot.slane %v5272, 5
      %v5282 = vrot.slane %v5272, 6
      %v5283 = vrot.slane %v5272, 7
      %v5284 = vrot.slane %v5273, 1
      %v5285 = vrot.slane %v5273, 2
      %v5286 = vrot.slane %v5273, 3
      %v5287 = vrot.slane %v5273, 4
      %v5288 = vrot.slane %v5273, 5
      %v5289 = vrot.slane %v5273, 6
      %v5290 = vrot.slane %v5273, 7
      %v5307 = vsub.f32 %v5198, %v5271
      %v5308 = vsub.f32 %v5199, %v5277
      %v5309 = vsub.f32 %v5200, %v5278
      %v5310 = vsub.f32 %v5201, %v5279
      %v5311 = vsub.f32 %v5202, %v5280
      %v5312 = vsub.f32 %v5203, %v5281
      %v5313 = vsub.f32 %v5204, %v5282
      %v5314 = vsub.f32 %v5205, %v5283
      %v5315 = vsub.f32 %v5206, %v5272
      %v5316 = vsub.f32 %v5207, %v5284
      %v5317 = vsub.f32 %v5208, %v5285
      %v5318 = vsub.f32 %v5209, %v5286
      %v5319 = vsub.f32 %v5210, %v5287
      %v5320 = vsub.f32 %v5211, %v5288
      %v5321 = vsub.f32 %v5212, %v5289
      %v5322 = vsub.f32 %v5213, %v5290
      %v5323 = vmul.f32 %v5307, %v5307
      %v5324 = vmul.f32 %v5308, %v5308
      %v5325 = vmul.f32 %v5309, %v5309
      %v5326 = vmul.f32 %v5310, %v5310
      %v5327 = vmul.f32 %v5311, %v5311
      %v5328 = vmul.f32 %v5312, %v5312
      %v5329 = vmul.f32 %v5313, %v5313
      %v5330 = vmul.f32 %v5314, %v5314
      %v5331 = vmul.f32 %v5315, %v5315
      %v5332 = vmul.f32 %v5316, %v5316
      %v5333 = vmul.f32 %v5317, %v5317
      %v5334 = vmul.f32 %v5318, %v5318
      %v5335 = vmul.f32 %v5319, %v5319
      %v5336 = vmul.f32 %v5320, %v5320
      %v5337 = vmul.f32 %v5321, %v5321
      %v5338 = vmul.f32 %v5322, %v5322
      %v5355 = vrot.slane %v5324, 7
      %v5356 = vrot.slane %v5325, 6
      %v5357 = vsel %vm1464, %v5356, %v5355
      %v5358 = vrot.slane %v5326, 5
      %v5359 = vsel %vm1467, %v5358, %v5357
      %v5360 = vrot.slane %v5327, 4
      %v5361 = vsel %vm1470, %v5360, %v5359
      %v5362 = vrot.slane %v5328, 3
      %v5363 = vsel %vm1473, %v5362, %v5361
      %v5364 = vrot.slane %v5329, 2
      %v5365 = vsel %vm1476, %v5364, %v5363
      %v5366 = vrot.slane %v5330, 1
      %v5367 = vsel %vm1479, %v5366, %v5365
      %v5368 = vsel %vm1481, %v5331, %v5367
      %v5369 = vrot.slane %v5332, 7
      %v5370 = vrot.slane %v5333, 6
      %v5371 = vsel %vm1464, %v5370, %v5369
      %v5372 = vrot.slane %v5334, 5
      %v5373 = vsel %vm1467, %v5372, %v5371
      %v5374 = vrot.slane %v5335, 4
      %v5375 = vsel %vm1470, %v5374, %v5373
      %v5376 = vrot.slane %v5336, 3
      %v5377 = vsel %vm1473, %v5376, %v5375
      %v5378 = vrot.slane %v5337, 2
      %v5379 = vsel %vm1476, %v5378, %v5377
      %v5380 = vrot.slane %v5338, 1
      %v5381 = vsel %vm1479, %v5380, %v5379
      %v5385 = vsel %vm4695, %v5323, 0.0
      %5386 = vadd.xlane.f32.xlu0 %v5385
      %v5387 = vpop.xlane.xlu0 %5386
      %v5388 = vsel %vm1099, %v5368, 0.0
      %5389 = vadd.xlane.f32.xlu0 %v5388
      %v5390 = vpop.xlane.xlu0 %5389
      %v5391 = vsel %vm4702, %v5381, 0.0
      %5392 = vadd.xlane.f32.xlu0 %v5391
      %v5393 = vpop.xlane.xlu0 %5392
      %v5394 = vmul.f32 %v5387, %v4706
      %v5395 = vmul.f32 %v5390, %v4706
      %v5396 = vmul.f32 %v5393, %v4706
      %v5397 = vadd.f32 %v5394, 1e-05
      %v5398 = vadd.f32 %v5395, 1e-05
      %v5399 = vadd.f32 %v5396, 1e-05
      %v5400 = vrsqrt.pop %v5397
      %v5401 = vrsqrt.pop %v5398
      %v5402 = vrsqrt.pop %v5399
      %v5406 = vrot.slane %v5401, 1
      %v5407 = vrot.slane %v5401, 2
      %v5408 = vrot.slane %v5401, 3
      %v5409 = vrot.slane %v5401, 4
      %v5410 = vrot.slane %v5401, 5
      %v5411 = vrot.slane %v5401, 6
      %v5412 = vrot.slane %v5401, 7
      %v5413 = vrot.slane %v5402, 1
      %v5414 = vrot.slane %v5402, 2
      %v5415 = vrot.slane %v5402, 3
      %v5416 = vrot.slane %v5402, 4
      %v5417 = vrot.slane %v5402, 5
      %v5418 = vrot.slane %v5402, 6
      %v5419 = vrot.slane %v5402, 7
      %v5436 = vmul.f32 %v5307, %v5400
      %v5437 = vmul.f32 %v5308, %v5406
      %v5438 = vmul.f32 %v5309, %v5407
      %v5439 = vmul.f32 %v5310, %v5408
      %v5440 = vmul.f32 %v5311, %v5409
      %v5441 = vmul.f32 %v5312, %v5410
      %v5442 = vmul.f32 %v5313, %v5411
      %v5443 = vmul.f32 %v5314, %v5412
      %v5444 = vmul.f32 %v5315, %v5401
      %v5445 = vmul.f32 %v5316, %v5413
      %v5446 = vmul.f32 %v5317, %v5414
      %v5447 = vmul.f32 %v5318, %v5415
      %v5448 = vmul.f32 %v5319, %v5416
      %v5449 = vmul.f32 %v5320, %v5417
      %v5450 = vmul.f32 %v5321, %v5418
      %v5451 = vmul.f32 %v5322, %v5419
      %v5453 = vlaneseq
      %v5454 = vshrl.u32 %v5453, 7
      %v5455 = vsub.s32 0, %v5454
      %v5456 = vrot.slane %v5214, %v5455
      %v5458 = vmul.f32 %v5436, %v5456
      %v5459 = vmul.f32 %v5437, %v5456
      %v5460 = vmul.f32 %v5438, %v5456
      %v5461 = vmul.f32 %v5439, %v5456
      %v5462 = vmul.f32 %v5440, %v5456
      %v5463 = vmul.f32 %v5441, %v5456
      %v5464 = vmul.f32 %v5442, %v5456
      %v5465 = vmul.f32 %v5443, %v5456
      %v5466 = vmul.f32 %v5444, %v5456
      %v5467 = vmul.f32 %v5445, %v5456
      %v5468 = vmul.f32 %v5446, %v5456
      %v5469 = vmul.f32 %v5447, %v5456
      %v5470 = vmul.f32 %v5448, %v5456
      %v5471 = vmul.f32 %v5449, %v5456
      %v5472 = vmul.f32 %v5450, %v5456
      %v5473 = vmul.f32 %v5451, %v5456
      %v5475 = vlaneseq
      %v5476 = vshrl.u32 %v5475, 7
      %v5477 = vsub.s32 0, %v5476
      %v5478 = vrot.slane %v5215, %v5477
      %v5480 = vadd.f32 %v5458, %v5478
      %v5481 = vadd.f32 %v5459, %v5478
      %v5482 = vadd.f32 %v5460, %v5478
      %v5483 = vadd.f32 %v5461, %v5478
      %v5484 = vadd.f32 %v5462, %v5478
      %v5485 = vadd.f32 %v5463, %v5478
      %v5486 = vadd.f32 %v5464, %v5478
      %v5487 = vadd.f32 %v5465, %v5478
      %v5488 = vadd.f32 %v5466, %v5478
      %v5489 = vadd.f32 %v5467, %v5478
      %v5490 = vadd.f32 %v5468, %v5478
      %v5491 = vadd.f32 %v5469, %v5478
      %v5492 = vadd.f32 %v5470, %v5478
      %v5493 = vadd.f32 %v5471, %v5478
      %v5494 = vadd.f32 %v5472, %v5478
      %v5495 = vadd.f32 %v5473, %v5478
      %v5496 = vld [vmem:[%s1] sm:$0xff]
      %v5497 = vld [vmem:[%s1 + $0x8] sm:$0xff]
      %vm5498 = vcmp.gt.f32.partialorder %v5496, 0.0
      %vm5499 = vcmp.gt.f32.partialorder %v5497, 0.0
      %v5500 = vld [vmem:[%s18] sm:$0xff]
      %v5501 = vld [vmem:[%s18 + $0x8] sm:$0xff]
      %v5502 = vld [vmem:[%s18 + $0x10] sm:$0xff]
      %v5503 = vld [vmem:[%s18 + $0x18] sm:$0xff]
      %v5520 = vrot.slane %v5480, 7
      %v5521 = vrot.slane %v5481, 6
      %v5522 = vsel %vm1464, %v5521, %v5520
      %v5523 = vrot.slane %v5482, 5
      %v5524 = vsel %vm1467, %v5523, %v5522
      %v5525 = vrot.slane %v5483, 4
      %v5526 = vsel %vm1470, %v5525, %v5524
      %v5527 = vrot.slane %v5484, 3
      %v5528 = vsel %vm1473, %v5527, %v5526
      %v5529 = vrot.slane %v5485, 2
      %v5530 = vsel %vm1476, %v5529, %v5528
      %v5531 = vrot.slane %v5486, 1
      %v5532 = vsel %vm1479, %v5531, %v5530
      %v5533 = vsel %vm1481, %v5487, %v5532
      %v5534 = vrot.slane %v5488, 7
      %v5535 = vrot.slane %v5489, 6
      %v5536 = vsel %vm1464, %v5535, %v5534
      %v5537 = vrot.slane %v5490, 5
      %v5538 = vsel %vm1467, %v5537, %v5536
      %v5539 = vrot.slane %v5491, 4
      %v5540 = vsel %vm1470, %v5539, %v5538
      %v5541 = vrot.slane %v5492, 3
      %v5542 = vsel %vm1473, %v5541, %v5540
      %v5543 = vrot.slane %v5493, 2
      %v5544 = vsel %vm1476, %v5543, %v5542
      %v5545 = vrot.slane %v5494, 1
      %v5546 = vsel %vm1479, %v5545, %v5544
      %v5547 = vsel %vm1481, %v5495, %v5546
      %v5548 = vsel %vm1099, %v5533, 0
      %v5550 = vsel %vm1099, %v5547, 0
      %5552 = vmatprep.subr.mxu0 0.0
      %5553 = vmatpush1.msra.mxu0 %v5500
      %5554 = vmatprep.subr.mxu0 0.0
      %5555 = vmatpush1.msra.mxu0 %v5501
      %5556 = vmatprep.subr.mxu0 0.0
      %5557 = vmatpush1.msra.mxu0 %v5502
      %5558 = vmatprep.subr.mxu0 0.0
      %5559 = vmatpush1.msra.mxu0 %v5503
      %5560 = vmatprep.subr.mxu0 0.0
      %5561 = vmatpush1.msra.mxu0 0.0
      %5562 = vmatprep.subr.mxu0 0.0
      %5563 = vmatpush1.msra.mxu0 0.0
      %5564 = vmatprep.subr.mxu0 0.0
      %5565 = vmatpush1.msra.mxu0 0.0
      %5566 = vmatprep.subr.mxu0 0.0
      %5567 = vmatpush1.msra.mxu0 0.0
      %5568 = vmatprep.subr.mxu0 0.0
      %5569 = vmatpush1.msra.mxu0 0.0
      %5570 = vmatprep.subr.mxu0 0.0
      %5571 = vmatpush1.msra.mxu0 0.0
      %5572 = vmatprep.subr.mxu0 0.0
      %5573 = vmatpush1.msra.mxu0 0.0
      %5574 = vmatprep.subr.mxu0 0.0
      %5575 = vmatpush1.msra.mxu0 0.0
      %5576 = vmatprep.subr.mxu0 0.0
      %5577 = vmatpush1.msra.mxu0 0.0
      %5578 = vmatprep.subr.mxu0 0.0
      %5579 = vmatpush1.msra.mxu0 0.0
      %5580 = vmatprep.subr.mxu0 0.0
      %5581 = vmatpush1.msra.mxu0 0.0
      %5582 = vmatprep.subr.mxu0 0.0
      %5583 = vmatpush1.msra.mxu0 0.0
      %5584 = vmatprep.subr.mxu0 0.0
      %5585 = vmatpush1.msra.mxu0 0.0
      %5586 = vmatprep.subr.mxu0 0.0
      %5587 = vmatpush1.msra.mxu0 0.0
      %5588 = vmatprep.subr.mxu0 0.0
      %5589 = vmatpush1.msra.mxu0 0.0
      %5590 = vmatprep.subr.mxu0 0.0
      %5591 = vmatpush1.msra.mxu0 0.0
      %5592 = vmatprep.subr.mxu0 0.0
      %5593 = vmatpush1.msra.mxu0 0.0
      %5594 = vmatprep.subr.mxu0 0.0
      %5595 = vmatpush1.msra.mxu0 0.0
      %5596 = vmatprep.subr.mxu0 0.0
      %5597 = vmatpush1.msra.mxu0 0.0
      %5598 = vmatprep.subr.mxu0 0.0
      %5599 = vmatpush1.msra.mxu0 0.0
      %5600 = vmatprep.subr.mxu0 0.0
      %5601 = vmatpush1.msra.mxu0 0.0
      %5602 = vmatprep.subr.mxu0 0.0
      %5603 = vmatpush1.msra.mxu0 0.0
      %5604 = vmatprep.subr.mxu0 0.0
      %5605 = vmatpush1.msra.mxu0 0.0
      %5606 = vmatprep.subr.mxu0 0.0
      %5607 = vmatpush1.msra.mxu0 0.0
      %5608 = vmatprep.subr.mxu0 0.0
      %5609 = vmatpush1.msra.mxu0 0.0
      %5610 = vmatprep.subr.mxu0 0.0
      %5611 = vmatpush1.msra.mxu0 0.0
      %5612 = vmatprep.subr.mxu0 0.0
      %5613 = vmatpush1.msra.mxu0 0.0
      %5614 = vmatprep.subr.mxu0 0.0
      %5615 = vmatpush1.msra.mxu0 0.0
      %5616 = vmatprep.mubr.f32.mxu0 0.0
      %5617 = vmatmul.mubr.f32.gmra.mrb[0].mxu0 %v5548
      %v5618 = vpop.f32.mrb[0].mxu0
      %v5619 = vadd.f32 0.0, %v5618
      %v5620 = vpop.f32.mrb[0].mxu0
      %5621 = vmatprep.mubr.f32.mxu0 0.0
      %5622 = vmatmul.mubr.f32.gmra.mrb[0].mxu0 %v5550
      %v5623 = vpop.f32.mrb[0].mxu0
      %v5624 = vadd.f32 0.0, %v5623
      %v5625 = vpop.f32.mrb[0].mxu0
      %5626 = vdwg.mxu0
      %v5627 = vld [vmem:[%s19] sm:$0xff]
      %v5629 = vsel %vm1099, %v5627, 0
      %v5632 = vsel %vm1099, %v5619, 0
      %v5635 = vsel %vm1099, %v5624, 0
      %5637 = vmatprep.subr.mxu0 0.0
      %5638 = vmatpush1.xpose.msra.mxu0 %v5632
      %5639 = vmatprep.subr.mxu0 0.0
      %5640 = vmatpush1.xpose.msra.mxu0 %v5635
      %5641 = vmatprep.subr.mxu0 0.0
      %5642 = vmatpush1.xpose.msra.mxu0 0.0
      %5643 = vmatprep.subr.mxu0 0.0
      %5644 = vmatpush1.xpose.msra.mxu0 0.0
      %5645 = vmatprep.subr.mxu0 0.0
      %5646 = vmatpush1.xpose.msra.mxu0 0.0
      %5647 = vmatprep.subr.mxu0 0.0
      %5648 = vmatpush1.xpose.msra.mxu0 0.0
      %5649 = vmatprep.subr.mxu0 0.0
      %5650 = vmatpush1.xpose.msra.mxu0 0.0
      %5651 = vmatprep.subr.mxu0 0.0
      %5652 = vmatpush1.xpose.msra.mxu0 0.0
      %5653 = vmatprep.subr.mxu0 0.0
      %5654 = vmatpush1.xpose.msra.mxu0 0.0
      %5655 = vmatprep.subr.mxu0 0.0
      %5656 = vmatpush1.xpose.msra.mxu0 0.0
      %5657 = vmatprep.subr.mxu0 0.0
      %5658 = vmatpush1.xpose.msra.mxu0 0.0
      %5659 = vmatprep.subr.mxu0 0.0
      %5660 = vmatpush1.xpose.msra.mxu0 0.0
      %5661 = vmatprep.subr.mxu0 0.0
      %5662 = vmatpush1.xpose.msra.mxu0 0.0
      %5663 = vmatprep.subr.mxu0 0.0
      %5664 = vmatpush1.xpose.msra.mxu0 0.0
      %5665 = vmatprep.subr.mxu0 0.0
      %5666 = vmatpush1.xpose.msra.mxu0 0.0
      %5667 = vmatprep.subr.mxu0 0.0
      %5668 = vmatpush1.xpose.msra.mxu0 0.0
      %5669 = vmatprep.subr.mxu0 0.0
      %5670 = vmatpush1.xpose.msra.mxu0 0.0
      %5671 = vmatprep.subr.mxu0 0.0
      %5672 = vmatpush1.xpose.msra.mxu0 0.0
      %5673 = vmatprep.subr.mxu0 0.0
      %5674 = vmatpush1.xpose.msra.mxu0 0.0
      %5675 = vmatprep.subr.mxu0 0.0
      %5676 = vmatpush1.xpose.msra.mxu0 0.0
      %5677 = vmatprep.subr.mxu0 0.0
      %5678 = vmatpush1.xpose.msra.mxu0 0.0
      %5679 = vmatprep.subr.mxu0 0.0
      %5680 = vmatpush1.xpose.msra.mxu0 0.0
      %5681 = vmatprep.subr.mxu0 0.0
      %5682 = vmatpush1.xpose.msra.mxu0 0.0
      %5683 = vmatprep.subr.mxu0 0.0
      %5684 = vmatpush1.xpose.msra.mxu0 0.0
      %5685 = vmatprep.subr.mxu0 0.0
      %5686 = vmatpush1.xpose.msra.mxu0 0.0
      %5687 = vmatprep.subr.mxu0 0.0
      %5688 = vmatpush1.xpose.msra.mxu0 0.0
      %5689 = vmatprep.subr.mxu0 0.0
      %5690 = vmatpush1.xpose.msra.mxu0 0.0
      %5691 = vmatprep.subr.mxu0 0.0
      %5692 = vmatpush1.xpose.msra.mxu0 0.0
      %5693 = vmatprep.subr.mxu0 0.0
      %5694 = vmatpush1.xpose.msra.mxu0 0.0
      %5695 = vmatprep.subr.mxu0 0.0
      %5696 = vmatpush1.xpose.msra.mxu0 0.0
      %5697 = vmatprep.subr.mxu0 0.0
      %5698 = vmatpush1.xpose.msra.mxu0 0.0
      %5699 = vmatprep.subr.mxu0 0.0
      %5700 = vmatpush1.xpose.msra.mxu0 0.0
      %5701 = vmatprep.mubr.f32.mxu0 0.0
      %5702 = vmatmul.mubr.f32.gmra.mrb[0].mxu0 %v5629
      %v5703 = vpop.f32.mrb[0].mxu0
      %v5704 = vadd.f32 0.0, %v5703
      %v5705 = vpop.f32.mrb[0].mxu0
      %5706 = vdwg.mxu0
      %v5707 = vld [vmem:[%s20] sm:$0xff]
      %v5709 = vsel %vm1099, %v5707, 0
      %5711 = vmatprep.subr.mxu0 0.0
      %5712 = vmatpush1.xpose.msra.mxu0 %v5632
      %5713 = vmatprep.subr.mxu0 0.0
      %5714 = vmatpush1.xpose.msra.mxu0 %v5635
      %5715 = vmatprep.subr.mxu0 0.0
      %5716 = vmatpush1.xpose.msra.mxu0 0.0
      %5717 = vmatprep.subr.mxu0 0.0
      %5718 = vmatpush1.xpose.msra.mxu0 0.0
      %5719 = vmatprep.subr.mxu0 0.0
      %5720 = vmatpush1.xpose.msra.mxu0 0.0
      %5721 = vmatprep.subr.mxu0 0.0
      %5722 = vmatpush1.xpose.msra.mxu0 0.0
      %5723 = vmatprep.subr.mxu0 0.0
      %5724 = vmatpush1.xpose.msra.mxu0 0.0
      %5725 = vmatprep.subr.mxu0 0.0
      %5726 = vmatpush1.xpose.msra.mxu0 0.0
      %5727 = vmatprep.subr.mxu0 0.0
      %5728 = vmatpush1.xpose.msra.mxu0 0.0
      %5729 = vmatprep.subr.mxu0 0.0
      %5730 = vmatpush1.xpose.msra.mxu0 0.0
      %5731 = vmatprep.subr.mxu0 0.0
      %5732 = vmatpush1.xpose.msra.mxu0 0.0
      %5733 = vmatprep.subr.mxu0 0.0
      %5734 = vmatpush1.xpose.msra.mxu0 0.0
      %5735 = vmatprep.subr.mxu0 0.0
      %5736 = vmatpush1.xpose.msra.mxu0 0.0
      %5737 = vmatprep.subr.mxu0 0.0
      %5738 = vmatpush1.xpose.msra.mxu0 0.0
      %5739 = vmatprep.subr.mxu0 0.0
      %5740 = vmatpush1.xpose.msra.mxu0 0.0
      %5741 = vmatprep.subr.mxu0 0.0
      %5742 = vmatpush1.xpose.msra.mxu0 0.0
      %5743 = vmatprep.subr.mxu0 0.0
      %5744 = vmatpush1.xpose.msra.mxu0 0.0
      %5745 = vmatprep.subr.mxu0 0.0
      %5746 = vmatpush1.xpose.msra.mxu0 0.0
      %5747 = vmatprep.subr.mxu0 0.0
      %5748 = vmatpush1.xpose.msra.mxu0 0.0
      %5749 = vmatprep.subr.mxu0 0.0
      %5750 = vmatpush1.xpose.msra.mxu0 0.0
      %5751 = vmatprep.subr.mxu0 0.0
      %5752 = vmatpush1.xpose.msra.mxu0 0.0
      %5753 = vmatprep.subr.mxu0 0.0
      %5754 = vmatpush1.xpose.msra.mxu0 0.0
      %5755 = vmatprep.subr.mxu0 0.0
      %5756 = vmatpush1.xpose.msra.mxu0 0.0
      %5757 = vmatprep.subr.mxu0 0.0
      %5758 = vmatpush1.xpose.msra.mxu0 0.0
      %5759 = vmatprep.subr.mxu0 0.0
      %5760 = vmatpush1.xpose.msra.mxu0 0.0
      %5761 = vmatprep.subr.mxu0 0.0
      %5762 = vmatpush1.xpose.msra.mxu0 0.0
      %5763 = vmatprep.subr.mxu0 0.0
      %5764 = vmatpush1.xpose.msra.mxu0 0.0
      %5765 = vmatprep.subr.mxu0 0.0
      %5766 = vmatpush1.xpose.msra.mxu0 0.0
      %5767 = vmatprep.subr.mxu0 0.0
      %5768 = vmatpush1.xpose.msra.mxu0 0.0
      %5769 = vmatprep.subr.mxu0 0.0
      %5770 = vmatpush1.xpose.msra.mxu0 0.0
      %5771 = vmatprep.subr.mxu0 0.0
      %5772 = vmatpush1.xpose.msra.mxu0 0.0
      %5773 = vmatprep.subr.mxu0 0.0
      %5774 = vmatpush1.xpose.msra.mxu0 0.0
      %5775 = vmatprep.mubr.f32.mxu0 0.0
      %5776 = vmatmul.mubr.f32.gmra.mrb[0].mxu0 %v5709
      %v5777 = vpop.f32.mrb[0].mxu0
      %v5778 = vadd.f32 0.0, %v5777
      %v5779 = vpop.f32.mrb[0].mxu0
      %5780 = vdwg.mxu0
      %v5781 = vlaneseq
      %v5782 = vshrl.u32 %v5781, 7
      %v5783 = vsub.s32 0, %v5782
      %v5784 = vrot.slane %v5778, %v5783
      %5786 = vbcast.lane.b32.xlu0 %v5784, 256
      %v5787 = vpop.permute.xlu0 %5786
      %s5789 = sor.u32 256, 8
      %5790 = vbcast.lane.b32.xlu0 %v5784, %s5789
      %v5791 = vpop.permute.xlu0 %5790
      %v5792 = vlaneseq
      %v5793 = vshrl.u32 %v5792, 7
      %v5794 = vsub.s32 1, %v5793
      %v5795 = vrot.slane %v5778, %v5794
      %5797 = vbcast.lane.b32.xlu0 %v5795, 256
      %v5798 = vpop.permute.xlu0 %5797
      %s5800 = sor.u32 256, 8
      %5801 = vbcast.lane.b32.xlu0 %v5795, %s5800
      %v5802 = vpop.permute.xlu0 %5801
      %v5803 = vlaneseq
      %v5804 = vshrl.u32 %v5803, 7
      %v5805 = vsub.s32 2, %v5804
      %v5806 = vrot.slane %v5778, %v5805
      %5808 = vbcast.lane.b32.xlu0 %v5806, 256
      %v5809 = vpop.permute.xlu0 %5808
      %s5811 = sor.u32 256, 8
      %5812 = vbcast.lane.b32.xlu0 %v5806, %s5811
      %v5813 = vpop.permute.xlu0 %5812
      %v5814 = vlaneseq
      %v5815 = vshrl.u32 %v5814, 7
      %v5816 = vsub.s32 3, %v5815
      %v5817 = vrot.slane %v5778, %v5816
      %5819 = vbcast.lane.b32.xlu0 %v5817, 256
      %v5820 = vpop.permute.xlu0 %5819
      %s5822 = sor.u32 256, 8
      %5823 = vbcast.lane.b32.xlu0 %v5817, %s5822
      %v5824 = vpop.permute.xlu0 %5823
      %v5825 = vlaneseq
      %v5826 = vshrl.u32 %v5825, 7
      %v5827 = vsub.s32 4, %v5826
      %v5828 = vrot.slane %v5778, %v5827
      %5830 = vbcast.lane.b32.xlu0 %v5828, 256
      %v5831 = vpop.permute.xlu0 %5830
      %s5833 = sor.u32 256, 8
      %5834 = vbcast.lane.b32.xlu0 %v5828, %s5833
      %v5835 = vpop.permute.xlu0 %5834
      %v5836 = vlaneseq
      %v5837 = vshrl.u32 %v5836, 7
      %v5838 = vsub.s32 5, %v5837
      %v5839 = vrot.slane %v5778, %v5838
      %5841 = vbcast.lane.b32.xlu0 %v5839, 256
      %v5842 = vpop.permute.xlu0 %5841
      %s5844 = sor.u32 256, 8
      %5845 = vbcast.lane.b32.xlu0 %v5839, %s5844
      %v5846 = vpop.permute.xlu0 %5845
      %v5847 = vlaneseq
      %v5848 = vshrl.u32 %v5847, 7
      %v5849 = vsub.s32 6, %v5848
      %v5850 = vrot.slane %v5778, %v5849
      %5852 = vbcast.lane.b32.xlu0 %v5850, 256
      %v5853 = vpop.permute.xlu0 %5852
      %s5855 = sor.u32 256, 8
      %5856 = vbcast.lane.b32.xlu0 %v5850, %s5855
      %v5857 = vpop.permute.xlu0 %5856
      %v5858 = vlaneseq
      %v5859 = vshrl.u32 %v5858, 7
      %v5860 = vsub.s32 7, %v5859
      %v5861 = vrot.slane %v5778, %v5860
      %5863 = vbcast.lane.b32.xlu0 %v5861, 256
      %v5864 = vpop.permute.xlu0 %5863
      %s5866 = sor.u32 256, 8
      %5867 = vbcast.lane.b32.xlu0 %v5861, %s5866
      %v5868 = vpop.permute.xlu0 %5867
      %v5870 = vcombine.high %v5704, %v5704
      %v5872 = vunpack.c.l.s4 1966171168
      %v5873 = vunpack.c.0.s8 %v5872
      %v5874 = vlaneseq
      %v5875 = vshrl.u32 %v5874, 7
      %v5876 = vsub.s32 %v5873, %v5875
      %v5877 = vrot.slane %v5704, %v5876
      %v5879 = vunpack.c.l.s4 1966171168
      %v5880 = vunpack.c.0.s8 %v5879
      %v5881 = vlaneseq
      %v5882 = vshrl.u32 %v5881, 7
      %v5883 = vsub.s32 %v5880, %v5882
      %v5884 = vrot.slane %v5870, %v5883
      %v5885 = vcombine.high %v5877, %v5877
      %v5886 = vcombine.high %v5884, %v5884
      %v5888 = vunpack.c.l.s4 1966171168
      %v5889 = vunpack.c.0.s8 %v5888
      %v5890 = vlaneseq
      %v5891 = vshrl.u32 %v5890, 7
      %v5892 = vsub.s32 %v5889, %v5891
      %v5893 = vrot.slane %v5877, %v5892
      %v5895 = vunpack.c.l.s4 1966171168
      %v5896 = vunpack.c.0.s8 %v5895
      %v5897 = vlaneseq
      %v5898 = vshrl.u32 %v5897, 7
      %v5899 = vsub.s32 %v5896, %v5898
      %v5900 = vrot.slane %v5884, %v5899
      %v5902 = vunpack.c.l.s4 1966171168
      %v5903 = vunpack.c.0.s8 %v5902
      %v5904 = vlaneseq
      %v5905 = vshrl.u32 %v5904, 7
      %v5906 = vsub.s32 %v5903, %v5905
      %v5907 = vrot.slane %v5885, %v5906
      %v5909 = vunpack.c.l.s4 1966171168
      %v5910 = vunpack.c.0.s8 %v5909
      %v5911 = vlaneseq
      %v5912 = vshrl.u32 %v5911, 7
      %v5913 = vsub.s32 %v5910, %v5912
      %v5914 = vrot.slane %v5886, %v5913
      %v5915 = vcombine.high %v5893, %v5893
      %v5916 = vcombine.high %v5900, %v5900
      %v5917 = vcombine.high %v5907, %v5907
      %v5918 = vcombine.high %v5914, %v5914
      %v5919 = vlaneseq
      %v5920 = vshrl.u32 %v5919, 7
      %v5921 = vsub.s32 0, %v5920
      %v5922 = vrot.slane %v5893, %v5921
      %v5923 = vlaneseq
      %v5924 = vshrl.u32 %v5923, 7
      %v5925 = vsub.s32 0, %v5924
      %v5926 = vrot.slane %v5907, %v5925
      %v5927 = vlaneseq
      %v5928 = vshrl.u32 %v5927, 7
      %v5929 = vsub.s32 0, %v5928
      %v5930 = vrot.slane %v5915, %v5929
      %v5931 = vlaneseq
      %v5932 = vshrl.u32 %v5931, 7
      %v5933 = vsub.s32 0, %v5932
      %v5934 = vrot.slane %v5917, %v5933
      %v5935 = vlaneseq
      %v5936 = vshrl.u32 %v5935, 7
      %v5937 = vsub.s32 0, %v5936
      %v5938 = vrot.slane %v5900, %v5937
      %v5939 = vlaneseq
      %v5940 = vshrl.u32 %v5939, 7
      %v5941 = vsub.s32 0, %v5940
      %v5942 = vrot.slane %v5914, %v5941
      %v5943 = vlaneseq
      %v5944 = vshrl.u32 %v5943, 7
      %v5945 = vsub.s32 0, %v5944
      %v5946 = vrot.slane %v5916, %v5945
      %v5947 = vlaneseq
      %v5948 = vshrl.u32 %v5947, 7
      %v5949 = vsub.s32 0, %v5948
      %v5950 = vrot.slane %v5918, %v5949
      %v5959 = vadd.f32 %v5787, %v5922
      %v5960 = vadd.f32 %v5791, %v5922
      %v5961 = vadd.f32 %v5798, %v5926
      %v5962 = vadd.f32 %v5802, %v5926
      %v5963 = vadd.f32 %v5809, %v5930
      %v5964 = vadd.f32 %v5813, %v5930
      %v5965 = vadd.f32 %v5820, %v5934
      %v5966 = vadd.f32 %v5824, %v5934
      %v5967 = vadd.f32 %v5831, %v5938
      %v5968 = vadd.f32 %v5835, %v5938
      %v5969 = vadd.f32 %v5842, %v5942
      %v5970 = vadd.f32 %v5846, %v5942
      %v5971 = vadd.f32 %v5853, %v5946
      %v5972 = vadd.f32 %v5857, %v5946
      %v5973 = vadd.f32 %v5864, %v5950
      %v5974 = vadd.f32 %v5868, %v5950
      %vm5975 = vcmp.gt.f32.partialorder %v5959, 0.0
      %vm5976 = vcmp.gt.f32.partialorder %v5960, 0.0
      %vm5977 = vcmp.gt.f32.partialorder %v5961, 0.0
      %vm5978 = vcmp.gt.f32.partialorder %v5962, 0.0
      %vm5979 = vcmp.gt.f32.partialorder %v5963, 0.0
      %vm5980 = vcmp.gt.f32.partialorder %v5964, 0.0
      %vm5981 = vcmp.gt.f32.partialorder %v5965, 0.0
      %vm5982 = vcmp.gt.f32.partialorder %v5966, 0.0
      %vm5983 = vcmp.gt.f32.partialorder %v5967, 0.0
      %vm5984 = vcmp.gt.f32.partialorder %v5968, 0.0
      %vm5985 = vcmp.gt.f32.partialorder %v5969, 0.0
      %vm5986 = vcmp.gt.f32.partialorder %v5970, 0.0
      %vm5987 = vcmp.gt.f32.partialorder %v5971, 0.0
      %vm5988 = vcmp.gt.f32.partialorder %v5972, 0.0
      %vm5989 = vcmp.gt.f32.partialorder %v5973, 0.0
      %vm5990 = vcmp.gt.f32.partialorder %v5974, 0.0
      %v5991 = vmul.f32 %v5959, 0.2
      %v5992 = vmul.f32 %v5960, 0.2
      %v5993 = vmul.f32 %v5961, 0.2
      %v5994 = vmul.f32 %v5962, 0.2
      %v5995 = vmul.f32 %v5963, 0.2
      %v5996 = vmul.f32 %v5964, 0.2
      %v5997 = vmul.f32 %v5965, 0.2
      %v5998 = vmul.f32 %v5966, 0.2
      %v5999 = vmul.f32 %v5967, 0.2
      %v6000 = vmul.f32 %v5968, 0.2
      %v6001 = vmul.f32 %v5969, 0.2
      %v6002 = vmul.f32 %v5970, 0.2
      %v6003 = vmul.f32 %v5971, 0.2
      %v6004 = vmul.f32 %v5972, 0.2
      %v6005 = vmul.f32 %v5973, 0.2
      %v6006 = vmul.f32 %v5974, 0.2
      %v6007 = vsel %vm5975, %v5959, %v5991
      %v6008 = vsel %vm5976, %v5960, %v5992
      %v6009 = vsel %vm5977, %v5961, %v5993
      %v6010 = vsel %vm5978, %v5962, %v5994
      %v6011 = vsel %vm5979, %v5963, %v5995
      %v6012 = vsel %vm5980, %v5964, %v5996
      %v6013 = vsel %vm5981, %v5965, %v5997
      %v6014 = vsel %vm5982, %v5966, %v5998
      %v6015 = vsel %vm5983, %v5967, %v5999
      %v6016 = vsel %vm5984, %v5968, %v6000
      %v6017 = vsel %vm5985, %v5969, %v6001
      %v6018 = vsel %vm5986, %v5970, %v6002
      %v6019 = vsel %vm5987, %v5971, %v6003
      %v6020 = vsel %vm5988, %v5972, %v6004
      %v6021 = vsel %vm5989, %v5973, %v6005
      %v6022 = vsel %vm5990, %v5974, %v6006
      %v6023 = vsel %vm5498, 1, 0
      %v6024 = vsel %vm5499, 1, 0
      %vm6025 = vcmp.eq.s32.totalorder %v6023, 1
      %vm6026 = vcmp.eq.s32.totalorder %v6024, 1
      %v6027 = vsel %vm6025, %v6007, -1e+30
      %v6028 = vsel %vm6026, %v6008, -1e+30
      %v6029 = vsel %vm6025, %v6009, -1e+30
      %v6030 = vsel %vm6026, %v6010, -1e+30
      %v6031 = vsel %vm6025, %v6011, -1e+30
      %v6032 = vsel %vm6026, %v6012, -1e+30
      %v6033 = vsel %vm6025, %v6013, -1e+30
      %v6034 = vsel %vm6026, %v6014, -1e+30
      %v6035 = vsel %vm6025, %v6015, -1e+30
      %v6036 = vsel %vm6026, %v6016, -1e+30
      %v6037 = vsel %vm6025, %v6017, -1e+30
      %v6038 = vsel %vm6026, %v6018, -1e+30
      %v6039 = vsel %vm6025, %v6019, -1e+30
      %v6040 = vsel %vm6026, %v6020, -1e+30
      %v6041 = vsel %vm6025, %v6021, -1e+30
      %v6042 = vsel %vm6026, %v6022, -1e+30
      %vm6043 = vcmask 130048
      %v6044 = vsel %vm6043, %v6027, -inf
      %6045 = vmax.xlane.f32.xlu0 %v6044
      %v6046 = vpop.xlane.xlu0 %6045
      %v6047 = vsel %vm6043, %v6028, -inf
      %6048 = vmax.xlane.f32.xlu0 %v6047
      %v6049 = vpop.xlane.xlu0 %6048
      %v6050 = vsel %vm6043, %v6029, -inf
      %6051 = vmax.xlane.f32.xlu0 %v6050
      %v6052 = vpop.xlane.xlu0 %6051
      %v6053 = vsel %vm6043, %v6030, -inf
      %6054 = vmax.xlane.f32.xlu0 %v6053
      %v6055 = vpop.xlane.xlu0 %6054
      %v6056 = vsel %vm6043, %v6031, -inf
      %6057 = vmax.xlane.f32.xlu0 %v6056
      %v6058 = vpop.xlane.xlu0 %6057
      %v6059 = vsel %vm6043, %v6032, -inf
      %6060 = vmax.xlane.f32.xlu0 %v6059
      %v6061 = vpop.xlane.xlu0 %6060
      %v6062 = vsel %vm6043, %v6033, -inf
      %6063 = vmax.xlane.f32.xlu0 %v6062
      %v6064 = vpop.xlane.xlu0 %6063
      %v6065 = vsel %vm6043, %v6034, -inf
      %6066 = vmax.xlane.f32.xlu0 %v6065
      %v6067 = vpop.xlane.xlu0 %6066
      %v6068 = vsel %vm6043, %v6035, -inf
      %6069 = vmax.xlane.f32.xlu0 %v6068
      %v6070 = vpop.xlane.xlu0 %6069
      %v6071 = vsel %vm6043, %v6036, -inf
      %6072 = vmax.xlane.f32.xlu0 %v6071
      %v6073 = vpop.xlane.xlu0 %6072
      %v6074 = vsel %vm6043, %v6037, -inf
      %6075 = vmax.xlane.f32.xlu0 %v6074
      %v6076 = vpop.xlane.xlu0 %6075
      %v6077 = vsel %vm6043, %v6038, -inf
      %6078 = vmax.xlane.f32.xlu0 %v6077
      %v6079 = vpop.xlane.xlu0 %6078
      %v6080 = vsel %vm6043, %v6039, -inf
      %6081 = vmax.xlane.f32.xlu0 %v6080
      %v6082 = vpop.xlane.xlu0 %6081
      %v6083 = vsel %vm6043, %v6040, -inf
      %6084 = vmax.xlane.f32.xlu0 %v6083
      %v6085 = vpop.xlane.xlu0 %6084
      %v6086 = vsel %vm6043, %v6041, -inf
      %6087 = vmax.xlane.f32.xlu0 %v6086
      %v6088 = vpop.xlane.xlu0 %6087
      %v6089 = vsel %vm6043, %v6042, -inf
      %6090 = vmax.xlane.f32.xlu0 %v6089
      %v6091 = vpop.xlane.xlu0 %6090
      %v6092 = vsub.f32 %v6027, %v6046
      %v6093 = vsub.f32 %v6028, %v6049
      %v6094 = vsub.f32 %v6029, %v6052
      %v6095 = vsub.f32 %v6030, %v6055
      %v6096 = vsub.f32 %v6031, %v6058
      %v6097 = vsub.f32 %v6032, %v6061
      %v6098 = vsub.f32 %v6033, %v6064
      %v6099 = vsub.f32 %v6034, %v6067
      %v6100 = vsub.f32 %v6035, %v6070
      %v6101 = vsub.f32 %v6036, %v6073
      %v6102 = vsub.f32 %v6037, %v6076
      %v6103 = vsub.f32 %v6038, %v6079
      %v6104 = vsub.f32 %v6039, %v6082
      %v6105 = vsub.f32 %v6040, %v6085
      %v6106 = vsub.f32 %v6041, %v6088
      %v6107 = vsub.f32 %v6042, %v6091
      %v6108 = vmul.f32 %v6092, 1.442695
      %v6109 = vpow.pop %v6108
      %v6110 = vmul.f32 %v6093, 1.442695
      %v6111 = vpow.pop %v6110
      %v6112 = vmul.f32 %v6094, 1.442695
      %v6113 = vpow.pop %v6112
      %v6114 = vmul.f32 %v6095, 1.442695
      %v6115 = vpow.pop %v6114
      %v6116 = vmul.f32 %v6096, 1.442695
      %v6117 = vpow.pop %v6116
      %v6118 = vmul.f32 %v6097, 1.442695
      %v6119 = vpow.pop %v6118
      %v6120 = vmul.f32 %v6098, 1.442695
      %v6121 = vpow.pop %v6120
      %v6122 = vmul.f32 %v6099, 1.442695
      %v6123 = vpow.pop %v6122
      %v6124 = vmul.f32 %v6100, 1.442695
      %v6125 = vpow.pop %v6124
      %v6126 = vmul.f32 %v6101, 1.442695
      %v6127 = vpow.pop %v6126
      %v6128 = vmul.f32 %v6102, 1.442695
      %v6129 = vpow.pop %v6128
      %v6130 = vmul.f32 %v6103, 1.442695
      %v6131 = vpow.pop %v6130
      %v6132 = vmul.f32 %v6104, 1.442695
      %v6133 = vpow.pop %v6132
      %v6134 = vmul.f32 %v6105, 1.442695
      %v6135 = vpow.pop %v6134
      %v6136 = vmul.f32 %v6106, 1.442695
      %v6137 = vpow.pop %v6136
      %v6138 = vmul.f32 %v6107, 1.442695
      %v6139 = vpow.pop %v6138
      %v6140 = vsel %vm6043, %v6109, 0.0
      %6141 = vadd.xlane.f32.xlu0 %v6140
      %v6142 = vpop.xlane.xlu0 %6141
      %v6143 = vsel %vm6043, %v6111, 0.0
      %6144 = vadd.xlane.f32.xlu0 %v6143
      %v6145 = vpop.xlane.xlu0 %6144
      %v6146 = vsel %vm6043, %v6113, 0.0
      %6147 = vadd.xlane.f32.xlu0 %v6146
      %v6148 = vpop.xlane.xlu0 %6147
      %v6149 = vsel %vm6043, %v6115, 0.0
      %6150 = vadd.xlane.f32.xlu0 %v6149
      %v6151 = vpop.xlane.xlu0 %6150
      %v6152 = vsel %vm6043, %v6117, 0.0
      %6153 = vadd.xlane.f32.xlu0 %v6152
      %v6154 = vpop.xlane.xlu0 %6153
      %v6155 = vsel %vm6043, %v6119, 0.0
      %6156 = vadd.xlane.f32.xlu0 %v6155
      %v6157 = vpop.xlane.xlu0 %6156
      %v6158 = vsel %vm6043, %v6121, 0.0
      %6159 = vadd.xlane.f32.xlu0 %v6158
      %v6160 = vpop.xlane.xlu0 %6159
      %v6161 = vsel %vm6043, %v6123, 0.0
      %6162 = vadd.xlane.f32.xlu0 %v6161
      %v6163 = vpop.xlane.xlu0 %6162
      %v6164 = vsel %vm6043, %v6125, 0.0
      %6165 = vadd.xlane.f32.xlu0 %v6164
      %v6166 = vpop.xlane.xlu0 %6165
      %v6167 = vsel %vm6043, %v6127, 0.0
      %6168 = vadd.xlane.f32.xlu0 %v6167
      %v6169 = vpop.xlane.xlu0 %6168
      %v6170 = vsel %vm6043, %v6129, 0.0
      %6171 = vadd.xlane.f32.xlu0 %v6170
      %v6172 = vpop.xlane.xlu0 %6171
      %v6173 = vsel %vm6043, %v6131, 0.0
      %6174 = vadd.xlane.f32.xlu0 %v6173
      %v6175 = vpop.xlane.xlu0 %6174
      %v6176 = vsel %vm6043, %v6133, 0.0
      %6177 = vadd.xlane.f32.xlu0 %v6176
      %v6178 = vpop.xlane.xlu0 %6177
      %v6179 = vsel %vm6043, %v6135, 0.0
      %6180 = vadd.xlane.f32.xlu0 %v6179
      %v6181 = vpop.xlane.xlu0 %6180
      %v6182 = vsel %vm6043, %v6137, 0.0
      %6183 = vadd.xlane.f32.xlu0 %v6182
      %v6184 = vpop.xlane.xlu0 %6183
      %v6185 = vsel %vm6043, %v6139, 0.0
      %6186 = vadd.xlane.f32.xlu0 %v6185
      %v6187 = vpop.xlane.xlu0 %6186
      %v6188 = vrcp.pop %v6142
      %v6189 = vrcp.pop %v6145
      %v6190 = vrcp.pop %v6148
      %v6191 = vrcp.pop %v6151
      %v6192 = vrcp.pop %v6154
      %v6193 = vrcp.pop %v6157
      %v6194 = vrcp.pop %v6160
      %v6195 = vrcp.pop %v6163
      %v6196 = vrcp.pop %v6166
      %v6197 = vrcp.pop %v6169
      %v6198 = vrcp.pop %v6172
      %v6199 = vrcp.pop %v6175
      %v6200 = vrcp.pop %v6178
      %v6201 = vrcp.pop %v6181
      %v6202 = vrcp.pop %v6184
      %v6203 = vrcp.pop %v6187
      %v6204 = vmul.f32 %v6109, %v6188
      %v6205 = vmul.f32 %v6111, %v6189
      %v6206 = vmul.f32 %v6113, %v6190
      %v6207 = vmul.f32 %v6115, %v6191
      %v6208 = vmul.f32 %v6117, %v6192
      %v6209 = vmul.f32 %v6119, %v6193
      %v6210 = vmul.f32 %v6121, %v6194
      %v6211 = vmul.f32 %v6123, %v6195
      %v6212 = vmul.f32 %v6125, %v6196
      %v6213 = vmul.f32 %v6127, %v6197
      %v6214 = vmul.f32 %v6129, %v6198
      %v6215 = vmul.f32 %v6131, %v6199
      %v6216 = vmul.f32 %v6133, %v6200
      %v6217 = vmul.f32 %v6135, %v6201
      %v6218 = vmul.f32 %v6137, %v6202
      %v6219 = vmul.f32 %v6139, %v6203
      %v6221 = vsel %vm6043, %v6204, 0
      %v6224 = vsel %vm6043, %v6205, 0
      %v6227 = vsel %vm6043, %v6206, 0
      %v6230 = vsel %vm6043, %v6207, 0
      %v6233 = vsel %vm6043, %v6208, 0
      %v6236 = vsel %vm6043, %v6209, 0
      %v6239 = vsel %vm6043, %v6210, 0
      %v6242 = vsel %vm6043, %v6211, 0
      %v6245 = vsel %vm6043, %v6212, 0
      %v6248 = vsel %vm6043, %v6213, 0
      %v6251 = vsel %vm6043, %v6214, 0
      %v6254 = vsel %vm6043, %v6215, 0
      %v6257 = vsel %vm6043, %v6216, 0
      %v6260 = vsel %vm6043, %v6217, 0
      %v6263 = vsel %vm6043, %v6218, 0
      %v6266 = vsel %vm6043, %v6219, 0
      %6268 = vmatprep.subr.mxu0 0.0
      %6269 = vmatpush1.msra.mxu0 %v5619
      %6270 = vmatprep.subr.mxu0 0.0
      %6271 = vmatpush1.msra.mxu0 %v5624
      %6272 = vmatprep.subr.mxu0 0.0
      %6273 = vmatpush1.msra.mxu0 0.0
      %6274 = vmatprep.subr.mxu0 0.0
      %6275 = vmatpush1.msra.mxu0 0.0
      %6276 = vmatprep.subr.mxu0 0.0
      %6277 = vmatpush1.msra.mxu0 0.0
      %6278 = vmatprep.subr.mxu0 0.0
      %6279 = vmatpush1.msra.mxu0 0.0
      %6280 = vmatprep.subr.mxu0 0.0
      %6281 = vmatpush1.msra.mxu0 0.0
      %6282 = vmatprep.subr.mxu0 0.0
      %6283 = vmatpush1.msra.mxu0 0.0
      %6284 = vmatprep.subr.mxu0 0.0
      %6285 = vmatpush1.msra.mxu0 0.0
      %6286 = vmatprep.subr.mxu0 0.0
      %6287 = vmatpush1.msra.mxu0 0.0
      %6288 = vmatprep.subr.mxu0 0.0
      %6289 = vmatpush1.msra.mxu0 0.0
      %6290 = vmatprep.subr.mxu0 0.0
      %6291 = vmatpush1.msra.mxu0 0.0
      %6292 = vmatprep.subr.mxu0 0.0
      %6293 = vmatpush1.msra.mxu0 0.0
      %6294 = vmatprep.subr.mxu0 0.0
      %6295 = vmatpush1.msra.mxu0 0.0
      %6296 = vmatprep.subr.mxu0 0.0
      %6297 = vmatpush1.msra.mxu0 0.0
      %6298 = vmatprep.subr.mxu0 0.0
      %6299 = vmatpush1.msra.mxu0 0.0
      %6300 = vmatprep.subr.mxu0 0.0
      %6301 = vmatpush1.msra.mxu0 0.0
      %6302 = vmatprep.subr.mxu0 0.0
      %6303 = vmatpush1.msra.mxu0 0.0
      %6304 = vmatprep.subr.mxu0 0.0
      %6305 = vmatpush1.msra.mxu0 0.0
      %6306 = vmatprep.subr.mxu0 0.0
      %6307 = vmatpush1.msra.mxu0 0.0
      %6308 = vmatprep.subr.mxu0 0.0
      %6309 = vmatpush1.msra.mxu0 0.0
      %6310 = vmatprep.subr.mxu0 0.0
      %6311 = vmatpush1.msra.mxu0 0.0
      %6312 = vmatprep.subr.mxu0 0.0
      %6313 = vmatpush1.msra.mxu0 0.0
      %6314 = vmatprep.subr.mxu0 0.0
      %6315 = vmatpush1.msra.mxu0 0.0
      %6316 = vmatprep.subr.mxu0 0.0
      %6317 = vmatpush1.msra.mxu0 0.0
      %6318 = vmatprep.subr.mxu0 0.0
      %6319 = vmatpush1.msra.mxu0 0.0
      %6320 = vmatprep.subr.mxu0 0.0
      %6321 = vmatpush1.msra.mxu0 0.0
      %6322 = vmatprep.subr.mxu0 0.0
      %6323 = vmatpush1.msra.mxu0 0.0
      %6324 = vmatprep.subr.mxu0 0.0
      %6325 = vmatpush1.msra.mxu0 0.0
      %6326 = vmatprep.subr.mxu0 0.0
      %6327 = vmatpush1.msra.mxu0 0.0
      %6328 = vmatprep.subr.mxu0 0.0
      %6329 = vmatpush1.msra.mxu0 0.0
      %6330 = vmatprep.subr.mxu0 0.0
      %6331 = vmatpush1.msra.mxu0 0.0
      %6332 = vmatprep.mubr.f32.mxu0 0.0
      %6333 = vmatmul.mubr.f32.gmra.mrb[0].mxu0 %v6221
      %v6334 = vpop.f32.mrb[0].mxu0
      %v6335 = vadd.f32 0.0, %v6334
      %v6336 = vpop.f32.mrb[0].mxu0
      %6337 = vmatprep.mubr.f32.mxu0 0.0
      %6338 = vmatmul.mubr.f32.gmra.mrb[0].mxu0 %v6224
      %v6339 = vpop.f32.mrb[0].mxu0
      %v6340 = vadd.f32 0.0, %v6339
      %v6341 = vpop.f32.mrb[0].mxu0
      %6342 = vmatprep.mubr.f32.mxu0 0.0
      %6343 = vmatmul.mubr.f32.gmra.mrb[0].mxu0 %v6227
      %v6344 = vpop.f32.mrb[0].mxu0
      %v6345 = vadd.f32 0.0, %v6344
      %v6346 = vpop.f32.mrb[0].mxu0
      %6347 = vmatprep.mubr.f32.mxu0 0.0
      %6348 = vmatmul.mubr.f32.gmra.mrb[0].mxu0 %v6230
      %v6349 = vpop.f32.mrb[0].mxu0
      %v6350 = vadd.f32 0.0, %v6349
      %v6351 = vpop.f32.mrb[0].mxu0
      %6352 = vmatprep.mubr.f32.mxu0 0.0
      %6353 = vmatmul.mubr.f32.gmra.mrb[0].mxu0 %v6233
      %v6354 = vpop.f32.mrb[0].mxu0
      %v6355 = vadd.f32 0.0, %v6354
      %v6356 = vpop.f32.mrb[0].mxu0
      %6357 = vmatprep.mubr.f32.mxu0 0.0
      %6358 = vmatmul.mubr.f32.gmra.mrb[0].mxu0 %v6236
      %v6359 = vpop.f32.mrb[0].mxu0
      %v6360 = vadd.f32 0.0, %v6359
      %v6361 = vpop.f32.mrb[0].mxu0
      %6362 = vmatprep.mubr.f32.mxu0 0.0
      %6363 = vmatmul.mubr.f32.gmra.mrb[0].mxu0 %v6239
      %v6364 = vpop.f32.mrb[0].mxu0
      %v6365 = vadd.f32 0.0, %v6364
      %v6366 = vpop.f32.mrb[0].mxu0
      %6367 = vmatprep.mubr.f32.mxu0 0.0
      %6368 = vmatmul.mubr.f32.gmra.mrb[0].mxu0 %v6242
      %v6369 = vpop.f32.mrb[0].mxu0
      %v6370 = vadd.f32 0.0, %v6369
      %v6371 = vpop.f32.mrb[0].mxu0
      %6372 = vmatprep.mubr.f32.mxu0 0.0
      %6373 = vmatmul.mubr.f32.gmra.mrb[0].mxu0 %v6245
      %v6374 = vpop.f32.mrb[0].mxu0
      %v6375 = vadd.f32 0.0, %v6374
      %v6376 = vpop.f32.mrb[0].mxu0
      %6377 = vmatprep.mubr.f32.mxu0 0.0
      %6378 = vmatmul.mubr.f32.gmra.mrb[0].mxu0 %v6248
      %v6379 = vpop.f32.mrb[0].mxu0
      %v6380 = vadd.f32 0.0, %v6379
      %v6381 = vpop.f32.mrb[0].mxu0
      %6382 = vmatprep.mubr.f32.mxu0 0.0
      %6383 = vmatmul.mubr.f32.gmra.mrb[0].mxu0 %v6251
      %v6384 = vpop.f32.mrb[0].mxu0
      %v6385 = vadd.f32 0.0, %v6384
      %v6386 = vpop.f32.mrb[0].mxu0
      %6387 = vmatprep.mubr.f32.mxu0 0.0
      %6388 = vmatmul.mubr.f32.gmra.mrb[0].mxu0 %v6254
      %v6389 = vpop.f32.mrb[0].mxu0
      %v6390 = vadd.f32 0.0, %v6389
      %v6391 = vpop.f32.mrb[0].mxu0
      %6392 = vmatprep.mubr.f32.mxu0 0.0
      %6393 = vmatmul.mubr.f32.gmra.mrb[0].mxu0 %v6257
      %v6394 = vpop.f32.mrb[0].mxu0
      %v6395 = vadd.f32 0.0, %v6394
      %v6396 = vpop.f32.mrb[0].mxu0
      %6397 = vmatprep.mubr.f32.mxu0 0.0
      %6398 = vmatmul.mubr.f32.gmra.mrb[0].mxu0 %v6260
      %v6399 = vpop.f32.mrb[0].mxu0
      %v6400 = vadd.f32 0.0, %v6399
      %v6401 = vpop.f32.mrb[0].mxu0
      %6402 = vmatprep.mubr.f32.mxu0 0.0
      %6403 = vmatmul.mubr.f32.gmra.mrb[0].mxu0 %v6263
      %v6404 = vpop.f32.mrb[0].mxu0
      %v6405 = vadd.f32 0.0, %v6404
      %v6406 = vpop.f32.mrb[0].mxu0
      %6407 = vmatprep.mubr.f32.mxu0 0.0
      %6408 = vmatmul.mubr.f32.gmra.mrb[0].mxu0 %v6266
      %v6409 = vpop.f32.mrb[0].mxu0
      %v6410 = vadd.f32 0.0, %v6409
      %v6411 = vpop.f32.mrb[0].mxu0
      %6412 = vdwg.mxu0
      %v6414 = vcombine.high %v846, %v846
      %v6416 = vunpack.c.l.s4 1966171168
      %v6417 = vunpack.c.0.s8 %v6416
      %v6418 = vlaneseq
      %v6419 = vshrl.u32 %v6418, 7
      %v6420 = vsub.s32 %v6417, %v6419
      %v6421 = vrot.slane %v846, %v6420
      %v6423 = vunpack.c.l.s4 1966171168
      %v6424 = vunpack.c.0.s8 %v6423
      %v6425 = vlaneseq
      %v6426 = vshrl.u32 %v6425, 7
      %v6427 = vsub.s32 %v6424, %v6426
      %v6428 = vrot.slane %v6414, %v6427
      %v6429 = vcombine.high %v6421, %v6421
      %v6430 = vcombine.high %v6428, %v6428
      %v6432 = vunpack.c.l.s4 1966171168
      %v6433 = vunpack.c.0.s8 %v6432
      %v6434 = vlaneseq
      %v6435 = vshrl.u32 %v6434, 7
      %v6436 = vsub.s32 %v6433, %v6435
      %v6437 = vrot.slane %v6421, %v6436
      %v6439 = vunpack.c.l.s4 1966171168
      %v6440 = vunpack.c.0.s8 %v6439
      %v6441 = vlaneseq
      %v6442 = vshrl.u32 %v6441, 7
      %v6443 = vsub.s32 %v6440, %v6442
      %v6444 = vrot.slane %v6428, %v6443
      %v6446 = vunpack.c.l.s4 1966171168
      %v6447 = vunpack.c.0.s8 %v6446
      %v6448 = vlaneseq
      %v6449 = vshrl.u32 %v6448, 7
      %v6450 = vsub.s32 %v6447, %v6449
      %v6451 = vrot.slane %v6429, %v6450
      %v6453 = vunpack.c.l.s4 1966171168
      %v6454 = vunpack.c.0.s8 %v6453
      %v6455 = vlaneseq
      %v6456 = vshrl.u32 %v6455, 7
      %v6457 = vsub.s32 %v6454, %v6456
      %v6458 = vrot.slane %v6430, %v6457
      %v6459 = vcombine.high %v6437, %v6437
      %v6460 = vcombine.high %v6444, %v6444
      %v6461 = vcombine.high %v6451, %v6451
      %v6462 = vcombine.high %v6458, %v6458
      %v6463 = vlaneseq
      %v6464 = vshrl.u32 %v6463, 7
      %v6465 = vsub.s32 0, %v6464
      %v6466 = vrot.slane %v6437, %v6465
      %v6467 = vlaneseq
      %v6468 = vshrl.u32 %v6467, 7
      %v6469 = vsub.s32 0, %v6468
      %v6470 = vrot.slane %v6451, %v6469
      %v6471 = vlaneseq
      %v6472 = vshrl.u32 %v6471, 7
      %v6473 = vsub.s32 0, %v6472
      %v6474 = vrot.slane %v6459, %v6473
      %v6475 = vlaneseq
      %v6476 = vshrl.u32 %v6475, 7
      %v6477 = vsub.s32 0, %v6476
      %v6478 = vrot.slane %v6461, %v6477
      %v6479 = vlaneseq
      %v6480 = vshrl.u32 %v6479, 7
      %v6481 = vsub.s32 0, %v6480
      %v6482 = vrot.slane %v6444, %v6481
      %v6483 = vlaneseq
      %v6484 = vshrl.u32 %v6483, 7
      %v6485 = vsub.s32 0, %v6484
      %v6486 = vrot.slane %v6458, %v6485
      %v6487 = vlaneseq
      %v6488 = vshrl.u32 %v6487, 7
      %v6489 = vsub.s32 0, %v6488
      %v6490 = vrot.slane %v6460, %v6489
      %v6491 = vlaneseq
      %v6492 = vshrl.u32 %v6491, 7
      %v6493 = vsub.s32 0, %v6492
      %v6494 = vrot.slane %v6462, %v6493
      %v6503 = vmul.f32 %v6335, %v6466
      %v6504 = vmul.f32 %v6340, %v6466
      %v6505 = vmul.f32 %v6345, %v6470
      %v6506 = vmul.f32 %v6350, %v6470
      %v6507 = vmul.f32 %v6355, %v6474
      %v6508 = vmul.f32 %v6360, %v6474
      %v6509 = vmul.f32 %v6365, %v6478
      %v6510 = vmul.f32 %v6370, %v6478
      %v6511 = vmul.f32 %v6375, %v6482
      %v6512 = vmul.f32 %v6380, %v6482
      %v6513 = vmul.f32 %v6385, %v6486
      %v6514 = vmul.f32 %v6390, %v6486
      %v6515 = vmul.f32 %v6395, %v6490
      %v6516 = vmul.f32 %v6400, %v6490
      %v6517 = vmul.f32 %v6405, %v6494
      %v6518 = vmul.f32 %v6410, %v6494
      %v6519 = vsel %vm1099, %v6503, 0.0
      %v6520 = vsel %vm1099, %v6505, 0.0
      %v6521 = vadd.f32 %v6519, %v6520
      %v6522 = vsel %vm1099, %v6507, 0.0
      %v6523 = vadd.f32 %v6521, %v6522
      %v6524 = vsel %vm1099, %v6509, 0.0
      %v6525 = vadd.f32 %v6523, %v6524
      %v6526 = vsel %vm1099, %v6511, 0.0
      %v6527 = vadd.f32 %v6525, %v6526
      %v6528 = vsel %vm1099, %v6513, 0.0
      %v6529 = vadd.f32 %v6527, %v6528
      %v6530 = vsel %vm1099, %v6515, 0.0
      %v6531 = vadd.f32 %v6529, %v6530
      %v6532 = vsel %vm1099, %v6517, 0.0
      %v6533 = vadd.f32 %v6531, %v6532
      %v6534 = vsel %vm1099, %v6504, 0.0
      %v6535 = vsel %vm1099, %v6506, 0.0
      %v6536 = vadd.f32 %v6534, %v6535
      %v6537 = vsel %vm1099, %v6508, 0.0
      %v6538 = vadd.f32 %v6536, %v6537
      %v6539 = vsel %vm1099, %v6510, 0.0
      %v6540 = vadd.f32 %v6538, %v6539
      %v6541 = vsel %vm1099, %v6512, 0.0
      %v6542 = vadd.f32 %v6540, %v6541
      %v6543 = vsel %vm1099, %v6514, 0.0
      %v6544 = vadd.f32 %v6542, %v6543
      %v6545 = vsel %vm1099, %v6516, 0.0
      %v6546 = vadd.f32 %v6544, %v6545
      %v6547 = vsel %vm1099, %v6518, 0.0
      %v6548 = vadd.f32 %v6546, %v6547
      %v6549 = vld [vmem:[%s21] sm:$0x1]
      %v6551 = vlaneseq
      %v6552 = vshrl.u32 %v6551, 7
      %v6553 = vsub.s32 0, %v6552
      %v6554 = vrot.slane %v6549, %v6553
      %v6556 = vadd.f32 %v6533, %v6554
      %v6557 = vadd.f32 %v6548, %v6554
      %vm6558 = vcmp.gt.f32.partialorder %v6556, 0.0
      %vm6559 = vcmp.gt.f32.partialorder %v6557, 0.0
      %v6560 = vmin.f32 %v6556, 0.0
      %v6561 = vmin.f32 %v6557, 0.0
      %v6562 = vmul.f32 %v6560, 1.442695
      %v6563 = vpow.pop %v6562
      %v6564 = vmul.f32 %v6561, 1.442695
      %v6565 = vpow.pop %v6564
      %v6566 = vsub.f32 %v6563, 1.0
      %v6567 = vsub.f32 %v6565, 1.0
      %v6568 = vsel %vm6558, %v6556, %v6566
      %v6569 = vsel %vm6559, %v6557, %v6567
      %v6570 = vld [vmem:[%s22] sm:$0xff]
      %v6571 = vld [vmem:[%s22 + $0x8] sm:$0xff]
      %v6572 = vld [vmem:[%s22 + $0x10] sm:$0xff]
      %v6573 = vld [vmem:[%s22 + $0x18] sm:$0xff]
      %v6575 = vsel %vm1099, %v6568, 0
      %v6578 = vsel %vm1099, %v6569, 0
      %6580 = vmatprep.subr.mxu0 0.0
      %6581 = vmatpush1.msra.mxu0 %v6570
      %6582 = vmatprep.subr.mxu0 0.0
      %6583 = vmatpush1.msra.mxu0 %v6571
      %6584 = vmatprep.subr.mxu0 0.0
      %6585 = vmatpush1.msra.mxu0 %v6572
      %6586 = vmatprep.subr.mxu0 0.0
      %6587 = vmatpush1.msra.mxu0 %v6573
      %6588 = vmatprep.subr.mxu0 0.0
      %6589 = vmatpush1.msra.mxu0 0.0
      %6590 = vmatprep.subr.mxu0 0.0
      %6591 = vmatpush1.msra.mxu0 0.0
      %6592 = vmatprep.subr.mxu0 0.0
      %6593 = vmatpush1.msra.mxu0 0.0
      %6594 = vmatprep.subr.mxu0 0.0
      %6595 = vmatpush1.msra.mxu0 0.0
      %6596 = vmatprep.subr.mxu0 0.0
      %6597 = vmatpush1.msra.mxu0 0.0
      %6598 = vmatprep.subr.mxu0 0.0
      %6599 = vmatpush1.msra.mxu0 0.0
      %6600 = vmatprep.subr.mxu0 0.0
      %6601 = vmatpush1.msra.mxu0 0.0
      %6602 = vmatprep.subr.mxu0 0.0
      %6603 = vmatpush1.msra.mxu0 0.0
      %6604 = vmatprep.subr.mxu0 0.0
      %6605 = vmatpush1.msra.mxu0 0.0
      %6606 = vmatprep.subr.mxu0 0.0
      %6607 = vmatpush1.msra.mxu0 0.0
      %6608 = vmatprep.subr.mxu0 0.0
      %6609 = vmatpush1.msra.mxu0 0.0
      %6610 = vmatprep.subr.mxu0 0.0
      %6611 = vmatpush1.msra.mxu0 0.0
      %6612 = vmatprep.subr.mxu0 0.0
      %6613 = vmatpush1.msra.mxu0 0.0
      %6614 = vmatprep.subr.mxu0 0.0
      %6615 = vmatpush1.msra.mxu0 0.0
      %6616 = vmatprep.subr.mxu0 0.0
      %6617 = vmatpush1.msra.mxu0 0.0
      %6618 = vmatprep.subr.mxu0 0.0
      %6619 = vmatpush1.msra.mxu0 0.0
      %6620 = vmatprep.subr.mxu0 0.0
      %6621 = vmatpush1.msra.mxu0 0.0
      %6622 = vmatprep.subr.mxu0 0.0
      %6623 = vmatpush1.msra.mxu0 0.0
      %6624 = vmatprep.subr.mxu0 0.0
      %6625 = vmatpush1.msra.mxu0 0.0
      %6626 = vmatprep.subr.mxu0 0.0
      %6627 = vmatpush1.msra.mxu0 0.0
      %6628 = vmatprep.subr.mxu0 0.0
      %6629 = vmatpush1.msra.mxu0 0.0
      %6630 = vmatprep.subr.mxu0 0.0
      %6631 = vmatpush1.msra.mxu0 0.0
      %6632 = vmatprep.subr.mxu0 0.0
      %6633 = vmatpush1.msra.mxu0 0.0
      %6634 = vmatprep.subr.mxu0 0.0
      %6635 = vmatpush1.msra.mxu0 0.0
      %6636 = vmatprep.subr.mxu0 0.0
      %6637 = vmatpush1.msra.mxu0 0.0
      %6638 = vmatprep.subr.mxu0 0.0
      %6639 = vmatpush1.msra.mxu0 0.0
      %6640 = vmatprep.subr.mxu0 0.0
      %6641 = vmatpush1.msra.mxu0 0.0
      %6642 = vmatprep.subr.mxu0 0.0
      %6643 = vmatpush1.msra.mxu0 0.0
      %6644 = vmatprep.mubr.f32.mxu0 0.0
      %6645 = vmatmul.mubr.f32.gmra.mrb[0].mxu0 %v6575
      %v6646 = vpop.f32.mrb[0].mxu0
      %v6647 = vadd.f32 0.0, %v6646
      %v6648 = vpop.f32.mrb[0].mxu0
      %6649 = vmatprep.mubr.f32.mxu0 0.0
      %6650 = vmatmul.mubr.f32.gmra.mrb[0].mxu0 %v6578
      %v6651 = vpop.f32.mrb[0].mxu0
      %v6652 = vadd.f32 0.0, %v6651
      %v6653 = vpop.f32.mrb[0].mxu0
      %6654 = vdwg.mxu0
      %v6655 = vld [vmem:[%s23] sm:$0x1]
      %v6657 = vsel %vm1099, %v6655, 0
      %v6660 = vsel %vm1099, %v6647, 0
      %v6663 = vsel %vm1099, %v6652, 0
      %6665 = vmatprep.subr.mxu0 0.0
      %6666 = vmatpush1.xpose.msra.mxu0 %v6660
      %6667 = vmatprep.subr.mxu0 0.0
      %6668 = vmatpush1.xpose.msra.mxu0 %v6663
      %6669 = vmatprep.subr.mxu0 0.0
      %6670 = vmatpush1.xpose.msra.mxu0 0.0
      %6671 = vmatprep.subr.mxu0 0.0
      %6672 = vmatpush1.xpose.msra.mxu0 0.0
      %6673 = vmatprep.subr.mxu0 0.0
      %6674 = vmatpush1.xpose.msra.mxu0 0.0
      %6675 = vmatprep.subr.mxu0 0.0
      %6676 = vmatpush1.xpose.msra.mxu0 0.0
      %6677 = vmatprep.subr.mxu0 0.0
      %6678 = vmatpush1.xpose.msra.mxu0 0.0
      %6679 = vmatprep.subr.mxu0 0.0
      %6680 = vmatpush1.xpose.msra.mxu0 0.0
      %6681 = vmatprep.subr.mxu0 0.0
      %6682 = vmatpush1.xpose.msra.mxu0 0.0
      %6683 = vmatprep.subr.mxu0 0.0
      %6684 = vmatpush1.xpose.msra.mxu0 0.0
      %6685 = vmatprep.subr.mxu0 0.0
      %6686 = vmatpush1.xpose.msra.mxu0 0.0
      %6687 = vmatprep.subr.mxu0 0.0
      %6688 = vmatpush1.xpose.msra.mxu0 0.0
      %6689 = vmatprep.subr.mxu0 0.0
      %6690 = vmatpush1.xpose.msra.mxu0 0.0
      %6691 = vmatprep.subr.mxu0 0.0
      %6692 = vmatpush1.xpose.msra.mxu0 0.0
      %6693 = vmatprep.subr.mxu0 0.0
      %6694 = vmatpush1.xpose.msra.mxu0 0.0
      %6695 = vmatprep.subr.mxu0 0.0
      %6696 = vmatpush1.xpose.msra.mxu0 0.0
      %6697 = vmatprep.subr.mxu0 0.0
      %6698 = vmatpush1.xpose.msra.mxu0 0.0
      %6699 = vmatprep.subr.mxu0 0.0
      %6700 = vmatpush1.xpose.msra.mxu0 0.0
      %6701 = vmatprep.subr.mxu0 0.0
      %6702 = vmatpush1.xpose.msra.mxu0 0.0
      %6703 = vmatprep.subr.mxu0 0.0
      %6704 = vmatpush1.xpose.msra.mxu0 0.0
      %6705 = vmatprep.subr.mxu0 0.0
      %6706 = vmatpush1.xpose.msra.mxu0 0.0
      %6707 = vmatprep.subr.mxu0 0.0
      %6708 = vmatpush1.xpose.msra.mxu0 0.0
      %6709 = vmatprep.subr.mxu0 0.0
      %6710 = vmatpush1.xpose.msra.mxu0 0.0
      %6711 = vmatprep.subr.mxu0 0.0
      %6712 = vmatpush1.xpose.msra.mxu0 0.0
      %6713 = vmatprep.subr.mxu0 0.0
      %6714 = vmatpush1.xpose.msra.mxu0 0.0
      %6715 = vmatprep.subr.mxu0 0.0
      %6716 = vmatpush1.xpose.msra.mxu0 0.0
      %6717 = vmatprep.subr.mxu0 0.0
      %6718 = vmatpush1.xpose.msra.mxu0 0.0
      %6719 = vmatprep.subr.mxu0 0.0
      %6720 = vmatpush1.xpose.msra.mxu0 0.0
      %6721 = vmatprep.subr.mxu0 0.0
      %6722 = vmatpush1.xpose.msra.mxu0 0.0
      %6723 = vmatprep.subr.mxu0 0.0
      %6724 = vmatpush1.xpose.msra.mxu0 0.0
      %6725 = vmatprep.subr.mxu0 0.0
      %6726 = vmatpush1.xpose.msra.mxu0 0.0
      %6727 = vmatprep.subr.mxu0 0.0
      %6728 = vmatpush1.xpose.msra.mxu0 0.0
      %6729 = vmatprep.mubr.f32.mxu0 0.0
      %6730 = vmatmul.mubr.f32.gmra.mrb[0].mxu0 %v6657
      %v6731 = vpop.f32.mrb[0].mxu0
      %v6732 = vadd.f32 0.0, %v6731
      %v6733 = vpop.f32.mrb[0].mxu0
      %6734 = vdwg.mxu0
      %v6735 = vld [vmem:[%s24] sm:$0x1]
      %v6737 = vsel %vm1099, %v6735, 0
      %6739 = vmatprep.subr.mxu0 0.0
      %6740 = vmatpush1.xpose.msra.mxu0 %v6660
      %6741 = vmatprep.subr.mxu0 0.0
      %6742 = vmatpush1.xpose.msra.mxu0 %v6663
      %6743 = vmatprep.subr.mxu0 0.0
      %6744 = vmatpush1.xpose.msra.mxu0 0.0
      %6745 = vmatprep.subr.mxu0 0.0
      %6746 = vmatpush1.xpose.msra.mxu0 0.0
      %6747 = vmatprep.subr.mxu0 0.0
      %6748 = vmatpush1.xpose.msra.mxu0 0.0
      %6749 = vmatprep.subr.mxu0 0.0
      %6750 = vmatpush1.xpose.msra.mxu0 0.0
      %6751 = vmatprep.subr.mxu0 0.0
      %6752 = vmatpush1.xpose.msra.mxu0 0.0
      %6753 = vmatprep.subr.mxu0 0.0
      %6754 = vmatpush1.xpose.msra.mxu0 0.0
      %6755 = vmatprep.subr.mxu0 0.0
      %6756 = vmatpush1.xpose.msra.mxu0 0.0
      %6757 = vmatprep.subr.mxu0 0.0
      %6758 = vmatpush1.xpose.msra.mxu0 0.0
      %6759 = vmatprep.subr.mxu0 0.0
      %6760 = vmatpush1.xpose.msra.mxu0 0.0
      %6761 = vmatprep.subr.mxu0 0.0
      %6762 = vmatpush1.xpose.msra.mxu0 0.0
      %6763 = vmatprep.subr.mxu0 0.0
      %6764 = vmatpush1.xpose.msra.mxu0 0.0
      %6765 = vmatprep.subr.mxu0 0.0
      %6766 = vmatpush1.xpose.msra.mxu0 0.0
      %6767 = vmatprep.subr.mxu0 0.0
      %6768 = vmatpush1.xpose.msra.mxu0 0.0
      %6769 = vmatprep.subr.mxu0 0.0
      %6770 = vmatpush1.xpose.msra.mxu0 0.0
      %6771 = vmatprep.subr.mxu0 0.0
      %6772 = vmatpush1.xpose.msra.mxu0 0.0
      %6773 = vmatprep.subr.mxu0 0.0
      %6774 = vmatpush1.xpose.msra.mxu0 0.0
      %6775 = vmatprep.subr.mxu0 0.0
      %6776 = vmatpush1.xpose.msra.mxu0 0.0
      %6777 = vmatprep.subr.mxu0 0.0
      %6778 = vmatpush1.xpose.msra.mxu0 0.0
      %6779 = vmatprep.subr.mxu0 0.0
      %6780 = vmatpush1.xpose.msra.mxu0 0.0
      %6781 = vmatprep.subr.mxu0 0.0
      %6782 = vmatpush1.xpose.msra.mxu0 0.0
      %6783 = vmatprep.subr.mxu0 0.0
      %6784 = vmatpush1.xpose.msra.mxu0 0.0
      %6785 = vmatprep.subr.mxu0 0.0
      %6786 = vmatpush1.xpose.msra.mxu0 0.0
      %6787 = vmatprep.subr.mxu0 0.0
      %6788 = vmatpush1.xpose.msra.mxu0 0.0
      %6789 = vmatprep.subr.mxu0 0.0
      %6790 = vmatpush1.xpose.msra.mxu0 0.0
      %6791 = vmatprep.subr.mxu0 0.0
      %6792 = vmatpush1.xpose.msra.mxu0 0.0
      %6793 = vmatprep.subr.mxu0 0.0
      %6794 = vmatpush1.xpose.msra.mxu0 0.0
      %6795 = vmatprep.subr.mxu0 0.0
      %6796 = vmatpush1.xpose.msra.mxu0 0.0
      %6797 = vmatprep.subr.mxu0 0.0
      %6798 = vmatpush1.xpose.msra.mxu0 0.0
      %6799 = vmatprep.subr.mxu0 0.0
      %6800 = vmatpush1.xpose.msra.mxu0 0.0
      %6801 = vmatprep.subr.mxu0 0.0
      %6802 = vmatpush1.xpose.msra.mxu0 0.0
      %6803 = vmatprep.mubr.f32.mxu0 0.0
      %6804 = vmatmul.mubr.f32.gmra.mrb[0].mxu0 %v6737
      %v6805 = vpop.f32.mrb[0].mxu0
      %v6806 = vadd.f32 0.0, %v6805
      %v6807 = vpop.f32.mrb[0].mxu0
      %6808 = vdwg.mxu0
      %v6809 = vlaneseq
      %v6810 = vshrl.u32 %v6809, 7
      %v6811 = vsub.s32 0, %v6810
      %v6812 = vrot.slane %v6806, %v6811
      %6814 = vbcast.lane.b32.xlu0 %v6812, 256
      %v6815 = vpop.permute.xlu0 %6814
      %s6817 = sor.u32 256, 8
      %6818 = vbcast.lane.b32.xlu0 %v6812, %s6817
      %v6819 = vpop.permute.xlu0 %6818
      %v6820 = vlaneseq
      %v6821 = vshrl.u32 %v6820, 7
      %v6822 = vsub.s32 0, %v6821
      %v6823 = vrot.slane %v6732, %v6822
      %v6824 = vadd.f32 %v6815, %v6823
      %v6825 = vadd.f32 %v6819, %v6823
      %vm6826 = vcmp.gt.f32.partialorder %v6824, 0.0
      %vm6827 = vcmp.gt.f32.partialorder %v6825, 0.0
      %v6828 = vmul.f32 %v6824, 0.2
      %v6829 = vmul.f32 %v6825, 0.2
      %v6830 = vsel %vm6826, %v6824, %v6828
      %v6831 = vsel %vm6827, %v6825, %v6829
      %v6832 = vsel %vm5498, %v6830, -1e+30
      %v6833 = vsel %vm5499, %v6831, -1e+30
      %v6834 = vsel %vm6043, %v6832, -inf
      %6835 = vmax.xlane.f32.xlu0 %v6834
      %v6836 = vpop.xlane.xlu0 %6835
      %v6837 = vsel %vm6043, %v6833, -inf
      %6838 = vmax.xlane.f32.xlu0 %v6837
      %v6839 = vpop.xlane.xlu0 %6838
      %v6840 = vsub.f32 %v6832, %v6836
      %v6841 = vsub.f32 %v6833, %v6839
      %v6842 = vmul.f32 %v6840, 1.442695
      %v6843 = vpow.pop %v6842
      %v6844 = vmul.f32 %v6841, 1.442695
      %v6845 = vpow.pop %v6844
      %v6846 = vsel %vm6043, %v6843, 0.0
      %6847 = vadd.xlane.f32.xlu0 %v6846
      %v6848 = vpop.xlane.xlu0 %6847
      %v6849 = vsel %vm6043, %v6845, 0.0
      %6850 = vadd.xlane.f32.xlu0 %v6849
      %v6851 = vpop.xlane.xlu0 %6850
      %v6852 = vrcp.pop %v6848
      %v6853 = vrcp.pop %v6851
      %v6854 = vmul.f32 %v6843, %v6852
      %v6855 = vmul.f32 %v6845, %v6853
      %v6856 = vld [vmem:[%s25] sm:$0x1]
      %v6858 = vlaneseq
      %v6859 = vshrl.u32 %v6858, 7
      %v6860 = vsub.s32 0, %v6859
      %v6861 = vrot.slane %v6856, %v6860
      %v6864 = vsel %vm6043, %v6854, 0
      %v6867 = vsel %vm6043, %v6855, 0
      %6869 = vmatprep.subr.mxu0 0.0
      %6870 = vmatpush1.msra.mxu0 %v6647
      %6871 = vmatprep.subr.mxu0 0.0
      %6872 = vmatpush1.msra.mxu0 %v6652
      %6873 = vmatprep.subr.mxu0 0.0
      %6874 = vmatpush1.msra.mxu0 0.0
      %6875 = vmatprep.subr.mxu0 0.0
      %6876 = vmatpush1.msra.mxu0 0.0
      %6877 = vmatprep.subr.mxu0 0.0
      %6878 = vmatpush1.msra.mxu0 0.0
      %6879 = vmatprep.subr.mxu0 0.0
      %6880 = vmatpush1.msra.mxu0 0.0
      %6881 = vmatprep.subr.mxu0 0.0
      %6882 = vmatpush1.msra.mxu0 0.0
      %6883 = vmatprep.subr.mxu0 0.0
      %6884 = vmatpush1.msra.mxu0 0.0
      %6885 = vmatprep.subr.mxu0 0.0
      %6886 = vmatpush1.msra.mxu0 0.0
      %6887 = vmatprep.subr.mxu0 0.0
      %6888 = vmatpush1.msra.mxu0 0.0
      %6889 = vmatprep.subr.mxu0 0.0
      %6890 = vmatpush1.msra.mxu0 0.0
      %6891 = vmatprep.subr.mxu0 0.0
      %6892 = vmatpush1.msra.mxu0 0.0
      %6893 = vmatprep.subr.mxu0 0.0
      %6894 = vmatpush1.msra.mxu0 0.0
      %6895 = vmatprep.subr.mxu0 0.0
      %6896 = vmatpush1.msra.mxu0 0.0
      %6897 = vmatprep.subr.mxu0 0.0
      %6898 = vmatpush1.msra.mxu0 0.0
      %6899 = vmatprep.subr.mxu0 0.0
      %6900 = vmatpush1.msra.mxu0 0.0
      %6901 = vmatprep.subr.mxu0 0.0
      %6902 = vmatpush1.msra.mxu0 0.0
      %6903 = vmatprep.subr.mxu0 0.0
      %6904 = vmatpush1.msra.mxu0 0.0
      %6905 = vmatprep.subr.mxu0 0.0
      %6906 = vmatpush1.msra.mxu0 0.0
      %6907 = vmatprep.subr.mxu0 0.0
      %6908 = vmatpush1.msra.mxu0 0.0
      %6909 = vmatprep.subr.mxu0 0.0
      %6910 = vmatpush1.msra.mxu0 0.0
      %6911 = vmatprep.subr.mxu0 0.0
      %6912 = vmatpush1.msra.mxu0 0.0
      %6913 = vmatprep.subr.mxu0 0.0
      %6914 = vmatpush1.msra.mxu0 0.0
      %6915 = vmatprep.subr.mxu0 0.0
      %6916 = vmatpush1.msra.mxu0 0.0
      %6917 = vmatprep.subr.mxu0 0.0
      %6918 = vmatpush1.msra.mxu0 0.0
      %6919 = vmatprep.subr.mxu0 0.0
      %6920 = vmatpush1.msra.mxu0 0.0
      %6921 = vmatprep.subr.mxu0 0.0
      %6922 = vmatpush1.msra.mxu0 0.0
      %6923 = vmatprep.subr.mxu0 0.0
      %6924 = vmatpush1.msra.mxu0 0.0
      %6925 = vmatprep.subr.mxu0 0.0
      %6926 = vmatpush1.msra.mxu0 0.0
      %6927 = vmatprep.subr.mxu0 0.0
      %6928 = vmatpush1.msra.mxu0 0.0
      %6929 = vmatprep.subr.mxu0 0.0
      %6930 = vmatpush1.msra.mxu0 0.0
      %6931 = vmatprep.subr.mxu0 0.0
      %6932 = vmatpush1.msra.mxu0 0.0
      %6933 = vmatprep.mubr.f32.mxu0 0.0
      %6934 = vmatmul.mubr.f32.gmra.mrb[0].mxu0 %v6864
      %v6935 = vpop.f32.mrb[0].mxu0
      %v6936 = vadd.f32 %v6861, %v6935
      %v6937 = vpop.f32.mrb[0].mxu0
      %6938 = vmatprep.mubr.f32.mxu0 0.0
      %6939 = vmatmul.mubr.f32.gmra.mrb[0].mxu0 %v6867
      %v6940 = vpop.f32.mrb[0].mxu0
      %v6941 = vadd.f32 %v6861, %v6940
      %v6942 = vpop.f32.mrb[0].mxu0
      %6943 = vdwg.mxu0
      %v6944 = vld [vmem:[%s26] sm:$0xff]
      %v6945 = vld [vmem:[%s26 + $0x8] sm:$0xff]
      %v6946 = vld [vmem:[%s26 + $0x10] sm:$0xff]
      %v6947 = vld [vmem:[%s26 + $0x18] sm:$0xff]
      %v6948 = vld [vmem:[%s27] sm:$0x1]
      %v6950 = vlaneseq
      %v6951 = vshrl.u32 %v6950, 7
      %v6952 = vsub.s32 0, %v6951
      %v6953 = vrot.slane %v6948, %v6952
      %v6956 = vsel %vm1099, %v6936, 0
      %v6959 = vsel %vm1099, %v6941, 0
      %6961 = vmatprep.subr.mxu0 0.0
      %6962 = vmatpush1.msra.mxu0 %v6944
      %6963 = vmatprep.subr.mxu0 0.0
      %6964 = vmatpush1.msra.mxu0 %v6945
      %6965 = vmatprep.subr.mxu0 0.0
      %6966 = vmatpush1.msra.mxu0 %v6946
      %6967 = vmatprep.subr.mxu0 0.0
      %6968 = vmatpush1.msra.mxu0 %v6947
      %6969 = vmatprep.subr.mxu0 0.0
      %6970 = vmatpush1.msra.mxu0 0.0
      %6971 = vmatprep.subr.mxu0 0.0
      %6972 = vmatpush1.msra.mxu0 0.0
      %6973 = vmatprep.subr.mxu0 0.0
      %6974 = vmatpush1.msra.mxu0 0.0
      %6975 = vmatprep.subr.mxu0 0.0
      %6976 = vmatpush1.msra.mxu0 0.0
      %6977 = vmatprep.subr.mxu0 0.0
      %6978 = vmatpush1.msra.mxu0 0.0
      %6979 = vmatprep.subr.mxu0 0.0
      %6980 = vmatpush1.msra.mxu0 0.0
      %6981 = vmatprep.subr.mxu0 0.0
      %6982 = vmatpush1.msra.mxu0 0.0
      %6983 = vmatprep.subr.mxu0 0.0
      %6984 = vmatpush1.msra.mxu0 0.0
      %6985 = vmatprep.subr.mxu0 0.0
      %6986 = vmatpush1.msra.mxu0 0.0
      %6987 = vmatprep.subr.mxu0 0.0
      %6988 = vmatpush1.msra.mxu0 0.0
      %6989 = vmatprep.subr.mxu0 0.0
      %6990 = vmatpush1.msra.mxu0 0.0
      %6991 = vmatprep.subr.mxu0 0.0
      %6992 = vmatpush1.msra.mxu0 0.0
      %6993 = vmatprep.subr.mxu0 0.0
      %6994 = vmatpush1.msra.mxu0 0.0
      %6995 = vmatprep.subr.mxu0 0.0
      %6996 = vmatpush1.msra.mxu0 0.0
      %6997 = vmatprep.subr.mxu0 0.0
      %6998 = vmatpush1.msra.mxu0 0.0
      %6999 = vmatprep.subr.mxu0 0.0
      %7000 = vmatpush1.msra.mxu0 0.0
      %7001 = vmatprep.subr.mxu0 0.0
      %7002 = vmatpush1.msra.mxu0 0.0
      %7003 = vmatprep.subr.mxu0 0.0
      %7004 = vmatpush1.msra.mxu0 0.0
      %7005 = vmatprep.subr.mxu0 0.0
      %7006 = vmatpush1.msra.mxu0 0.0
      %7007 = vmatprep.subr.mxu0 0.0
      %7008 = vmatpush1.msra.mxu0 0.0
      %7009 = vmatprep.subr.mxu0 0.0
      %7010 = vmatpush1.msra.mxu0 0.0
      %7011 = vmatprep.subr.mxu0 0.0
      %7012 = vmatpush1.msra.mxu0 0.0
      %7013 = vmatprep.subr.mxu0 0.0
      %7014 = vmatpush1.msra.mxu0 0.0
      %7015 = vmatprep.subr.mxu0 0.0
      %7016 = vmatpush1.msra.mxu0 0.0
      %7017 = vmatprep.subr.mxu0 0.0
      %7018 = vmatpush1.msra.mxu0 0.0
      %7019 = vmatprep.subr.mxu0 0.0
      %7020 = vmatpush1.msra.mxu0 0.0
      %7021 = vmatprep.subr.mxu0 0.0
      %7022 = vmatpush1.msra.mxu0 0.0
      %7023 = vmatprep.subr.mxu0 0.0
      %7024 = vmatpush1.msra.mxu0 0.0
      %7025 = vmatprep.mubr.f32.mxu0 0.0
      %7026 = vmatmul.mubr.f32.gmra.mrb[0].mxu0 %v6956
      %v7027 = vpop.f32.mrb[0].mxu0
      %v7028 = vadd.f32 %v6953, %v7027
      %v7029 = vpop.f32.mrb[0].mxu0
      %7030 = vmatprep.mubr.f32.mxu0 0.0
      %7031 = vmatmul.mubr.f32.gmra.mrb[0].mxu0 %v6959
      %v7032 = vpop.f32.mrb[0].mxu0
      %v7033 = vadd.f32 %v6953, %v7032
      %v7034 = vpop.f32.mrb[0].mxu0
      %7035 = vdwg.mxu0
      %7036 = vst.msk [vmem:[%s845] sm:$0xff] %vm6043, %v7028
      %7037 = vst.msk [vmem:[%s845 + $0x8] sm:$0xff] %vm6043, %v7033
      %p7038 = scmp.lt.s32.totalorder %s39, 1
      %s7039 = scalar_select %p7038, %s39, 1
      %s7040 = smul.addr %s7039, 2
      %s7041 = smul.addr %s7040, 8
      %s7042 = scalar_lea.vmem %s28, %s7041
      // Predicated region
      $region133: #{temporal_gat_forward.1} parent=131 // pred_check
        %p7043 = pneg %p650
      $region134: #{temporal_gat_forward.1} parent=131 // pred_check_branch
        %7045 = sbr.rel (%p7043) target = $region136
      $region135: #{temporal_gat_forward.1} parent=131 // pred_region
        _
      $region136: #{temporal_gat_forward.1} parent=131 // pred_fallthru
        _
    $region132: #{temporal_gat_forward.1} parent=5 // pred_fallthru
      _
    %p7046 = scmp.le.s32.totalorder 2, %s34
    // Predicated region
    $region137: #{temporal_gat_forward.1} parent=5 // pred_check
      %p7047 = pneg %p7046
    $region138: #{temporal_gat_forward.1} parent=5 // pred_check_branch
      %7049 = sbr.rel (%p7047) target = $region140
    $region139: #{temporal_gat_forward.1} parent=5 // pred_region
      %s7050 = ssub.s32 %s34, 2
      // Predicated region
      $region141: #{temporal_gat_forward.1} parent=139 // pred_check
        %p7051 = pneg %p656
      $region142: #{temporal_gat_forward.1} parent=139 // pred_check_branch
        %7053 = sbr.rel (%p7051) target = $region144
      $region143: #{temporal_gat_forward.1} parent=139 // pred_region
        %p7054 = scmp.lt.s32.totalorder %s40, 1
        %s7055 = scalar_select %p7054, %s40, 1
        %s7056 = smul.addr %s7055, 2
        %s7057 = smul.addr %s7056, 8
        %s7058 = scalar_lea.vmem %s28, %s7057
      $region144: #{temporal_gat_forward.1} parent=139 // pred_fallthru
        _
    $region140: #{temporal_gat_forward.1} parent=5 // pred_fallthru
      _
  $region6: #{temporal_gat_forward.1} parent=0 // loop_footer
    %s38 = sadd.s32 1, %s34
  $region7: #{temporal_gat_forward.1} parent=0 // loop_footer_branch
    %33 = sbr.rel target = $region3
  $region8: #{temporal_gat_forward.1} parent=0 // loop_exit
    _

</llo_original>
